<compile_context>
chip_gen: v7x
topology: tpu7x:2x2x1
jax: 0.10.0
libtpu: 0.0.40
codegen_flags: <defaults>
</compile_context>

<pallas_src>
import functools

import numpy as np

import jax
import jax.numpy as jnp
from jax.experimental import pallas as pl
from jax.experimental.pallas import tpu as pltpu


_K = 5
_LANE = 128
_BT = 8  # batch tile: multiple of 8 so every row slice is sublane-aligned
_CONV_CFG = [  # (stride, padding, output_padding) of the 5 ConvTranspose2d layers
    (2, 1, 0),
    (1, 1, 0),
    (2, 1, 0),
    (1, 0, 0),
    (2, 1, 1),
]


def _ru(x, m):
    return (x + m - 1) // m * m


# ----------------------------------------------------------------------------
# Static geometry of the decoder (spatial sizes are fixed by the architecture)
# ----------------------------------------------------------------------------
def _layer_plan(output_dim, hidden_dims):
    chans = [hidden_dims[0], hidden_dims[0], hidden_dims[1], hidden_dims[2],
             hidden_dims[3], output_dim]
    plan, w_in = [], 1
    for l, (s, p, op) in enumerate(_CONV_CFG):
        lo = _K - 1 - p                                   # low-side pad
        w_out = (w_in - 1) * s - 2 * p + _K + op          # output H == W
        hv = (w_in - 1) * s + 1 + 2 * lo + op             # padded+dilated height
        ci, co = chans[l], chans[l + 1]
        plan.append(dict(ci=ci, co=co, s=s, p=p, lo=lo, w_in=w_in, w_out=w_out,
                         hv=hv, k=w_in * ci, n=w_out * co,
                         kp=_ru(w_in * ci, _LANE), np=_ru(w_out * co, _LANE)))
        w_in = w_out
    return plan


# ----------------------------------------------------------------------------
# Parameter preparation (done once, outside the jitted forward).
#
# For each ConvTranspose2d we build K banded ("Toeplitz") matrices T[kh] of
# shape (Kp, Np) (lane-padded to 128) such that, with the input stored
# row-stacked and vertically dilated/padded:
#     Y[oh, ow*CO+co] = sum_kh  B[oh+kh, :] @ T[kh]
# exactly reproduces PyTorch ConvTranspose2d semantics.  Padding columns/rows
# of T are zero, so lane-padding never affects correctness.
# ----------------------------------------------------------------------------
def _build_toeplitz(w, stride, padding, w_in, w_out, k_dim, n_dim):
    w = np.asarray(w, np.float32)                 # (CI, CO, K, K) PyTorch layout
    ci, co, k, _ = w.shape
    lo = k - 1 - padding
    wf = w[:, :, ::-1, ::-1]                      # flipped kernel
    t = np.zeros((k, k_dim, n_dim), np.float32)
    for kh in range(k):
        for j in range(w_in):
            for ow in range(w_out):
                kw = lo + j * stride - ow
                if 0 <= kw < k:
                    t[kh, j * ci:(j + 1) * ci, ow * co:(ow + 1) * co] = \
                        wf[:, :, kh, kw]
    return t


def prepare_decoder_params(params, output_dim, hidden_dims):
    plan = _layer_plan(output_dim, hidden_dims)
    lin_w = np.asarray(params["lin_w"], np.float32)       # (H0, latent)
    lin_b = np.asarray(params["lin_b"], np.float32)       # (H0,)

    # ---- Fuse nn.Linear with conv0 (input is 1x1, only one nonzero row) ----
    c0 = plan[0]
    w0 = np.asarray(params["conv0_w"], np.float32)
    b0 = np.asarray(params["conv0_b"], np.float32)
    t0 = _build_toeplitz(w0, c0["s"], c0["p"], c0["w_in"], c0["w_out"],
                         c0["k"], c0["np"])               # (5, C0, np0)
    b0_row = np.zeros((c0["np"],), np.float32)
    b0_row[:c0["n"]] = np.tile(b0, c0["w_out"])
    wf_blocks, bf_blocks = [], []
    for oh in range(c0["w_out"]):
        kh = c0["lo"] - oh                                # only contributing tap
        assert 0 <= kh < _K
        wf_blocks.append(lin_w.T @ t0[kh])                # (latent, np0)
        bf_blocks.append(lin_b @ t0[kh] + b0_row)         # (np0,)
    prep = {
        "wf": jnp.asarray(np.concatenate(wf_blocks, axis=1)),   # (latent, 3*np0)
        "bf": jnp.asarray(np.concatenate(bf_blocks)[None, :]),  # (1, 3*np0)
    }

    # ---- Remaining transposed convs as lane-padded banded matmuls ----
    for l in range(1, len(plan)):
        c = plan[l]
        w = np.asarray(params[f"conv{l}_w"], np.float32)
        b = np.asarray(params[f"conv{l}_b"], np.float32)
        prep[f"t{l}"] = jnp.asarray(
            _build_toeplitz(w, c["s"], c["p"], c["w_in"], c["w_out"],
                            c["kp"], c["np"]))
        br = np.zeros((1, c["np"]), np.float32)
        br[0, :c["n"]] = np.tile(b, c["w_out"])
        prep[f"b{l}"] = jnp.asarray(br)
    return prep


# ----------------------------------------------------------------------------
# Fused Pallas kernel: whole decoder for Bt batch elements per grid step.
# Activation row layout: row index = image_row * Bt + batch_index.
# ----------------------------------------------------------------------------
def _decoder_kernel(*refs, plan, bt):
    n_conv = len(plan) - 1                        # layers 1..4 use Toeplitz refs
    z_ref, wf_ref, bf_ref = refs[0], refs[1], refs[2]
    tw = refs[3:3 + 2 * n_conv]                   # (t1, b1, t2, b2, ...)
    out_ref = refs[3 + 2 * n_conv]
    bufs = refs[4 + 2 * n_conv:]                  # dilated row buffers, layers 1..4

    # ---- Fused Linear + conv0 (+ ReLU), scattered into layer-1's buffer ----
    c1 = plan[1]
    buf1 = bufs[0]
    buf1[...] = jnp.zeros(buf1.shape, buf1.dtype)
    h = jnp.dot(z_ref[...], wf_ref[...], preferred_element_type=jnp.float32)
    h = jnp.maximum(h + bf_ref[...], 0.0)         # (bt, w_out0 * np0)
    np0 = plan[0]["np"]
    for i in range(c1["w_in"]):                   # w_in(layer1) == w_out(layer0)
        r = (c1["lo"] + c1["s"] * i) * bt
        buf1[r:r + bt, :] = h[:, i * np0:(i + 1) * np0]

    y = None
    for l in range(1, len(plan)):
        c = plan[l]
        buf = bufs[l - 1]
        t_ref, b_ref = tw[2 * (l - 1)], tw[2 * (l - 1) + 1]

        if l > 1:
            # Scatter previous activation into this layer's vertically
            # padded / dilated row buffer (zeros elsewhere).  Every store is a
            # full sublane-aligned (bt, F) slab.
            buf[...] = jnp.zeros(buf.shape, buf.dtype)
            if c["s"] == 1:
                buf[c["lo"] * bt:(c["lo"] + c["w_in"]) * bt, :] = y
            else:
                for i in range(c["w_in"]):
                    r = (c["lo"] + c["s"] * i) * bt
                    buf[r:r + bt, :] = y[i * bt:(i + 1) * bt, :]

        # Transposed conv = sum over the 5 vertical taps of a band matmul.
        m = c["w_out"] * bt
        acc = None
        for kh in range(_K):
            part = jnp.dot(buf[kh * bt:kh * bt + m, :], t_ref[kh],
                           preferred_element_type=jnp.float32)
            acc = part if acc is None else acc + part
        acc = acc + b_ref[...]                    # (w_out*bt, np)
        if l < len(plan) - 1:                     # ReLU after all but the last
            acc = jnp.maximum(acc, 0.0)
        y = acc

    out_ref[0] = y                                # (32*bt, np_last), lane-dense


def _const_map(rank):
    zeros = (0,) * rank
    return lambda g: zeros


def decoder_forward(prepared, z, output_dim, hidden_dims, bt=_BT):
    B, latent = z.shape
    plan = _layer_plan(output_dim, hidden_dims)
    h_out = plan[-1]["w_out"]                     # 32
    w_out = plan[-1]["w_out"]                     # 32
    co = plan[-1]["co"]                           # output_dim
    np_last = plan[-1]["np"]                      # lane-padded 32*output_dim

    grid = max(1, pl.cdiv(B, bt))
    b_pad = grid * bt
    if b_pad != B:
        z = jnp.pad(z, ((0, b_pad - B), (0, 0)))

    weight_args = [prepared["wf"], prepared["bf"]]
    for l in range(1, len(plan)):
        weight_args += [prepared[f"t{l}"], prepared[f"b{l}"]]

    in_specs = [pl.BlockSpec((bt, latent), lambda g: (g, 0))]
    in_specs += [pl.BlockSpec(a.shape, _const_map(a.ndim)) for a in weight_args]

    scratch = [pltpu.VMEM((plan[l]["hv"] * bt, plan[l]["kp"]), jnp.float32)
               for l in range(1, len(plan))]

    out = pl.pallas_call(
        functools.partial(_decoder_kernel, plan=plan, bt=bt),
        out_shape=jax.ShapeDtypeStruct((grid, h_out * bt, np_last), jnp.float32),
        grid=(grid,),
        in_specs=in_specs,
        out_specs=pl.BlockSpec((1, h_out * bt, np_last), lambda g: (g, 0, 0)),
        scratch_shapes=scratch,
        compiler_params=pltpu.CompilerParams(
            dimension_semantics=("parallel",),
            vmem_limit_bytes=32 * 1024 * 1024),
    )(z, *weight_args)

    # (grid, oh*bt + b, ow*co + c)  ->  NCHW, once at the very end.
    out = out.reshape(grid, h_out, bt, np_last)[:, :, :, :w_out * co]
    out = out.reshape(grid, h_out, bt, w_out, co)
    out = out.transpose(0, 2, 4, 1, 3).reshape(grid * bt, co, h_out, w_out)
    return out[:B]


# ----------------------------------------------------------------------------
# Deterministic synthetic parameters (PyTorch layouts)
# ----------------------------------------------------------------------------
def init_decoder_params(key, output_dim, latent_dim, hidden_dims):
    params = {}
    keys = jax.random.split(key, 16)
    ki = iter(range(16))

    def rnd(k, shape, scale):
        return (scale * jax.random.normal(keys[k], shape)).astype(jnp.float32)

    params["lin_w"] = rnd(next(ki), (hidden_dims[0], latent_dim), 0.1)
    params["lin_b"] = rnd(next(ki), (hidden_dims[0],), 0.01)

    convs = [
        (hidden_dims[0], hidden_dims[0]),
        (hidden_dims[0], hidden_dims[1]),
        (hidden_dims[1], hidden_dims[2]),
        (hidden_dims[2], hidden_dims[3]),
        (hidden_dims[3], output_dim),
    ]
    for i, (ci, c_o) in enumerate(convs):
        params[f"conv{i}_w"] = rnd(next(ki), (ci, c_o, _K, _K), 0.05)
        params[f"conv{i}_b"] = rnd(next(ki), (c_o,), 0.01)
    return params


# ----------------------------------------------------------------------------
# Pure-JAX reference (lax conv) for correctness check
# ----------------------------------------------------------------------------
def _ref_conv_transpose(x, w, b, stride, padding, output_padding=0, relu=False):
    CI, CO, K, _ = w.shape
    w_conv = jnp.flip(w, axis=(2, 3)).transpose(1, 0, 2, 3)      # OIHW
    pad_lo = K - 1 - padding
    pad_hi = K - 1 - padding + output_padding
    y = jax.lax.conv_general_dilated(
        x, w_conv, window_strides=(1, 1),
        padding=((pad_lo, pad_hi), (pad_lo, pad_hi)),
        lhs_dilation=(stride, stride),
        dimension_numbers=("NCHW", "OIHW", "NCHW"))
    y = y + b.reshape(1, CO, 1, 1)
    return jnp.maximum(y, 0.0) if relu else y


def _ref_forward(params, z, hidden_dims):
    B = z.shape[0]
    h = z @ params["lin_w"].T + params["lin_b"]
    x = h.reshape(B, hidden_dims[0], 1, 1)
    x = _ref_conv_transpose(x, params["conv0_w"], params["conv0_b"], 2, 1, relu=True)
    x = _ref_conv_transpose(x, params["conv1_w"], params["conv1_b"], 1, 1, relu=True)
    x = _ref_conv_transpose(x, params["conv2_w"], params["conv2_b"], 2, 1, relu=True)
    x = _ref_conv_transpose(x, params["conv3_w"], params["conv3_b"], 1, 0, relu=True)
    x = _ref_conv_transpose(x, params["conv4_w"], params["conv4_b"], 2, 1, 1, relu=False)
    return x


if __name__ == "__main__":
    output_dim = 3
    latent_dim = 32
    hidden_dims = [64, 32, 16, 8]

    key = jax.random.PRNGKey(0)
    k_param, k_z = jax.random.split(key)
    params = init_decoder_params(k_param, output_dim, latent_dim, hidden_dims)
    prepared = prepare_decoder_params(params, output_dim, hidden_dims)

    fwd = jax.jit(lambda p, z_: decoder_forward(p, z_, output_dim, hidden_dims))

    # Small batch (single grid step, padded batch tile).
    z2 = jax.random.normal(k_z, (2, latent_dim), dtype=jnp.float32)
    out2 = jax.block_until_ready(fwd(prepared, z2))
    assert out2.shape == (2, output_dim, 32, 32), out2.shape
    ref2 = jax.block_until_ready(_ref_forward(params, z2, hidden_dims))
    assert jnp.allclose(out2, ref2, atol=1e-3, rtol=1e-3), \
        float(jnp.max(jnp.abs(out2 - ref2)))

    # Larger / non-multiple batch: exercises multi-step grid + partial tile.
    z11 = jax.random.normal(jax.random.PRNGKey(7), (11, latent_dim),
                            dtype=jnp.float32)
    out11 = jax.block_until_ready(fwd(prepared, z11))
    assert out11.shape == (11, output_dim, 32, 32), out11.shape
    ref11 = jax.block_until_ready(_ref_forward(params, z11, hidden_dims))
    assert jnp.allclose(out11, ref11, atol=1e-3, rtol=1e-3), \
        float(jnp.max(jnp.abs(out11 - ref11)))

    print("KERNEL_OK")
</pallas_src>

<mosaic_0001>
module attributes {stable_mosaic.version = 11 : i64} {
  func.func @_decoder_kernel(%arg0: i32, %arg1: memref<8x32xf32, #tpu.memory_space<vmem>>, %arg2: memref<32x768xf32, #tpu.memory_space<vmem>>, %arg3: memref<1x768xf32, #tpu.memory_space<vmem>>, %arg4: memref<5x256x256xf32, #tpu.memory_space<vmem>>, %arg5: memref<1x256xf32, #tpu.memory_space<vmem>>, %arg6: memref<5x256x256xf32, #tpu.memory_space<vmem>>, %arg7: memref<1x256xf32, #tpu.memory_space<vmem>>, %arg8: memref<5x256x128xf32, #tpu.memory_space<vmem>>, %arg9: memref<1x128xf32, #tpu.memory_space<vmem>>, %arg10: memref<5x128x128xf32, #tpu.memory_space<vmem>>, %arg11: memref<1x128xf32, #tpu.memory_space<vmem>>, %arg12: memref<1x256x128xf32, #tpu.memory_space<vmem>>, %arg13: memref<72x256xf32, #tpu.memory_space<vmem>>, %arg14: memref<120x256xf32, #tpu.memory_space<vmem>>, %arg15: memref<152x256xf32, #tpu.memory_space<vmem>>, %arg16: memref<288x128xf32, #tpu.memory_space<vmem>>) attributes {dimension_semantics = [#tpu.dimension_semantics<parallel>], iteration_bounds = array<i64: 1>, scalar_prefetch = 0 : i64, scratch_operands = 4 : i64, tpu.core_type = #tpu.core_type<tc>, window_params = [{transform_indices = @transform_0, window_bounds = array<i64: 8, 32>}, {pipeline_mode = #tpu.pipeline_mode<synchronous>, transform_indices = @transform_1, window_bounds = array<i64: 32, 768>}, {pipeline_mode = #tpu.pipeline_mode<synchronous>, transform_indices = @transform_2, window_bounds = array<i64: 1, 768>}, {pipeline_mode = #tpu.pipeline_mode<synchronous>, transform_indices = @transform_3, window_bounds = array<i64: 5, 256, 256>}, {pipeline_mode = #tpu.pipeline_mode<synchronous>, transform_indices = @transform_4, window_bounds = array<i64: 1, 256>}, {pipeline_mode = #tpu.pipeline_mode<synchronous>, transform_indices = @transform_5, window_bounds = array<i64: 5, 256, 256>}, {pipeline_mode = #tpu.pipeline_mode<synchronous>, transform_indices = @transform_6, window_bounds = array<i64: 1, 256>}, {pipeline_mode = #tpu.pipeline_mode<synchronous>, transform_indices = @transform_7, window_bounds = array<i64: 5, 256, 128>}, {pipeline_mode = #tpu.pipeline_mode<synchronous>, transform_indices = @transform_8, window_bounds = array<i64: 1, 128>}, {pipeline_mode = #tpu.pipeline_mode<synchronous>, transform_indices = @transform_9, window_bounds = array<i64: 5, 128, 128>}, {pipeline_mode = #tpu.pipeline_mode<synchronous>, transform_indices = @transform_10, window_bounds = array<i64: 1, 128>}, {transform_indices = @transform_11, window_bounds = array<i64: 1, 256, 128>}]} {
    %cst = arith.constant 0.000000e+00 : f32
    %0 = vector.broadcast %cst : f32 to vector<72x256xf32>
    %c0 = arith.constant 0 : index
    %c0_0 = arith.constant 0 : index
    %1 = vector.load %arg13[%c0, %c0_0] : memref<72x256xf32, #tpu.memory_space<vmem>>, vector<72x256xf32>
    tpu.vector_store %arg13[%c0, %c0_0], %0 {strides = array<i32>} : memref<72x256xf32, #tpu.memory_space<vmem>>, vector<72x256xf32>,
    %c0_1 = arith.constant 0 : index
    %c0_2 = arith.constant 0 : index
    %2 = vector.load %arg1[%c0_1, %c0_2] : memref<8x32xf32, #tpu.memory_space<vmem>>, vector<8x32xf32>
    %c0_3 = arith.constant 0 : index
    %c0_4 = arith.constant 0 : index
    %3 = vector.load %arg2[%c0_3, %c0_4] : memref<32x768xf32, #tpu.memory_space<vmem>>, vector<32x768xf32>
    %cst_5 = arith.constant dense<0.000000e+00> : vector<8x768xf32>
    %4 = tpu.matmul %2, %3, %cst_5 {dimension_numbers = #tpu.dot_dimension_numbers<[1], [0], [0], [1], [0, 0, 1, 1], [], []>} : vector<8x32xf32>, vector<32x768xf32>, vector<8x768xf32> -> vector<8x768xf32>
    %c0_6 = arith.constant 0 : index
    %c0_7 = arith.constant 0 : index
    %5 = vector.load %arg3[%c0_6, %c0_7] : memref<1x768xf32, #tpu.memory_space<vmem>>, vector<1x768xf32>
    %6 = vector.broadcast %5 : vector<1x768xf32> to vector<8x768xf32>
    %7 = arith.addf %4, %6 : vector<8x768xf32>
    %cst_8 = arith.constant 0.000000e+00 : f32
    %8 = vector.broadcast %cst_8 : f32 to vector<8x768xf32>
    %9 = arith.maximumf %7, %8 : vector<8x768xf32>
    %10 = vector.extract_strided_slice %9 {offsets = [0, 0], sizes = [8, 256], strides = [1, 1]} : vector<8x768xf32> to vector<8x256xf32>
    %c24 = arith.constant 24 : index
    %c0_9 = arith.constant 0 : index
    %11 = vector.load %arg13[%c24, %c0_9] : memref<72x256xf32, #tpu.memory_space<vmem>>, vector<8x256xf32>
    tpu.vector_store %arg13[%c24, %c0_9], %10 {strides = array<i32>} : memref<72x256xf32, #tpu.memory_space<vmem>>, vector<8x256xf32>,
    %12 = vector.extract_strided_slice %9 {offsets = [0, 256], sizes = [8, 256], strides = [1, 1]} : vector<8x768xf32> to vector<8x256xf32>
    %c32 = arith.constant 32 : index
    %c0_10 = arith.constant 0 : index
    %13 = vector.load %arg13[%c32, %c0_10] : memref<72x256xf32, #tpu.memory_space<vmem>>, vector<8x256xf32>
    tpu.vector_store %arg13[%c32, %c0_10], %12 {strides = array<i32>} : memref<72x256xf32, #tpu.memory_space<vmem>>, vector<8x256xf32>,
    %14 = vector.extract_strided_slice %9 {offsets = [0, 512], sizes = [8, 256], strides = [1, 1]} : vector<8x768xf32> to vector<8x256xf32>
    %c40 = arith.constant 40 : index
    %c0_11 = arith.constant 0 : index
    %15 = vector.load %arg13[%c40, %c0_11] : memref<72x256xf32, #tpu.memory_space<vmem>>, vector<8x256xf32>
    tpu.vector_store %arg13[%c40, %c0_11], %14 {strides = array<i32>} : memref<72x256xf32, #tpu.memory_space<vmem>>, vector<8x256xf32>,
    %c0_12 = arith.constant 0 : index
    %c0_13 = arith.constant 0 : index
    %16 = vector.load %arg13[%c0_12, %c0_13] : memref<72x256xf32, #tpu.memory_space<vmem>>, vector<40x256xf32>
    %c0_14 = arith.constant 0 : index
    %c0_15 = arith.constant 0 : index
    %c0_16 = arith.constant 0 : index
    %17 = vector.load %arg4[%c0_14, %c0_15, %c0_16] : memref<5x256x256xf32, #tpu.memory_space<vmem>>, vector<1x256x256xf32>
    %18 = vector.shape_cast %17 : vector<1x256x256xf32> to vector<256x256xf32>
    %cst_17 = arith.constant dense<0.000000e+00> : vector<40x256xf32>
    %19 = tpu.matmul %16, %18, %cst_17 {dimension_numbers = #tpu.dot_dimension_numbers<[1], [0], [0], [1], [0, 0, 1, 1], [], []>} : vector<40x256xf32>, vector<256x256xf32>, vector<40x256xf32> -> vector<40x256xf32>
    %c8 = arith.constant 8 : index
    %c0_18 = arith.constant 0 : index
    %20 = vector.load %arg13[%c8, %c0_18] : memref<72x256xf32, #tpu.memory_space<vmem>>, vector<40x256xf32>
    %c1 = arith.constant 1 : index
    %c0_19 = arith.constant 0 : index
    %c0_20 = arith.constant 0 : index
    %21 = vector.load %arg4[%c1, %c0_19, %c0_20] : memref<5x256x256xf32, #tpu.memory_space<vmem>>, vector<1x256x256xf32>
    %22 = vector.shape_cast %21 : vector<1x256x256xf32> to vector<256x256xf32>
    %cst_21 = arith.constant dense<0.000000e+00> : vector<40x256xf32>
    %23 = tpu.matmul %20, %22, %cst_21 {dimension_numbers = #tpu.dot_dimension_numbers<[1], [0], [0], [1], [0, 0, 1, 1], [], []>} : vector<40x256xf32>, vector<256x256xf32>, vector<40x256xf32> -> vector<40x256xf32>
    %24 = arith.addf %19, %23 : vector<40x256xf32>
    %c16 = arith.constant 16 : index
    %c0_22 = arith.constant 0 : index
    %25 = vector.load %arg13[%c16, %c0_22] : memref<72x256xf32, #tpu.memory_space<vmem>>, vector<40x256xf32>
    %c2 = arith.constant 2 : index
    %c0_23 = arith.constant 0 : index
    %c0_24 = arith.constant 0 : index
    %26 = vector.load %arg4[%c2, %c0_23, %c0_24] : memref<5x256x256xf32, #tpu.memory_space<vmem>>, vector<1x256x256xf32>
    %27 = vector.shape_cast %26 : vector<1x256x256xf32> to vector<256x256xf32>
    %cst_25 = arith.constant dense<0.000000e+00> : vector<40x256xf32>
    %28 = tpu.matmul %25, %27, %cst_25 {dimension_numbers = #tpu.dot_dimension_numbers<[1], [0], [0], [1], [0, 0, 1, 1], [], []>} : vector<40x256xf32>, vector<256x256xf32>, vector<40x256xf32> -> vector<40x256xf32>
    %29 = arith.addf %24, %28 : vector<40x256xf32>
    %c24_26 = arith.constant 24 : index
    %c0_27 = arith.constant 0 : index
    %30 = vector.load %arg13[%c24_26, %c0_27] : memref<72x256xf32, #tpu.memory_space<vmem>>, vector<40x256xf32>
    %c3 = arith.constant 3 : index
    %c0_28 = arith.constant 0 : index
    %c0_29 = arith.constant 0 : index
    %31 = vector.load %arg4[%c3, %c0_28, %c0_29] : memref<5x256x256xf32, #tpu.memory_space<vmem>>, vector<1x256x256xf32>
    %32 = vector.shape_cast %31 : vector<1x256x256xf32> to vector<256x256xf32>
    %cst_30 = arith.constant dense<0.000000e+00> : vector<40x256xf32>
    %33 = tpu.matmul %30, %32, %cst_30 {dimension_numbers = #tpu.dot_dimension_numbers<[1], [0], [0], [1], [0, 0, 1, 1], [], []>} : vector<40x256xf32>, vector<256x256xf32>, vector<40x256xf32> -> vector<40x256xf32>
    %34 = arith.addf %29, %33 : vector<40x256xf32>
    %c32_31 = arith.constant 32 : index
    %c0_32 = arith.constant 0 : index
    %35 = vector.load %arg13[%c32_31, %c0_32] : memref<72x256xf32, #tpu.memory_space<vmem>>, vector<40x256xf32>
    %c4 = arith.constant 4 : index
    %c0_33 = arith.constant 0 : index
    %c0_34 = arith.constant 0 : index
    %36 = vector.load %arg4[%c4, %c0_33, %c0_34] : memref<5x256x256xf32, #tpu.memory_space<vmem>>, vector<1x256x256xf32>
    %37 = vector.shape_cast %36 : vector<1x256x256xf32> to vector<256x256xf32>
    %cst_35 = arith.constant dense<0.000000e+00> : vector<40x256xf32>
    %38 = tpu.matmul %35, %37, %cst_35 {dimension_numbers = #tpu.dot_dimension_numbers<[1], [0], [0], [1], [0, 0, 1, 1], [], []>} : vector<40x256xf32>, vector<256x256xf32>, vector<40x256xf32> -> vector<40x256xf32>
    %39 = arith.addf %34, %38 : vector<40x256xf32>
    %c0_36 = arith.constant 0 : index
    %c0_37 = arith.constant 0 : index
    %40 = vector.load %arg5[%c0_36, %c0_37] : memref<1x256xf32, #tpu.memory_space<vmem>>, vector<1x256xf32>
    %41 = vector.broadcast %40 : vector<1x256xf32> to vector<40x256xf32>
    %42 = arith.addf %39, %41 : vector<40x256xf32>
    %cst_38 = arith.constant 0.000000e+00 : f32
    %43 = vector.broadcast %cst_38 : f32 to vector<40x256xf32>
    %44 = arith.maximumf %42, %43 : vector<40x256xf32>
    %cst_39 = arith.constant 0.000000e+00 : f32
    %45 = vector.broadcast %cst_39 : f32 to vector<120x256xf32>
    %c0_40 = arith.constant 0 : index
    %c0_41 = arith.constant 0 : index
    %46 = vector.load %arg14[%c0_40, %c0_41] : memref<120x256xf32, #tpu.memory_space<vmem>>, vector<120x256xf32>
    tpu.vector_store %arg14[%c0_40, %c0_41], %45 {strides = array<i32>} : memref<120x256xf32, #tpu.memory_space<vmem>>, vector<120x256xf32>,
    %47 = vector.extract_strided_slice %44 {offsets = [0, 0], sizes = [8, 256], strides = [1, 1]} : vector<40x256xf32> to vector<8x256xf32>
    %c24_42 = arith.constant 24 : index
    %c0_43 = arith.constant 0 : index
    %48 = vector.load %arg14[%c24_42, %c0_43] : memref<120x256xf32, #tpu.memory_space<vmem>>, vector<8x256xf32>
    tpu.vector_store %arg14[%c24_42, %c0_43], %47 {strides = array<i32>} : memref<120x256xf32, #tpu.memory_space<vmem>>, vector<8x256xf32>,
    %49 = vector.extract_strided_slice %44 {offsets = [8, 0], sizes = [8, 256], strides = [1, 1]} : vector<40x256xf32> to vector<8x256xf32>
    %c40_44 = arith.constant 40 : index
    %c0_45 = arith.constant 0 : index
    %50 = vector.load %arg14[%c40_44, %c0_45] : memref<120x256xf32, #tpu.memory_space<vmem>>, vector<8x256xf32>
    tpu.vector_store %arg14[%c40_44, %c0_45], %49 {strides = array<i32>} : memref<120x256xf32, #tpu.memory_space<vmem>>, vector<8x256xf32>,
    %51 = vector.extract_strided_slice %44 {offsets = [16, 0], sizes = [8, 256], strides = [1, 1]} : vector<40x256xf32> to vector<8x256xf32>
    %c56 = arith.constant 56 : index
    %c0_46 = arith.constant 0 : index
    %52 = vector.load %arg14[%c56, %c0_46] : memref<120x256xf32, #tpu.memory_space<vmem>>, vector<8x256xf32>
    tpu.vector_store %arg14[%c56, %c0_46], %51 {strides = array<i32>} : memref<120x256xf32, #tpu.memory_space<vmem>>, vector<8x256xf32>,
    %53 = vector.extract_strided_slice %44 {offsets = [24, 0], sizes = [8, 256], strides = [1, 1]} : vector<40x256xf32> to vector<8x256xf32>
    %c72 = arith.constant 72 : index
    %c0_47 = arith.constant 0 : index
    %54 = vector.load %arg14[%c72, %c0_47] : memref<120x256xf32, #tpu.memory_space<vmem>>, vector<8x256xf32>
    tpu.vector_store %arg14[%c72, %c0_47], %53 {strides = array<i32>} : memref<120x256xf32, #tpu.memory_space<vmem>>, vector<8x256xf32>,
    %55 = vector.extract_strided_slice %44 {offsets = [32, 0], sizes = [8, 256], strides = [1, 1]} : vector<40x256xf32> to vector<8x256xf32>
    %c88 = arith.constant 88 : index
    %c0_48 = arith.constant 0 : index
    %56 = vector.load %arg14[%c88, %c0_48] : memref<120x256xf32, #tpu.memory_space<vmem>>, vector<8x256xf32>
    tpu.vector_store %arg14[%c88, %c0_48], %55 {strides = array<i32>} : memref<120x256xf32, #tpu.memory_space<vmem>>, vector<8x256xf32>,
    %c0_49 = arith.constant 0 : index
    %c0_50 = arith.constant 0 : index
    %57 = vector.load %arg14[%c0_49, %c0_50] : memref<120x256xf32, #tpu.memory_space<vmem>>, vector<88x256xf32>
    %c0_51 = arith.constant 0 : index
    %c0_52 = arith.constant 0 : index
    %c0_53 = arith.constant 0 : index
    %58 = vector.load %arg6[%c0_51, %c0_52, %c0_53] : memref<5x256x256xf32, #tpu.memory_space<vmem>>, vector<1x256x256xf32>
    %59 = vector.shape_cast %58 : vector<1x256x256xf32> to vector<256x256xf32>
    %cst_54 = arith.constant dense<0.000000e+00> : vector<88x256xf32>
    %60 = tpu.matmul %57, %59, %cst_54 {dimension_numbers = #tpu.dot_dimension_numbers<[1], [0], [0], [1], [0, 0, 1, 1], [], []>} : vector<88x256xf32>, vector<256x256xf32>, vector<88x256xf32> -> vector<88x256xf32>
    %c8_55 = arith.constant 8 : index
    %c0_56 = arith.constant 0 : index
    %61 = vector.load %arg14[%c8_55, %c0_56] : memref<120x256xf32, #tpu.memory_space<vmem>>, vector<88x256xf32>
    %c1_57 = arith.constant 1 : index
    %c0_58 = arith.constant 0 : index
    %c0_59 = arith.constant 0 : index
    %62 = vector.load %arg6[%c1_57, %c0_58, %c0_59] : memref<5x256x256xf32, #tpu.memory_space<vmem>>, vector<1x256x256xf32>
    %63 = vector.shape_cast %62 : vector<1x256x256xf32> to vector<256x256xf32>
    %cst_60 = arith.constant dense<0.000000e+00> : vector<88x256xf32>
    %64 = tpu.matmul %61, %63, %cst_60 {dimension_numbers = #tpu.dot_dimension_numbers<[1], [0], [0], [1], [0, 0, 1, 1], [], []>} : vector<88x256xf32>, vector<256x256xf32>, vector<88x256xf32> -> vector<88x256xf32>
    %65 = arith.addf %60, %64 : vector<88x256xf32>
    %c16_61 = arith.constant 16 : index
    %c0_62 = arith.constant 0 : index
    %66 = vector.load %arg14[%c16_61, %c0_62] : memref<120x256xf32, #tpu.memory_space<vmem>>, vector<88x256xf32>
    %c2_63 = arith.constant 2 : index
    %c0_64 = arith.constant 0 : index
    %c0_65 = arith.constant 0 : index
    %67 = vector.load %arg6[%c2_63, %c0_64, %c0_65] : memref<5x256x256xf32, #tpu.memory_space<vmem>>, vector<1x256x256xf32>
    %68 = vector.shape_cast %67 : vector<1x256x256xf32> to vector<256x256xf32>
    %cst_66 = arith.constant dense<0.000000e+00> : vector<88x256xf32>
    %69 = tpu.matmul %66, %68, %cst_66 {dimension_numbers = #tpu.dot_dimension_numbers<[1], [0], [0], [1], [0, 0, 1, 1], [], []>} : vector<88x256xf32>, vector<256x256xf32>, vector<88x256xf32> -> vector<88x256xf32>
    %70 = arith.addf %65, %69 : vector<88x256xf32>
    %c24_67 = arith.constant 24 : index
    %c0_68 = arith.constant 0 : index
    %71 = vector.load %arg14[%c24_67, %c0_68] : memref<120x256xf32, #tpu.memory_space<vmem>>, vector<88x256xf32>
    %c3_69 = arith.constant 3 : index
    %c0_70 = arith.constant 0 : index
    %c0_71 = arith.constant 0 : index
    %72 = vector.load %arg6[%c3_69, %c0_70, %c0_71] : memref<5x256x256xf32, #tpu.memory_space<vmem>>, vector<1x256x256xf32>
    %73 = vector.shape_cast %72 : vector<1x256x256xf32> to vector<256x256xf32>
    %cst_72 = arith.constant dense<0.000000e+00> : vector<88x256xf32>
    %74 = tpu.matmul %71, %73, %cst_72 {dimension_numbers = #tpu.dot_dimension_numbers<[1], [0], [0], [1], [0, 0, 1, 1], [], []>} : vector<88x256xf32>, vector<256x256xf32>, vector<88x256xf32> -> vector<88x256xf32>
    %75 = arith.addf %70, %74 : vector<88x256xf32>
    %c32_73 = arith.constant 32 : index
    %c0_74 = arith.constant 0 : index
    %76 = vector.load %arg14[%c32_73, %c0_74] : memref<120x256xf32, #tpu.memory_space<vmem>>, vector<88x256xf32>
    %c4_75 = arith.constant 4 : index
    %c0_76 = arith.constant 0 : index
    %c0_77 = arith.constant 0 : index
    %77 = vector.load %arg6[%c4_75, %c0_76, %c0_77] : memref<5x256x256xf32, #tpu.memory_space<vmem>>, vector<1x256x256xf32>
    %78 = vector.shape_cast %77 : vector<1x256x256xf32> to vector<256x256xf32>
    %cst_78 = arith.constant dense<0.000000e+00> : vector<88x256xf32>
    %79 = tpu.matmul %76, %78, %cst_78 {dimension_numbers = #tpu.dot_dimension_numbers<[1], [0], [0], [1], [0, 0, 1, 1], [], []>} : vector<88x256xf32>, vector<256x256xf32>, vector<88x256xf32> -> vector<88x256xf32>
    %80 = arith.addf %75, %79 : vector<88x256xf32>
    %c0_79 = arith.constant 0 : index
    %c0_80 = arith.constant 0 : index
    %81 = vector.load %arg7[%c0_79, %c0_80] : memref<1x256xf32, #tpu.memory_space<vmem>>, vector<1x256xf32>
    %82 = vector.broadcast %81 : vector<1x256xf32> to vector<88x256xf32>
    %83 = arith.addf %80, %82 : vector<88x256xf32>
    %cst_81 = arith.constant 0.000000e+00 : f32
    %84 = vector.broadcast %cst_81 : f32 to vector<88x256xf32>
    %85 = arith.maximumf %83, %84 : vector<88x256xf32>
    %cst_82 = arith.constant 0.000000e+00 : f32
    %86 = vector.broadcast %cst_82 : f32 to vector<152x256xf32>
    %c0_83 = arith.constant 0 : index
    %c0_84 = arith.constant 0 : index
    %87 = vector.load %arg15[%c0_83, %c0_84] : memref<152x256xf32, #tpu.memory_space<vmem>>, vector<152x256xf32>
    tpu.vector_store %arg15[%c0_83, %c0_84], %86 {strides = array<i32>} : memref<152x256xf32, #tpu.memory_space<vmem>>, vector<152x256xf32>,
    %c32_85 = arith.constant 32 : index
    %c0_86 = arith.constant 0 : index
    %88 = vector.load %arg15[%c32_85, %c0_86] : memref<152x256xf32, #tpu.memory_space<vmem>>, vector<88x256xf32>
    tpu.vector_store %arg15[%c32_85, %c0_86], %85 {strides = array<i32>} : memref<152x256xf32, #tpu.memory_space<vmem>>, vector<88x256xf32>,
    %c0_87 = arith.constant 0 : index
    %c0_88 = arith.constant 0 : index
    %89 = vector.load %arg15[%c0_87, %c0_88] : memref<152x256xf32, #tpu.memory_space<vmem>>, vector<120x256xf32>
    %c0_89 = arith.constant 0 : index
    %c0_90 = arith.constant 0 : index
    %c0_91 = arith.constant 0 : index
    %90 = vector.load %arg8[%c0_89, %c0_90, %c0_91] : memref<5x256x128xf32, #tpu.memory_space<vmem>>, vector<1x256x128xf32>
    %91 = vector.shape_cast %90 : vector<1x256x128xf32> to vector<256x128xf32>
    %cst_92 = arith.constant dense<0.000000e+00> : vector<120x128xf32>
    %92 = tpu.matmul %89, %91, %cst_92 {dimension_numbers = #tpu.dot_dimension_numbers<[1], [0], [0], [1], [0, 0, 1, 1], [], []>} : vector<120x256xf32>, vector<256x128xf32>, vector<120x128xf32> -> vector<120x128xf32>
    %c8_93 = arith.constant 8 : index
    %c0_94 = arith.constant 0 : index
    %93 = vector.load %arg15[%c8_93, %c0_94] : memref<152x256xf32, #tpu.memory_space<vmem>>, vector<120x256xf32>
    %c1_95 = arith.constant 1 : index
    %c0_96 = arith.constant 0 : index
    %c0_97 = arith.constant 0 : index
    %94 = vector.load %arg8[%c1_95, %c0_96, %c0_97] : memref<5x256x128xf32, #tpu.memory_space<vmem>>, vector<1x256x128xf32>
    %95 = vector.shape_cast %94 : vector<1x256x128xf32> to vector<256x128xf32>
    %cst_98 = arith.constant dense<0.000000e+00> : vector<120x128xf32>
    %96 = tpu.matmul %93, %95, %cst_98 {dimension_numbers = #tpu.dot_dimension_numbers<[1], [0], [0], [1], [0, 0, 1, 1], [], []>} : vector<120x256xf32>, vector<256x128xf32>, vector<120x128xf32> -> vector<120x128xf32>
    %97 = arith.addf %92, %96 : vector<120x128xf32>
    %c16_99 = arith.constant 16 : index
    %c0_100 = arith.constant 0 : index
    %98 = vector.load %arg15[%c16_99, %c0_100] : memref<152x256xf32, #tpu.memory_space<vmem>>, vector<120x256xf32>
    %c2_101 = arith.constant 2 : index
    %c0_102 = arith.constant 0 : index
    %c0_103 = arith.constant 0 : index
    %99 = vector.load %arg8[%c2_101, %c0_102, %c0_103] : memref<5x256x128xf32, #tpu.memory_space<vmem>>, vector<1x256x128xf32>
    %100 = vector.shape_cast %99 : vector<1x256x128xf32> to vector<256x128xf32>
    %cst_104 = arith.constant dense<0.000000e+00> : vector<120x128xf32>
    %101 = tpu.matmul %98, %100, %cst_104 {dimension_numbers = #tpu.dot_dimension_numbers<[1], [0], [0], [1], [0, 0, 1, 1], [], []>} : vector<120x256xf32>, vector<256x128xf32>, vector<120x128xf32> -> vector<120x128xf32>
    %102 = arith.addf %97, %101 : vector<120x128xf32>
    %c24_105 = arith.constant 24 : index
    %c0_106 = arith.constant 0 : index
    %103 = vector.load %arg15[%c24_105, %c0_106] : memref<152x256xf32, #tpu.memory_space<vmem>>, vector<120x256xf32>
    %c3_107 = arith.constant 3 : index
    %c0_108 = arith.constant 0 : index
    %c0_109 = arith.constant 0 : index
    %104 = vector.load %arg8[%c3_107, %c0_108, %c0_109] : memref<5x256x128xf32, #tpu.memory_space<vmem>>, vector<1x256x128xf32>
    %105 = vector.shape_cast %104 : vector<1x256x128xf32> to vector<256x128xf32>
    %cst_110 = arith.constant dense<0.000000e+00> : vector<120x128xf32>
    %106 = tpu.matmul %103, %105, %cst_110 {dimension_numbers = #tpu.dot_dimension_numbers<[1], [0], [0], [1], [0, 0, 1, 1], [], []>} : vector<120x256xf32>, vector<256x128xf32>, vector<120x128xf32> -> vector<120x128xf32>
    %107 = arith.addf %102, %106 : vector<120x128xf32>
    %c32_111 = arith.constant 32 : index
    %c0_112 = arith.constant 0 : index
    %108 = vector.load %arg15[%c32_111, %c0_112] : memref<152x256xf32, #tpu.memory_space<vmem>>, vector<120x256xf32>
    %c4_113 = arith.constant 4 : index
    %c0_114 = arith.constant 0 : index
    %c0_115 = arith.constant 0 : index
    %109 = vector.load %arg8[%c4_113, %c0_114, %c0_115] : memref<5x256x128xf32, #tpu.memory_space<vmem>>, vector<1x256x128xf32>
    %110 = vector.shape_cast %109 : vector<1x256x128xf32> to vector<256x128xf32>
    %cst_116 = arith.constant dense<0.000000e+00> : vector<120x128xf32>
    %111 = tpu.matmul %108, %110, %cst_116 {dimension_numbers = #tpu.dot_dimension_numbers<[1], [0], [0], [1], [0, 0, 1, 1], [], []>} : vector<120x256xf32>, vector<256x128xf32>, vector<120x128xf32> -> vector<120x128xf32>
    %112 = arith.addf %107, %111 : vector<120x128xf32>
    %c0_117 = arith.constant 0 : index
    %c0_118 = arith.constant 0 : index
    %113 = vector.load %arg9[%c0_117, %c0_118] : memref<1x128xf32, #tpu.memory_space<vmem>>, vector<1x128xf32>
    %114 = vector.broadcast %113 : vector<1x128xf32> to vector<120x128xf32>
    %115 = arith.addf %112, %114 : vector<120x128xf32>
    %cst_119 = arith.constant 0.000000e+00 : f32
    %116 = vector.broadcast %cst_119 : f32 to vector<120x128xf32>
    %117 = arith.maximumf %115, %116 : vector<120x128xf32>
    %cst_120 = arith.constant 0.000000e+00 : f32
    %118 = vector.broadcast %cst_120 : f32 to vector<288x128xf32>
    %c0_121 = arith.constant 0 : index
    %c0_122 = arith.constant 0 : index
    %119 = vector.load %arg16[%c0_121, %c0_122] : memref<288x128xf32, #tpu.memory_space<vmem>>, vector<288x128xf32>
    tpu.vector_store %arg16[%c0_121, %c0_122], %118 {strides = array<i32>} : memref<288x128xf32, #tpu.memory_space<vmem>>, vector<288x128xf32>,
    %120 = vector.extract_strided_slice %117 {offsets = [0, 0], sizes = [8, 128], strides = [1, 1]} : vector<120x128xf32> to vector<8x128xf32>
    %c24_123 = arith.constant 24 : index
    %c0_124 = arith.constant 0 : index
    %121 = vector.load %arg16[%c24_123, %c0_124] : memref<288x128xf32, #tpu.memory_space<vmem>>, vector<8x128xf32>
    tpu.vector_store %arg16[%c24_123, %c0_124], %120 {strides = array<i32>} : memref<288x128xf32, #tpu.memory_space<vmem>>, vector<8x128xf32>,
    %122 = vector.extract_strided_slice %117 {offsets = [8, 0], sizes = [8, 128], strides = [1, 1]} : vector<120x128xf32> to vector<8x128xf32>
    %c40_125 = arith.constant 40 : index
    %c0_126 = arith.constant 0 : index
    %123 = vector.load %arg16[%c40_125, %c0_126] : memref<288x128xf32, #tpu.memory_space<vmem>>, vector<8x128xf32>
    tpu.vector_store %arg16[%c40_125, %c0_126], %122 {strides = array<i32>} : memref<288x128xf32, #tpu.memory_space<vmem>>, vector<8x128xf32>,
    %124 = vector.extract_strided_slice %117 {offsets = [16, 0], sizes = [8, 128], strides = [1, 1]} : vector<120x128xf32> to vector<8x128xf32>
    %c56_127 = arith.constant 56 : index
    %c0_128 = arith.constant 0 : index
    %125 = vector.load %arg16[%c56_127, %c0_128] : memref<288x128xf32, #tpu.memory_space<vmem>>, vector<8x128xf32>
    tpu.vector_store %arg16[%c56_127, %c0_128], %124 {strides = array<i32>} : memref<288x128xf32, #tpu.memory_space<vmem>>, vector<8x128xf32>,
    %126 = vector.extract_strided_slice %117 {offsets = [24, 0], sizes = [8, 128], strides = [1, 1]} : vector<120x128xf32> to vector<8x128xf32>
    %c72_129 = arith.constant 72 : index
    %c0_130 = arith.constant 0 : index
    %127 = vector.load %arg16[%c72_129, %c0_130] : memref<288x128xf32, #tpu.memory_space<vmem>>, vector<8x128xf32>
    tpu.vector_store %arg16[%c72_129, %c0_130], %126 {strides = array<i32>} : memref<288x128xf32, #tpu.memory_space<vmem>>, vector<8x128xf32>,
    %128 = vector.extract_strided_slice %117 {offsets = [32, 0], sizes = [8, 128], strides = [1, 1]} : vector<120x128xf32> to vector<8x128xf32>
    %c88_131 = arith.constant 88 : index
    %c0_132 = arith.constant 0 : index
    %129 = vector.load %arg16[%c88_131, %c0_132] : memref<288x128xf32, #tpu.memory_space<vmem>>, vector<8x128xf32>
    tpu.vector_store %arg16[%c88_131, %c0_132], %128 {strides = array<i32>} : memref<288x128xf32, #tpu.memory_space<vmem>>, vector<8x128xf32>,
    %130 = vector.extract_strided_slice %117 {offsets = [40, 0], sizes = [8, 128], strides = [1, 1]} : vector<120x128xf32> to vector<8x128xf32>
    %c104 = arith.constant 104 : index
    %c0_133 = arith.constant 0 : index
    %131 = vector.load %arg16[%c104, %c0_133] : memref<288x128xf32, #tpu.memory_space<vmem>>, vector<8x128xf32>
    tpu.vector_store %arg16[%c104, %c0_133], %130 {strides = array<i32>} : memref<288x128xf32, #tpu.memory_space<vmem>>, vector<8x128xf32>,
    %132 = vector.extract_strided_slice %117 {offsets = [48, 0], sizes = [8, 128], strides = [1, 1]} : vector<120x128xf32> to vector<8x128xf32>
    %c120 = arith.constant 120 : index
    %c0_134 = arith.constant 0 : index
    %133 = vector.load %arg16[%c120, %c0_134] : memref<288x128xf32, #tpu.memory_space<vmem>>, vector<8x128xf32>
    tpu.vector_store %arg16[%c120, %c0_134], %132 {strides = array<i32>} : memref<288x128xf32, #tpu.memory_space<vmem>>, vector<8x128xf32>,
    %134 = vector.extract_strided_slice %117 {offsets = [56, 0], sizes = [8, 128], strides = [1, 1]} : vector<120x128xf32> to vector<8x128xf32>
    %c136 = arith.constant 136 : index
    %c0_135 = arith.constant 0 : index
    %135 = vector.load %arg16[%c136, %c0_135] : memref<288x128xf32, #tpu.memory_space<vmem>>, vector<8x128xf32>
    tpu.vector_store %arg16[%c136, %c0_135], %134 {strides = array<i32>} : memref<288x128xf32, #tpu.memory_space<vmem>>, vector<8x128xf32>,
    %136 = vector.extract_strided_slice %117 {offsets = [64, 0], sizes = [8, 128], strides = [1, 1]} : vector<120x128xf32> to vector<8x128xf32>
    %c152 = arith.constant 152 : index
    %c0_136 = arith.constant 0 : index
    %137 = vector.load %arg16[%c152, %c0_136] : memref<288x128xf32, #tpu.memory_space<vmem>>, vector<8x128xf32>
    tpu.vector_store %arg16[%c152, %c0_136], %136 {strides = array<i32>} : memref<288x128xf32, #tpu.memory_space<vmem>>, vector<8x128xf32>,
    %138 = vector.extract_strided_slice %117 {offsets = [72, 0], sizes = [8, 128], strides = [1, 1]} : vector<120x128xf32> to vector<8x128xf32>
    %c168 = arith.constant 168 : index
    %c0_137 = arith.constant 0 : index
    %139 = vector.load %arg16[%c168, %c0_137] : memref<288x128xf32, #tpu.memory_space<vmem>>, vector<8x128xf32>
    tpu.vector_store %arg16[%c168, %c0_137], %138 {strides = array<i32>} : memref<288x128xf32, #tpu.memory_space<vmem>>, vector<8x128xf32>,
    %140 = vector.extract_strided_slice %117 {offsets = [80, 0], sizes = [8, 128], strides = [1, 1]} : vector<120x128xf32> to vector<8x128xf32>
    %c184 = arith.constant 184 : index
    %c0_138 = arith.constant 0 : index
    %141 = vector.load %arg16[%c184, %c0_138] : memref<288x128xf32, #tpu.memory_space<vmem>>, vector<8x128xf32>
    tpu.vector_store %arg16[%c184, %c0_138], %140 {strides = array<i32>} : memref<288x128xf32, #tpu.memory_space<vmem>>, vector<8x128xf32>,
    %142 = vector.extract_strided_slice %117 {offsets = [88, 0], sizes = [8, 128], strides = [1, 1]} : vector<120x128xf32> to vector<8x128xf32>
    %c200 = arith.constant 200 : index
    %c0_139 = arith.constant 0 : index
    %143 = vector.load %arg16[%c200, %c0_139] : memref<288x128xf32, #tpu.memory_space<vmem>>, vector<8x128xf32>
    tpu.vector_store %arg16[%c200, %c0_139], %142 {strides = array<i32>} : memref<288x128xf32, #tpu.memory_space<vmem>>, vector<8x128xf32>,
    %144 = vector.extract_strided_slice %117 {offsets = [96, 0], sizes = [8, 128], strides = [1, 1]} : vector<120x128xf32> to vector<8x128xf32>
    %c216 = arith.constant 216 : index
    %c0_140 = arith.constant 0 : index
    %145 = vector.load %arg16[%c216, %c0_140] : memref<288x128xf32, #tpu.memory_space<vmem>>, vector<8x128xf32>
    tpu.vector_store %arg16[%c216, %c0_140], %144 {strides = array<i32>} : memref<288x128xf32, #tpu.memory_space<vmem>>, vector<8x128xf32>,
    %146 = vector.extract_strided_slice %117 {offsets = [104, 0], sizes = [8, 128], strides = [1, 1]} : vector<120x128xf32> to vector<8x128xf32>
    %c232 = arith.constant 232 : index
    %c0_141 = arith.constant 0 : index
    %147 = vector.load %arg16[%c232, %c0_141] : memref<288x128xf32, #tpu.memory_space<vmem>>, vector<8x128xf32>
    tpu.vector_store %arg16[%c232, %c0_141], %146 {strides = array<i32>} : memref<288x128xf32, #tpu.memory_space<vmem>>, vector<8x128xf32>,
    %148 = vector.extract_strided_slice %117 {offsets = [112, 0], sizes = [8, 128], strides = [1, 1]} : vector<120x128xf32> to vector<8x128xf32>
    %c248 = arith.constant 248 : index
    %c0_142 = arith.constant 0 : index
    %149 = vector.load %arg16[%c248, %c0_142] : memref<288x128xf32, #tpu.memory_space<vmem>>, vector<8x128xf32>
    tpu.vector_store %arg16[%c248, %c0_142], %148 {strides = array<i32>} : memref<288x128xf32, #tpu.memory_space<vmem>>, vector<8x128xf32>,
    %c0_143 = arith.constant 0 : index
    %c0_144 = arith.constant 0 : index
    %150 = vector.load %arg16[%c0_143, %c0_144] : memref<288x128xf32, #tpu.memory_space<vmem>>, vector<256x128xf32>
    %c0_145 = arith.constant 0 : index
    %c0_146 = arith.constant 0 : index
    %c0_147 = arith.constant 0 : index
    %151 = vector.load %arg10[%c0_145, %c0_146, %c0_147] : memref<5x128x128xf32, #tpu.memory_space<vmem>>, vector<1x128x128xf32>
    %152 = vector.shape_cast %151 : vector<1x128x128xf32> to vector<128x128xf32>
    %cst_148 = arith.constant dense<0.000000e+00> : vector<256x128xf32>
    %153 = tpu.matmul %150, %152, %cst_148 {dimension_numbers = #tpu.dot_dimension_numbers<[1], [0], [0], [1], [0, 0, 1, 1], [], []>} : vector<256x128xf32>, vector<128x128xf32>, vector<256x128xf32> -> vector<256x128xf32>
    %c8_149 = arith.constant 8 : index
    %c0_150 = arith.constant 0 : index
    %154 = vector.load %arg16[%c8_149, %c0_150] : memref<288x128xf32, #tpu.memory_space<vmem>>, vector<256x128xf32>
    %c1_151 = arith.constant 1 : index
    %c0_152 = arith.constant 0 : index
    %c0_153 = arith.constant 0 : index
    %155 = vector.load %arg10[%c1_151, %c0_152, %c0_153] : memref<5x128x128xf32, #tpu.memory_space<vmem>>, vector<1x128x128xf32>
    %156 = vector.shape_cast %155 : vector<1x128x128xf32> to vector<128x128xf32>
    %cst_154 = arith.constant dense<0.000000e+00> : vector<256x128xf32>
    %157 = tpu.matmul %154, %156, %cst_154 {dimension_numbers = #tpu.dot_dimension_numbers<[1], [0], [0], [1], [0, 0, 1, 1], [], []>} : vector<256x128xf32>, vector<128x128xf32>, vector<256x128xf32> -> vector<256x128xf32>
    %158 = arith.addf %153, %157 : vector<256x128xf32>
    %c16_155 = arith.constant 16 : index
    %c0_156 = arith.constant 0 : index
    %159 = vector.load %arg16[%c16_155, %c0_156] : memref<288x128xf32, #tpu.memory_space<vmem>>, vector<256x128xf32>
    %c2_157 = arith.constant 2 : index
    %c0_158 = arith.constant 0 : index
    %c0_159 = arith.constant 0 : index
    %160 = vector.load %arg10[%c2_157, %c0_158, %c0_159] : memref<5x128x128xf32, #tpu.memory_space<vmem>>, vector<1x128x128xf32>
    %161 = vector.shape_cast %160 : vector<1x128x128xf32> to vector<128x128xf32>
    %cst_160 = arith.constant dense<0.000000e+00> : vector<256x128xf32>
    %162 = tpu.matmul %159, %161, %cst_160 {dimension_numbers = #tpu.dot_dimension_numbers<[1], [0], [0], [1], [0, 0, 1, 1], [], []>} : vector<256x128xf32>, vector<128x128xf32>, vector<256x128xf32> -> vector<256x128xf32>
    %163 = arith.addf %158, %162 : vector<256x128xf32>
    %c24_161 = arith.constant 24 : index
    %c0_162 = arith.constant 0 : index
    %164 = vector.load %arg16[%c24_161, %c0_162] : memref<288x128xf32, #tpu.memory_space<vmem>>, vector<256x128xf32>
    %c3_163 = arith.constant 3 : index
    %c0_164 = arith.constant 0 : index
    %c0_165 = arith.constant 0 : index
    %165 = vector.load %arg10[%c3_163, %c0_164, %c0_165] : memref<5x128x128xf32, #tpu.memory_space<vmem>>, vector<1x128x128xf32>
    %166 = vector.shape_cast %165 : vector<1x128x128xf32> to vector<128x128xf32>
    %cst_166 = arith.constant dense<0.000000e+00> : vector<256x128xf32>
    %167 = tpu.matmul %164, %166, %cst_166 {dimension_numbers = #tpu.dot_dimension_numbers<[1], [0], [0], [1], [0, 0, 1, 1], [], []>} : vector<256x128xf32>, vector<128x128xf32>, vector<256x128xf32> -> vector<256x128xf32>
    %168 = arith.addf %163, %167 : vector<256x128xf32>
    %c32_167 = arith.constant 32 : index
    %c0_168 = arith.constant 0 : index
    %169 = vector.load %arg16[%c32_167, %c0_168] : memref<288x128xf32, #tpu.memory_space<vmem>>, vector<256x128xf32>
    %c4_169 = arith.constant 4 : index
    %c0_170 = arith.constant 0 : index
    %c0_171 = arith.constant 0 : index
    %170 = vector.load %arg10[%c4_169, %c0_170, %c0_171] : memref<5x128x128xf32, #tpu.memory_space<vmem>>, vector<1x128x128xf32>
    %171 = vector.shape_cast %170 : vector<1x128x128xf32> to vector<128x128xf32>
    %cst_172 = arith.constant dense<0.000000e+00> : vector<256x128xf32>
    %172 = tpu.matmul %169, %171, %cst_172 {dimension_numbers = #tpu.dot_dimension_numbers<[1], [0], [0], [1], [0, 0, 1, 1], [], []>} : vector<256x128xf32>, vector<128x128xf32>, vector<256x128xf32> -> vector<256x128xf32>
    %173 = arith.addf %168, %172 : vector<256x128xf32>
    %c0_173 = arith.constant 0 : index
    %c0_174 = arith.constant 0 : index
    %174 = vector.load %arg11[%c0_173, %c0_174] : memref<1x128xf32, #tpu.memory_space<vmem>>, vector<1x128xf32>
    %175 = vector.broadcast %174 : vector<1x128xf32> to vector<256x128xf32>
    %176 = arith.addf %173, %175 : vector<256x128xf32>
    %c0_175 = arith.constant 0 : index
    %c0_176 = arith.constant 0 : index
    %c0_177 = arith.constant 0 : index
    %177 = vector.load %arg12[%c0_175, %c0_176, %c0_177] : memref<1x256x128xf32, #tpu.memory_space<vmem>>, vector<1x256x128xf32>
    %178 = vector.shape_cast %177 : vector<1x256x128xf32> to vector<256x128xf32>
    %179 = vector.shape_cast %176 : vector<256x128xf32> to vector<1x256x128xf32>
    tpu.vector_store %arg12[%c0_175, %c0_176, %c0_177], %179 {strides = array<i32>} : memref<1x256x128xf32, #tpu.memory_space<vmem>>, vector<1x256x128xf32>,
    return
  }
  func.func @transform_0(%arg0: i32) -> (i32, i32) {
    %c0_i32 = arith.constant 0 : i32
    %c0_i32_0 = arith.constant 0 : i32
    return %arg0, %c0_i32 : i32, i32
  }
  func.func @transform_1(%arg0: i32) -> (i32, i32) {
    %c0_i32 = arith.constant 0 : i32
    %c0_i32_0 = arith.constant 0 : i32
    %c0_i32_1 = arith.constant 0 : i32
    return %c0_i32, %c0_i32_0 : i32, i32
  }
  func.func @transform_2(%arg0: i32) -> (i32, i32) {
    %c0_i32 = arith.constant 0 : i32
    %c0_i32_0 = arith.constant 0 : i32
    %c0_i32_1 = arith.constant 0 : i32
    return %c0_i32, %c0_i32_0 : i32, i32
  }
  func.func @transform_3(%arg0: i32) -> (i32, i32, i32) {
    %c0_i32 = arith.constant 0 : i32
    %c0_i32_0 = arith.constant 0 : i32
    %c0_i32_1 = arith.constant 0 : i32
    %c0_i32_2 = arith.constant 0 : i32
    return %c0_i32, %c0_i32_0, %c0_i32_1 : i32, i32, i32
  }
  func.func @transform_4(%arg0: i32) -> (i32, i32) {
    %c0_i32 = arith.constant 0 : i32
    %c0_i32_0 = arith.constant 0 : i32
    %c0_i32_1 = arith.constant 0 : i32
    return %c0_i32, %c0_i32_0 : i32, i32
  }
  func.func @transform_5(%arg0: i32) -> (i32, i32, i32) {
    %c0_i32 = arith.constant 0 : i32
    %c0_i32_0 = arith.constant 0 : i32
    %c0_i32_1 = arith.constant 0 : i32
    %c0_i32_2 = arith.constant 0 : i32
    return %c0_i32, %c0_i32_0, %c0_i32_1 : i32, i32, i32
  }
  func.func @transform_6(%arg0: i32) -> (i32, i32) {
    %c0_i32 = arith.constant 0 : i32
    %c0_i32_0 = arith.constant 0 : i32
    %c0_i32_1 = arith.constant 0 : i32
    return %c0_i32, %c0_i32_0 : i32, i32
  }
  func.func @transform_7(%arg0: i32) -> (i32, i32, i32) {
    %c0_i32 = arith.constant 0 : i32
    %c0_i32_0 = arith.constant 0 : i32
    %c0_i32_1 = arith.constant 0 : i32
    %c0_i32_2 = arith.constant 0 : i32
    return %c0_i32, %c0_i32_0, %c0_i32_1 : i32, i32, i32
  }
  func.func @transform_8(%arg0: i32) -> (i32, i32) {
    %c0_i32 = arith.constant 0 : i32
    %c0_i32_0 = arith.constant 0 : i32
    %c0_i32_1 = arith.constant 0 : i32
    return %c0_i32, %c0_i32_0 : i32, i32
  }
  func.func @transform_9(%arg0: i32) -> (i32, i32, i32) {
    %c0_i32 = arith.constant 0 : i32
    %c0_i32_0 = arith.constant 0 : i32
    %c0_i32_1 = arith.constant 0 : i32
    %c0_i32_2 = arith.constant 0 : i32
    return %c0_i32, %c0_i32_0, %c0_i32_1 : i32, i32, i32
  }
  func.func @transform_10(%arg0: i32) -> (i32, i32) {
    %c0_i32 = arith.constant 0 : i32
    %c0_i32_0 = arith.constant 0 : i32
    %c0_i32_1 = arith.constant 0 : i32
    return %c0_i32, %c0_i32_0 : i32, i32
  }
  func.func @transform_11(%arg0: i32) -> (i32, i32, i32) {
    %c0_i32 = arith.constant 0 : i32
    %c0_i32_0 = arith.constant 0 : i32
    %c0_i32_1 = arith.constant 0 : i32
    return %arg0, %c0_i32, %c0_i32_0 : i32, i32, i32
  }
}

</mosaic_0001>

<llo_original>
// kernel: _lambda_.1
$region0: #{_lambda_.1}
  #allocation0 [shape = 'u32[]', space=smem, size = 0x4, offset = 0x4, fixed_abs, tag = 'smem constant byte address 0x4 - core index']
  #allocation1 [shape = 'u32[144,128]{1,0:T(1,128)}', space=vmem, size = 0x12000, scoped, tag = 'internal scratch']
  #allocation2 [shape = 'f32[72,256]{1,0:T(8,128)}', space=vmem, size = 0x12000, scoped, tag = 'scratch operand']
  #allocation3 [shape = 'f32[120,256]{1,0:T(8,128)}', space=vmem, size = 0x1e000, scoped, tag = 'scratch operand']
  #allocation4 [shape = 'f32[152,256]{1,0:T(8,128)}', space=vmem, size = 0x26000, scoped, tag = 'scratch operand']
  #allocation5 [shape = 'f32[288,128]{1,0:T(8,128)}', space=vmem, size = 0x24000, scoped, tag = 'scratch operand']
  %s0 = inlined_call_operand.vmem [shape: f32[8,32], index: 0, kind: input, shape index: {}]
  %s1 = inlined_call_operand.hbm [shape: f32[32,768], index: 1, kind: input, shape index: {}]
  %s2 = inlined_call_operand.hbm [shape: f32[1,768], index: 2, kind: input, shape index: {}]
  %s3 = inlined_call_operand.hbm [shape: f32[5,256,256], index: 3, kind: input, shape index: {}]
  %s4 = inlined_call_operand.hbm [shape: f32[1,256], index: 4, kind: input, shape index: {}]
  %s5 = inlined_call_operand.hbm [shape: f32[5,256,256], index: 5, kind: input, shape index: {}]
  %s6 = inlined_call_operand.hbm [shape: f32[1,256], index: 6, kind: input, shape index: {}]
  %s7 = inlined_call_operand.hbm [shape: f32[5,256,128], index: 7, kind: input, shape index: {}]
  %s8 = inlined_call_operand.hbm [shape: f32[1,128], index: 8, kind: input, shape index: {}]
  %s9 = inlined_call_operand.hbm [shape: f32[5,128,128], index: 9, kind: input, shape index: {}]
  %s10 = inlined_call_operand.hbm [shape: f32[1,128], index: 10, kind: input, shape index: {}]
  %s11 = inlined_call_operand.vmem [shape: f32[1,256,128], index: 11, kind: output, shape index: {}]
  %s12 = sld [smem:[#allocation0]]
  $region94: #{_lambda_.1} parent=0
    _
  %s14 = ssub.s32 1, %s12
  %s15 = scalar_select 0, %s14, %s12
  $region1: #{_lambda_.1} parent=0
    #allocation6 [shape = 'u8[98304]{0}', space=vmem, size = 0x18000, scoped, tag = 'input window, operand 1, single buffered']
    #allocation7 [shape = 's32[1]{0}', space=sflag, size = 0x4, scoped, tag = 'scoped memory for _lambda_.1']
    #allocation8 [shape = 'u8[3072]{0}', space=vmem, size = 0xc00, scoped, tag = 'input window, operand 2, single buffered']
    #allocation9 [shape = 's32[1]{0}', space=sflag, size = 0x4, scoped, tag = 'scoped memory for _lambda_.1']
    #allocation10 [shape = 'u8[1310720]{0}', space=vmem, size = 0x140000, scoped, tag = 'input window, operand 3, single buffered']
    #allocation11 [shape = 'u8[1024]{0}', space=vmem, size = 0x400, scoped, tag = 'input window, operand 4, single buffered']
    #allocation12 [shape = 's32[1]{0}', space=sflag, size = 0x4, scoped, tag = 'scoped memory for _lambda_.1']
    #allocation13 [shape = 'u8[1310720]{0}', space=vmem, size = 0x140000, scoped, tag = 'input window, operand 5, single buffered']
    #allocation14 [shape = 'u8[1024]{0}', space=vmem, size = 0x400, scoped, tag = 'input window, operand 6, single buffered']
    #allocation15 [shape = 's32[1]{0}', space=sflag, size = 0x4, scoped, tag = 'scoped memory for _lambda_.1']
    #allocation16 [shape = 'u8[655360]{0}', space=vmem, size = 0xa0000, scoped, tag = 'input window, operand 7, single buffered']
    #allocation17 [shape = 'u8[512]{0}', space=vmem, size = 0x400, scoped, tag = 'input window, operand 8, single buffered']
    #allocation18 [shape = 's32[1]{0}', space=sflag, size = 0x4, scoped, tag = 'scoped memory for _lambda_.1']
    #allocation19 [shape = 'u8[327680]{0}', space=vmem, size = 0x50000, scoped, tag = 'input window, operand 9, single buffered']
    #allocation20 [shape = 'u8[512]{0}', space=vmem, size = 0x400, scoped, tag = 'input window, operand 10, single buffered']
    #allocation21 [shape = 's32[1]{0}', space=sflag, size = 0x4, scoped, tag = 'scoped memory for _lambda_.1']
    %16 = vsyncpa [#allocation7], 0
    %17 = vsyncpa [#allocation9], 0
    %18 = vsyncpa [#allocation12], 0
    %19 = vsyncpa [#allocation15], 0
    %20 = vsyncpa [#allocation18], 0
    %21 = vsyncpa [#allocation21], 0
    // Predicated region
    $region2: #{_lambda_.1} parent=1 // pred_check
      _
    $region3: #{_lambda_.1} parent=1 // pred_check_branch
      %23 = sbr.rel (0) target = $region5
    $region4: #{_lambda_.1} parent=1 // pred_region
      _
    $region5: #{_lambda_.1} parent=1 // pred_fallthru
      _
    // Predicated region
    $region6: #{_lambda_.1} parent=1 // pred_check
      _
    $region7: #{_lambda_.1} parent=1 // pred_check_branch
      %25 = sbr.rel (0) target = $region9
    $region8: #{_lambda_.1} parent=1 // pred_region
      %s27 = ssub.s32 3072, 3072
      %28 = vsyncadd [#allocation7], %s27
      %s29 = sshll.u32 [#allocation6], 4
      %s30 = int_to_ptr.vmem [resolvable:$true] %s29
      %35 = dma.hbm_to_vmem [thread:$0]  %s1, 3072, %s30, [#allocation7], 768, 768, 48
    $region9: #{_lambda_.1} parent=1 // pred_fallthru
      _
    // Predicated region
    $region10: #{_lambda_.1} parent=1 // pred_check
      _
    $region11: #{_lambda_.1} parent=1 // pred_check_branch
      %37 = sbr.rel (0) target = $region13
    $region12: #{_lambda_.1} parent=1 // pred_region
      %s39 = ssub.s32 96, 96
      %40 = vsyncadd [#allocation9], %s39
      %s42 = sshll.u32 [#allocation8], 4
      %s43 = int_to_ptr.vmem [resolvable:$true] %s42
      %45 = dma.hbm_to_vmem [thread:$0]  %s2, 96, %s43, [#allocation9]
    $region13: #{_lambda_.1} parent=1 // pred_fallthru
      _
    // Predicated region
    $region14: #{_lambda_.1} parent=1 // pred_check
      _
    $region15: #{_lambda_.1} parent=1 // pred_check_branch
      %47 = sbr.rel (0) target = $region17
    $region16: #{_lambda_.1} parent=1 // pred_region
      %s49 = ssub.s32 40960, 40960
      %50 = vsyncadd [#allocation9], %s49
      %s51 = sshll.u32 [#allocation10], 4
      %s52 = int_to_ptr.vmem [resolvable:$true] %s51
      %57 = dma.hbm_to_vmem [thread:$0]  %s3, 40960, %s52, [#allocation9], 256, 256, 16
    $region17: #{_lambda_.1} parent=1 // pred_fallthru
      _
    // Predicated region
    $region18: #{_lambda_.1} parent=1 // pred_check
      _
    $region19: #{_lambda_.1} parent=1 // pred_check_branch
      %59 = sbr.rel (0) target = $region21
    $region20: #{_lambda_.1} parent=1 // pred_region
      %s61 = ssub.s32 32, 32
      %62 = vsyncadd [#allocation12], %s61
      %s64 = sshll.u32 [#allocation11], 4
      %s65 = int_to_ptr.vmem [resolvable:$true] %s64
      %67 = dma.hbm_to_vmem [thread:$0]  %s4, 32, %s65, [#allocation12]
    $region21: #{_lambda_.1} parent=1 // pred_fallthru
      _
    // Predicated region
    $region22: #{_lambda_.1} parent=1 // pred_check
      _
    $region23: #{_lambda_.1} parent=1 // pred_check_branch
      %69 = sbr.rel (0) target = $region25
    $region24: #{_lambda_.1} parent=1 // pred_region
      %s71 = ssub.s32 40960, 40960
      %72 = vsyncadd [#allocation12], %s71
      %s73 = sshll.u32 [#allocation13], 4
      %s74 = int_to_ptr.vmem [resolvable:$true] %s73
      %79 = dma.hbm_to_vmem [thread:$0]  %s5, 40960, %s74, [#allocation12], 256, 256, 16
    $region25: #{_lambda_.1} parent=1 // pred_fallthru
      _
    // Predicated region
    $region26: #{_lambda_.1} parent=1 // pred_check
      _
    $region27: #{_lambda_.1} parent=1 // pred_check_branch
      %81 = sbr.rel (0) target = $region29
    $region28: #{_lambda_.1} parent=1 // pred_region
      %s83 = ssub.s32 32, 32
      %84 = vsyncadd [#allocation15], %s83
      %s86 = sshll.u32 [#allocation14], 4
      %s87 = int_to_ptr.vmem [resolvable:$true] %s86
      %89 = dma.hbm_to_vmem [thread:$0]  %s6, 32, %s87, [#allocation15]
    $region29: #{_lambda_.1} parent=1 // pred_fallthru
      _
    // Predicated region
    $region30: #{_lambda_.1} parent=1 // pred_check
      _
    $region31: #{_lambda_.1} parent=1 // pred_check_branch
      %91 = sbr.rel (0) target = $region33
    $region32: #{_lambda_.1} parent=1 // pred_region
      %s93 = ssub.s32 20480, 20480
      %94 = vsyncadd [#allocation15], %s93
      %s95 = sshll.u32 [#allocation16], 4
      %s96 = int_to_ptr.vmem [resolvable:$true] %s95
      %101 = dma.hbm_to_vmem [thread:$0]  %s7, 20480, %s96, [#allocation15], 128, 128, 8
    $region33: #{_lambda_.1} parent=1 // pred_fallthru
      _
    // Predicated region
    $region34: #{_lambda_.1} parent=1 // pred_check
      _
    $region35: #{_lambda_.1} parent=1 // pred_check_branch
      %103 = sbr.rel (0) target = $region37
    $region36: #{_lambda_.1} parent=1 // pred_region
      %s105 = ssub.s32 16, 16
      %106 = vsyncadd [#allocation18], %s105
      %s108 = sshll.u32 [#allocation17], 4
      %s109 = int_to_ptr.vmem [resolvable:$true] %s108
      %111 = dma.hbm_to_vmem [thread:$0]  %s8, 16, %s109, [#allocation18]
    $region37: #{_lambda_.1} parent=1 // pred_fallthru
      _
    // Predicated region
    $region38: #{_lambda_.1} parent=1 // pred_check
      _
    $region39: #{_lambda_.1} parent=1 // pred_check_branch
      %113 = sbr.rel (0) target = $region41
    $region40: #{_lambda_.1} parent=1 // pred_region
      %s115 = ssub.s32 10240, 10240
      %116 = vsyncadd [#allocation18], %s115
      %s117 = sshll.u32 [#allocation19], 4
      %s118 = int_to_ptr.vmem [resolvable:$true] %s117
      %123 = dma.hbm_to_vmem [thread:$0]  %s9, 10240, %s118, [#allocation18], 128, 128, 8
    $region41: #{_lambda_.1} parent=1 // pred_fallthru
      _
    // Predicated region
    $region42: #{_lambda_.1} parent=1 // pred_check
      _
    $region43: #{_lambda_.1} parent=1 // pred_check_branch
      %125 = sbr.rel (0) target = $region45
    $region44: #{_lambda_.1} parent=1 // pred_region
      %s127 = ssub.s32 16, 16
      %128 = vsyncadd [#allocation21], %s127
      %s130 = sshll.u32 [#allocation20], 4
      %s131 = int_to_ptr.vmem [resolvable:$true] %s130
      %133 = dma.hbm_to_vmem [thread:$0]  %s10, 16, %s131, [#allocation21]
    $region45: #{_lambda_.1} parent=1 // pred_fallthru
      _
    // Predicated region
    $region46: #{_lambda_.1} parent=1 // pred_check
      _
    $region47: #{_lambda_.1} parent=1 // pred_check_branch
      %135 = sbr.rel (0) target = $region49
    $region48: #{_lambda_.1} parent=1 // pred_region
      %136 = dma.done [#allocation7], 3072
    $region49: #{_lambda_.1} parent=1 // pred_fallthru
      _
    // Predicated region
    $region50: #{_lambda_.1} parent=1 // pred_check
      _
    $region51: #{_lambda_.1} parent=1 // pred_check_branch
      %138 = sbr.rel (0) target = $region53
    $region52: #{_lambda_.1} parent=1 // pred_region
      %139 = dma.done [#allocation9], 96
    $region53: #{_lambda_.1} parent=1 // pred_fallthru
      _
    // Predicated region
    $region54: #{_lambda_.1} parent=1 // pred_check
      _
    $region55: #{_lambda_.1} parent=1 // pred_check_branch
      %141 = sbr.rel (0) target = $region57
    $region56: #{_lambda_.1} parent=1 // pred_region
      %142 = dma.done [#allocation9], 40960
    $region57: #{_lambda_.1} parent=1 // pred_fallthru
      _
    // Predicated region
    $region58: #{_lambda_.1} parent=1 // pred_check
      _
    $region59: #{_lambda_.1} parent=1 // pred_check_branch
      %144 = sbr.rel (0) target = $region61
    $region60: #{_lambda_.1} parent=1 // pred_region
      %145 = dma.done [#allocation12], 32
    $region61: #{_lambda_.1} parent=1 // pred_fallthru
      _
    // Predicated region
    $region62: #{_lambda_.1} parent=1 // pred_check
      _
    $region63: #{_lambda_.1} parent=1 // pred_check_branch
      %147 = sbr.rel (0) target = $region65
    $region64: #{_lambda_.1} parent=1 // pred_region
      %148 = dma.done [#allocation12], 40960
    $region65: #{_lambda_.1} parent=1 // pred_fallthru
      _
    // Predicated region
    $region66: #{_lambda_.1} parent=1 // pred_check
      _
    $region67: #{_lambda_.1} parent=1 // pred_check_branch
      %150 = sbr.rel (0) target = $region69
    $region68: #{_lambda_.1} parent=1 // pred_region
      %151 = dma.done [#allocation15], 32
    $region69: #{_lambda_.1} parent=1 // pred_fallthru
      _
    // Predicated region
    $region70: #{_lambda_.1} parent=1 // pred_check
      _
    $region71: #{_lambda_.1} parent=1 // pred_check_branch
      %153 = sbr.rel (0) target = $region73
    $region72: #{_lambda_.1} parent=1 // pred_region
      %154 = dma.done [#allocation15], 20480
    $region73: #{_lambda_.1} parent=1 // pred_fallthru
      _
    // Predicated region
    $region74: #{_lambda_.1} parent=1 // pred_check
      _
    $region75: #{_lambda_.1} parent=1 // pred_check_branch
      %156 = sbr.rel (0) target = $region77
    $region76: #{_lambda_.1} parent=1 // pred_region
      %157 = dma.done [#allocation18], 16
    $region77: #{_lambda_.1} parent=1 // pred_fallthru
      _
    // Predicated region
    $region78: #{_lambda_.1} parent=1 // pred_check
      _
    $region79: #{_lambda_.1} parent=1 // pred_check_branch
      %159 = sbr.rel (0) target = $region81
    $region80: #{_lambda_.1} parent=1 // pred_region
      %160 = dma.done [#allocation18], 10240
    $region81: #{_lambda_.1} parent=1 // pred_fallthru
      _
    // Predicated region
    $region82: #{_lambda_.1} parent=1 // pred_check
      _
    $region83: #{_lambda_.1} parent=1 // pred_check_branch
      %162 = sbr.rel (0) target = $region85
    $region84: #{_lambda_.1} parent=1 // pred_region
      %163 = dma.done [#allocation21], 16
    $region85: #{_lambda_.1} parent=1 // pred_fallthru
      _
    %164 = vst [vmem:[#allocation2] sm:$0xff] 0.0
    %165 = vst [vmem:[#allocation2 + $0x8] sm:$0xff] 0.0
    %166 = vst [vmem:[#allocation2 + $0x10] sm:$0xff] 0.0
    %167 = vst [vmem:[#allocation2 + $0x18] sm:$0xff] 0.0
    %168 = vst [vmem:[#allocation2 + $0x20] sm:$0xff] 0.0
    %169 = vst [vmem:[#allocation2 + $0x28] sm:$0xff] 0.0
    %170 = vst [vmem:[#allocation2 + $0x30] sm:$0xff] 0.0
    %171 = vst [vmem:[#allocation2 + $0x38] sm:$0xff] 0.0
    %172 = vst [vmem:[#allocation2 + $0x40] sm:$0xff] 0.0
    %173 = vst [vmem:[#allocation2 + $0x48] sm:$0xff] 0.0
    %174 = vst [vmem:[#allocation2 + $0x50] sm:$0xff] 0.0
    %175 = vst [vmem:[#allocation2 + $0x58] sm:$0xff] 0.0
    %176 = vst [vmem:[#allocation2 + $0x60] sm:$0xff] 0.0
    %177 = vst [vmem:[#allocation2 + $0x68] sm:$0xff] 0.0
    %178 = vst [vmem:[#allocation2 + $0x70] sm:$0xff] 0.0
    %179 = vst [vmem:[#allocation2 + $0x78] sm:$0xff] 0.0
    %180 = vst [vmem:[#allocation2 + $0x80] sm:$0xff] 0.0
    %181 = vst [vmem:[#allocation2 + $0x88] sm:$0xff] 0.0
    %v182 = vld [vmem:[%s0] sm:$0xff]
    %v183 = vld [vmem:[#allocation6] sm:$0xff]
    %v184 = vld [vmem:[#allocation6 + $0x8] sm:$0xff]
    %v185 = vld [vmem:[#allocation6 + $0x10] sm:$0xff]
    %v186 = vld [vmem:[#allocation6 + $0x18] sm:$0xff]
    %v187 = vld [vmem:[#allocation6 + $0x20] sm:$0xff]
    %v188 = vld [vmem:[#allocation6 + $0x28] sm:$0xff]
    %v189 = vld [vmem:[#allocation6 + $0x30] sm:$0xff]
    %v190 = vld [vmem:[#allocation6 + $0x38] sm:$0xff]
    %v191 = vld [vmem:[#allocation6 + $0x40] sm:$0xff]
    %v192 = vld [vmem:[#allocation6 + $0x48] sm:$0xff]
    %v193 = vld [vmem:[#allocation6 + $0x50] sm:$0xff]
    %v194 = vld [vmem:[#allocation6 + $0x58] sm:$0xff]
    %v195 = vld [vmem:[#allocation6 + $0x60] sm:$0xff]
    %v196 = vld [vmem:[#allocation6 + $0x68] sm:$0xff]
    %v197 = vld [vmem:[#allocation6 + $0x70] sm:$0xff]
    %v198 = vld [vmem:[#allocation6 + $0x78] sm:$0xff]
    %v199 = vld [vmem:[#allocation6 + $0x80] sm:$0xff]
    %v200 = vld [vmem:[#allocation6 + $0x88] sm:$0xff]
    %v201 = vld [vmem:[#allocation6 + $0x90] sm:$0xff]
    %v202 = vld [vmem:[#allocation6 + $0x98] sm:$0xff]
    %v203 = vld [vmem:[#allocation6 + $0xa0] sm:$0xff]
    %v204 = vld [vmem:[#allocation6 + $0xa8] sm:$0xff]
    %v205 = vld [vmem:[#allocation6 + $0xb0] sm:$0xff]
    %v206 = vld [vmem:[#allocation6 + $0xb8] sm:$0xff]
    %v207 = vld [vmem:[#allocation8] sm:$0x3f]
    %v209 = vlaneseq
    %v210 = vshrl.u32 %v209, 7
    %v211 = vsub.s32 0, %v210
    %v212 = vrot.slane %v207, %v211
    %v213 = vlaneseq
    %v214 = vshrl.u32 %v213, 7
    %v215 = vsub.s32 1, %v214
    %v216 = vrot.slane %v207, %v215
    %v217 = vlaneseq
    %v218 = vshrl.u32 %v217, 7
    %v219 = vsub.s32 2, %v218
    %v220 = vrot.slane %v207, %v219
    %v221 = vlaneseq
    %v222 = vshrl.u32 %v221, 7
    %v223 = vsub.s32 3, %v222
    %v224 = vrot.slane %v207, %v223
    %v225 = vlaneseq
    %v226 = vshrl.u32 %v225, 7
    %v227 = vsub.s32 4, %v226
    %v228 = vrot.slane %v207, %v227
    %v229 = vlaneseq
    %v230 = vshrl.u32 %v229, 7
    %v231 = vsub.s32 5, %v230
    %v232 = vrot.slane %v207, %v231
    %vm239 = vcmask 261120
    %v241 = vsel %vm239, %v182, 0
    %243 = vmatprep.subr.mxu0 %v184
    %244 = vmatpush1.msra.mxu0 %v183
    %245 = vmatprep.subr.mxu0 %v190
    %246 = vmatpush1.msra.mxu0 %v189
    %247 = vmatprep.subr.mxu0 %v196
    %248 = vmatpush1.msra.mxu0 %v195
    %249 = vmatprep.subr.mxu0 %v202
    %250 = vmatpush1.msra.mxu0 %v201
    %251 = vmatprep.subr.mxu0 0.0
    %252 = vmatpush1.msra.mxu0 0.0
    %253 = vmatprep.subr.mxu0 0.0
    %254 = vmatpush1.msra.mxu0 0.0
    %255 = vmatprep.subr.mxu0 0.0
    %256 = vmatpush1.msra.mxu0 0.0
    %257 = vmatprep.subr.mxu0 0.0
    %258 = vmatpush1.msra.mxu0 0.0
    %259 = vmatprep.subr.mxu0 0.0
    %260 = vmatpush1.msra.mxu0 0.0
    %261 = vmatprep.subr.mxu0 0.0
    %262 = vmatpush1.msra.mxu0 0.0
    %263 = vmatprep.subr.mxu0 0.0
    %264 = vmatpush1.msra.mxu0 0.0
    %265 = vmatprep.subr.mxu0 0.0
    %266 = vmatpush1.msra.mxu0 0.0
    %267 = vmatprep.subr.mxu0 0.0
    %268 = vmatpush1.msra.mxu0 0.0
    %269 = vmatprep.subr.mxu0 0.0
    %270 = vmatpush1.msra.mxu0 0.0
    %271 = vmatprep.subr.mxu0 0.0
    %272 = vmatpush1.msra.mxu0 0.0
    %273 = vmatprep.subr.mxu0 0.0
    %274 = vmatpush1.msra.mxu0 0.0
    %275 = vmatprep.subr.mxu0 0.0
    %276 = vmatpush1.msra.mxu0 0.0
    %277 = vmatprep.subr.mxu0 0.0
    %278 = vmatpush1.msra.mxu0 0.0
    %279 = vmatprep.subr.mxu0 0.0
    %280 = vmatpush1.msra.mxu0 0.0
    %281 = vmatprep.subr.mxu0 0.0
    %282 = vmatpush1.msra.mxu0 0.0
    %283 = vmatprep.subr.mxu0 0.0
    %284 = vmatpush1.msra.mxu0 0.0
    %285 = vmatprep.subr.mxu0 0.0
    %286 = vmatpush1.msra.mxu0 0.0
    %287 = vmatprep.subr.mxu0 0.0
    %288 = vmatpush1.msra.mxu0 0.0
    %289 = vmatprep.subr.mxu0 0.0
    %290 = vmatpush1.msra.mxu0 0.0
    %291 = vmatprep.subr.mxu0 0.0
    %292 = vmatpush1.msra.mxu0 0.0
    %293 = vmatprep.subr.mxu0 0.0
    %294 = vmatpush1.msra.mxu0 0.0
    %295 = vmatprep.subr.mxu0 0.0
    %296 = vmatpush1.msra.mxu0 0.0
    %297 = vmatprep.subr.mxu0 0.0
    %298 = vmatpush1.msra.mxu0 0.0
    %299 = vmatprep.subr.mxu0 0.0
    %300 = vmatpush1.msra.mxu0 0.0
    %301 = vmatprep.subr.mxu0 0.0
    %302 = vmatpush1.msra.mxu0 0.0
    %303 = vmatprep.subr.mxu0 0.0
    %304 = vmatpush1.msra.mxu0 0.0
    %305 = vmatprep.subr.mxu0 0.0
    %306 = vmatpush1.msra.mxu0 0.0
    %307 = vmatprep.mubr.f32.mxu0 0.0
    %308 = vmatmul.mubr.f32.gmra.mrb[0].mxu0 %v241
    %v309 = vpop.f32.mrb[0].mxu0
    %v310 = vadd.f32 %v212, %v309
    %v311 = vpop.f32.mrb[0].mxu0
    %v312 = vadd.f32 %v216, %v311
    %313 = vdwg.mxu0
    %314 = vmatprep.subr.mxu0 %v186
    %315 = vmatpush1.msra.mxu0 %v185
    %316 = vmatprep.subr.mxu0 %v192
    %317 = vmatpush1.msra.mxu0 %v191
    %318 = vmatprep.subr.mxu0 %v198
    %319 = vmatpush1.msra.mxu0 %v197
    %320 = vmatprep.subr.mxu0 %v204
    %321 = vmatpush1.msra.mxu0 %v203
    %322 = vmatprep.subr.mxu0 0.0
    %323 = vmatpush1.msra.mxu0 0.0
    %324 = vmatprep.subr.mxu0 0.0
    %325 = vmatpush1.msra.mxu0 0.0
    %326 = vmatprep.subr.mxu0 0.0
    %327 = vmatpush1.msra.mxu0 0.0
    %328 = vmatprep.subr.mxu0 0.0
    %329 = vmatpush1.msra.mxu0 0.0
    %330 = vmatprep.subr.mxu0 0.0
    %331 = vmatpush1.msra.mxu0 0.0
    %332 = vmatprep.subr.mxu0 0.0
    %333 = vmatpush1.msra.mxu0 0.0
    %334 = vmatprep.subr.mxu0 0.0
    %335 = vmatpush1.msra.mxu0 0.0
    %336 = vmatprep.subr.mxu0 0.0
    %337 = vmatpush1.msra.mxu0 0.0
    %338 = vmatprep.subr.mxu0 0.0
    %339 = vmatpush1.msra.mxu0 0.0
    %340 = vmatprep.subr.mxu0 0.0
    %341 = vmatpush1.msra.mxu0 0.0
    %342 = vmatprep.subr.mxu0 0.0
    %343 = vmatpush1.msra.mxu0 0.0
    %344 = vmatprep.subr.mxu0 0.0
    %345 = vmatpush1.msra.mxu0 0.0
    %346 = vmatprep.subr.mxu0 0.0
    %347 = vmatpush1.msra.mxu0 0.0
    %348 = vmatprep.subr.mxu0 0.0
    %349 = vmatpush1.msra.mxu0 0.0
    %350 = vmatprep.subr.mxu0 0.0
    %351 = vmatpush1.msra.mxu0 0.0
    %352 = vmatprep.subr.mxu0 0.0
    %353 = vmatpush1.msra.mxu0 0.0
    %354 = vmatprep.subr.mxu0 0.0
    %355 = vmatpush1.msra.mxu0 0.0
    %356 = vmatprep.subr.mxu0 0.0
    %357 = vmatpush1.msra.mxu0 0.0
    %358 = vmatprep.subr.mxu0 0.0
    %359 = vmatpush1.msra.mxu0 0.0
    %360 = vmatprep.subr.mxu0 0.0
    %361 = vmatpush1.msra.mxu0 0.0
    %362 = vmatprep.subr.mxu0 0.0
    %363 = vmatpush1.msra.mxu0 0.0
    %364 = vmatprep.subr.mxu0 0.0
    %365 = vmatpush1.msra.mxu0 0.0
    %366 = vmatprep.subr.mxu0 0.0
    %367 = vmatpush1.msra.mxu0 0.0
    %368 = vmatprep.subr.mxu0 0.0
    %369 = vmatpush1.msra.mxu0 0.0
    %370 = vmatprep.subr.mxu0 0.0
    %371 = vmatpush1.msra.mxu0 0.0
    %372 = vmatprep.subr.mxu0 0.0
    %373 = vmatpush1.msra.mxu0 0.0
    %374 = vmatprep.subr.mxu0 0.0
    %375 = vmatpush1.msra.mxu0 0.0
    %376 = vmatprep.subr.mxu0 0.0
    %377 = vmatpush1.msra.mxu0 0.0
    %378 = vmatprep.mubr.f32.mxu0 0.0
    %379 = vmatmul.mubr.f32.gmra.mrb[0].mxu0 %v241
    %v380 = vpop.f32.mrb[0].mxu0
    %v381 = vadd.f32 %v220, %v380
    %v382 = vpop.f32.mrb[0].mxu0
    %v383 = vadd.f32 %v224, %v382
    %384 = vdwg.mxu0
    %385 = vmatprep.subr.mxu0 %v188
    %386 = vmatpush1.msra.mxu0 %v187
    %387 = vmatprep.subr.mxu0 %v194
    %388 = vmatpush1.msra.mxu0 %v193
    %389 = vmatprep.subr.mxu0 %v200
    %390 = vmatpush1.msra.mxu0 %v199
    %391 = vmatprep.subr.mxu0 %v206
    %392 = vmatpush1.msra.mxu0 %v205
    %393 = vmatprep.subr.mxu0 0.0
    %394 = vmatpush1.msra.mxu0 0.0
    %395 = vmatprep.subr.mxu0 0.0
    %396 = vmatpush1.msra.mxu0 0.0
    %397 = vmatprep.subr.mxu0 0.0
    %398 = vmatpush1.msra.mxu0 0.0
    %399 = vmatprep.subr.mxu0 0.0
    %400 = vmatpush1.msra.mxu0 0.0
    %401 = vmatprep.subr.mxu0 0.0
    %402 = vmatpush1.msra.mxu0 0.0
    %403 = vmatprep.subr.mxu0 0.0
    %404 = vmatpush1.msra.mxu0 0.0
    %405 = vmatprep.subr.mxu0 0.0
    %406 = vmatpush1.msra.mxu0 0.0
    %407 = vmatprep.subr.mxu0 0.0
    %408 = vmatpush1.msra.mxu0 0.0
    %409 = vmatprep.subr.mxu0 0.0
    %410 = vmatpush1.msra.mxu0 0.0
    %411 = vmatprep.subr.mxu0 0.0
    %412 = vmatpush1.msra.mxu0 0.0
    %413 = vmatprep.subr.mxu0 0.0
    %414 = vmatpush1.msra.mxu0 0.0
    %415 = vmatprep.subr.mxu0 0.0
    %416 = vmatpush1.msra.mxu0 0.0
    %417 = vmatprep.subr.mxu0 0.0
    %418 = vmatpush1.msra.mxu0 0.0
    %419 = vmatprep.subr.mxu0 0.0
    %420 = vmatpush1.msra.mxu0 0.0
    %421 = vmatprep.subr.mxu0 0.0
    %422 = vmatpush1.msra.mxu0 0.0
    %423 = vmatprep.subr.mxu0 0.0
    %424 = vmatpush1.msra.mxu0 0.0
    %425 = vmatprep.subr.mxu0 0.0
    %426 = vmatpush1.msra.mxu0 0.0
    %427 = vmatprep.subr.mxu0 0.0
    %428 = vmatpush1.msra.mxu0 0.0
    %429 = vmatprep.subr.mxu0 0.0
    %430 = vmatpush1.msra.mxu0 0.0
    %431 = vmatprep.subr.mxu0 0.0
    %432 = vmatpush1.msra.mxu0 0.0
    %433 = vmatprep.subr.mxu0 0.0
    %434 = vmatpush1.msra.mxu0 0.0
    %435 = vmatprep.subr.mxu0 0.0
    %436 = vmatpush1.msra.mxu0 0.0
    %437 = vmatprep.subr.mxu0 0.0
    %438 = vmatpush1.msra.mxu0 0.0
    %439 = vmatprep.subr.mxu0 0.0
    %440 = vmatpush1.msra.mxu0 0.0
    %441 = vmatprep.subr.mxu0 0.0
    %442 = vmatpush1.msra.mxu0 0.0
    %443 = vmatprep.subr.mxu0 0.0
    %444 = vmatpush1.msra.mxu0 0.0
    %445 = vmatprep.subr.mxu0 0.0
    %446 = vmatpush1.msra.mxu0 0.0
    %447 = vmatprep.subr.mxu0 0.0
    %448 = vmatpush1.msra.mxu0 0.0
    %449 = vmatprep.mubr.f32.mxu0 0.0
    %450 = vmatmul.mubr.f32.gmra.mrb[0].mxu0 %v241
    %v451 = vpop.f32.mrb[0].mxu0
    %v452 = vadd.f32 %v228, %v451
    %v453 = vpop.f32.mrb[0].mxu0
    %v454 = vadd.f32 %v232, %v453
    %455 = vdwg.mxu0
    %v456 = vmax.f32 %v310, 0.0
    %v457 = vmax.f32 %v312, 0.0
    %v458 = vmax.f32 %v381, 0.0
    %v459 = vmax.f32 %v383, 0.0
    %v460 = vmax.f32 %v452, 0.0
    %v461 = vmax.f32 %v454, 0.0
    %462 = vst [vmem:[#allocation2 + $0x30] sm:$0xff] %v456
    %463 = vst [vmem:[#allocation2 + $0x38] sm:$0xff] %v457
    %464 = vst [vmem:[#allocation2 + $0x40] sm:$0xff] %v458
    %465 = vst [vmem:[#allocation2 + $0x48] sm:$0xff] %v459
    %466 = vst [vmem:[#allocation2 + $0x50] sm:$0xff] %v460
    %467 = vst [vmem:[#allocation2 + $0x58] sm:$0xff] %v461
    %v468 = vld [vmem:[#allocation2] sm:$0xff]
    %v469 = vld [vmem:[#allocation2 + $0x8] sm:$0xff]
    %v470 = vld [vmem:[#allocation2 + $0x10] sm:$0xff]
    %v471 = vld [vmem:[#allocation2 + $0x18] sm:$0xff]
    %v472 = vld [vmem:[#allocation2 + $0x20] sm:$0xff]
    %v473 = vld [vmem:[#allocation2 + $0x28] sm:$0xff]
    %v474 = vld [vmem:[#allocation2 + $0x30] sm:$0xff]
    %v475 = vld [vmem:[#allocation2 + $0x38] sm:$0xff]
    %v476 = vld [vmem:[#allocation2 + $0x40] sm:$0xff]
    %v477 = vld [vmem:[#allocation2 + $0x48] sm:$0xff]
    %v478 = vld [vmem:[#allocation10] sm:$0xff]
    %v479 = vld [vmem:[#allocation10 + $0x8] sm:$0xff]
    %v480 = vld [vmem:[#allocation10 + $0x10] sm:$0xff]
    %v481 = vld [vmem:[#allocation10 + $0x18] sm:$0xff]
    %v482 = vld [vmem:[#allocation10 + $0x20] sm:$0xff]
    %v483 = vld [vmem:[#allocation10 + $0x28] sm:$0xff]
    %v484 = vld [vmem:[#allocation10 + $0x30] sm:$0xff]
    %v485 = vld [vmem:[#allocation10 + $0x38] sm:$0xff]
    %v486 = vld [vmem:[#allocation10 + $0x40] sm:$0xff]
    %v487 = vld [vmem:[#allocation10 + $0x48] sm:$0xff]
    %v488 = vld [vmem:[#allocation10 + $0x50] sm:$0xff]
    %v489 = vld [vmem:[#allocation10 + $0x58] sm:$0xff]
    %v490 = vld [vmem:[#allocation10 + $0x60] sm:$0xff]
    %v491 = vld [vmem:[#allocation10 + $0x68] sm:$0xff]
    %v492 = vld [vmem:[#allocation10 + $0x70] sm:$0xff]
    %v493 = vld [vmem:[#allocation10 + $0x78] sm:$0xff]
    %v494 = vld [vmem:[#allocation10 + $0x80] sm:$0xff]
    %v495 = vld [vmem:[#allocation10 + $0x88] sm:$0xff]
    %v496 = vld [vmem:[#allocation10 + $0x90] sm:$0xff]
    %v497 = vld [vmem:[#allocation10 + $0x98] sm:$0xff]
    %v498 = vld [vmem:[#allocation10 + $0xa0] sm:$0xff]
    %v499 = vld [vmem:[#allocation10 + $0xa8] sm:$0xff]
    %v500 = vld [vmem:[#allocation10 + $0xb0] sm:$0xff]
    %v501 = vld [vmem:[#allocation10 + $0xb8] sm:$0xff]
    %v502 = vld [vmem:[#allocation10 + $0xc0] sm:$0xff]
    %v503 = vld [vmem:[#allocation10 + $0xc8] sm:$0xff]
    %v504 = vld [vmem:[#allocation10 + $0xd0] sm:$0xff]
    %v505 = vld [vmem:[#allocation10 + $0xd8] sm:$0xff]
    %v506 = vld [vmem:[#allocation10 + $0xe0] sm:$0xff]
    %v507 = vld [vmem:[#allocation10 + $0xe8] sm:$0xff]
    %v508 = vld [vmem:[#allocation10 + $0xf0] sm:$0xff]
    %v509 = vld [vmem:[#allocation10 + $0xf8] sm:$0xff]
    %v510 = vld [vmem:[#allocation10 + $0x100] sm:$0xff]
    %v511 = vld [vmem:[#allocation10 + $0x108] sm:$0xff]
    %v512 = vld [vmem:[#allocation10 + $0x110] sm:$0xff]
    %v513 = vld [vmem:[#allocation10 + $0x118] sm:$0xff]
    %v514 = vld [vmem:[#allocation10 + $0x120] sm:$0xff]
    %v515 = vld [vmem:[#allocation10 + $0x128] sm:$0xff]
    %v516 = vld [vmem:[#allocation10 + $0x130] sm:$0xff]
    %v517 = vld [vmem:[#allocation10 + $0x138] sm:$0xff]
    %v518 = vld [vmem:[#allocation10 + $0x140] sm:$0xff]
    %v519 = vld [vmem:[#allocation10 + $0x148] sm:$0xff]
    %v520 = vld [vmem:[#allocation10 + $0x150] sm:$0xff]
    %v521 = vld [vmem:[#allocation10 + $0x158] sm:$0xff]
    %v522 = vld [vmem:[#allocation10 + $0x160] sm:$0xff]
    %v523 = vld [vmem:[#allocation10 + $0x168] sm:$0xff]
    %v524 = vld [vmem:[#allocation10 + $0x170] sm:$0xff]
    %v525 = vld [vmem:[#allocation10 + $0x178] sm:$0xff]
    %v526 = vld [vmem:[#allocation10 + $0x180] sm:$0xff]
    %v527 = vld [vmem:[#allocation10 + $0x188] sm:$0xff]
    %v528 = vld [vmem:[#allocation10 + $0x190] sm:$0xff]
    %v529 = vld [vmem:[#allocation10 + $0x198] sm:$0xff]
    %v530 = vld [vmem:[#allocation10 + $0x1a0] sm:$0xff]
    %v531 = vld [vmem:[#allocation10 + $0x1a8] sm:$0xff]
    %v532 = vld [vmem:[#allocation10 + $0x1b0] sm:$0xff]
    %v533 = vld [vmem:[#allocation10 + $0x1b8] sm:$0xff]
    %v534 = vld [vmem:[#allocation10 + $0x1c0] sm:$0xff]
    %v535 = vld [vmem:[#allocation10 + $0x1c8] sm:$0xff]
    %v536 = vld [vmem:[#allocation10 + $0x1d0] sm:$0xff]
    %v537 = vld [vmem:[#allocation10 + $0x1d8] sm:$0xff]
    %v538 = vld [vmem:[#allocation10 + $0x1e0] sm:$0xff]
    %v539 = vld [vmem:[#allocation10 + $0x1e8] sm:$0xff]
    %v540 = vld [vmem:[#allocation10 + $0x1f0] sm:$0xff]
    %v541 = vld [vmem:[#allocation10 + $0x1f8] sm:$0xff]
    %v542 = vld [vmem:[#allocation2 + $0x50] sm:$0xff]
    %v543 = vld [vmem:[#allocation2 + $0x58] sm:$0xff]
    %s544 = scalar_lea.vmem [#allocation10], 512
    %v545 = vld [vmem:[%s544] sm:$0xff]
    %v546 = vld [vmem:[%s544 + $0x8] sm:$0xff]
    %v547 = vld [vmem:[%s544 + $0x10] sm:$0xff]
    %v548 = vld [vmem:[%s544 + $0x18] sm:$0xff]
    %v549 = vld [vmem:[%s544 + $0x20] sm:$0xff]
    %v550 = vld [vmem:[%s544 + $0x28] sm:$0xff]
    %v551 = vld [vmem:[%s544 + $0x30] sm:$0xff]
    %v552 = vld [vmem:[%s544 + $0x38] sm:$0xff]
    %v553 = vld [vmem:[%s544 + $0x40] sm:$0xff]
    %v554 = vld [vmem:[%s544 + $0x48] sm:$0xff]
    %v555 = vld [vmem:[%s544 + $0x50] sm:$0xff]
    %v556 = vld [vmem:[%s544 + $0x58] sm:$0xff]
    %v557 = vld [vmem:[%s544 + $0x60] sm:$0xff]
    %v558 = vld [vmem:[%s544 + $0x68] sm:$0xff]
    %v559 = vld [vmem:[%s544 + $0x70] sm:$0xff]
    %v560 = vld [vmem:[%s544 + $0x78] sm:$0xff]
    %v561 = vld [vmem:[%s544 + $0x80] sm:$0xff]
    %v562 = vld [vmem:[%s544 + $0x88] sm:$0xff]
    %v563 = vld [vmem:[%s544 + $0x90] sm:$0xff]
    %v564 = vld [vmem:[%s544 + $0x98] sm:$0xff]
    %v565 = vld [vmem:[%s544 + $0xa0] sm:$0xff]
    %v566 = vld [vmem:[%s544 + $0xa8] sm:$0xff]
    %v567 = vld [vmem:[%s544 + $0xb0] sm:$0xff]
    %v568 = vld [vmem:[%s544 + $0xb8] sm:$0xff]
    %v569 = vld [vmem:[%s544 + $0xc0] sm:$0xff]
    %v570 = vld [vmem:[%s544 + $0xc8] sm:$0xff]
    %v571 = vld [vmem:[%s544 + $0xd0] sm:$0xff]
    %v572 = vld [vmem:[%s544 + $0xd8] sm:$0xff]
    %v573 = vld [vmem:[%s544 + $0xe0] sm:$0xff]
    %v574 = vld [vmem:[%s544 + $0xe8] sm:$0xff]
    %v575 = vld [vmem:[%s544 + $0xf0] sm:$0xff]
    %v576 = vld [vmem:[%s544 + $0xf8] sm:$0xff]
    %v577 = vld [vmem:[%s544 + $0x100] sm:$0xff]
    %v578 = vld [vmem:[%s544 + $0x108] sm:$0xff]
    %v579 = vld [vmem:[%s544 + $0x110] sm:$0xff]
    %v580 = vld [vmem:[%s544 + $0x118] sm:$0xff]
    %v581 = vld [vmem:[%s544 + $0x120] sm:$0xff]
    %v582 = vld [vmem:[%s544 + $0x128] sm:$0xff]
    %v583 = vld [vmem:[%s544 + $0x130] sm:$0xff]
    %v584 = vld [vmem:[%s544 + $0x138] sm:$0xff]
    %v585 = vld [vmem:[%s544 + $0x140] sm:$0xff]
    %v586 = vld [vmem:[%s544 + $0x148] sm:$0xff]
    %v587 = vld [vmem:[%s544 + $0x150] sm:$0xff]
    %v588 = vld [vmem:[%s544 + $0x158] sm:$0xff]
    %v589 = vld [vmem:[%s544 + $0x160] sm:$0xff]
    %v590 = vld [vmem:[%s544 + $0x168] sm:$0xff]
    %v591 = vld [vmem:[%s544 + $0x170] sm:$0xff]
    %v592 = vld [vmem:[%s544 + $0x178] sm:$0xff]
    %v593 = vld [vmem:[%s544 + $0x180] sm:$0xff]
    %v594 = vld [vmem:[%s544 + $0x188] sm:$0xff]
    %v595 = vld [vmem:[%s544 + $0x190] sm:$0xff]
    %v596 = vld [vmem:[%s544 + $0x198] sm:$0xff]
    %v597 = vld [vmem:[%s544 + $0x1a0] sm:$0xff]
    %v598 = vld [vmem:[%s544 + $0x1a8] sm:$0xff]
    %v599 = vld [vmem:[%s544 + $0x1b0] sm:$0xff]
    %v600 = vld [vmem:[%s544 + $0x1b8] sm:$0xff]
    %v601 = vld [vmem:[%s544 + $0x1c0] sm:$0xff]
    %v602 = vld [vmem:[%s544 + $0x1c8] sm:$0xff]
    %v603 = vld [vmem:[%s544 + $0x1d0] sm:$0xff]
    %v604 = vld [vmem:[%s544 + $0x1d8] sm:$0xff]
    %v605 = vld [vmem:[%s544 + $0x1e0] sm:$0xff]
    %v606 = vld [vmem:[%s544 + $0x1e8] sm:$0xff]
    %v607 = vld [vmem:[%s544 + $0x1f0] sm:$0xff]
    %v608 = vld [vmem:[%s544 + $0x1f8] sm:$0xff]
    %609 = vmatprep.subr.mxu0 %v546
    %610 = vmatpush1.msra.mxu0 %v545
    %611 = vmatprep.subr.mxu0 %v548
    %612 = vmatpush1.msra.mxu0 %v547
    %613 = vmatprep.subr.mxu0 %v550
    %614 = vmatpush1.msra.mxu0 %v549
    %615 = vmatprep.subr.mxu0 %v552
    %616 = vmatpush1.msra.mxu0 %v551
    %617 = vmatprep.subr.mxu0 %v554
    %618 = vmatpush1.msra.mxu0 %v553
    %619 = vmatprep.subr.mxu0 %v556
    %620 = vmatpush1.msra.mxu0 %v555
    %621 = vmatprep.subr.mxu0 %v558
    %622 = vmatpush1.msra.mxu0 %v557
    %623 = vmatprep.subr.mxu0 %v560
    %624 = vmatpush1.msra.mxu0 %v559
    %625 = vmatprep.subr.mxu0 %v562
    %626 = vmatpush1.msra.mxu0 %v561
    %627 = vmatprep.subr.mxu0 %v564
    %628 = vmatpush1.msra.mxu0 %v563
    %629 = vmatprep.subr.mxu0 %v566
    %630 = vmatpush1.msra.mxu0 %v565
    %631 = vmatprep.subr.mxu0 %v568
    %632 = vmatpush1.msra.mxu0 %v567
    %633 = vmatprep.subr.mxu0 %v570
    %634 = vmatpush1.msra.mxu0 %v569
    %635 = vmatprep.subr.mxu0 %v572
    %636 = vmatpush1.msra.mxu0 %v571
    %637 = vmatprep.subr.mxu0 %v574
    %638 = vmatpush1.msra.mxu0 %v573
    %639 = vmatprep.subr.mxu0 %v576
    %640 = vmatpush1.msra.mxu0 %v575
    %641 = vmatprep.subr.mxu0 %v578
    %642 = vmatpush1.msra.mxu0 %v577
    %643 = vmatprep.subr.mxu0 %v580
    %644 = vmatpush1.msra.mxu0 %v579
    %645 = vmatprep.subr.mxu0 %v582
    %646 = vmatpush1.msra.mxu0 %v581
    %647 = vmatprep.subr.mxu0 %v584
    %648 = vmatpush1.msra.mxu0 %v583
    %649 = vmatprep.subr.mxu0 %v586
    %650 = vmatpush1.msra.mxu0 %v585
    %651 = vmatprep.subr.mxu0 %v588
    %652 = vmatpush1.msra.mxu0 %v587
    %653 = vmatprep.subr.mxu0 %v590
    %654 = vmatpush1.msra.mxu0 %v589
    %655 = vmatprep.subr.mxu0 %v592
    %656 = vmatpush1.msra.mxu0 %v591
    %657 = vmatprep.subr.mxu0 %v594
    %658 = vmatpush1.msra.mxu0 %v593
    %659 = vmatprep.subr.mxu0 %v596
    %660 = vmatpush1.msra.mxu0 %v595
    %661 = vmatprep.subr.mxu0 %v598
    %662 = vmatpush1.msra.mxu0 %v597
    %663 = vmatprep.subr.mxu0 %v600
    %664 = vmatpush1.msra.mxu0 %v599
    %665 = vmatprep.subr.mxu0 %v602
    %666 = vmatpush1.msra.mxu0 %v601
    %667 = vmatprep.subr.mxu0 %v604
    %668 = vmatpush1.msra.mxu0 %v603
    %669 = vmatprep.subr.mxu0 %v606
    %670 = vmatpush1.msra.mxu0 %v605
    %671 = vmatprep.subr.mxu0 %v608
    %672 = vmatpush1.msra.mxu0 %v607
    %673 = vmatprep.mubr.f32.mxu0 %v471
    %674 = vmatmul.mubr.f32.gmra.mrb[0].mxu0 %v470
    %v675 = vpop.f32.mrb[0].mxu0
    %v676 = vadd.f32 0.0, %v675
    %v677 = vpop.f32.mrb[0].mxu0
    %v678 = vadd.f32 0.0, %v677
    %679 = vmatprep.mubr.f32.mxu0 %v473
    %680 = vmatmul.mubr.f32.gmra.mrb[0].mxu0 %v472
    %v681 = vpop.f32.mrb[0].mxu0
    %v682 = vadd.f32 0.0, %v681
    %v683 = vpop.f32.mrb[0].mxu0
    %v684 = vadd.f32 0.0, %v683
    %685 = vmatprep.mubr.f32.mxu0 %v475
    %686 = vmatmul.mubr.f32.gmra.mrb[0].mxu0 %v474
    %v687 = vpop.f32.mrb[0].mxu0
    %v688 = vadd.f32 0.0, %v687
    %v689 = vpop.f32.mrb[0].mxu0
    %v690 = vadd.f32 0.0, %v689
    %691 = vmatprep.mubr.f32.mxu0 %v477
    %692 = vmatmul.mubr.f32.gmra.mrb[0].mxu0 %v476
    %v693 = vpop.f32.mrb[0].mxu0
    %v694 = vadd.f32 0.0, %v693
    %v695 = vpop.f32.mrb[0].mxu0
    %v696 = vadd.f32 0.0, %v695
    %697 = vmatprep.mubr.f32.mxu0 %v543
    %698 = vmatmul.mubr.f32.gmra.mrb[0].mxu0 %v542
    %v699 = vpop.f32.mrb[0].mxu0
    %v700 = vadd.f32 0.0, %v699
    %v701 = vpop.f32.mrb[0].mxu0
    %v702 = vadd.f32 0.0, %v701
    %703 = vdwg.mxu0
    %704 = vmatprep.subr.mxu0 %v479
    %705 = vmatpush1.msra.mxu0 %v478
    %706 = vmatprep.subr.mxu0 %v481
    %707 = vmatpush1.msra.mxu0 %v480
    %708 = vmatprep.subr.mxu0 %v483
    %709 = vmatpush1.msra.mxu0 %v482
    %710 = vmatprep.subr.mxu0 %v485
    %711 = vmatpush1.msra.mxu0 %v484
    %712 = vmatprep.subr.mxu0 %v487
    %713 = vmatpush1.msra.mxu0 %v486
    %714 = vmatprep.subr.mxu0 %v489
    %715 = vmatpush1.msra.mxu0 %v488
    %716 = vmatprep.subr.mxu0 %v491
    %717 = vmatpush1.msra.mxu0 %v490
    %718 = vmatprep.subr.mxu0 %v493
    %719 = vmatpush1.msra.mxu0 %v492
    %720 = vmatprep.subr.mxu0 %v495
    %721 = vmatpush1.msra.mxu0 %v494
    %722 = vmatprep.subr.mxu0 %v497
    %723 = vmatpush1.msra.mxu0 %v496
    %724 = vmatprep.subr.mxu0 %v499
    %725 = vmatpush1.msra.mxu0 %v498
    %726 = vmatprep.subr.mxu0 %v501
    %727 = vmatpush1.msra.mxu0 %v500
    %728 = vmatprep.subr.mxu0 %v503
    %729 = vmatpush1.msra.mxu0 %v502
    %730 = vmatprep.subr.mxu0 %v505
    %731 = vmatpush1.msra.mxu0 %v504
    %732 = vmatprep.subr.mxu0 %v507
    %733 = vmatpush1.msra.mxu0 %v506
    %734 = vmatprep.subr.mxu0 %v509
    %735 = vmatpush1.msra.mxu0 %v508
    %736 = vmatprep.subr.mxu0 %v511
    %737 = vmatpush1.msra.mxu0 %v510
    %738 = vmatprep.subr.mxu0 %v513
    %739 = vmatpush1.msra.mxu0 %v512
    %740 = vmatprep.subr.mxu0 %v515
    %741 = vmatpush1.msra.mxu0 %v514
    %742 = vmatprep.subr.mxu0 %v517
    %743 = vmatpush1.msra.mxu0 %v516
    %744 = vmatprep.subr.mxu0 %v519
    %745 = vmatpush1.msra.mxu0 %v518
    %746 = vmatprep.subr.mxu0 %v521
    %747 = vmatpush1.msra.mxu0 %v520
    %748 = vmatprep.subr.mxu0 %v523
    %749 = vmatpush1.msra.mxu0 %v522
    %750 = vmatprep.subr.mxu0 %v525
    %751 = vmatpush1.msra.mxu0 %v524
    %752 = vmatprep.subr.mxu0 %v527
    %753 = vmatpush1.msra.mxu0 %v526
    %754 = vmatprep.subr.mxu0 %v529
    %755 = vmatpush1.msra.mxu0 %v528
    %756 = vmatprep.subr.mxu0 %v531
    %757 = vmatpush1.msra.mxu0 %v530
    %758 = vmatprep.subr.mxu0 %v533
    %759 = vmatpush1.msra.mxu0 %v532
    %760 = vmatprep.subr.mxu0 %v535
    %761 = vmatpush1.msra.mxu0 %v534
    %762 = vmatprep.subr.mxu0 %v537
    %763 = vmatpush1.msra.mxu0 %v536
    %764 = vmatprep.subr.mxu0 %v539
    %765 = vmatpush1.msra.mxu0 %v538
    %766 = vmatprep.subr.mxu0 %v541
    %767 = vmatpush1.msra.mxu0 %v540
    %768 = vmatprep.mubr.f32.mxu0 %v469
    %769 = vmatmul.mubr.f32.gmra.mrb[0].mxu0 %v468
    %v770 = vpop.f32.mrb[0].mxu0
    %v771 = vadd.f32 %v676, %v770
    %v772 = vpop.f32.mrb[0].mxu0
    %v773 = vadd.f32 %v678, %v772
    %774 = vmatprep.mubr.f32.mxu0 %v471
    %775 = vmatmul.mubr.f32.gmra.mrb[0].mxu0 %v470
    %v776 = vpop.f32.mrb[0].mxu0
    %v777 = vadd.f32 %v682, %v776
    %v778 = vpop.f32.mrb[0].mxu0
    %v779 = vadd.f32 %v684, %v778
    %780 = vmatprep.mubr.f32.mxu0 %v473
    %781 = vmatmul.mubr.f32.gmra.mrb[0].mxu0 %v472
    %v782 = vpop.f32.mrb[0].mxu0
    %v783 = vadd.f32 %v688, %v782
    %v784 = vpop.f32.mrb[0].mxu0
    %v785 = vadd.f32 %v690, %v784
    %786 = vmatprep.mubr.f32.mxu0 %v475
    %787 = vmatmul.mubr.f32.gmra.mrb[0].mxu0 %v474
    %v788 = vpop.f32.mrb[0].mxu0
    %v789 = vadd.f32 %v694, %v788
    %v790 = vpop.f32.mrb[0].mxu0
    %v791 = vadd.f32 %v696, %v790
    %792 = vmatprep.mubr.f32.mxu0 %v477
    %793 = vmatmul.mubr.f32.gmra.mrb[0].mxu0 %v476
    %v794 = vpop.f32.mrb[0].mxu0
    %v795 = vadd.f32 %v700, %v794
    %v796 = vpop.f32.mrb[0].mxu0
    %v797 = vadd.f32 %v702, %v796
    %798 = vdwg.mxu0
    %v799 = vld [vmem:[#allocation2 + $0x20] sm:$0xff]
    %v800 = vld [vmem:[#allocation2 + $0x28] sm:$0xff]
    %v801 = vld [vmem:[#allocation2 + $0x30] sm:$0xff]
    %v802 = vld [vmem:[#allocation2 + $0x38] sm:$0xff]
    %v803 = vld [vmem:[#allocation2 + $0x40] sm:$0xff]
    %v804 = vld [vmem:[#allocation2 + $0x48] sm:$0xff]
    %v805 = vld [vmem:[#allocation2 + $0x50] sm:$0xff]
    %v806 = vld [vmem:[#allocation2 + $0x58] sm:$0xff]
    %v807 = vld [vmem:[#allocation2 + $0x60] sm:$0xff]
    %v808 = vld [vmem:[#allocation2 + $0x68] sm:$0xff]
    %s809 = scalar_lea.vmem [#allocation10], 1024
    %v810 = vld [vmem:[%s809] sm:$0xff]
    %v811 = vld [vmem:[%s809 + $0x8] sm:$0xff]
    %v812 = vld [vmem:[%s809 + $0x10] sm:$0xff]
    %v813 = vld [vmem:[%s809 + $0x18] sm:$0xff]
    %v814 = vld [vmem:[%s809 + $0x20] sm:$0xff]
    %v815 = vld [vmem:[%s809 + $0x28] sm:$0xff]
    %v816 = vld [vmem:[%s809 + $0x30] sm:$0xff]
    %v817 = vld [vmem:[%s809 + $0x38] sm:$0xff]
    %v818 = vld [vmem:[%s809 + $0x40] sm:$0xff]
    %v819 = vld [vmem:[%s809 + $0x48] sm:$0xff]
    %v820 = vld [vmem:[%s809 + $0x50] sm:$0xff]
    %v821 = vld [vmem:[%s809 + $0x58] sm:$0xff]
    %v822 = vld [vmem:[%s809 + $0x60] sm:$0xff]
    %v823 = vld [vmem:[%s809 + $0x68] sm:$0xff]
    %v824 = vld [vmem:[%s809 + $0x70] sm:$0xff]
    %v825 = vld [vmem:[%s809 + $0x78] sm:$0xff]
    %v826 = vld [vmem:[%s809 + $0x80] sm:$0xff]
    %v827 = vld [vmem:[%s809 + $0x88] sm:$0xff]
    %v828 = vld [vmem:[%s809 + $0x90] sm:$0xff]
    %v829 = vld [vmem:[%s809 + $0x98] sm:$0xff]
    %v830 = vld [vmem:[%s809 + $0xa0] sm:$0xff]
    %v831 = vld [vmem:[%s809 + $0xa8] sm:$0xff]
    %v832 = vld [vmem:[%s809 + $0xb0] sm:$0xff]
    %v833 = vld [vmem:[%s809 + $0xb8] sm:$0xff]
    %v834 = vld [vmem:[%s809 + $0xc0] sm:$0xff]
    %v835 = vld [vmem:[%s809 + $0xc8] sm:$0xff]
    %v836 = vld [vmem:[%s809 + $0xd0] sm:$0xff]
    %v837 = vld [vmem:[%s809 + $0xd8] sm:$0xff]
    %v838 = vld [vmem:[%s809 + $0xe0] sm:$0xff]
    %v839 = vld [vmem:[%s809 + $0xe8] sm:$0xff]
    %v840 = vld [vmem:[%s809 + $0xf0] sm:$0xff]
    %v841 = vld [vmem:[%s809 + $0xf8] sm:$0xff]
    %v842 = vld [vmem:[%s809 + $0x100] sm:$0xff]
    %v843 = vld [vmem:[%s809 + $0x108] sm:$0xff]
    %v844 = vld [vmem:[%s809 + $0x110] sm:$0xff]
    %v845 = vld [vmem:[%s809 + $0x118] sm:$0xff]
    %v846 = vld [vmem:[%s809 + $0x120] sm:$0xff]
    %v847 = vld [vmem:[%s809 + $0x128] sm:$0xff]
    %v848 = vld [vmem:[%s809 + $0x130] sm:$0xff]
    %v849 = vld [vmem:[%s809 + $0x138] sm:$0xff]
    %v850 = vld [vmem:[%s809 + $0x140] sm:$0xff]
    %v851 = vld [vmem:[%s809 + $0x148] sm:$0xff]
    %v852 = vld [vmem:[%s809 + $0x150] sm:$0xff]
    %v853 = vld [vmem:[%s809 + $0x158] sm:$0xff]
    %v854 = vld [vmem:[%s809 + $0x160] sm:$0xff]
    %v855 = vld [vmem:[%s809 + $0x168] sm:$0xff]
    %v856 = vld [vmem:[%s809 + $0x170] sm:$0xff]
    %v857 = vld [vmem:[%s809 + $0x178] sm:$0xff]
    %v858 = vld [vmem:[%s809 + $0x180] sm:$0xff]
    %v859 = vld [vmem:[%s809 + $0x188] sm:$0xff]
    %v860 = vld [vmem:[%s809 + $0x190] sm:$0xff]
    %v861 = vld [vmem:[%s809 + $0x198] sm:$0xff]
    %v862 = vld [vmem:[%s809 + $0x1a0] sm:$0xff]
    %v863 = vld [vmem:[%s809 + $0x1a8] sm:$0xff]
    %v864 = vld [vmem:[%s809 + $0x1b0] sm:$0xff]
    %v865 = vld [vmem:[%s809 + $0x1b8] sm:$0xff]
    %v866 = vld [vmem:[%s809 + $0x1c0] sm:$0xff]
    %v867 = vld [vmem:[%s809 + $0x1c8] sm:$0xff]
    %v868 = vld [vmem:[%s809 + $0x1d0] sm:$0xff]
    %v869 = vld [vmem:[%s809 + $0x1d8] sm:$0xff]
    %v870 = vld [vmem:[%s809 + $0x1e0] sm:$0xff]
    %v871 = vld [vmem:[%s809 + $0x1e8] sm:$0xff]
    %v872 = vld [vmem:[%s809 + $0x1f0] sm:$0xff]
    %v873 = vld [vmem:[%s809 + $0x1f8] sm:$0xff]
    %874 = vmatprep.subr.mxu0 %v811
    %875 = vmatpush1.msra.mxu0 %v810
    %876 = vmatprep.subr.mxu0 %v813
    %877 = vmatpush1.msra.mxu0 %v812
    %878 = vmatprep.subr.mxu0 %v815
    %879 = vmatpush1.msra.mxu0 %v814
    %880 = vmatprep.subr.mxu0 %v817
    %881 = vmatpush1.msra.mxu0 %v816
    %882 = vmatprep.subr.mxu0 %v819
    %883 = vmatpush1.msra.mxu0 %v818
    %884 = vmatprep.subr.mxu0 %v821
    %885 = vmatpush1.msra.mxu0 %v820
    %886 = vmatprep.subr.mxu0 %v823
    %887 = vmatpush1.msra.mxu0 %v822
    %888 = vmatprep.subr.mxu0 %v825
    %889 = vmatpush1.msra.mxu0 %v824
    %890 = vmatprep.subr.mxu0 %v827
    %891 = vmatpush1.msra.mxu0 %v826
    %892 = vmatprep.subr.mxu0 %v829
    %893 = vmatpush1.msra.mxu0 %v828
    %894 = vmatprep.subr.mxu0 %v831
    %895 = vmatpush1.msra.mxu0 %v830
    %896 = vmatprep.subr.mxu0 %v833
    %897 = vmatpush1.msra.mxu0 %v832
    %898 = vmatprep.subr.mxu0 %v835
    %899 = vmatpush1.msra.mxu0 %v834
    %900 = vmatprep.subr.mxu0 %v837
    %901 = vmatpush1.msra.mxu0 %v836
    %902 = vmatprep.subr.mxu0 %v839
    %903 = vmatpush1.msra.mxu0 %v838
    %904 = vmatprep.subr.mxu0 %v841
    %905 = vmatpush1.msra.mxu0 %v840
    %906 = vmatprep.subr.mxu0 %v843
    %907 = vmatpush1.msra.mxu0 %v842
    %908 = vmatprep.subr.mxu0 %v845
    %909 = vmatpush1.msra.mxu0 %v844
    %910 = vmatprep.subr.mxu0 %v847
    %911 = vmatpush1.msra.mxu0 %v846
    %912 = vmatprep.subr.mxu0 %v849
    %913 = vmatpush1.msra.mxu0 %v848
    %914 = vmatprep.subr.mxu0 %v851
    %915 = vmatpush1.msra.mxu0 %v850
    %916 = vmatprep.subr.mxu0 %v853
    %917 = vmatpush1.msra.mxu0 %v852
    %918 = vmatprep.subr.mxu0 %v855
    %919 = vmatpush1.msra.mxu0 %v854
    %920 = vmatprep.subr.mxu0 %v857
    %921 = vmatpush1.msra.mxu0 %v856
    %922 = vmatprep.subr.mxu0 %v859
    %923 = vmatpush1.msra.mxu0 %v858
    %924 = vmatprep.subr.mxu0 %v861
    %925 = vmatpush1.msra.mxu0 %v860
    %926 = vmatprep.subr.mxu0 %v863
    %927 = vmatpush1.msra.mxu0 %v862
    %928 = vmatprep.subr.mxu0 %v865
    %929 = vmatpush1.msra.mxu0 %v864
    %930 = vmatprep.subr.mxu0 %v867
    %931 = vmatpush1.msra.mxu0 %v866
    %932 = vmatprep.subr.mxu0 %v869
    %933 = vmatpush1.msra.mxu0 %v868
    %934 = vmatprep.subr.mxu0 %v871
    %935 = vmatpush1.msra.mxu0 %v870
    %936 = vmatprep.subr.mxu0 %v873
    %937 = vmatpush1.msra.mxu0 %v872
    %938 = vmatprep.mubr.f32.mxu0 %v800
    %939 = vmatmul.mubr.f32.gmra.mrb[0].mxu0 %v799
    %v940 = vpop.f32.mrb[0].mxu0
    %v941 = vadd.f32 0.0, %v940
    %v942 = vpop.f32.mrb[0].mxu0
    %v943 = vadd.f32 0.0, %v942
    %944 = vmatprep.mubr.f32.mxu0 %v802
    %945 = vmatmul.mubr.f32.gmra.mrb[0].mxu0 %v801
    %v946 = vpop.f32.mrb[0].mxu0
    %v947 = vadd.f32 0.0, %v946
    %v948 = vpop.f32.mrb[0].mxu0
    %v949 = vadd.f32 0.0, %v948
    %950 = vmatprep.mubr.f32.mxu0 %v804
    %951 = vmatmul.mubr.f32.gmra.mrb[0].mxu0 %v803
    %v952 = vpop.f32.mrb[0].mxu0
    %v953 = vadd.f32 0.0, %v952
    %v954 = vpop.f32.mrb[0].mxu0
    %v955 = vadd.f32 0.0, %v954
    %956 = vmatprep.mubr.f32.mxu0 %v806
    %957 = vmatmul.mubr.f32.gmra.mrb[0].mxu0 %v805
    %v958 = vpop.f32.mrb[0].mxu0
    %v959 = vadd.f32 0.0, %v958
    %v960 = vpop.f32.mrb[0].mxu0
    %v961 = vadd.f32 0.0, %v960
    %962 = vmatprep.mubr.f32.mxu0 %v808
    %963 = vmatmul.mubr.f32.gmra.mrb[0].mxu0 %v807
    %v964 = vpop.f32.mrb[0].mxu0
    %v965 = vadd.f32 0.0, %v964
    %v966 = vpop.f32.mrb[0].mxu0
    %v967 = vadd.f32 0.0, %v966
    %968 = vdwg.mxu0
    %v969 = vadd.f32 %v771, %v941
    %v970 = vadd.f32 %v773, %v943
    %v971 = vadd.f32 %v777, %v947
    %v972 = vadd.f32 %v779, %v949
    %v973 = vadd.f32 %v783, %v953
    %v974 = vadd.f32 %v785, %v955
    %v975 = vadd.f32 %v789, %v959
    %v976 = vadd.f32 %v791, %v961
    %v977 = vadd.f32 %v795, %v965
    %v978 = vadd.f32 %v797, %v967
    %v979 = vld [vmem:[#allocation2 + $0x30] sm:$0xff]
    %v980 = vld [vmem:[#allocation2 + $0x38] sm:$0xff]
    %v981 = vld [vmem:[#allocation2 + $0x40] sm:$0xff]
    %v982 = vld [vmem:[#allocation2 + $0x48] sm:$0xff]
    %v983 = vld [vmem:[#allocation2 + $0x50] sm:$0xff]
    %v984 = vld [vmem:[#allocation2 + $0x58] sm:$0xff]
    %v985 = vld [vmem:[#allocation2 + $0x60] sm:$0xff]
    %v986 = vld [vmem:[#allocation2 + $0x68] sm:$0xff]
    %v987 = vld [vmem:[#allocation2 + $0x70] sm:$0xff]
    %v988 = vld [vmem:[#allocation2 + $0x78] sm:$0xff]
    %s989 = scalar_lea.vmem [#allocation10], 1536
    %v990 = vld [vmem:[%s989] sm:$0xff]
    %v991 = vld [vmem:[%s989 + $0x8] sm:$0xff]
    %v992 = vld [vmem:[%s989 + $0x10] sm:$0xff]
    %v993 = vld [vmem:[%s989 + $0x18] sm:$0xff]
    %v994 = vld [vmem:[%s989 + $0x20] sm:$0xff]
    %v995 = vld [vmem:[%s989 + $0x28] sm:$0xff]
    %v996 = vld [vmem:[%s989 + $0x30] sm:$0xff]
    %v997 = vld [vmem:[%s989 + $0x38] sm:$0xff]
    %v998 = vld [vmem:[%s989 + $0x40] sm:$0xff]
    %v999 = vld [vmem:[%s989 + $0x48] sm:$0xff]
    %v1000 = vld [vmem:[%s989 + $0x50] sm:$0xff]
    %v1001 = vld [vmem:[%s989 + $0x58] sm:$0xff]
    %v1002 = vld [vmem:[%s989 + $0x60] sm:$0xff]
    %v1003 = vld [vmem:[%s989 + $0x68] sm:$0xff]
    %v1004 = vld [vmem:[%s989 + $0x70] sm:$0xff]
    %v1005 = vld [vmem:[%s989 + $0x78] sm:$0xff]
    %v1006 = vld [vmem:[%s989 + $0x80] sm:$0xff]
    %v1007 = vld [vmem:[%s989 + $0x88] sm:$0xff]
    %v1008 = vld [vmem:[%s989 + $0x90] sm:$0xff]
    %v1009 = vld [vmem:[%s989 + $0x98] sm:$0xff]
    %v1010 = vld [vmem:[%s989 + $0xa0] sm:$0xff]
    %v1011 = vld [vmem:[%s989 + $0xa8] sm:$0xff]
    %v1012 = vld [vmem:[%s989 + $0xb0] sm:$0xff]
    %v1013 = vld [vmem:[%s989 + $0xb8] sm:$0xff]
    %v1014 = vld [vmem:[%s989 + $0xc0] sm:$0xff]
    %v1015 = vld [vmem:[%s989 + $0xc8] sm:$0xff]
    %v1016 = vld [vmem:[%s989 + $0xd0] sm:$0xff]
    %v1017 = vld [vmem:[%s989 + $0xd8] sm:$0xff]
    %v1018 = vld [vmem:[%s989 + $0xe0] sm:$0xff]
    %v1019 = vld [vmem:[%s989 + $0xe8] sm:$0xff]
    %v1020 = vld [vmem:[%s989 + $0xf0] sm:$0xff]
    %v1021 = vld [vmem:[%s989 + $0xf8] sm:$0xff]
    %v1022 = vld [vmem:[%s989 + $0x100] sm:$0xff]
    %v1023 = vld [vmem:[%s989 + $0x108] sm:$0xff]
    %v1024 = vld [vmem:[%s989 + $0x110] sm:$0xff]
    %v1025 = vld [vmem:[%s989 + $0x118] sm:$0xff]
    %v1026 = vld [vmem:[%s989 + $0x120] sm:$0xff]
    %v1027 = vld [vmem:[%s989 + $0x128] sm:$0xff]
    %v1028 = vld [vmem:[%s989 + $0x130] sm:$0xff]
    %v1029 = vld [vmem:[%s989 + $0x138] sm:$0xff]
    %v1030 = vld [vmem:[%s989 + $0x140] sm:$0xff]
    %v1031 = vld [vmem:[%s989 + $0x148] sm:$0xff]
    %v1032 = vld [vmem:[%s989 + $0x150] sm:$0xff]
    %v1033 = vld [vmem:[%s989 + $0x158] sm:$0xff]
    %v1034 = vld [vmem:[%s989 + $0x160] sm:$0xff]
    %v1035 = vld [vmem:[%s989 + $0x168] sm:$0xff]
    %v1036 = vld [vmem:[%s989 + $0x170] sm:$0xff]
    %v1037 = vld [vmem:[%s989 + $0x178] sm:$0xff]
    %v1038 = vld [vmem:[%s989 + $0x180] sm:$0xff]
    %v1039 = vld [vmem:[%s989 + $0x188] sm:$0xff]
    %v1040 = vld [vmem:[%s989 + $0x190] sm:$0xff]
    %v1041 = vld [vmem:[%s989 + $0x198] sm:$0xff]
    %v1042 = vld [vmem:[%s989 + $0x1a0] sm:$0xff]
    %v1043 = vld [vmem:[%s989 + $0x1a8] sm:$0xff]
    %v1044 = vld [vmem:[%s989 + $0x1b0] sm:$0xff]
    %v1045 = vld [vmem:[%s989 + $0x1b8] sm:$0xff]
    %v1046 = vld [vmem:[%s989 + $0x1c0] sm:$0xff]
    %v1047 = vld [vmem:[%s989 + $0x1c8] sm:$0xff]
    %v1048 = vld [vmem:[%s989 + $0x1d0] sm:$0xff]
    %v1049 = vld [vmem:[%s989 + $0x1d8] sm:$0xff]
    %v1050 = vld [vmem:[%s989 + $0x1e0] sm:$0xff]
    %v1051 = vld [vmem:[%s989 + $0x1e8] sm:$0xff]
    %v1052 = vld [vmem:[%s989 + $0x1f0] sm:$0xff]
    %v1053 = vld [vmem:[%s989 + $0x1f8] sm:$0xff]
    %1054 = vmatprep.subr.mxu0 %v991
    %1055 = vmatpush1.msra.mxu0 %v990
    %1056 = vmatprep.subr.mxu0 %v993
    %1057 = vmatpush1.msra.mxu0 %v992
    %1058 = vmatprep.subr.mxu0 %v995
    %1059 = vmatpush1.msra.mxu0 %v994
    %1060 = vmatprep.subr.mxu0 %v997
    %1061 = vmatpush1.msra.mxu0 %v996
    %1062 = vmatprep.subr.mxu0 %v999
    %1063 = vmatpush1.msra.mxu0 %v998
    %1064 = vmatprep.subr.mxu0 %v1001
    %1065 = vmatpush1.msra.mxu0 %v1000
    %1066 = vmatprep.subr.mxu0 %v1003
    %1067 = vmatpush1.msra.mxu0 %v1002
    %1068 = vmatprep.subr.mxu0 %v1005
    %1069 = vmatpush1.msra.mxu0 %v1004
    %1070 = vmatprep.subr.mxu0 %v1007
    %1071 = vmatpush1.msra.mxu0 %v1006
    %1072 = vmatprep.subr.mxu0 %v1009
    %1073 = vmatpush1.msra.mxu0 %v1008
    %1074 = vmatprep.subr.mxu0 %v1011
    %1075 = vmatpush1.msra.mxu0 %v1010
    %1076 = vmatprep.subr.mxu0 %v1013
    %1077 = vmatpush1.msra.mxu0 %v1012
    %1078 = vmatprep.subr.mxu0 %v1015
    %1079 = vmatpush1.msra.mxu0 %v1014
    %1080 = vmatprep.subr.mxu0 %v1017
    %1081 = vmatpush1.msra.mxu0 %v1016
    %1082 = vmatprep.subr.mxu0 %v1019
    %1083 = vmatpush1.msra.mxu0 %v1018
    %1084 = vmatprep.subr.mxu0 %v1021
    %1085 = vmatpush1.msra.mxu0 %v1020
    %1086 = vmatprep.subr.mxu0 %v1023
    %1087 = vmatpush1.msra.mxu0 %v1022
    %1088 = vmatprep.subr.mxu0 %v1025
    %1089 = vmatpush1.msra.mxu0 %v1024
    %1090 = vmatprep.subr.mxu0 %v1027
    %1091 = vmatpush1.msra.mxu0 %v1026
    %1092 = vmatprep.subr.mxu0 %v1029
    %1093 = vmatpush1.msra.mxu0 %v1028
    %1094 = vmatprep.subr.mxu0 %v1031
    %1095 = vmatpush1.msra.mxu0 %v1030
    %1096 = vmatprep.subr.mxu0 %v1033
    %1097 = vmatpush1.msra.mxu0 %v1032
    %1098 = vmatprep.subr.mxu0 %v1035
    %1099 = vmatpush1.msra.mxu0 %v1034
    %1100 = vmatprep.subr.mxu0 %v1037
    %1101 = vmatpush1.msra.mxu0 %v1036
    %1102 = vmatprep.subr.mxu0 %v1039
    %1103 = vmatpush1.msra.mxu0 %v1038
    %1104 = vmatprep.subr.mxu0 %v1041
    %1105 = vmatpush1.msra.mxu0 %v1040
    %1106 = vmatprep.subr.mxu0 %v1043
    %1107 = vmatpush1.msra.mxu0 %v1042
    %1108 = vmatprep.subr.mxu0 %v1045
    %1109 = vmatpush1.msra.mxu0 %v1044
    %1110 = vmatprep.subr.mxu0 %v1047
    %1111 = vmatpush1.msra.mxu0 %v1046
    %1112 = vmatprep.subr.mxu0 %v1049
    %1113 = vmatpush1.msra.mxu0 %v1048
    %1114 = vmatprep.subr.mxu0 %v1051
    %1115 = vmatpush1.msra.mxu0 %v1050
    %1116 = vmatprep.subr.mxu0 %v1053
    %1117 = vmatpush1.msra.mxu0 %v1052
    %1118 = vmatprep.mubr.f32.mxu0 %v980
    %1119 = vmatmul.mubr.f32.gmra.mrb[0].mxu0 %v979
    %v1120 = vpop.f32.mrb[0].mxu0
    %v1121 = vadd.f32 0.0, %v1120
    %v1122 = vpop.f32.mrb[0].mxu0
    %v1123 = vadd.f32 0.0, %v1122
    %1124 = vmatprep.mubr.f32.mxu0 %v982
    %1125 = vmatmul.mubr.f32.gmra.mrb[0].mxu0 %v981
    %v1126 = vpop.f32.mrb[0].mxu0
    %v1127 = vadd.f32 0.0, %v1126
    %v1128 = vpop.f32.mrb[0].mxu0
    %v1129 = vadd.f32 0.0, %v1128
    %1130 = vmatprep.mubr.f32.mxu0 %v984
    %1131 = vmatmul.mubr.f32.gmra.mrb[0].mxu0 %v983
    %v1132 = vpop.f32.mrb[0].mxu0
    %v1133 = vadd.f32 0.0, %v1132
    %v1134 = vpop.f32.mrb[0].mxu0
    %v1135 = vadd.f32 0.0, %v1134
    %1136 = vmatprep.mubr.f32.mxu0 %v986
    %1137 = vmatmul.mubr.f32.gmra.mrb[0].mxu0 %v985
    %v1138 = vpop.f32.mrb[0].mxu0
    %v1139 = vadd.f32 0.0, %v1138
    %v1140 = vpop.f32.mrb[0].mxu0
    %v1141 = vadd.f32 0.0, %v1140
    %1142 = vmatprep.mubr.f32.mxu0 %v988
    %1143 = vmatmul.mubr.f32.gmra.mrb[0].mxu0 %v987
    %v1144 = vpop.f32.mrb[0].mxu0
    %v1145 = vadd.f32 0.0, %v1144
    %v1146 = vpop.f32.mrb[0].mxu0
    %v1147 = vadd.f32 0.0, %v1146
    %1148 = vdwg.mxu0
    %v1149 = vadd.f32 %v969, %v1121
    %v1150 = vadd.f32 %v970, %v1123
    %v1151 = vadd.f32 %v971, %v1127
    %v1152 = vadd.f32 %v972, %v1129
    %v1153 = vadd.f32 %v973, %v1133
    %v1154 = vadd.f32 %v974, %v1135
    %v1155 = vadd.f32 %v975, %v1139
    %v1156 = vadd.f32 %v976, %v1141
    %v1157 = vadd.f32 %v977, %v1145
    %v1158 = vadd.f32 %v978, %v1147
    %v1159 = vld [vmem:[#allocation2 + $0x40] sm:$0xff]
    %v1160 = vld [vmem:[#allocation2 + $0x48] sm:$0xff]
    %v1161 = vld [vmem:[#allocation2 + $0x50] sm:$0xff]
    %v1162 = vld [vmem:[#allocation2 + $0x58] sm:$0xff]
    %v1163 = vld [vmem:[#allocation2 + $0x60] sm:$0xff]
    %v1164 = vld [vmem:[#allocation2 + $0x68] sm:$0xff]
    %v1165 = vld [vmem:[#allocation2 + $0x70] sm:$0xff]
    %v1166 = vld [vmem:[#allocation2 + $0x78] sm:$0xff]
    %v1167 = vld [vmem:[#allocation2 + $0x80] sm:$0xff]
    %v1168 = vld [vmem:[#allocation2 + $0x88] sm:$0xff]
    %s1169 = scalar_lea.vmem [#allocation10], 2048
    %v1170 = vld [vmem:[%s1169] sm:$0xff]
    %v1171 = vld [vmem:[%s1169 + $0x8] sm:$0xff]
    %v1172 = vld [vmem:[%s1169 + $0x10] sm:$0xff]
    %v1173 = vld [vmem:[%s1169 + $0x18] sm:$0xff]
    %v1174 = vld [vmem:[%s1169 + $0x20] sm:$0xff]
    %v1175 = vld [vmem:[%s1169 + $0x28] sm:$0xff]
    %v1176 = vld [vmem:[%s1169 + $0x30] sm:$0xff]
    %v1177 = vld [vmem:[%s1169 + $0x38] sm:$0xff]
    %v1178 = vld [vmem:[%s1169 + $0x40] sm:$0xff]
    %v1179 = vld [vmem:[%s1169 + $0x48] sm:$0xff]
    %v1180 = vld [vmem:[%s1169 + $0x50] sm:$0xff]
    %v1181 = vld [vmem:[%s1169 + $0x58] sm:$0xff]
    %v1182 = vld [vmem:[%s1169 + $0x60] sm:$0xff]
    %v1183 = vld [vmem:[%s1169 + $0x68] sm:$0xff]
    %v1184 = vld [vmem:[%s1169 + $0x70] sm:$0xff]
    %v1185 = vld [vmem:[%s1169 + $0x78] sm:$0xff]
    %v1186 = vld [vmem:[%s1169 + $0x80] sm:$0xff]
    %v1187 = vld [vmem:[%s1169 + $0x88] sm:$0xff]
    %v1188 = vld [vmem:[%s1169 + $0x90] sm:$0xff]
    %v1189 = vld [vmem:[%s1169 + $0x98] sm:$0xff]
    %v1190 = vld [vmem:[%s1169 + $0xa0] sm:$0xff]
    %v1191 = vld [vmem:[%s1169 + $0xa8] sm:$0xff]
    %v1192 = vld [vmem:[%s1169 + $0xb0] sm:$0xff]
    %v1193 = vld [vmem:[%s1169 + $0xb8] sm:$0xff]
    %v1194 = vld [vmem:[%s1169 + $0xc0] sm:$0xff]
    %v1195 = vld [vmem:[%s1169 + $0xc8] sm:$0xff]
    %v1196 = vld [vmem:[%s1169 + $0xd0] sm:$0xff]
    %v1197 = vld [vmem:[%s1169 + $0xd8] sm:$0xff]
    %v1198 = vld [vmem:[%s1169 + $0xe0] sm:$0xff]
    %v1199 = vld [vmem:[%s1169 + $0xe8] sm:$0xff]
    %v1200 = vld [vmem:[%s1169 + $0xf0] sm:$0xff]
    %v1201 = vld [vmem:[%s1169 + $0xf8] sm:$0xff]
    %v1202 = vld [vmem:[%s1169 + $0x100] sm:$0xff]
    %v1203 = vld [vmem:[%s1169 + $0x108] sm:$0xff]
    %v1204 = vld [vmem:[%s1169 + $0x110] sm:$0xff]
    %v1205 = vld [vmem:[%s1169 + $0x118] sm:$0xff]
    %v1206 = vld [vmem:[%s1169 + $0x120] sm:$0xff]
    %v1207 = vld [vmem:[%s1169 + $0x128] sm:$0xff]
    %v1208 = vld [vmem:[%s1169 + $0x130] sm:$0xff]
    %v1209 = vld [vmem:[%s1169 + $0x138] sm:$0xff]
    %v1210 = vld [vmem:[%s1169 + $0x140] sm:$0xff]
    %v1211 = vld [vmem:[%s1169 + $0x148] sm:$0xff]
    %v1212 = vld [vmem:[%s1169 + $0x150] sm:$0xff]
    %v1213 = vld [vmem:[%s1169 + $0x158] sm:$0xff]
    %v1214 = vld [vmem:[%s1169 + $0x160] sm:$0xff]
    %v1215 = vld [vmem:[%s1169 + $0x168] sm:$0xff]
    %v1216 = vld [vmem:[%s1169 + $0x170] sm:$0xff]
    %v1217 = vld [vmem:[%s1169 + $0x178] sm:$0xff]
    %v1218 = vld [vmem:[%s1169 + $0x180] sm:$0xff]
    %v1219 = vld [vmem:[%s1169 + $0x188] sm:$0xff]
    %v1220 = vld [vmem:[%s1169 + $0x190] sm:$0xff]
    %v1221 = vld [vmem:[%s1169 + $0x198] sm:$0xff]
    %v1222 = vld [vmem:[%s1169 + $0x1a0] sm:$0xff]
    %v1223 = vld [vmem:[%s1169 + $0x1a8] sm:$0xff]
    %v1224 = vld [vmem:[%s1169 + $0x1b0] sm:$0xff]
    %v1225 = vld [vmem:[%s1169 + $0x1b8] sm:$0xff]
    %v1226 = vld [vmem:[%s1169 + $0x1c0] sm:$0xff]
    %v1227 = vld [vmem:[%s1169 + $0x1c8] sm:$0xff]
    %v1228 = vld [vmem:[%s1169 + $0x1d0] sm:$0xff]
    %v1229 = vld [vmem:[%s1169 + $0x1d8] sm:$0xff]
    %v1230 = vld [vmem:[%s1169 + $0x1e0] sm:$0xff]
    %v1231 = vld [vmem:[%s1169 + $0x1e8] sm:$0xff]
    %v1232 = vld [vmem:[%s1169 + $0x1f0] sm:$0xff]
    %v1233 = vld [vmem:[%s1169 + $0x1f8] sm:$0xff]
    %1234 = vmatprep.subr.mxu0 %v1171
    %1235 = vmatpush1.msra.mxu0 %v1170
    %1236 = vmatprep.subr.mxu0 %v1173
    %1237 = vmatpush1.msra.mxu0 %v1172
    %1238 = vmatprep.subr.mxu0 %v1175
    %1239 = vmatpush1.msra.mxu0 %v1174
    %1240 = vmatprep.subr.mxu0 %v1177
    %1241 = vmatpush1.msra.mxu0 %v1176
    %1242 = vmatprep.subr.mxu0 %v1179
    %1243 = vmatpush1.msra.mxu0 %v1178
    %1244 = vmatprep.subr.mxu0 %v1181
    %1245 = vmatpush1.msra.mxu0 %v1180
    %1246 = vmatprep.subr.mxu0 %v1183
    %1247 = vmatpush1.msra.mxu0 %v1182
    %1248 = vmatprep.subr.mxu0 %v1185
    %1249 = vmatpush1.msra.mxu0 %v1184
    %1250 = vmatprep.subr.mxu0 %v1187
    %1251 = vmatpush1.msra.mxu0 %v1186
    %1252 = vmatprep.subr.mxu0 %v1189
    %1253 = vmatpush1.msra.mxu0 %v1188
    %1254 = vmatprep.subr.mxu0 %v1191
    %1255 = vmatpush1.msra.mxu0 %v1190
    %1256 = vmatprep.subr.mxu0 %v1193
    %1257 = vmatpush1.msra.mxu0 %v1192
    %1258 = vmatprep.subr.mxu0 %v1195
    %1259 = vmatpush1.msra.mxu0 %v1194
    %1260 = vmatprep.subr.mxu0 %v1197
    %1261 = vmatpush1.msra.mxu0 %v1196
    %1262 = vmatprep.subr.mxu0 %v1199
    %1263 = vmatpush1.msra.mxu0 %v1198
    %1264 = vmatprep.subr.mxu0 %v1201
    %1265 = vmatpush1.msra.mxu0 %v1200
    %1266 = vmatprep.subr.mxu0 %v1203
    %1267 = vmatpush1.msra.mxu0 %v1202
    %1268 = vmatprep.subr.mxu0 %v1205
    %1269 = vmatpush1.msra.mxu0 %v1204
    %1270 = vmatprep.subr.mxu0 %v1207
    %1271 = vmatpush1.msra.mxu0 %v1206
    %1272 = vmatprep.subr.mxu0 %v1209
    %1273 = vmatpush1.msra.mxu0 %v1208
    %1274 = vmatprep.subr.mxu0 %v1211
    %1275 = vmatpush1.msra.mxu0 %v1210
    %1276 = vmatprep.subr.mxu0 %v1213
    %1277 = vmatpush1.msra.mxu0 %v1212
    %1278 = vmatprep.subr.mxu0 %v1215
    %1279 = vmatpush1.msra.mxu0 %v1214
    %1280 = vmatprep.subr.mxu0 %v1217
    %1281 = vmatpush1.msra.mxu0 %v1216
    %1282 = vmatprep.subr.mxu0 %v1219
    %1283 = vmatpush1.msra.mxu0 %v1218
    %1284 = vmatprep.subr.mxu0 %v1221
    %1285 = vmatpush1.msra.mxu0 %v1220
    %1286 = vmatprep.subr.mxu0 %v1223
    %1287 = vmatpush1.msra.mxu0 %v1222
    %1288 = vmatprep.subr.mxu0 %v1225
    %1289 = vmatpush1.msra.mxu0 %v1224
    %1290 = vmatprep.subr.mxu0 %v1227
    %1291 = vmatpush1.msra.mxu0 %v1226
    %1292 = vmatprep.subr.mxu0 %v1229
    %1293 = vmatpush1.msra.mxu0 %v1228
    %1294 = vmatprep.subr.mxu0 %v1231
    %1295 = vmatpush1.msra.mxu0 %v1230
    %1296 = vmatprep.subr.mxu0 %v1233
    %1297 = vmatpush1.msra.mxu0 %v1232
    %1298 = vmatprep.mubr.f32.mxu0 %v1160
    %1299 = vmatmul.mubr.f32.gmra.mrb[0].mxu0 %v1159
    %v1300 = vpop.f32.mrb[0].mxu0
    %v1301 = vadd.f32 0.0, %v1300
    %v1302 = vpop.f32.mrb[0].mxu0
    %v1303 = vadd.f32 0.0, %v1302
    %1304 = vmatprep.mubr.f32.mxu0 %v1162
    %1305 = vmatmul.mubr.f32.gmra.mrb[0].mxu0 %v1161
    %v1306 = vpop.f32.mrb[0].mxu0
    %v1307 = vadd.f32 0.0, %v1306
    %v1308 = vpop.f32.mrb[0].mxu0
    %v1309 = vadd.f32 0.0, %v1308
    %1310 = vmatprep.mubr.f32.mxu0 %v1164
    %1311 = vmatmul.mubr.f32.gmra.mrb[0].mxu0 %v1163
    %v1312 = vpop.f32.mrb[0].mxu0
    %v1313 = vadd.f32 0.0, %v1312
    %v1314 = vpop.f32.mrb[0].mxu0
    %v1315 = vadd.f32 0.0, %v1314
    %1316 = vmatprep.mubr.f32.mxu0 %v1166
    %1317 = vmatmul.mubr.f32.gmra.mrb[0].mxu0 %v1165
    %v1318 = vpop.f32.mrb[0].mxu0
    %v1319 = vadd.f32 0.0, %v1318
    %v1320 = vpop.f32.mrb[0].mxu0
    %v1321 = vadd.f32 0.0, %v1320
    %1322 = vmatprep.mubr.f32.mxu0 %v1168
    %1323 = vmatmul.mubr.f32.gmra.mrb[0].mxu0 %v1167
    %v1324 = vpop.f32.mrb[0].mxu0
    %v1325 = vadd.f32 0.0, %v1324
    %v1326 = vpop.f32.mrb[0].mxu0
    %v1327 = vadd.f32 0.0, %v1326
    %1328 = vdwg.mxu0
    %v1329 = vadd.f32 %v1149, %v1301
    %v1330 = vadd.f32 %v1150, %v1303
    %v1331 = vadd.f32 %v1151, %v1307
    %v1332 = vadd.f32 %v1152, %v1309
    %v1333 = vadd.f32 %v1153, %v1313
    %v1334 = vadd.f32 %v1154, %v1315
    %v1335 = vadd.f32 %v1155, %v1319
    %v1336 = vadd.f32 %v1156, %v1321
    %v1337 = vadd.f32 %v1157, %v1325
    %v1338 = vadd.f32 %v1158, %v1327
    %v1339 = vld [vmem:[#allocation11] sm:$0x3]
    %v1341 = vlaneseq
    %v1342 = vshrl.u32 %v1341, 7
    %v1343 = vsub.s32 0, %v1342
    %v1344 = vrot.slane %v1339, %v1343
    %v1345 = vlaneseq
    %v1346 = vshrl.u32 %v1345, 7
    %v1347 = vsub.s32 1, %v1346
    %v1348 = vrot.slane %v1339, %v1347
    %v1351 = vadd.f32 %v1329, %v1344
    %v1352 = vadd.f32 %v1330, %v1348
    %v1353 = vadd.f32 %v1331, %v1344
    %v1354 = vadd.f32 %v1332, %v1348
    %v1355 = vadd.f32 %v1333, %v1344
    %v1356 = vadd.f32 %v1334, %v1348
    %v1357 = vadd.f32 %v1335, %v1344
    %v1358 = vadd.f32 %v1336, %v1348
    %v1359 = vadd.f32 %v1337, %v1344
    %v1360 = vadd.f32 %v1338, %v1348
    %v1361 = vmax.f32 %v1351, 0.0
    %v1362 = vmax.f32 %v1352, 0.0
    %v1363 = vmax.f32 %v1353, 0.0
    %v1364 = vmax.f32 %v1354, 0.0
    %v1365 = vmax.f32 %v1355, 0.0
    %v1366 = vmax.f32 %v1356, 0.0
    %v1367 = vmax.f32 %v1357, 0.0
    %v1368 = vmax.f32 %v1358, 0.0
    %v1369 = vmax.f32 %v1359, 0.0
    %v1370 = vmax.f32 %v1360, 0.0
    %1371 = vst [vmem:[#allocation3] sm:$0xff] 0.0
    %1372 = vst [vmem:[#allocation3 + $0x8] sm:$0xff] 0.0
    %1373 = vst [vmem:[#allocation3 + $0x10] sm:$0xff] 0.0
    %1374 = vst [vmem:[#allocation3 + $0x18] sm:$0xff] 0.0
    %1375 = vst [vmem:[#allocation3 + $0x20] sm:$0xff] 0.0
    %1376 = vst [vmem:[#allocation3 + $0x28] sm:$0xff] 0.0
    %1377 = vst [vmem:[#allocation3 + $0x30] sm:$0xff] 0.0
    %1378 = vst [vmem:[#allocation3 + $0x38] sm:$0xff] 0.0
    %1379 = vst [vmem:[#allocation3 + $0x40] sm:$0xff] 0.0
    %1380 = vst [vmem:[#allocation3 + $0x48] sm:$0xff] 0.0
    %1381 = vst [vmem:[#allocation3 + $0x50] sm:$0xff] 0.0
    %1382 = vst [vmem:[#allocation3 + $0x58] sm:$0xff] 0.0
    %1383 = vst [vmem:[#allocation3 + $0x60] sm:$0xff] 0.0
    %1384 = vst [vmem:[#allocation3 + $0x68] sm:$0xff] 0.0
    %1385 = vst [vmem:[#allocation3 + $0x70] sm:$0xff] 0.0
    %1386 = vst [vmem:[#allocation3 + $0x78] sm:$0xff] 0.0
    %1387 = vst [vmem:[#allocation3 + $0x80] sm:$0xff] 0.0
    %1388 = vst [vmem:[#allocation3 + $0x88] sm:$0xff] 0.0
    %1389 = vst [vmem:[#allocation3 + $0x90] sm:$0xff] 0.0
    %1390 = vst [vmem:[#allocation3 + $0x98] sm:$0xff] 0.0
    %1391 = vst [vmem:[#allocation3 + $0xa0] sm:$0xff] 0.0
    %1392 = vst [vmem:[#allocation3 + $0xa8] sm:$0xff] 0.0
    %1393 = vst [vmem:[#allocation3 + $0xb0] sm:$0xff] 0.0
    %1394 = vst [vmem:[#allocation3 + $0xb8] sm:$0xff] 0.0
    %1395 = vst [vmem:[#allocation3 + $0xc0] sm:$0xff] 0.0
    %1396 = vst [vmem:[#allocation3 + $0xc8] sm:$0xff] 0.0
    %1397 = vst [vmem:[#allocation3 + $0xd0] sm:$0xff] 0.0
    %1398 = vst [vmem:[#allocation3 + $0xd8] sm:$0xff] 0.0
    %1399 = vst [vmem:[#allocation3 + $0xe0] sm:$0xff] 0.0
    %1400 = vst [vmem:[#allocation3 + $0xe8] sm:$0xff] 0.0
    %1401 = vst [vmem:[#allocation3 + $0x30] sm:$0xff] %v1361
    %1402 = vst [vmem:[#allocation3 + $0x38] sm:$0xff] %v1362
    %1403 = vst [vmem:[#allocation3 + $0x50] sm:$0xff] %v1363
    %1404 = vst [vmem:[#allocation3 + $0x58] sm:$0xff] %v1364
    %1405 = vst [vmem:[#allocation3 + $0x70] sm:$0xff] %v1365
    %1406 = vst [vmem:[#allocation3 + $0x78] sm:$0xff] %v1366
    %1407 = vst [vmem:[#allocation3 + $0x90] sm:$0xff] %v1367
    %1408 = vst [vmem:[#allocation3 + $0x98] sm:$0xff] %v1368
    %1409 = vst [vmem:[#allocation3 + $0xb0] sm:$0xff] %v1369
    %1410 = vst [vmem:[#allocation3 + $0xb8] sm:$0xff] %v1370
    %v1411 = vld [vmem:[#allocation3] sm:$0xff]
    %v1412 = vld [vmem:[#allocation3 + $0x8] sm:$0xff]
    %v1413 = vld [vmem:[#allocation3 + $0x10] sm:$0xff]
    %v1414 = vld [vmem:[#allocation3 + $0x18] sm:$0xff]
    %v1415 = vld [vmem:[#allocation3 + $0x20] sm:$0xff]
    %v1416 = vld [vmem:[#allocation3 + $0x28] sm:$0xff]
    %v1417 = vld [vmem:[#allocation3 + $0x30] sm:$0xff]
    %v1418 = vld [vmem:[#allocation3 + $0x38] sm:$0xff]
    %v1419 = vld [vmem:[#allocation3 + $0x40] sm:$0xff]
    %v1420 = vld [vmem:[#allocation3 + $0x48] sm:$0xff]
    %v1421 = vld [vmem:[#allocation3 + $0x50] sm:$0xff]
    %v1422 = vld [vmem:[#allocation3 + $0x58] sm:$0xff]
    %v1423 = vld [vmem:[#allocation3 + $0x60] sm:$0xff]
    %v1424 = vld [vmem:[#allocation3 + $0x68] sm:$0xff]
    %v1425 = vld [vmem:[#allocation3 + $0x70] sm:$0xff]
    %v1426 = vld [vmem:[#allocation3 + $0x78] sm:$0xff]
    %v1427 = vld [vmem:[#allocation3 + $0x80] sm:$0xff]
    %v1428 = vld [vmem:[#allocation3 + $0x88] sm:$0xff]
    %v1429 = vld [vmem:[#allocation3 + $0x90] sm:$0xff]
    %v1430 = vld [vmem:[#allocation3 + $0x98] sm:$0xff]
    %v1431 = vld [vmem:[#allocation3 + $0xa0] sm:$0xff]
    %v1432 = vld [vmem:[#allocation3 + $0xa8] sm:$0xff]
    %v1433 = vld [vmem:[#allocation13] sm:$0xff]
    %v1434 = vld [vmem:[#allocation13 + $0x8] sm:$0xff]
    %v1435 = vld [vmem:[#allocation13 + $0x10] sm:$0xff]
    %v1436 = vld [vmem:[#allocation13 + $0x18] sm:$0xff]
    %v1437 = vld [vmem:[#allocation13 + $0x20] sm:$0xff]
    %v1438 = vld [vmem:[#allocation13 + $0x28] sm:$0xff]
    %v1439 = vld [vmem:[#allocation13 + $0x30] sm:$0xff]
    %v1440 = vld [vmem:[#allocation13 + $0x38] sm:$0xff]
    %v1441 = vld [vmem:[#allocation13 + $0x40] sm:$0xff]
    %v1442 = vld [vmem:[#allocation13 + $0x48] sm:$0xff]
    %v1443 = vld [vmem:[#allocation13 + $0x50] sm:$0xff]
    %v1444 = vld [vmem:[#allocation13 + $0x58] sm:$0xff]
    %v1445 = vld [vmem:[#allocation13 + $0x60] sm:$0xff]
    %v1446 = vld [vmem:[#allocation13 + $0x68] sm:$0xff]
    %v1447 = vld [vmem:[#allocation13 + $0x70] sm:$0xff]
    %v1448 = vld [vmem:[#allocation13 + $0x78] sm:$0xff]
    %v1449 = vld [vmem:[#allocation13 + $0x80] sm:$0xff]
    %v1450 = vld [vmem:[#allocation13 + $0x88] sm:$0xff]
    %v1451 = vld [vmem:[#allocation13 + $0x90] sm:$0xff]
    %v1452 = vld [vmem:[#allocation13 + $0x98] sm:$0xff]
    %v1453 = vld [vmem:[#allocation13 + $0xa0] sm:$0xff]
    %v1454 = vld [vmem:[#allocation13 + $0xa8] sm:$0xff]
    %v1455 = vld [vmem:[#allocation13 + $0xb0] sm:$0xff]
    %v1456 = vld [vmem:[#allocation13 + $0xb8] sm:$0xff]
    %v1457 = vld [vmem:[#allocation13 + $0xc0] sm:$0xff]
    %v1458 = vld [vmem:[#allocation13 + $0xc8] sm:$0xff]
    %v1459 = vld [vmem:[#allocation13 + $0xd0] sm:$0xff]
    %v1460 = vld [vmem:[#allocation13 + $0xd8] sm:$0xff]
    %v1461 = vld [vmem:[#allocation13 + $0xe0] sm:$0xff]
    %v1462 = vld [vmem:[#allocation13 + $0xe8] sm:$0xff]
    %v1463 = vld [vmem:[#allocation13 + $0xf0] sm:$0xff]
    %v1464 = vld [vmem:[#allocation13 + $0xf8] sm:$0xff]
    %v1465 = vld [vmem:[#allocation13 + $0x100] sm:$0xff]
    %v1466 = vld [vmem:[#allocation13 + $0x108] sm:$0xff]
    %v1467 = vld [vmem:[#allocation13 + $0x110] sm:$0xff]
    %v1468 = vld [vmem:[#allocation13 + $0x118] sm:$0xff]
    %v1469 = vld [vmem:[#allocation13 + $0x120] sm:$0xff]
    %v1470 = vld [vmem:[#allocation13 + $0x128] sm:$0xff]
    %v1471 = vld [vmem:[#allocation13 + $0x130] sm:$0xff]
    %v1472 = vld [vmem:[#allocation13 + $0x138] sm:$0xff]
    %v1473 = vld [vmem:[#allocation13 + $0x140] sm:$0xff]
    %v1474 = vld [vmem:[#allocation13 + $0x148] sm:$0xff]
    %v1475 = vld [vmem:[#allocation13 + $0x150] sm:$0xff]
    %v1476 = vld [vmem:[#allocation13 + $0x158] sm:$0xff]
    %v1477 = vld [vmem:[#allocation13 + $0x160] sm:$0xff]
    %v1478 = vld [vmem:[#allocation13 + $0x168] sm:$0xff]
    %v1479 = vld [vmem:[#allocation13 + $0x170] sm:$0xff]
    %v1480 = vld [vmem:[#allocation13 + $0x178] sm:$0xff]
    %v1481 = vld [vmem:[#allocation13 + $0x180] sm:$0xff]
    %v1482 = vld [vmem:[#allocation13 + $0x188] sm:$0xff]
    %v1483 = vld [vmem:[#allocation13 + $0x190] sm:$0xff]
    %v1484 = vld [vmem:[#allocation13 + $0x198] sm:$0xff]
    %v1485 = vld [vmem:[#allocation13 + $0x1a0] sm:$0xff]
    %v1486 = vld [vmem:[#allocation13 + $0x1a8] sm:$0xff]
    %v1487 = vld [vmem:[#allocation13 + $0x1b0] sm:$0xff]
    %v1488 = vld [vmem:[#allocation13 + $0x1b8] sm:$0xff]
    %v1489 = vld [vmem:[#allocation13 + $0x1c0] sm:$0xff]
    %v1490 = vld [vmem:[#allocation13 + $0x1c8] sm:$0xff]
    %v1491 = vld [vmem:[#allocation13 + $0x1d0] sm:$0xff]
    %v1492 = vld [vmem:[#allocation13 + $0x1d8] sm:$0xff]
    %v1493 = vld [vmem:[#allocation13 + $0x1e0] sm:$0xff]
    %v1494 = vld [vmem:[#allocation13 + $0x1e8] sm:$0xff]
    %v1495 = vld [vmem:[#allocation13 + $0x1f0] sm:$0xff]
    %v1496 = vld [vmem:[#allocation13 + $0x1f8] sm:$0xff]
    %v1497 = vld [vmem:[#allocation3 + $0xb0] sm:$0xff]
    %v1498 = vld [vmem:[#allocation3 + $0xb8] sm:$0xff]
    %s1499 = scalar_lea.vmem [#allocation13], 512
    %v1500 = vld [vmem:[%s1499] sm:$0xff]
    %v1501 = vld [vmem:[%s1499 + $0x8] sm:$0xff]
    %v1502 = vld [vmem:[%s1499 + $0x10] sm:$0xff]
    %v1503 = vld [vmem:[%s1499 + $0x18] sm:$0xff]
    %v1504 = vld [vmem:[%s1499 + $0x20] sm:$0xff]
    %v1505 = vld [vmem:[%s1499 + $0x28] sm:$0xff]
    %v1506 = vld [vmem:[%s1499 + $0x30] sm:$0xff]
    %v1507 = vld [vmem:[%s1499 + $0x38] sm:$0xff]
    %v1508 = vld [vmem:[%s1499 + $0x40] sm:$0xff]
    %v1509 = vld [vmem:[%s1499 + $0x48] sm:$0xff]
    %v1510 = vld [vmem:[%s1499 + $0x50] sm:$0xff]
    %v1511 = vld [vmem:[%s1499 + $0x58] sm:$0xff]
    %v1512 = vld [vmem:[%s1499 + $0x60] sm:$0xff]
    %v1513 = vld [vmem:[%s1499 + $0x68] sm:$0xff]
    %v1514 = vld [vmem:[%s1499 + $0x70] sm:$0xff]
    %v1515 = vld [vmem:[%s1499 + $0x78] sm:$0xff]
    %v1516 = vld [vmem:[%s1499 + $0x80] sm:$0xff]
    %v1517 = vld [vmem:[%s1499 + $0x88] sm:$0xff]
    %v1518 = vld [vmem:[%s1499 + $0x90] sm:$0xff]
    %v1519 = vld [vmem:[%s1499 + $0x98] sm:$0xff]
    %v1520 = vld [vmem:[%s1499 + $0xa0] sm:$0xff]
    %v1521 = vld [vmem:[%s1499 + $0xa8] sm:$0xff]
    %v1522 = vld [vmem:[%s1499 + $0xb0] sm:$0xff]
    %v1523 = vld [vmem:[%s1499 + $0xb8] sm:$0xff]
    %v1524 = vld [vmem:[%s1499 + $0xc0] sm:$0xff]
    %v1525 = vld [vmem:[%s1499 + $0xc8] sm:$0xff]
    %v1526 = vld [vmem:[%s1499 + $0xd0] sm:$0xff]
    %v1527 = vld [vmem:[%s1499 + $0xd8] sm:$0xff]
    %v1528 = vld [vmem:[%s1499 + $0xe0] sm:$0xff]
    %v1529 = vld [vmem:[%s1499 + $0xe8] sm:$0xff]
    %v1530 = vld [vmem:[%s1499 + $0xf0] sm:$0xff]
    %v1531 = vld [vmem:[%s1499 + $0xf8] sm:$0xff]
    %v1532 = vld [vmem:[%s1499 + $0x100] sm:$0xff]
    %v1533 = vld [vmem:[%s1499 + $0x108] sm:$0xff]
    %v1534 = vld [vmem:[%s1499 + $0x110] sm:$0xff]
    %v1535 = vld [vmem:[%s1499 + $0x118] sm:$0xff]
    %v1536 = vld [vmem:[%s1499 + $0x120] sm:$0xff]
    %v1537 = vld [vmem:[%s1499 + $0x128] sm:$0xff]
    %v1538 = vld [vmem:[%s1499 + $0x130] sm:$0xff]
    %v1539 = vld [vmem:[%s1499 + $0x138] sm:$0xff]
    %v1540 = vld [vmem:[%s1499 + $0x140] sm:$0xff]
    %v1541 = vld [vmem:[%s1499 + $0x148] sm:$0xff]
    %v1542 = vld [vmem:[%s1499 + $0x150] sm:$0xff]
    %v1543 = vld [vmem:[%s1499 + $0x158] sm:$0xff]
    %v1544 = vld [vmem:[%s1499 + $0x160] sm:$0xff]
    %v1545 = vld [vmem:[%s1499 + $0x168] sm:$0xff]
    %v1546 = vld [vmem:[%s1499 + $0x170] sm:$0xff]
    %v1547 = vld [vmem:[%s1499 + $0x178] sm:$0xff]
    %v1548 = vld [vmem:[%s1499 + $0x180] sm:$0xff]
    %v1549 = vld [vmem:[%s1499 + $0x188] sm:$0xff]
    %v1550 = vld [vmem:[%s1499 + $0x190] sm:$0xff]
    %v1551 = vld [vmem:[%s1499 + $0x198] sm:$0xff]
    %v1552 = vld [vmem:[%s1499 + $0x1a0] sm:$0xff]
    %v1553 = vld [vmem:[%s1499 + $0x1a8] sm:$0xff]
    %v1554 = vld [vmem:[%s1499 + $0x1b0] sm:$0xff]
    %v1555 = vld [vmem:[%s1499 + $0x1b8] sm:$0xff]
    %v1556 = vld [vmem:[%s1499 + $0x1c0] sm:$0xff]
    %v1557 = vld [vmem:[%s1499 + $0x1c8] sm:$0xff]
    %v1558 = vld [vmem:[%s1499 + $0x1d0] sm:$0xff]
    %v1559 = vld [vmem:[%s1499 + $0x1d8] sm:$0xff]
    %v1560 = vld [vmem:[%s1499 + $0x1e0] sm:$0xff]
    %v1561 = vld [vmem:[%s1499 + $0x1e8] sm:$0xff]
    %v1562 = vld [vmem:[%s1499 + $0x1f0] sm:$0xff]
    %v1563 = vld [vmem:[%s1499 + $0x1f8] sm:$0xff]
    %1564 = vmatprep.subr.mxu0 %v1501
    %1565 = vmatpush1.msra.mxu0 %v1500
    %1566 = vmatprep.subr.mxu0 %v1503
    %1567 = vmatpush1.msra.mxu0 %v1502
    %1568 = vmatprep.subr.mxu0 %v1505
    %1569 = vmatpush1.msra.mxu0 %v1504
    %1570 = vmatprep.subr.mxu0 %v1507
    %1571 = vmatpush1.msra.mxu0 %v1506
    %1572 = vmatprep.subr.mxu0 %v1509
    %1573 = vmatpush1.msra.mxu0 %v1508
    %1574 = vmatprep.subr.mxu0 %v1511
    %1575 = vmatpush1.msra.mxu0 %v1510
    %1576 = vmatprep.subr.mxu0 %v1513
    %1577 = vmatpush1.msra.mxu0 %v1512
    %1578 = vmatprep.subr.mxu0 %v1515
    %1579 = vmatpush1.msra.mxu0 %v1514
    %1580 = vmatprep.subr.mxu0 %v1517
    %1581 = vmatpush1.msra.mxu0 %v1516
    %1582 = vmatprep.subr.mxu0 %v1519
    %1583 = vmatpush1.msra.mxu0 %v1518
    %1584 = vmatprep.subr.mxu0 %v1521
    %1585 = vmatpush1.msra.mxu0 %v1520
    %1586 = vmatprep.subr.mxu0 %v1523
    %1587 = vmatpush1.msra.mxu0 %v1522
    %1588 = vmatprep.subr.mxu0 %v1525
    %1589 = vmatpush1.msra.mxu0 %v1524
    %1590 = vmatprep.subr.mxu0 %v1527
    %1591 = vmatpush1.msra.mxu0 %v1526
    %1592 = vmatprep.subr.mxu0 %v1529
    %1593 = vmatpush1.msra.mxu0 %v1528
    %1594 = vmatprep.subr.mxu0 %v1531
    %1595 = vmatpush1.msra.mxu0 %v1530
    %1596 = vmatprep.subr.mxu0 %v1533
    %1597 = vmatpush1.msra.mxu0 %v1532
    %1598 = vmatprep.subr.mxu0 %v1535
    %1599 = vmatpush1.msra.mxu0 %v1534
    %1600 = vmatprep.subr.mxu0 %v1537
    %1601 = vmatpush1.msra.mxu0 %v1536
    %1602 = vmatprep.subr.mxu0 %v1539
    %1603 = vmatpush1.msra.mxu0 %v1538
    %1604 = vmatprep.subr.mxu0 %v1541
    %1605 = vmatpush1.msra.mxu0 %v1540
    %1606 = vmatprep.subr.mxu0 %v1543
    %1607 = vmatpush1.msra.mxu0 %v1542
    %1608 = vmatprep.subr.mxu0 %v1545
    %1609 = vmatpush1.msra.mxu0 %v1544
    %1610 = vmatprep.subr.mxu0 %v1547
    %1611 = vmatpush1.msra.mxu0 %v1546
    %1612 = vmatprep.subr.mxu0 %v1549
    %1613 = vmatpush1.msra.mxu0 %v1548
    %1614 = vmatprep.subr.mxu0 %v1551
    %1615 = vmatpush1.msra.mxu0 %v1550
    %1616 = vmatprep.subr.mxu0 %v1553
    %1617 = vmatpush1.msra.mxu0 %v1552
    %1618 = vmatprep.subr.mxu0 %v1555
    %1619 = vmatpush1.msra.mxu0 %v1554
    %1620 = vmatprep.subr.mxu0 %v1557
    %1621 = vmatpush1.msra.mxu0 %v1556
    %1622 = vmatprep.subr.mxu0 %v1559
    %1623 = vmatpush1.msra.mxu0 %v1558
    %1624 = vmatprep.subr.mxu0 %v1561
    %1625 = vmatpush1.msra.mxu0 %v1560
    %1626 = vmatprep.subr.mxu0 %v1563
    %1627 = vmatpush1.msra.mxu0 %v1562
    %1628 = vmatprep.mubr.f32.mxu0 %v1414
    %1629 = vmatmul.mubr.f32.gmra.mrb[0].mxu0 %v1413
    %v1630 = vpop.f32.mrb[0].mxu0
    %v1631 = vadd.f32 0.0, %v1630
    %v1632 = vpop.f32.mrb[0].mxu0
    %v1633 = vadd.f32 0.0, %v1632
    %1634 = vmatprep.mubr.f32.mxu0 %v1416
    %1635 = vmatmul.mubr.f32.gmra.mrb[0].mxu0 %v1415
    %v1636 = vpop.f32.mrb[0].mxu0
    %v1637 = vadd.f32 0.0, %v1636
    %v1638 = vpop.f32.mrb[0].mxu0
    %v1639 = vadd.f32 0.0, %v1638
    %1640 = vmatprep.mubr.f32.mxu0 %v1418
    %1641 = vmatmul.mubr.f32.gmra.mrb[0].mxu0 %v1417
    %v1642 = vpop.f32.mrb[0].mxu0
    %v1643 = vadd.f32 0.0, %v1642
    %v1644 = vpop.f32.mrb[0].mxu0
    %v1645 = vadd.f32 0.0, %v1644
    %1646 = vmatprep.mubr.f32.mxu0 %v1420
    %1647 = vmatmul.mubr.f32.gmra.mrb[0].mxu0 %v1419
    %v1648 = vpop.f32.mrb[0].mxu0
    %v1649 = vadd.f32 0.0, %v1648
    %v1650 = vpop.f32.mrb[0].mxu0
    %v1651 = vadd.f32 0.0, %v1650
    %1652 = vmatprep.mubr.f32.mxu0 %v1422
    %1653 = vmatmul.mubr.f32.gmra.mrb[0].mxu0 %v1421
    %v1654 = vpop.f32.mrb[0].mxu0
    %v1655 = vadd.f32 0.0, %v1654
    %v1656 = vpop.f32.mrb[0].mxu0
    %v1657 = vadd.f32 0.0, %v1656
    %1658 = vmatprep.mubr.f32.mxu0 %v1424
    %1659 = vmatmul.mubr.f32.gmra.mrb[0].mxu0 %v1423
    %v1660 = vpop.f32.mrb[0].mxu0
    %v1661 = vadd.f32 0.0, %v1660
    %v1662 = vpop.f32.mrb[0].mxu0
    %v1663 = vadd.f32 0.0, %v1662
    %1664 = vmatprep.mubr.f32.mxu0 %v1426
    %1665 = vmatmul.mubr.f32.gmra.mrb[0].mxu0 %v1425
    %v1666 = vpop.f32.mrb[0].mxu0
    %v1667 = vadd.f32 0.0, %v1666
    %v1668 = vpop.f32.mrb[0].mxu0
    %v1669 = vadd.f32 0.0, %v1668
    %1670 = vmatprep.mubr.f32.mxu0 %v1428
    %1671 = vmatmul.mubr.f32.gmra.mrb[0].mxu0 %v1427
    %v1672 = vpop.f32.mrb[0].mxu0
    %v1673 = vadd.f32 0.0, %v1672
    %v1674 = vpop.f32.mrb[0].mxu0
    %v1675 = vadd.f32 0.0, %v1674
    %1676 = vmatprep.mubr.f32.mxu0 %v1430
    %1677 = vmatmul.mubr.f32.gmra.mrb[0].mxu0 %v1429
    %v1678 = vpop.f32.mrb[0].mxu0
    %v1679 = vadd.f32 0.0, %v1678
    %v1680 = vpop.f32.mrb[0].mxu0
    %v1681 = vadd.f32 0.0, %v1680
    %1682 = vmatprep.mubr.f32.mxu0 %v1432
    %1683 = vmatmul.mubr.f32.gmra.mrb[0].mxu0 %v1431
    %v1684 = vpop.f32.mrb[0].mxu0
    %v1685 = vadd.f32 0.0, %v1684
    %v1686 = vpop.f32.mrb[0].mxu0
    %v1687 = vadd.f32 0.0, %v1686
    %1688 = vmatprep.mubr.f32.mxu0 %v1498
    %1689 = vmatmul.mubr.f32.gmra.mrb[0].mxu0 %v1497
    %v1690 = vpop.f32.mrb[0].mxu0
    %v1691 = vadd.f32 0.0, %v1690
    %v1692 = vpop.f32.mrb[0].mxu0
    %v1693 = vadd.f32 0.0, %v1692
    %1694 = vdwg.mxu0
    %1695 = vmatprep.subr.mxu0 %v1434
    %1696 = vmatpush1.msra.mxu0 %v1433
    %1697 = vmatprep.subr.mxu0 %v1436
    %1698 = vmatpush1.msra.mxu0 %v1435
    %1699 = vmatprep.subr.mxu0 %v1438
    %1700 = vmatpush1.msra.mxu0 %v1437
    %1701 = vmatprep.subr.mxu0 %v1440
    %1702 = vmatpush1.msra.mxu0 %v1439
    %1703 = vmatprep.subr.mxu0 %v1442
    %1704 = vmatpush1.msra.mxu0 %v1441
    %1705 = vmatprep.subr.mxu0 %v1444
    %1706 = vmatpush1.msra.mxu0 %v1443
    %1707 = vmatprep.subr.mxu0 %v1446
    %1708 = vmatpush1.msra.mxu0 %v1445
    %1709 = vmatprep.subr.mxu0 %v1448
    %1710 = vmatpush1.msra.mxu0 %v1447
    %1711 = vmatprep.subr.mxu0 %v1450
    %1712 = vmatpush1.msra.mxu0 %v1449
    %1713 = vmatprep.subr.mxu0 %v1452
    %1714 = vmatpush1.msra.mxu0 %v1451
    %1715 = vmatprep.subr.mxu0 %v1454
    %1716 = vmatpush1.msra.mxu0 %v1453
    %1717 = vmatprep.subr.mxu0 %v1456
    %1718 = vmatpush1.msra.mxu0 %v1455
    %1719 = vmatprep.subr.mxu0 %v1458
    %1720 = vmatpush1.msra.mxu0 %v1457
    %1721 = vmatprep.subr.mxu0 %v1460
    %1722 = vmatpush1.msra.mxu0 %v1459
    %1723 = vmatprep.subr.mxu0 %v1462
    %1724 = vmatpush1.msra.mxu0 %v1461
    %1725 = vmatprep.subr.mxu0 %v1464
    %1726 = vmatpush1.msra.mxu0 %v1463
    %1727 = vmatprep.subr.mxu0 %v1466
    %1728 = vmatpush1.msra.mxu0 %v1465
    %1729 = vmatprep.subr.mxu0 %v1468
    %1730 = vmatpush1.msra.mxu0 %v1467
    %1731 = vmatprep.subr.mxu0 %v1470
    %1732 = vmatpush1.msra.mxu0 %v1469
    %1733 = vmatprep.subr.mxu0 %v1472
    %1734 = vmatpush1.msra.mxu0 %v1471
    %1735 = vmatprep.subr.mxu0 %v1474
    %1736 = vmatpush1.msra.mxu0 %v1473
    %1737 = vmatprep.subr.mxu0 %v1476
    %1738 = vmatpush1.msra.mxu0 %v1475
    %1739 = vmatprep.subr.mxu0 %v1478
    %1740 = vmatpush1.msra.mxu0 %v1477
    %1741 = vmatprep.subr.mxu0 %v1480
    %1742 = vmatpush1.msra.mxu0 %v1479
    %1743 = vmatprep.subr.mxu0 %v1482
    %1744 = vmatpush1.msra.mxu0 %v1481
    %1745 = vmatprep.subr.mxu0 %v1484
    %1746 = vmatpush1.msra.mxu0 %v1483
    %1747 = vmatprep.subr.mxu0 %v1486
    %1748 = vmatpush1.msra.mxu0 %v1485
    %1749 = vmatprep.subr.mxu0 %v1488
    %1750 = vmatpush1.msra.mxu0 %v1487
    %1751 = vmatprep.subr.mxu0 %v1490
    %1752 = vmatpush1.msra.mxu0 %v1489
    %1753 = vmatprep.subr.mxu0 %v1492
    %1754 = vmatpush1.msra.mxu0 %v1491
    %1755 = vmatprep.subr.mxu0 %v1494
    %1756 = vmatpush1.msra.mxu0 %v1493
    %1757 = vmatprep.subr.mxu0 %v1496
    %1758 = vmatpush1.msra.mxu0 %v1495
    %1759 = vmatprep.mubr.f32.mxu0 %v1412
    %1760 = vmatmul.mubr.f32.gmra.mrb[0].mxu0 %v1411
    %v1761 = vpop.f32.mrb[0].mxu0
    %v1762 = vadd.f32 %v1631, %v1761
    %v1763 = vpop.f32.mrb[0].mxu0
    %v1764 = vadd.f32 %v1633, %v1763
    %1765 = vmatprep.mubr.f32.mxu0 %v1414
    %1766 = vmatmul.mubr.f32.gmra.mrb[0].mxu0 %v1413
    %v1767 = vpop.f32.mrb[0].mxu0
    %v1768 = vadd.f32 %v1637, %v1767
    %v1769 = vpop.f32.mrb[0].mxu0
    %v1770 = vadd.f32 %v1639, %v1769
    %1771 = vmatprep.mubr.f32.mxu0 %v1416
    %1772 = vmatmul.mubr.f32.gmra.mrb[0].mxu0 %v1415
    %v1773 = vpop.f32.mrb[0].mxu0
    %v1774 = vadd.f32 %v1643, %v1773
    %v1775 = vpop.f32.mrb[0].mxu0
    %v1776 = vadd.f32 %v1645, %v1775
    %1777 = vmatprep.mubr.f32.mxu0 %v1418
    %1778 = vmatmul.mubr.f32.gmra.mrb[0].mxu0 %v1417
    %v1779 = vpop.f32.mrb[0].mxu0
    %v1780 = vadd.f32 %v1649, %v1779
    %v1781 = vpop.f32.mrb[0].mxu0
    %v1782 = vadd.f32 %v1651, %v1781
    %1783 = vmatprep.mubr.f32.mxu0 %v1420
    %1784 = vmatmul.mubr.f32.gmra.mrb[0].mxu0 %v1419
    %v1785 = vpop.f32.mrb[0].mxu0
    %v1786 = vadd.f32 %v1655, %v1785
    %v1787 = vpop.f32.mrb[0].mxu0
    %v1788 = vadd.f32 %v1657, %v1787
    %1789 = vmatprep.mubr.f32.mxu0 %v1422
    %1790 = vmatmul.mubr.f32.gmra.mrb[0].mxu0 %v1421
    %v1791 = vpop.f32.mrb[0].mxu0
    %v1792 = vadd.f32 %v1661, %v1791
    %v1793 = vpop.f32.mrb[0].mxu0
    %v1794 = vadd.f32 %v1663, %v1793
    %1795 = vmatprep.mubr.f32.mxu0 %v1424
    %1796 = vmatmul.mubr.f32.gmra.mrb[0].mxu0 %v1423
    %v1797 = vpop.f32.mrb[0].mxu0
    %v1798 = vadd.f32 %v1667, %v1797
    %v1799 = vpop.f32.mrb[0].mxu0
    %v1800 = vadd.f32 %v1669, %v1799
    %1801 = vmatprep.mubr.f32.mxu0 %v1426
    %1802 = vmatmul.mubr.f32.gmra.mrb[0].mxu0 %v1425
    %v1803 = vpop.f32.mrb[0].mxu0
    %v1804 = vadd.f32 %v1673, %v1803
    %v1805 = vpop.f32.mrb[0].mxu0
    %v1806 = vadd.f32 %v1675, %v1805
    %1807 = vmatprep.mubr.f32.mxu0 %v1428
    %1808 = vmatmul.mubr.f32.gmra.mrb[0].mxu0 %v1427
    %v1809 = vpop.f32.mrb[0].mxu0
    %v1810 = vadd.f32 %v1679, %v1809
    %v1811 = vpop.f32.mrb[0].mxu0
    %v1812 = vadd.f32 %v1681, %v1811
    %1813 = vmatprep.mubr.f32.mxu0 %v1430
    %1814 = vmatmul.mubr.f32.gmra.mrb[0].mxu0 %v1429
    %v1815 = vpop.f32.mrb[0].mxu0
    %v1816 = vadd.f32 %v1685, %v1815
    %v1817 = vpop.f32.mrb[0].mxu0
    %v1818 = vadd.f32 %v1687, %v1817
    %1819 = vmatprep.mubr.f32.mxu0 %v1432
    %1820 = vmatmul.mubr.f32.gmra.mrb[0].mxu0 %v1431
    %v1821 = vpop.f32.mrb[0].mxu0
    %v1822 = vadd.f32 %v1691, %v1821
    %v1823 = vpop.f32.mrb[0].mxu0
    %v1824 = vadd.f32 %v1693, %v1823
    %1825 = vdwg.mxu0
    %v1826 = vld [vmem:[#allocation3 + $0x20] sm:$0xff]
    %v1827 = vld [vmem:[#allocation3 + $0x28] sm:$0xff]
    %v1828 = vld [vmem:[#allocation3 + $0x30] sm:$0xff]
    %v1829 = vld [vmem:[#allocation3 + $0x38] sm:$0xff]
    %v1830 = vld [vmem:[#allocation3 + $0x40] sm:$0xff]
    %v1831 = vld [vmem:[#allocation3 + $0x48] sm:$0xff]
    %v1832 = vld [vmem:[#allocation3 + $0x50] sm:$0xff]
    %v1833 = vld [vmem:[#allocation3 + $0x58] sm:$0xff]
    %v1834 = vld [vmem:[#allocation3 + $0x60] sm:$0xff]
    %v1835 = vld [vmem:[#allocation3 + $0x68] sm:$0xff]
    %v1836 = vld [vmem:[#allocation3 + $0x70] sm:$0xff]
    %v1837 = vld [vmem:[#allocation3 + $0x78] sm:$0xff]
    %v1838 = vld [vmem:[#allocation3 + $0x80] sm:$0xff]
    %v1839 = vld [vmem:[#allocation3 + $0x88] sm:$0xff]
    %v1840 = vld [vmem:[#allocation3 + $0x90] sm:$0xff]
    %v1841 = vld [vmem:[#allocation3 + $0x98] sm:$0xff]
    %v1842 = vld [vmem:[#allocation3 + $0xa0] sm:$0xff]
    %v1843 = vld [vmem:[#allocation3 + $0xa8] sm:$0xff]
    %v1844 = vld [vmem:[#allocation3 + $0xb0] sm:$0xff]
    %v1845 = vld [vmem:[#allocation3 + $0xb8] sm:$0xff]
    %v1846 = vld [vmem:[#allocation3 + $0xc0] sm:$0xff]
    %v1847 = vld [vmem:[#allocation3 + $0xc8] sm:$0xff]
    %s1848 = scalar_lea.vmem [#allocation13], 1024
    %v1849 = vld [vmem:[%s1848] sm:$0xff]
    %v1850 = vld [vmem:[%s1848 + $0x8] sm:$0xff]
    %v1851 = vld [vmem:[%s1848 + $0x10] sm:$0xff]
    %v1852 = vld [vmem:[%s1848 + $0x18] sm:$0xff]
    %v1853 = vld [vmem:[%s1848 + $0x20] sm:$0xff]
    %v1854 = vld [vmem:[%s1848 + $0x28] sm:$0xff]
    %v1855 = vld [vmem:[%s1848 + $0x30] sm:$0xff]
    %v1856 = vld [vmem:[%s1848 + $0x38] sm:$0xff]
    %v1857 = vld [vmem:[%s1848 + $0x40] sm:$0xff]
    %v1858 = vld [vmem:[%s1848 + $0x48] sm:$0xff]
    %v1859 = vld [vmem:[%s1848 + $0x50] sm:$0xff]
    %v1860 = vld [vmem:[%s1848 + $0x58] sm:$0xff]
    %v1861 = vld [vmem:[%s1848 + $0x60] sm:$0xff]
    %v1862 = vld [vmem:[%s1848 + $0x68] sm:$0xff]
    %v1863 = vld [vmem:[%s1848 + $0x70] sm:$0xff]
    %v1864 = vld [vmem:[%s1848 + $0x78] sm:$0xff]
    %v1865 = vld [vmem:[%s1848 + $0x80] sm:$0xff]
    %v1866 = vld [vmem:[%s1848 + $0x88] sm:$0xff]
    %v1867 = vld [vmem:[%s1848 + $0x90] sm:$0xff]
    %v1868 = vld [vmem:[%s1848 + $0x98] sm:$0xff]
    %v1869 = vld [vmem:[%s1848 + $0xa0] sm:$0xff]
    %v1870 = vld [vmem:[%s1848 + $0xa8] sm:$0xff]
    %v1871 = vld [vmem:[%s1848 + $0xb0] sm:$0xff]
    %v1872 = vld [vmem:[%s1848 + $0xb8] sm:$0xff]
    %v1873 = vld [vmem:[%s1848 + $0xc0] sm:$0xff]
    %v1874 = vld [vmem:[%s1848 + $0xc8] sm:$0xff]
    %v1875 = vld [vmem:[%s1848 + $0xd0] sm:$0xff]
    %v1876 = vld [vmem:[%s1848 + $0xd8] sm:$0xff]
    %v1877 = vld [vmem:[%s1848 + $0xe0] sm:$0xff]
    %v1878 = vld [vmem:[%s1848 + $0xe8] sm:$0xff]
    %v1879 = vld [vmem:[%s1848 + $0xf0] sm:$0xff]
    %v1880 = vld [vmem:[%s1848 + $0xf8] sm:$0xff]
    %v1881 = vld [vmem:[%s1848 + $0x100] sm:$0xff]
    %v1882 = vld [vmem:[%s1848 + $0x108] sm:$0xff]
    %v1883 = vld [vmem:[%s1848 + $0x110] sm:$0xff]
    %v1884 = vld [vmem:[%s1848 + $0x118] sm:$0xff]
    %v1885 = vld [vmem:[%s1848 + $0x120] sm:$0xff]
    %v1886 = vld [vmem:[%s1848 + $0x128] sm:$0xff]
    %v1887 = vld [vmem:[%s1848 + $0x130] sm:$0xff]
    %v1888 = vld [vmem:[%s1848 + $0x138] sm:$0xff]
    %v1889 = vld [vmem:[%s1848 + $0x140] sm:$0xff]
    %v1890 = vld [vmem:[%s1848 + $0x148] sm:$0xff]
    %v1891 = vld [vmem:[%s1848 + $0x150] sm:$0xff]
    %v1892 = vld [vmem:[%s1848 + $0x158] sm:$0xff]
    %v1893 = vld [vmem:[%s1848 + $0x160] sm:$0xff]
    %v1894 = vld [vmem:[%s1848 + $0x168] sm:$0xff]
    %v1895 = vld [vmem:[%s1848 + $0x170] sm:$0xff]
    %v1896 = vld [vmem:[%s1848 + $0x178] sm:$0xff]
    %v1897 = vld [vmem:[%s1848 + $0x180] sm:$0xff]
    %v1898 = vld [vmem:[%s1848 + $0x188] sm:$0xff]
    %v1899 = vld [vmem:[%s1848 + $0x190] sm:$0xff]
    %v1900 = vld [vmem:[%s1848 + $0x198] sm:$0xff]
    %v1901 = vld [vmem:[%s1848 + $0x1a0] sm:$0xff]
    %v1902 = vld [vmem:[%s1848 + $0x1a8] sm:$0xff]
    %v1903 = vld [vmem:[%s1848 + $0x1b0] sm:$0xff]
    %v1904 = vld [vmem:[%s1848 + $0x1b8] sm:$0xff]
    %v1905 = vld [vmem:[%s1848 + $0x1c0] sm:$0xff]
    %v1906 = vld [vmem:[%s1848 + $0x1c8] sm:$0xff]
    %v1907 = vld [vmem:[%s1848 + $0x1d0] sm:$0xff]
    %v1908 = vld [vmem:[%s1848 + $0x1d8] sm:$0xff]
    %v1909 = vld [vmem:[%s1848 + $0x1e0] sm:$0xff]
    %v1910 = vld [vmem:[%s1848 + $0x1e8] sm:$0xff]
    %v1911 = vld [vmem:[%s1848 + $0x1f0] sm:$0xff]
    %v1912 = vld [vmem:[%s1848 + $0x1f8] sm:$0xff]
    %1913 = vmatprep.subr.mxu0 %v1850
    %1914 = vmatpush1.msra.mxu0 %v1849
    %1915 = vmatprep.subr.mxu0 %v1852
    %1916 = vmatpush1.msra.mxu0 %v1851
    %1917 = vmatprep.subr.mxu0 %v1854
    %1918 = vmatpush1.msra.mxu0 %v1853
    %1919 = vmatprep.subr.mxu0 %v1856
    %1920 = vmatpush1.msra.mxu0 %v1855
    %1921 = vmatprep.subr.mxu0 %v1858
    %1922 = vmatpush1.msra.mxu0 %v1857
    %1923 = vmatprep.subr.mxu0 %v1860
    %1924 = vmatpush1.msra.mxu0 %v1859
    %1925 = vmatprep.subr.mxu0 %v1862
    %1926 = vmatpush1.msra.mxu0 %v1861
    %1927 = vmatprep.subr.mxu0 %v1864
    %1928 = vmatpush1.msra.mxu0 %v1863
    %1929 = vmatprep.subr.mxu0 %v1866
    %1930 = vmatpush1.msra.mxu0 %v1865
    %1931 = vmatprep.subr.mxu0 %v1868
    %1932 = vmatpush1.msra.mxu0 %v1867
    %1933 = vmatprep.subr.mxu0 %v1870
    %1934 = vmatpush1.msra.mxu0 %v1869
    %1935 = vmatprep.subr.mxu0 %v1872
    %1936 = vmatpush1.msra.mxu0 %v1871
    %1937 = vmatprep.subr.mxu0 %v1874
    %1938 = vmatpush1.msra.mxu0 %v1873
    %1939 = vmatprep.subr.mxu0 %v1876
    %1940 = vmatpush1.msra.mxu0 %v1875
    %1941 = vmatprep.subr.mxu0 %v1878
    %1942 = vmatpush1.msra.mxu0 %v1877
    %1943 = vmatprep.subr.mxu0 %v1880
    %1944 = vmatpush1.msra.mxu0 %v1879
    %1945 = vmatprep.subr.mxu0 %v1882
    %1946 = vmatpush1.msra.mxu0 %v1881
    %1947 = vmatprep.subr.mxu0 %v1884
    %1948 = vmatpush1.msra.mxu0 %v1883
    %1949 = vmatprep.subr.mxu0 %v1886
    %1950 = vmatpush1.msra.mxu0 %v1885
    %1951 = vmatprep.subr.mxu0 %v1888
    %1952 = vmatpush1.msra.mxu0 %v1887
    %1953 = vmatprep.subr.mxu0 %v1890
    %1954 = vmatpush1.msra.mxu0 %v1889
    %1955 = vmatprep.subr.mxu0 %v1892
    %1956 = vmatpush1.msra.mxu0 %v1891
    %1957 = vmatprep.subr.mxu0 %v1894
    %1958 = vmatpush1.msra.mxu0 %v1893
    %1959 = vmatprep.subr.mxu0 %v1896
    %1960 = vmatpush1.msra.mxu0 %v1895
    %1961 = vmatprep.subr.mxu0 %v1898
    %1962 = vmatpush1.msra.mxu0 %v1897
    %1963 = vmatprep.subr.mxu0 %v1900
    %1964 = vmatpush1.msra.mxu0 %v1899
    %1965 = vmatprep.subr.mxu0 %v1902
    %1966 = vmatpush1.msra.mxu0 %v1901
    %1967 = vmatprep.subr.mxu0 %v1904
    %1968 = vmatpush1.msra.mxu0 %v1903
    %1969 = vmatprep.subr.mxu0 %v1906
    %1970 = vmatpush1.msra.mxu0 %v1905
    %1971 = vmatprep.subr.mxu0 %v1908
    %1972 = vmatpush1.msra.mxu0 %v1907
    %1973 = vmatprep.subr.mxu0 %v1910
    %1974 = vmatpush1.msra.mxu0 %v1909
    %1975 = vmatprep.subr.mxu0 %v1912
    %1976 = vmatpush1.msra.mxu0 %v1911
    %1977 = vmatprep.mubr.f32.mxu0 %v1827
    %1978 = vmatmul.mubr.f32.gmra.mrb[0].mxu0 %v1826
    %v1979 = vpop.f32.mrb[0].mxu0
    %v1980 = vadd.f32 0.0, %v1979
    %v1981 = vpop.f32.mrb[0].mxu0
    %v1982 = vadd.f32 0.0, %v1981
    %1983 = vmatprep.mubr.f32.mxu0 %v1829
    %1984 = vmatmul.mubr.f32.gmra.mrb[0].mxu0 %v1828
    %v1985 = vpop.f32.mrb[0].mxu0
    %v1986 = vadd.f32 0.0, %v1985
    %v1987 = vpop.f32.mrb[0].mxu0
    %v1988 = vadd.f32 0.0, %v1987
    %1989 = vmatprep.mubr.f32.mxu0 %v1831
    %1990 = vmatmul.mubr.f32.gmra.mrb[0].mxu0 %v1830
    %v1991 = vpop.f32.mrb[0].mxu0
    %v1992 = vadd.f32 0.0, %v1991
    %v1993 = vpop.f32.mrb[0].mxu0
    %v1994 = vadd.f32 0.0, %v1993
    %1995 = vmatprep.mubr.f32.mxu0 %v1833
    %1996 = vmatmul.mubr.f32.gmra.mrb[0].mxu0 %v1832
    %v1997 = vpop.f32.mrb[0].mxu0
    %v1998 = vadd.f32 0.0, %v1997
    %v1999 = vpop.f32.mrb[0].mxu0
    %v2000 = vadd.f32 0.0, %v1999
    %2001 = vmatprep.mubr.f32.mxu0 %v1835
    %2002 = vmatmul.mubr.f32.gmra.mrb[0].mxu0 %v1834
    %v2003 = vpop.f32.mrb[0].mxu0
    %v2004 = vadd.f32 0.0, %v2003
    %v2005 = vpop.f32.mrb[0].mxu0
    %v2006 = vadd.f32 0.0, %v2005
    %2007 = vmatprep.mubr.f32.mxu0 %v1837
    %2008 = vmatmul.mubr.f32.gmra.mrb[0].mxu0 %v1836
    %v2009 = vpop.f32.mrb[0].mxu0
    %v2010 = vadd.f32 0.0, %v2009
    %v2011 = vpop.f32.mrb[0].mxu0
    %v2012 = vadd.f32 0.0, %v2011
    %2013 = vmatprep.mubr.f32.mxu0 %v1839
    %2014 = vmatmul.mubr.f32.gmra.mrb[0].mxu0 %v1838
    %v2015 = vpop.f32.mrb[0].mxu0
    %v2016 = vadd.f32 0.0, %v2015
    %v2017 = vpop.f32.mrb[0].mxu0
    %v2018 = vadd.f32 0.0, %v2017
    %2019 = vmatprep.mubr.f32.mxu0 %v1841
    %2020 = vmatmul.mubr.f32.gmra.mrb[0].mxu0 %v1840
    %v2021 = vpop.f32.mrb[0].mxu0
    %v2022 = vadd.f32 0.0, %v2021
    %v2023 = vpop.f32.mrb[0].mxu0
    %v2024 = vadd.f32 0.0, %v2023
    %2025 = vmatprep.mubr.f32.mxu0 %v1843
    %2026 = vmatmul.mubr.f32.gmra.mrb[0].mxu0 %v1842
    %v2027 = vpop.f32.mrb[0].mxu0
    %v2028 = vadd.f32 0.0, %v2027
    %v2029 = vpop.f32.mrb[0].mxu0
    %v2030 = vadd.f32 0.0, %v2029
    %2031 = vmatprep.mubr.f32.mxu0 %v1845
    %2032 = vmatmul.mubr.f32.gmra.mrb[0].mxu0 %v1844
    %v2033 = vpop.f32.mrb[0].mxu0
    %v2034 = vadd.f32 0.0, %v2033
    %v2035 = vpop.f32.mrb[0].mxu0
    %v2036 = vadd.f32 0.0, %v2035
    %2037 = vmatprep.mubr.f32.mxu0 %v1847
    %2038 = vmatmul.mubr.f32.gmra.mrb[0].mxu0 %v1846
    %v2039 = vpop.f32.mrb[0].mxu0
    %v2040 = vadd.f32 0.0, %v2039
    %v2041 = vpop.f32.mrb[0].mxu0
    %v2042 = vadd.f32 0.0, %v2041
    %2043 = vdwg.mxu0
    %v2044 = vadd.f32 %v1762, %v1980
    %v2045 = vadd.f32 %v1764, %v1982
    %v2046 = vadd.f32 %v1768, %v1986
    %v2047 = vadd.f32 %v1770, %v1988
    %v2048 = vadd.f32 %v1774, %v1992
    %v2049 = vadd.f32 %v1776, %v1994
    %v2050 = vadd.f32 %v1780, %v1998
    %v2051 = vadd.f32 %v1782, %v2000
    %v2052 = vadd.f32 %v1786, %v2004
    %v2053 = vadd.f32 %v1788, %v2006
    %v2054 = vadd.f32 %v1792, %v2010
    %v2055 = vadd.f32 %v1794, %v2012
    %v2056 = vadd.f32 %v1798, %v2016
    %v2057 = vadd.f32 %v1800, %v2018
    %v2058 = vadd.f32 %v1804, %v2022
    %v2059 = vadd.f32 %v1806, %v2024
    %v2060 = vadd.f32 %v1810, %v2028
    %v2061 = vadd.f32 %v1812, %v2030
    %v2062 = vadd.f32 %v1816, %v2034
    %v2063 = vadd.f32 %v1818, %v2036
    %v2064 = vadd.f32 %v1822, %v2040
    %v2065 = vadd.f32 %v1824, %v2042
    %v2066 = vld [vmem:[#allocation3 + $0x30] sm:$0xff]
    %v2067 = vld [vmem:[#allocation3 + $0x38] sm:$0xff]
    %v2068 = vld [vmem:[#allocation3 + $0x40] sm:$0xff]
    %v2069 = vld [vmem:[#allocation3 + $0x48] sm:$0xff]
    %v2070 = vld [vmem:[#allocation3 + $0x50] sm:$0xff]
    %v2071 = vld [vmem:[#allocation3 + $0x58] sm:$0xff]
    %v2072 = vld [vmem:[#allocation3 + $0x60] sm:$0xff]
    %v2073 = vld [vmem:[#allocation3 + $0x68] sm:$0xff]
    %v2074 = vld [vmem:[#allocation3 + $0x70] sm:$0xff]
    %v2075 = vld [vmem:[#allocation3 + $0x78] sm:$0xff]
    %v2076 = vld [vmem:[#allocation3 + $0x80] sm:$0xff]
    %v2077 = vld [vmem:[#allocation3 + $0x88] sm:$0xff]
    %v2078 = vld [vmem:[#allocation3 + $0x90] sm:$0xff]
    %v2079 = vld [vmem:[#allocation3 + $0x98] sm:$0xff]
    %v2080 = vld [vmem:[#allocation3 + $0xa0] sm:$0xff]
    %v2081 = vld [vmem:[#allocation3 + $0xa8] sm:$0xff]
    %v2082 = vld [vmem:[#allocation3 + $0xb0] sm:$0xff]
    %v2083 = vld [vmem:[#allocation3 + $0xb8] sm:$0xff]
    %v2084 = vld [vmem:[#allocation3 + $0xc0] sm:$0xff]
    %v2085 = vld [vmem:[#allocation3 + $0xc8] sm:$0xff]
    %v2086 = vld [vmem:[#allocation3 + $0xd0] sm:$0xff]
    %v2087 = vld [vmem:[#allocation3 + $0xd8] sm:$0xff]
    %s2088 = scalar_lea.vmem [#allocation13], 1536
    %v2089 = vld [vmem:[%s2088] sm:$0xff]
    %v2090 = vld [vmem:[%s2088 + $0x8] sm:$0xff]
    %v2091 = vld [vmem:[%s2088 + $0x10] sm:$0xff]
    %v2092 = vld [vmem:[%s2088 + $0x18] sm:$0xff]
    %v2093 = vld [vmem:[%s2088 + $0x20] sm:$0xff]
    %v2094 = vld [vmem:[%s2088 + $0x28] sm:$0xff]
    %v2095 = vld [vmem:[%s2088 + $0x30] sm:$0xff]
    %v2096 = vld [vmem:[%s2088 + $0x38] sm:$0xff]
    %v2097 = vld [vmem:[%s2088 + $0x40] sm:$0xff]
    %v2098 = vld [vmem:[%s2088 + $0x48] sm:$0xff]
    %v2099 = vld [vmem:[%s2088 + $0x50] sm:$0xff]
    %v2100 = vld [vmem:[%s2088 + $0x58] sm:$0xff]
    %v2101 = vld [vmem:[%s2088 + $0x60] sm:$0xff]
    %v2102 = vld [vmem:[%s2088 + $0x68] sm:$0xff]
    %v2103 = vld [vmem:[%s2088 + $0x70] sm:$0xff]
    %v2104 = vld [vmem:[%s2088 + $0x78] sm:$0xff]
    %v2105 = vld [vmem:[%s2088 + $0x80] sm:$0xff]
    %v2106 = vld [vmem:[%s2088 + $0x88] sm:$0xff]
    %v2107 = vld [vmem:[%s2088 + $0x90] sm:$0xff]
    %v2108 = vld [vmem:[%s2088 + $0x98] sm:$0xff]
    %v2109 = vld [vmem:[%s2088 + $0xa0] sm:$0xff]
    %v2110 = vld [vmem:[%s2088 + $0xa8] sm:$0xff]
    %v2111 = vld [vmem:[%s2088 + $0xb0] sm:$0xff]
    %v2112 = vld [vmem:[%s2088 + $0xb8] sm:$0xff]
    %v2113 = vld [vmem:[%s2088 + $0xc0] sm:$0xff]
    %v2114 = vld [vmem:[%s2088 + $0xc8] sm:$0xff]
    %v2115 = vld [vmem:[%s2088 + $0xd0] sm:$0xff]
    %v2116 = vld [vmem:[%s2088 + $0xd8] sm:$0xff]
    %v2117 = vld [vmem:[%s2088 + $0xe0] sm:$0xff]
    %v2118 = vld [vmem:[%s2088 + $0xe8] sm:$0xff]
    %v2119 = vld [vmem:[%s2088 + $0xf0] sm:$0xff]
    %v2120 = vld [vmem:[%s2088 + $0xf8] sm:$0xff]
    %v2121 = vld [vmem:[%s2088 + $0x100] sm:$0xff]
    %v2122 = vld [vmem:[%s2088 + $0x108] sm:$0xff]
    %v2123 = vld [vmem:[%s2088 + $0x110] sm:$0xff]
    %v2124 = vld [vmem:[%s2088 + $0x118] sm:$0xff]
    %v2125 = vld [vmem:[%s2088 + $0x120] sm:$0xff]
    %v2126 = vld [vmem:[%s2088 + $0x128] sm:$0xff]
    %v2127 = vld [vmem:[%s2088 + $0x130] sm:$0xff]
    %v2128 = vld [vmem:[%s2088 + $0x138] sm:$0xff]
    %v2129 = vld [vmem:[%s2088 + $0x140] sm:$0xff]
    %v2130 = vld [vmem:[%s2088 + $0x148] sm:$0xff]
    %v2131 = vld [vmem:[%s2088 + $0x150] sm:$0xff]
    %v2132 = vld [vmem:[%s2088 + $0x158] sm:$0xff]
    %v2133 = vld [vmem:[%s2088 + $0x160] sm:$0xff]
    %v2134 = vld [vmem:[%s2088 + $0x168] sm:$0xff]
    %v2135 = vld [vmem:[%s2088 + $0x170] sm:$0xff]
    %v2136 = vld [vmem:[%s2088 + $0x178] sm:$0xff]
    %v2137 = vld [vmem:[%s2088 + $0x180] sm:$0xff]
    %v2138 = vld [vmem:[%s2088 + $0x188] sm:$0xff]
    %v2139 = vld [vmem:[%s2088 + $0x190] sm:$0xff]
    %v2140 = vld [vmem:[%s2088 + $0x198] sm:$0xff]
    %v2141 = vld [vmem:[%s2088 + $0x1a0] sm:$0xff]
    %v2142 = vld [vmem:[%s2088 + $0x1a8] sm:$0xff]
    %v2143 = vld [vmem:[%s2088 + $0x1b0] sm:$0xff]
    %v2144 = vld [vmem:[%s2088 + $0x1b8] sm:$0xff]
    %v2145 = vld [vmem:[%s2088 + $0x1c0] sm:$0xff]
    %v2146 = vld [vmem:[%s2088 + $0x1c8] sm:$0xff]
    %v2147 = vld [vmem:[%s2088 + $0x1d0] sm:$0xff]
    %v2148 = vld [vmem:[%s2088 + $0x1d8] sm:$0xff]
    %v2149 = vld [vmem:[%s2088 + $0x1e0] sm:$0xff]
    %v2150 = vld [vmem:[%s2088 + $0x1e8] sm:$0xff]
    %v2151 = vld [vmem:[%s2088 + $0x1f0] sm:$0xff]
    %v2152 = vld [vmem:[%s2088 + $0x1f8] sm:$0xff]
    %2153 = vmatprep.subr.mxu0 %v2090
    %2154 = vmatpush1.msra.mxu0 %v2089
    %2155 = vmatprep.subr.mxu0 %v2092
    %2156 = vmatpush1.msra.mxu0 %v2091
    %2157 = vmatprep.subr.mxu0 %v2094
    %2158 = vmatpush1.msra.mxu0 %v2093
    %2159 = vmatprep.subr.mxu0 %v2096
    %2160 = vmatpush1.msra.mxu0 %v2095
    %2161 = vmatprep.subr.mxu0 %v2098
    %2162 = vmatpush1.msra.mxu0 %v2097
    %2163 = vmatprep.subr.mxu0 %v2100
    %2164 = vmatpush1.msra.mxu0 %v2099
    %2165 = vmatprep.subr.mxu0 %v2102
    %2166 = vmatpush1.msra.mxu0 %v2101
    %2167 = vmatprep.subr.mxu0 %v2104
    %2168 = vmatpush1.msra.mxu0 %v2103
    %2169 = vmatprep.subr.mxu0 %v2106
    %2170 = vmatpush1.msra.mxu0 %v2105
    %2171 = vmatprep.subr.mxu0 %v2108
    %2172 = vmatpush1.msra.mxu0 %v2107
    %2173 = vmatprep.subr.mxu0 %v2110
    %2174 = vmatpush1.msra.mxu0 %v2109
    %2175 = vmatprep.subr.mxu0 %v2112
    %2176 = vmatpush1.msra.mxu0 %v2111
    %2177 = vmatprep.subr.mxu0 %v2114
    %2178 = vmatpush1.msra.mxu0 %v2113
    %2179 = vmatprep.subr.mxu0 %v2116
    %2180 = vmatpush1.msra.mxu0 %v2115
    %2181 = vmatprep.subr.mxu0 %v2118
    %2182 = vmatpush1.msra.mxu0 %v2117
    %2183 = vmatprep.subr.mxu0 %v2120
    %2184 = vmatpush1.msra.mxu0 %v2119
    %2185 = vmatprep.subr.mxu0 %v2122
    %2186 = vmatpush1.msra.mxu0 %v2121
    %2187 = vmatprep.subr.mxu0 %v2124
    %2188 = vmatpush1.msra.mxu0 %v2123
    %2189 = vmatprep.subr.mxu0 %v2126
    %2190 = vmatpush1.msra.mxu0 %v2125
    %2191 = vmatprep.subr.mxu0 %v2128
    %2192 = vmatpush1.msra.mxu0 %v2127
    %2193 = vmatprep.subr.mxu0 %v2130
    %2194 = vmatpush1.msra.mxu0 %v2129
    %2195 = vmatprep.subr.mxu0 %v2132
    %2196 = vmatpush1.msra.mxu0 %v2131
    %2197 = vmatprep.subr.mxu0 %v2134
    %2198 = vmatpush1.msra.mxu0 %v2133
    %2199 = vmatprep.subr.mxu0 %v2136
    %2200 = vmatpush1.msra.mxu0 %v2135
    %2201 = vmatprep.subr.mxu0 %v2138
    %2202 = vmatpush1.msra.mxu0 %v2137
    %2203 = vmatprep.subr.mxu0 %v2140
    %2204 = vmatpush1.msra.mxu0 %v2139
    %2205 = vmatprep.subr.mxu0 %v2142
    %2206 = vmatpush1.msra.mxu0 %v2141
    %2207 = vmatprep.subr.mxu0 %v2144
    %2208 = vmatpush1.msra.mxu0 %v2143
    %2209 = vmatprep.subr.mxu0 %v2146
    %2210 = vmatpush1.msra.mxu0 %v2145
    %2211 = vmatprep.subr.mxu0 %v2148
    %2212 = vmatpush1.msra.mxu0 %v2147
    %2213 = vmatprep.subr.mxu0 %v2150
    %2214 = vmatpush1.msra.mxu0 %v2149
    %2215 = vmatprep.subr.mxu0 %v2152
    %2216 = vmatpush1.msra.mxu0 %v2151
    %2217 = vmatprep.mubr.f32.mxu0 %v2067
    %2218 = vmatmul.mubr.f32.gmra.mrb[0].mxu0 %v2066
    %v2219 = vpop.f32.mrb[0].mxu0
    %v2220 = vadd.f32 0.0, %v2219
    %v2221 = vpop.f32.mrb[0].mxu0
    %v2222 = vadd.f32 0.0, %v2221
    %2223 = vmatprep.mubr.f32.mxu0 %v2069
    %2224 = vmatmul.mubr.f32.gmra.mrb[0].mxu0 %v2068
    %v2225 = vpop.f32.mrb[0].mxu0
    %v2226 = vadd.f32 0.0, %v2225
    %v2227 = vpop.f32.mrb[0].mxu0
    %v2228 = vadd.f32 0.0, %v2227
    %2229 = vmatprep.mubr.f32.mxu0 %v2071
    %2230 = vmatmul.mubr.f32.gmra.mrb[0].mxu0 %v2070
    %v2231 = vpop.f32.mrb[0].mxu0
    %v2232 = vadd.f32 0.0, %v2231
    %v2233 = vpop.f32.mrb[0].mxu0
    %v2234 = vadd.f32 0.0, %v2233
    %2235 = vmatprep.mubr.f32.mxu0 %v2073
    %2236 = vmatmul.mubr.f32.gmra.mrb[0].mxu0 %v2072
    %v2237 = vpop.f32.mrb[0].mxu0
    %v2238 = vadd.f32 0.0, %v2237
    %v2239 = vpop.f32.mrb[0].mxu0
    %v2240 = vadd.f32 0.0, %v2239
    %2241 = vmatprep.mubr.f32.mxu0 %v2075
    %2242 = vmatmul.mubr.f32.gmra.mrb[0].mxu0 %v2074
    %v2243 = vpop.f32.mrb[0].mxu0
    %v2244 = vadd.f32 0.0, %v2243
    %v2245 = vpop.f32.mrb[0].mxu0
    %v2246 = vadd.f32 0.0, %v2245
    %2247 = vmatprep.mubr.f32.mxu0 %v2077
    %2248 = vmatmul.mubr.f32.gmra.mrb[0].mxu0 %v2076
    %v2249 = vpop.f32.mrb[0].mxu0
    %v2250 = vadd.f32 0.0, %v2249
    %v2251 = vpop.f32.mrb[0].mxu0
    %v2252 = vadd.f32 0.0, %v2251
    %2253 = vmatprep.mubr.f32.mxu0 %v2079
    %2254 = vmatmul.mubr.f32.gmra.mrb[0].mxu0 %v2078
    %v2255 = vpop.f32.mrb[0].mxu0
    %v2256 = vadd.f32 0.0, %v2255
    %v2257 = vpop.f32.mrb[0].mxu0
    %v2258 = vadd.f32 0.0, %v2257
    %2259 = vmatprep.mubr.f32.mxu0 %v2081
    %2260 = vmatmul.mubr.f32.gmra.mrb[0].mxu0 %v2080
    %v2261 = vpop.f32.mrb[0].mxu0
    %v2262 = vadd.f32 0.0, %v2261
    %v2263 = vpop.f32.mrb[0].mxu0
    %v2264 = vadd.f32 0.0, %v2263
    %2265 = vmatprep.mubr.f32.mxu0 %v2083
    %2266 = vmatmul.mubr.f32.gmra.mrb[0].mxu0 %v2082
    %v2267 = vpop.f32.mrb[0].mxu0
    %v2268 = vadd.f32 0.0, %v2267
    %v2269 = vpop.f32.mrb[0].mxu0
    %v2270 = vadd.f32 0.0, %v2269
    %2271 = vmatprep.mubr.f32.mxu0 %v2085
    %2272 = vmatmul.mubr.f32.gmra.mrb[0].mxu0 %v2084
    %v2273 = vpop.f32.mrb[0].mxu0
    %v2274 = vadd.f32 0.0, %v2273
    %v2275 = vpop.f32.mrb[0].mxu0
    %v2276 = vadd.f32 0.0, %v2275
    %2277 = vmatprep.mubr.f32.mxu0 %v2087
    %2278 = vmatmul.mubr.f32.gmra.mrb[0].mxu0 %v2086
    %v2279 = vpop.f32.mrb[0].mxu0
    %v2280 = vadd.f32 0.0, %v2279
    %v2281 = vpop.f32.mrb[0].mxu0
    %v2282 = vadd.f32 0.0, %v2281
    %2283 = vdwg.mxu0
    %v2284 = vadd.f32 %v2044, %v2220
    %v2285 = vadd.f32 %v2045, %v2222
    %v2286 = vadd.f32 %v2046, %v2226
    %v2287 = vadd.f32 %v2047, %v2228
    %v2288 = vadd.f32 %v2048, %v2232
    %v2289 = vadd.f32 %v2049, %v2234
    %v2290 = vadd.f32 %v2050, %v2238
    %v2291 = vadd.f32 %v2051, %v2240
    %v2292 = vadd.f32 %v2052, %v2244
    %v2293 = vadd.f32 %v2053, %v2246
    %v2294 = vadd.f32 %v2054, %v2250
    %v2295 = vadd.f32 %v2055, %v2252
    %v2296 = vadd.f32 %v2056, %v2256
    %v2297 = vadd.f32 %v2057, %v2258
    %v2298 = vadd.f32 %v2058, %v2262
    %v2299 = vadd.f32 %v2059, %v2264
    %v2300 = vadd.f32 %v2060, %v2268
    %v2301 = vadd.f32 %v2061, %v2270
    %v2302 = vadd.f32 %v2062, %v2274
    %v2303 = vadd.f32 %v2063, %v2276
    %v2304 = vadd.f32 %v2064, %v2280
    %v2305 = vadd.f32 %v2065, %v2282
    %v2306 = vld [vmem:[#allocation3 + $0x40] sm:$0xff]
    %v2307 = vld [vmem:[#allocation3 + $0x48] sm:$0xff]
    %v2308 = vld [vmem:[#allocation3 + $0x50] sm:$0xff]
    %v2309 = vld [vmem:[#allocation3 + $0x58] sm:$0xff]
    %v2310 = vld [vmem:[#allocation3 + $0x60] sm:$0xff]
    %v2311 = vld [vmem:[#allocation3 + $0x68] sm:$0xff]
    %v2312 = vld [vmem:[#allocation3 + $0x70] sm:$0xff]
    %v2313 = vld [vmem:[#allocation3 + $0x78] sm:$0xff]
    %v2314 = vld [vmem:[#allocation3 + $0x80] sm:$0xff]
    %v2315 = vld [vmem:[#allocation3 + $0x88] sm:$0xff]
    %v2316 = vld [vmem:[#allocation3 + $0x90] sm:$0xff]
    %v2317 = vld [vmem:[#allocation3 + $0x98] sm:$0xff]
    %v2318 = vld [vmem:[#allocation3 + $0xa0] sm:$0xff]
    %v2319 = vld [vmem:[#allocation3 + $0xa8] sm:$0xff]
    %v2320 = vld [vmem:[#allocation3 + $0xb0] sm:$0xff]
    %v2321 = vld [vmem:[#allocation3 + $0xb8] sm:$0xff]
    %v2322 = vld [vmem:[#allocation3 + $0xc0] sm:$0xff]
    %v2323 = vld [vmem:[#allocation3 + $0xc8] sm:$0xff]
    %v2324 = vld [vmem:[#allocation3 + $0xd0] sm:$0xff]
    %v2325 = vld [vmem:[#allocation3 + $0xd8] sm:$0xff]
    %v2326 = vld [vmem:[#allocation3 + $0xe0] sm:$0xff]
    %v2327 = vld [vmem:[#allocation3 + $0xe8] sm:$0xff]
    %s2328 = scalar_lea.vmem [#allocation13], 2048
    %v2329 = vld [vmem:[%s2328] sm:$0xff]
    %v2330 = vld [vmem:[%s2328 + $0x8] sm:$0xff]
    %v2331 = vld [vmem:[%s2328 + $0x10] sm:$0xff]
    %v2332 = vld [vmem:[%s2328 + $0x18] sm:$0xff]
    %v2333 = vld [vmem:[%s2328 + $0x20] sm:$0xff]
    %v2334 = vld [vmem:[%s2328 + $0x28] sm:$0xff]
    %v2335 = vld [vmem:[%s2328 + $0x30] sm:$0xff]
    %v2336 = vld [vmem:[%s2328 + $0x38] sm:$0xff]
    %v2337 = vld [vmem:[%s2328 + $0x40] sm:$0xff]
    %v2338 = vld [vmem:[%s2328 + $0x48] sm:$0xff]
    %v2339 = vld [vmem:[%s2328 + $0x50] sm:$0xff]
    %v2340 = vld [vmem:[%s2328 + $0x58] sm:$0xff]
    %v2341 = vld [vmem:[%s2328 + $0x60] sm:$0xff]
    %v2342 = vld [vmem:[%s2328 + $0x68] sm:$0xff]
    %v2343 = vld [vmem:[%s2328 + $0x70] sm:$0xff]
    %v2344 = vld [vmem:[%s2328 + $0x78] sm:$0xff]
    %v2345 = vld [vmem:[%s2328 + $0x80] sm:$0xff]
    %v2346 = vld [vmem:[%s2328 + $0x88] sm:$0xff]
    %v2347 = vld [vmem:[%s2328 + $0x90] sm:$0xff]
    %v2348 = vld [vmem:[%s2328 + $0x98] sm:$0xff]
    %v2349 = vld [vmem:[%s2328 + $0xa0] sm:$0xff]
    %v2350 = vld [vmem:[%s2328 + $0xa8] sm:$0xff]
    %v2351 = vld [vmem:[%s2328 + $0xb0] sm:$0xff]
    %v2352 = vld [vmem:[%s2328 + $0xb8] sm:$0xff]
    %v2353 = vld [vmem:[%s2328 + $0xc0] sm:$0xff]
    %v2354 = vld [vmem:[%s2328 + $0xc8] sm:$0xff]
    %v2355 = vld [vmem:[%s2328 + $0xd0] sm:$0xff]
    %v2356 = vld [vmem:[%s2328 + $0xd8] sm:$0xff]
    %v2357 = vld [vmem:[%s2328 + $0xe0] sm:$0xff]
    %v2358 = vld [vmem:[%s2328 + $0xe8] sm:$0xff]
    %v2359 = vld [vmem:[%s2328 + $0xf0] sm:$0xff]
    %v2360 = vld [vmem:[%s2328 + $0xf8] sm:$0xff]
    %v2361 = vld [vmem:[%s2328 + $0x100] sm:$0xff]
    %v2362 = vld [vmem:[%s2328 + $0x108] sm:$0xff]
    %v2363 = vld [vmem:[%s2328 + $0x110] sm:$0xff]
    %v2364 = vld [vmem:[%s2328 + $0x118] sm:$0xff]
    %v2365 = vld [vmem:[%s2328 + $0x120] sm:$0xff]
    %v2366 = vld [vmem:[%s2328 + $0x128] sm:$0xff]
    %v2367 = vld [vmem:[%s2328 + $0x130] sm:$0xff]
    %v2368 = vld [vmem:[%s2328 + $0x138] sm:$0xff]
    %v2369 = vld [vmem:[%s2328 + $0x140] sm:$0xff]
    %v2370 = vld [vmem:[%s2328 + $0x148] sm:$0xff]
    %v2371 = vld [vmem:[%s2328 + $0x150] sm:$0xff]
    %v2372 = vld [vmem:[%s2328 + $0x158] sm:$0xff]
    %v2373 = vld [vmem:[%s2328 + $0x160] sm:$0xff]
    %v2374 = vld [vmem:[%s2328 + $0x168] sm:$0xff]
    %v2375 = vld [vmem:[%s2328 + $0x170] sm:$0xff]
    %v2376 = vld [vmem:[%s2328 + $0x178] sm:$0xff]
    %v2377 = vld [vmem:[%s2328 + $0x180] sm:$0xff]
    %v2378 = vld [vmem:[%s2328 + $0x188] sm:$0xff]
    %v2379 = vld [vmem:[%s2328 + $0x190] sm:$0xff]
    %v2380 = vld [vmem:[%s2328 + $0x198] sm:$0xff]
    %v2381 = vld [vmem:[%s2328 + $0x1a0] sm:$0xff]
    %v2382 = vld [vmem:[%s2328 + $0x1a8] sm:$0xff]
    %v2383 = vld [vmem:[%s2328 + $0x1b0] sm:$0xff]
    %v2384 = vld [vmem:[%s2328 + $0x1b8] sm:$0xff]
    %v2385 = vld [vmem:[%s2328 + $0x1c0] sm:$0xff]
    %v2386 = vld [vmem:[%s2328 + $0x1c8] sm:$0xff]
    %v2387 = vld [vmem:[%s2328 + $0x1d0] sm:$0xff]
    %v2388 = vld [vmem:[%s2328 + $0x1d8] sm:$0xff]
    %v2389 = vld [vmem:[%s2328 + $0x1e0] sm:$0xff]
    %v2390 = vld [vmem:[%s2328 + $0x1e8] sm:$0xff]
    %v2391 = vld [vmem:[%s2328 + $0x1f0] sm:$0xff]
    %v2392 = vld [vmem:[%s2328 + $0x1f8] sm:$0xff]
    %2393 = vmatprep.subr.mxu0 %v2330
    %2394 = vmatpush1.msra.mxu0 %v2329
    %2395 = vmatprep.subr.mxu0 %v2332
    %2396 = vmatpush1.msra.mxu0 %v2331
    %2397 = vmatprep.subr.mxu0 %v2334
    %2398 = vmatpush1.msra.mxu0 %v2333
    %2399 = vmatprep.subr.mxu0 %v2336
    %2400 = vmatpush1.msra.mxu0 %v2335
    %2401 = vmatprep.subr.mxu0 %v2338
    %2402 = vmatpush1.msra.mxu0 %v2337
    %2403 = vmatprep.subr.mxu0 %v2340
    %2404 = vmatpush1.msra.mxu0 %v2339
    %2405 = vmatprep.subr.mxu0 %v2342
    %2406 = vmatpush1.msra.mxu0 %v2341
    %2407 = vmatprep.subr.mxu0 %v2344
    %2408 = vmatpush1.msra.mxu0 %v2343
    %2409 = vmatprep.subr.mxu0 %v2346
    %2410 = vmatpush1.msra.mxu0 %v2345
    %2411 = vmatprep.subr.mxu0 %v2348
    %2412 = vmatpush1.msra.mxu0 %v2347
    %2413 = vmatprep.subr.mxu0 %v2350
    %2414 = vmatpush1.msra.mxu0 %v2349
    %2415 = vmatprep.subr.mxu0 %v2352
    %2416 = vmatpush1.msra.mxu0 %v2351
    %2417 = vmatprep.subr.mxu0 %v2354
    %2418 = vmatpush1.msra.mxu0 %v2353
    %2419 = vmatprep.subr.mxu0 %v2356
    %2420 = vmatpush1.msra.mxu0 %v2355
    %2421 = vmatprep.subr.mxu0 %v2358
    %2422 = vmatpush1.msra.mxu0 %v2357
    %2423 = vmatprep.subr.mxu0 %v2360
    %2424 = vmatpush1.msra.mxu0 %v2359
    %2425 = vmatprep.subr.mxu0 %v2362
    %2426 = vmatpush1.msra.mxu0 %v2361
    %2427 = vmatprep.subr.mxu0 %v2364
    %2428 = vmatpush1.msra.mxu0 %v2363
    %2429 = vmatprep.subr.mxu0 %v2366
    %2430 = vmatpush1.msra.mxu0 %v2365
    %2431 = vmatprep.subr.mxu0 %v2368
    %2432 = vmatpush1.msra.mxu0 %v2367
    %2433 = vmatprep.subr.mxu0 %v2370
    %2434 = vmatpush1.msra.mxu0 %v2369
    %2435 = vmatprep.subr.mxu0 %v2372
    %2436 = vmatpush1.msra.mxu0 %v2371
    %2437 = vmatprep.subr.mxu0 %v2374
    %2438 = vmatpush1.msra.mxu0 %v2373
    %2439 = vmatprep.subr.mxu0 %v2376
    %2440 = vmatpush1.msra.mxu0 %v2375
    %2441 = vmatprep.subr.mxu0 %v2378
    %2442 = vmatpush1.msra.mxu0 %v2377
    %2443 = vmatprep.subr.mxu0 %v2380
    %2444 = vmatpush1.msra.mxu0 %v2379
    %2445 = vmatprep.subr.mxu0 %v2382
    %2446 = vmatpush1.msra.mxu0 %v2381
    %2447 = vmatprep.subr.mxu0 %v2384
    %2448 = vmatpush1.msra.mxu0 %v2383
    %2449 = vmatprep.subr.mxu0 %v2386
    %2450 = vmatpush1.msra.mxu0 %v2385
    %2451 = vmatprep.subr.mxu0 %v2388
    %2452 = vmatpush1.msra.mxu0 %v2387
    %2453 = vmatprep.subr.mxu0 %v2390
    %2454 = vmatpush1.msra.mxu0 %v2389
    %2455 = vmatprep.subr.mxu0 %v2392
    %2456 = vmatpush1.msra.mxu0 %v2391
    %2457 = vmatprep.mubr.f32.mxu0 %v2307
    %2458 = vmatmul.mubr.f32.gmra.mrb[0].mxu0 %v2306
    %v2459 = vpop.f32.mrb[0].mxu0
    %v2460 = vadd.f32 0.0, %v2459
    %v2461 = vpop.f32.mrb[0].mxu0
    %v2462 = vadd.f32 0.0, %v2461
    %2463 = vmatprep.mubr.f32.mxu0 %v2309
    %2464 = vmatmul.mubr.f32.gmra.mrb[0].mxu0 %v2308
    %v2465 = vpop.f32.mrb[0].mxu0
    %v2466 = vadd.f32 0.0, %v2465
    %v2467 = vpop.f32.mrb[0].mxu0
    %v2468 = vadd.f32 0.0, %v2467
    %2469 = vmatprep.mubr.f32.mxu0 %v2311
    %2470 = vmatmul.mubr.f32.gmra.mrb[0].mxu0 %v2310
    %v2471 = vpop.f32.mrb[0].mxu0
    %v2472 = vadd.f32 0.0, %v2471
    %v2473 = vpop.f32.mrb[0].mxu0
    %v2474 = vadd.f32 0.0, %v2473
    %2475 = vmatprep.mubr.f32.mxu0 %v2313
    %2476 = vmatmul.mubr.f32.gmra.mrb[0].mxu0 %v2312
    %v2477 = vpop.f32.mrb[0].mxu0
    %v2478 = vadd.f32 0.0, %v2477
    %v2479 = vpop.f32.mrb[0].mxu0
    %v2480 = vadd.f32 0.0, %v2479
    %2481 = vmatprep.mubr.f32.mxu0 %v2315
    %2482 = vmatmul.mubr.f32.gmra.mrb[0].mxu0 %v2314
    %v2483 = vpop.f32.mrb[0].mxu0
    %v2484 = vadd.f32 0.0, %v2483
    %v2485 = vpop.f32.mrb[0].mxu0
    %v2486 = vadd.f32 0.0, %v2485
    %2487 = vmatprep.mubr.f32.mxu0 %v2317
    %2488 = vmatmul.mubr.f32.gmra.mrb[0].mxu0 %v2316
    %v2489 = vpop.f32.mrb[0].mxu0
    %v2490 = vadd.f32 0.0, %v2489
    %v2491 = vpop.f32.mrb[0].mxu0
    %v2492 = vadd.f32 0.0, %v2491
    %2493 = vmatprep.mubr.f32.mxu0 %v2319
    %2494 = vmatmul.mubr.f32.gmra.mrb[0].mxu0 %v2318
    %v2495 = vpop.f32.mrb[0].mxu0
    %v2496 = vadd.f32 0.0, %v2495
    %v2497 = vpop.f32.mrb[0].mxu0
    %v2498 = vadd.f32 0.0, %v2497
    %2499 = vmatprep.mubr.f32.mxu0 %v2321
    %2500 = vmatmul.mubr.f32.gmra.mrb[0].mxu0 %v2320
    %v2501 = vpop.f32.mrb[0].mxu0
    %v2502 = vadd.f32 0.0, %v2501
    %v2503 = vpop.f32.mrb[0].mxu0
    %v2504 = vadd.f32 0.0, %v2503
    %2505 = vmatprep.mubr.f32.mxu0 %v2323
    %2506 = vmatmul.mubr.f32.gmra.mrb[0].mxu0 %v2322
    %v2507 = vpop.f32.mrb[0].mxu0
    %v2508 = vadd.f32 0.0, %v2507
    %v2509 = vpop.f32.mrb[0].mxu0
    %v2510 = vadd.f32 0.0, %v2509
    %2511 = vmatprep.mubr.f32.mxu0 %v2325
    %2512 = vmatmul.mubr.f32.gmra.mrb[0].mxu0 %v2324
    %v2513 = vpop.f32.mrb[0].mxu0
    %v2514 = vadd.f32 0.0, %v2513
    %v2515 = vpop.f32.mrb[0].mxu0
    %v2516 = vadd.f32 0.0, %v2515
    %2517 = vmatprep.mubr.f32.mxu0 %v2327
    %2518 = vmatmul.mubr.f32.gmra.mrb[0].mxu0 %v2326
    %v2519 = vpop.f32.mrb[0].mxu0
    %v2520 = vadd.f32 0.0, %v2519
    %v2521 = vpop.f32.mrb[0].mxu0
    %v2522 = vadd.f32 0.0, %v2521
    %2523 = vdwg.mxu0
    %v2524 = vadd.f32 %v2284, %v2460
    %v2525 = vadd.f32 %v2285, %v2462
    %v2526 = vadd.f32 %v2286, %v2466
    %v2527 = vadd.f32 %v2287, %v2468
    %v2528 = vadd.f32 %v2288, %v2472
    %v2529 = vadd.f32 %v2289, %v2474
    %v2530 = vadd.f32 %v2290, %v2478
    %v2531 = vadd.f32 %v2291, %v2480
    %v2532 = vadd.f32 %v2292, %v2484
    %v2533 = vadd.f32 %v2293, %v2486
    %v2534 = vadd.f32 %v2294, %v2490
    %v2535 = vadd.f32 %v2295, %v2492
    %v2536 = vadd.f32 %v2296, %v2496
    %v2537 = vadd.f32 %v2297, %v2498
    %v2538 = vadd.f32 %v2298, %v2502
    %v2539 = vadd.f32 %v2299, %v2504
    %v2540 = vadd.f32 %v2300, %v2508
    %v2541 = vadd.f32 %v2301, %v2510
    %v2542 = vadd.f32 %v2302, %v2514
    %v2543 = vadd.f32 %v2303, %v2516
    %v2544 = vadd.f32 %v2304, %v2520
    %v2545 = vadd.f32 %v2305, %v2522
    %v2546 = vld [vmem:[#allocation14] sm:$0x3]
    %v2548 = vlaneseq
    %v2549 = vshrl.u32 %v2548, 7
    %v2550 = vsub.s32 0, %v2549
    %v2551 = vrot.slane %v2546, %v2550
    %v2552 = vlaneseq
    %v2553 = vshrl.u32 %v2552, 7
    %v2554 = vsub.s32 1, %v2553
    %v2555 = vrot.slane %v2546, %v2554
    %v2558 = vadd.f32 %v2524, %v2551
    %v2559 = vadd.f32 %v2525, %v2555
    %v2560 = vadd.f32 %v2526, %v2551
    %v2561 = vadd.f32 %v2527, %v2555
    %v2562 = vadd.f32 %v2528, %v2551
    %v2563 = vadd.f32 %v2529, %v2555
    %v2564 = vadd.f32 %v2530, %v2551
    %v2565 = vadd.f32 %v2531, %v2555
    %v2566 = vadd.f32 %v2532, %v2551
    %v2567 = vadd.f32 %v2533, %v2555
    %v2568 = vadd.f32 %v2534, %v2551
    %v2569 = vadd.f32 %v2535, %v2555
    %v2570 = vadd.f32 %v2536, %v2551
    %v2571 = vadd.f32 %v2537, %v2555
    %v2572 = vadd.f32 %v2538, %v2551
    %v2573 = vadd.f32 %v2539, %v2555
    %v2574 = vadd.f32 %v2540, %v2551
    %v2575 = vadd.f32 %v2541, %v2555
    %v2576 = vadd.f32 %v2542, %v2551
    %v2577 = vadd.f32 %v2543, %v2555
    %v2578 = vadd.f32 %v2544, %v2551
    %v2579 = vadd.f32 %v2545, %v2555
    %v2580 = vmax.f32 %v2558, 0.0
    %v2581 = vmax.f32 %v2559, 0.0
    %v2582 = vmax.f32 %v2560, 0.0
    %v2583 = vmax.f32 %v2561, 0.0
    %v2584 = vmax.f32 %v2562, 0.0
    %v2585 = vmax.f32 %v2563, 0.0
    %v2586 = vmax.f32 %v2564, 0.0
    %v2587 = vmax.f32 %v2565, 0.0
    %v2588 = vmax.f32 %v2566, 0.0
    %v2589 = vmax.f32 %v2567, 0.0
    %v2590 = vmax.f32 %v2568, 0.0
    %v2591 = vmax.f32 %v2569, 0.0
    %v2592 = vmax.f32 %v2570, 0.0
    %v2593 = vmax.f32 %v2571, 0.0
    %v2594 = vmax.f32 %v2572, 0.0
    %v2595 = vmax.f32 %v2573, 0.0
    %v2596 = vmax.f32 %v2574, 0.0
    %v2597 = vmax.f32 %v2575, 0.0
    %v2598 = vmax.f32 %v2576, 0.0
    %v2599 = vmax.f32 %v2577, 0.0
    %v2600 = vmax.f32 %v2578, 0.0
    %v2601 = vmax.f32 %v2579, 0.0
    %2602 = vst [vmem:[#allocation4] sm:$0xff] 0.0
    %2603 = vst [vmem:[#allocation4 + $0x8] sm:$0xff] 0.0
    %2604 = vst [vmem:[#allocation4 + $0x10] sm:$0xff] 0.0
    %2605 = vst [vmem:[#allocation4 + $0x18] sm:$0xff] 0.0
    %2606 = vst [vmem:[#allocation4 + $0x20] sm:$0xff] 0.0
    %2607 = vst [vmem:[#allocation4 + $0x28] sm:$0xff] 0.0
    %2608 = vst [vmem:[#allocation4 + $0x30] sm:$0xff] 0.0
    %2609 = vst [vmem:[#allocation4 + $0x38] sm:$0xff] 0.0
    %2610 = vst [vmem:[#allocation4 + $0x40] sm:$0xff] 0.0
    %2611 = vst [vmem:[#allocation4 + $0x48] sm:$0xff] 0.0
    %2612 = vst [vmem:[#allocation4 + $0x50] sm:$0xff] 0.0
    %2613 = vst [vmem:[#allocation4 + $0x58] sm:$0xff] 0.0
    %2614 = vst [vmem:[#allocation4 + $0x60] sm:$0xff] 0.0
    %2615 = vst [vmem:[#allocation4 + $0x68] sm:$0xff] 0.0
    %2616 = vst [vmem:[#allocation4 + $0x70] sm:$0xff] 0.0
    %2617 = vst [vmem:[#allocation4 + $0x78] sm:$0xff] 0.0
    %2618 = vst [vmem:[#allocation4 + $0x80] sm:$0xff] 0.0
    %2619 = vst [vmem:[#allocation4 + $0x88] sm:$0xff] 0.0
    %2620 = vst [vmem:[#allocation4 + $0x90] sm:$0xff] 0.0
    %2621 = vst [vmem:[#allocation4 + $0x98] sm:$0xff] 0.0
    %2622 = vst [vmem:[#allocation4 + $0xa0] sm:$0xff] 0.0
    %2623 = vst [vmem:[#allocation4 + $0xa8] sm:$0xff] 0.0
    %2624 = vst [vmem:[#allocation4 + $0xb0] sm:$0xff] 0.0
    %2625 = vst [vmem:[#allocation4 + $0xb8] sm:$0xff] 0.0
    %2626 = vst [vmem:[#allocation4 + $0xc0] sm:$0xff] 0.0
    %2627 = vst [vmem:[#allocation4 + $0xc8] sm:$0xff] 0.0
    %2628 = vst [vmem:[#allocation4 + $0xd0] sm:$0xff] 0.0
    %2629 = vst [vmem:[#allocation4 + $0xd8] sm:$0xff] 0.0
    %2630 = vst [vmem:[#allocation4 + $0xe0] sm:$0xff] 0.0
    %2631 = vst [vmem:[#allocation4 + $0xe8] sm:$0xff] 0.0
    %2632 = vst [vmem:[#allocation4 + $0xf0] sm:$0xff] 0.0
    %2633 = vst [vmem:[#allocation4 + $0xf8] sm:$0xff] 0.0
    %2634 = vst [vmem:[#allocation4 + $0x100] sm:$0xff] 0.0
    %2635 = vst [vmem:[#allocation4 + $0x108] sm:$0xff] 0.0
    %2636 = vst [vmem:[#allocation4 + $0x110] sm:$0xff] 0.0
    %2637 = vst [vmem:[#allocation4 + $0x118] sm:$0xff] 0.0
    %2638 = vst [vmem:[#allocation4 + $0x120] sm:$0xff] 0.0
    %2639 = vst [vmem:[#allocation4 + $0x128] sm:$0xff] 0.0
    %2640 = vst [vmem:[#allocation4 + $0x40] sm:$0xff] %v2580
    %2641 = vst [vmem:[#allocation4 + $0x48] sm:$0xff] %v2581
    %2642 = vst [vmem:[#allocation4 + $0x50] sm:$0xff] %v2582
    %2643 = vst [vmem:[#allocation4 + $0x58] sm:$0xff] %v2583
    %2644 = vst [vmem:[#allocation4 + $0x60] sm:$0xff] %v2584
    %2645 = vst [vmem:[#allocation4 + $0x68] sm:$0xff] %v2585
    %2646 = vst [vmem:[#allocation4 + $0x70] sm:$0xff] %v2586
    %2647 = vst [vmem:[#allocation4 + $0x78] sm:$0xff] %v2587
    %2648 = vst [vmem:[#allocation4 + $0x80] sm:$0xff] %v2588
    %2649 = vst [vmem:[#allocation4 + $0x88] sm:$0xff] %v2589
    %2650 = vst [vmem:[#allocation4 + $0x90] sm:$0xff] %v2590
    %2651 = vst [vmem:[#allocation4 + $0x98] sm:$0xff] %v2591
    %2652 = vst [vmem:[#allocation4 + $0xa0] sm:$0xff] %v2592
    %2653 = vst [vmem:[#allocation4 + $0xa8] sm:$0xff] %v2593
    %2654 = vst [vmem:[#allocation4 + $0xb0] sm:$0xff] %v2594
    %2655 = vst [vmem:[#allocation4 + $0xb8] sm:$0xff] %v2595
    %2656 = vst [vmem:[#allocation4 + $0xc0] sm:$0xff] %v2596
    %2657 = vst [vmem:[#allocation4 + $0xc8] sm:$0xff] %v2597
    %2658 = vst [vmem:[#allocation4 + $0xd0] sm:$0xff] %v2598
    %2659 = vst [vmem:[#allocation4 + $0xd8] sm:$0xff] %v2599
    %2660 = vst [vmem:[#allocation4 + $0xe0] sm:$0xff] %v2600
    %2661 = vst [vmem:[#allocation4 + $0xe8] sm:$0xff] %v2601
    %v2662 = vld [vmem:[#allocation4] sm:$0xff]
    %v2663 = vld [vmem:[#allocation4 + $0x8] sm:$0xff]
    %v2664 = vld [vmem:[#allocation4 + $0x10] sm:$0xff]
    %v2665 = vld [vmem:[#allocation4 + $0x18] sm:$0xff]
    %v2666 = vld [vmem:[#allocation4 + $0x20] sm:$0xff]
    %v2667 = vld [vmem:[#allocation4 + $0x28] sm:$0xff]
    %v2668 = vld [vmem:[#allocation4 + $0x30] sm:$0xff]
    %v2669 = vld [vmem:[#allocation4 + $0x38] sm:$0xff]
    %v2670 = vld [vmem:[#allocation4 + $0x40] sm:$0xff]
    %v2671 = vld [vmem:[#allocation4 + $0x48] sm:$0xff]
    %v2672 = vld [vmem:[#allocation4 + $0x50] sm:$0xff]
    %v2673 = vld [vmem:[#allocation4 + $0x58] sm:$0xff]
    %v2674 = vld [vmem:[#allocation4 + $0x60] sm:$0xff]
    %v2675 = vld [vmem:[#allocation4 + $0x68] sm:$0xff]
    %v2676 = vld [vmem:[#allocation4 + $0x70] sm:$0xff]
    %v2677 = vld [vmem:[#allocation4 + $0x78] sm:$0xff]
    %v2678 = vld [vmem:[#allocation4 + $0x80] sm:$0xff]
    %v2679 = vld [vmem:[#allocation4 + $0x88] sm:$0xff]
    %v2680 = vld [vmem:[#allocation4 + $0x90] sm:$0xff]
    %v2681 = vld [vmem:[#allocation4 + $0x98] sm:$0xff]
    %v2682 = vld [vmem:[#allocation4 + $0xa0] sm:$0xff]
    %v2683 = vld [vmem:[#allocation4 + $0xa8] sm:$0xff]
    %v2684 = vld [vmem:[#allocation4 + $0xb0] sm:$0xff]
    %v2685 = vld [vmem:[#allocation4 + $0xb8] sm:$0xff]
    %v2686 = vld [vmem:[#allocation4 + $0xc0] sm:$0xff]
    %v2687 = vld [vmem:[#allocation4 + $0xc8] sm:$0xff]
    %v2688 = vld [vmem:[#allocation4 + $0xd0] sm:$0xff]
    %v2689 = vld [vmem:[#allocation4 + $0xd8] sm:$0xff]
    %v2690 = vld [vmem:[#allocation4 + $0xe0] sm:$0xff]
    %v2691 = vld [vmem:[#allocation4 + $0xe8] sm:$0xff]
    %v2692 = vld [vmem:[#allocation16] sm:$0xff]
    %v2693 = vld [vmem:[#allocation16 + $0x8] sm:$0xff]
    %v2694 = vld [vmem:[#allocation16 + $0x10] sm:$0xff]
    %v2695 = vld [vmem:[#allocation16 + $0x18] sm:$0xff]
    %v2696 = vld [vmem:[#allocation16 + $0x20] sm:$0xff]
    %v2697 = vld [vmem:[#allocation16 + $0x28] sm:$0xff]
    %v2698 = vld [vmem:[#allocation16 + $0x30] sm:$0xff]
    %v2699 = vld [vmem:[#allocation16 + $0x38] sm:$0xff]
    %v2700 = vld [vmem:[#allocation16 + $0x40] sm:$0xff]
    %v2701 = vld [vmem:[#allocation16 + $0x48] sm:$0xff]
    %v2702 = vld [vmem:[#allocation16 + $0x50] sm:$0xff]
    %v2703 = vld [vmem:[#allocation16 + $0x58] sm:$0xff]
    %v2704 = vld [vmem:[#allocation16 + $0x60] sm:$0xff]
    %v2705 = vld [vmem:[#allocation16 + $0x68] sm:$0xff]
    %v2706 = vld [vmem:[#allocation16 + $0x70] sm:$0xff]
    %v2707 = vld [vmem:[#allocation16 + $0x78] sm:$0xff]
    %v2708 = vld [vmem:[#allocation16 + $0x80] sm:$0xff]
    %v2709 = vld [vmem:[#allocation16 + $0x88] sm:$0xff]
    %v2710 = vld [vmem:[#allocation16 + $0x90] sm:$0xff]
    %v2711 = vld [vmem:[#allocation16 + $0x98] sm:$0xff]
    %v2712 = vld [vmem:[#allocation16 + $0xa0] sm:$0xff]
    %v2713 = vld [vmem:[#allocation16 + $0xa8] sm:$0xff]
    %v2714 = vld [vmem:[#allocation16 + $0xb0] sm:$0xff]
    %v2715 = vld [vmem:[#allocation16 + $0xb8] sm:$0xff]
    %v2716 = vld [vmem:[#allocation16 + $0xc0] sm:$0xff]
    %v2717 = vld [vmem:[#allocation16 + $0xc8] sm:$0xff]
    %v2718 = vld [vmem:[#allocation16 + $0xd0] sm:$0xff]
    %v2719 = vld [vmem:[#allocation16 + $0xd8] sm:$0xff]
    %v2720 = vld [vmem:[#allocation16 + $0xe0] sm:$0xff]
    %v2721 = vld [vmem:[#allocation16 + $0xe8] sm:$0xff]
    %v2722 = vld [vmem:[#allocation16 + $0xf0] sm:$0xff]
    %v2723 = vld [vmem:[#allocation16 + $0xf8] sm:$0xff]
    %v2724 = vld [vmem:[#allocation4 + $0xf0] sm:$0xff]
    %v2725 = vld [vmem:[#allocation4 + $0xf8] sm:$0xff]
    %s2726 = scalar_lea.vmem [#allocation16], 256
    %v2727 = vld [vmem:[%s2726] sm:$0xff]
    %v2728 = vld [vmem:[%s2726 + $0x8] sm:$0xff]
    %v2729 = vld [vmem:[%s2726 + $0x10] sm:$0xff]
    %v2730 = vld [vmem:[%s2726 + $0x18] sm:$0xff]
    %v2731 = vld [vmem:[%s2726 + $0x20] sm:$0xff]
    %v2732 = vld [vmem:[%s2726 + $0x28] sm:$0xff]
    %v2733 = vld [vmem:[%s2726 + $0x30] sm:$0xff]
    %v2734 = vld [vmem:[%s2726 + $0x38] sm:$0xff]
    %v2735 = vld [vmem:[%s2726 + $0x40] sm:$0xff]
    %v2736 = vld [vmem:[%s2726 + $0x48] sm:$0xff]
    %v2737 = vld [vmem:[%s2726 + $0x50] sm:$0xff]
    %v2738 = vld [vmem:[%s2726 + $0x58] sm:$0xff]
    %v2739 = vld [vmem:[%s2726 + $0x60] sm:$0xff]
    %v2740 = vld [vmem:[%s2726 + $0x68] sm:$0xff]
    %v2741 = vld [vmem:[%s2726 + $0x70] sm:$0xff]
    %v2742 = vld [vmem:[%s2726 + $0x78] sm:$0xff]
    %v2743 = vld [vmem:[%s2726 + $0x80] sm:$0xff]
    %v2744 = vld [vmem:[%s2726 + $0x88] sm:$0xff]
    %v2745 = vld [vmem:[%s2726 + $0x90] sm:$0xff]
    %v2746 = vld [vmem:[%s2726 + $0x98] sm:$0xff]
    %v2747 = vld [vmem:[%s2726 + $0xa0] sm:$0xff]
    %v2748 = vld [vmem:[%s2726 + $0xa8] sm:$0xff]
    %v2749 = vld [vmem:[%s2726 + $0xb0] sm:$0xff]
    %v2750 = vld [vmem:[%s2726 + $0xb8] sm:$0xff]
    %v2751 = vld [vmem:[%s2726 + $0xc0] sm:$0xff]
    %v2752 = vld [vmem:[%s2726 + $0xc8] sm:$0xff]
    %v2753 = vld [vmem:[%s2726 + $0xd0] sm:$0xff]
    %v2754 = vld [vmem:[%s2726 + $0xd8] sm:$0xff]
    %v2755 = vld [vmem:[%s2726 + $0xe0] sm:$0xff]
    %v2756 = vld [vmem:[%s2726 + $0xe8] sm:$0xff]
    %v2757 = vld [vmem:[%s2726 + $0xf0] sm:$0xff]
    %v2758 = vld [vmem:[%s2726 + $0xf8] sm:$0xff]
    %2759 = vmatprep.subr.mxu0 0.0
    %2760 = vmatpush1.msra.mxu0 %v2727
    %2761 = vmatprep.subr.mxu0 0.0
    %2762 = vmatpush1.msra.mxu0 %v2728
    %2763 = vmatprep.subr.mxu0 0.0
    %2764 = vmatpush1.msra.mxu0 %v2729
    %2765 = vmatprep.subr.mxu0 0.0
    %2766 = vmatpush1.msra.mxu0 %v2730
    %2767 = vmatprep.subr.mxu0 0.0
    %2768 = vmatpush1.msra.mxu0 %v2731
    %2769 = vmatprep.subr.mxu0 0.0
    %2770 = vmatpush1.msra.mxu0 %v2732
    %2771 = vmatprep.subr.mxu0 0.0
    %2772 = vmatpush1.msra.mxu0 %v2733
    %2773 = vmatprep.subr.mxu0 0.0
    %2774 = vmatpush1.msra.mxu0 %v2734
    %2775 = vmatprep.subr.mxu0 0.0
    %2776 = vmatpush1.msra.mxu0 %v2735
    %2777 = vmatprep.subr.mxu0 0.0
    %2778 = vmatpush1.msra.mxu0 %v2736
    %2779 = vmatprep.subr.mxu0 0.0
    %2780 = vmatpush1.msra.mxu0 %v2737
    %2781 = vmatprep.subr.mxu0 0.0
    %2782 = vmatpush1.msra.mxu0 %v2738
    %2783 = vmatprep.subr.mxu0 0.0
    %2784 = vmatpush1.msra.mxu0 %v2739
    %2785 = vmatprep.subr.mxu0 0.0
    %2786 = vmatpush1.msra.mxu0 %v2740
    %2787 = vmatprep.subr.mxu0 0.0
    %2788 = vmatpush1.msra.mxu0 %v2741
    %2789 = vmatprep.subr.mxu0 0.0
    %2790 = vmatpush1.msra.mxu0 %v2742
    %2791 = vmatprep.subr.mxu0 0.0
    %2792 = vmatpush1.msra.mxu0 %v2743
    %2793 = vmatprep.subr.mxu0 0.0
    %2794 = vmatpush1.msra.mxu0 %v2744
    %2795 = vmatprep.subr.mxu0 0.0
    %2796 = vmatpush1.msra.mxu0 %v2745
    %2797 = vmatprep.subr.mxu0 0.0
    %2798 = vmatpush1.msra.mxu0 %v2746
    %2799 = vmatprep.subr.mxu0 0.0
    %2800 = vmatpush1.msra.mxu0 %v2747
    %2801 = vmatprep.subr.mxu0 0.0
    %2802 = vmatpush1.msra.mxu0 %v2748
    %2803 = vmatprep.subr.mxu0 0.0
    %2804 = vmatpush1.msra.mxu0 %v2749
    %2805 = vmatprep.subr.mxu0 0.0
    %2806 = vmatpush1.msra.mxu0 %v2750
    %2807 = vmatprep.subr.mxu0 0.0
    %2808 = vmatpush1.msra.mxu0 %v2751
    %2809 = vmatprep.subr.mxu0 0.0
    %2810 = vmatpush1.msra.mxu0 %v2752
    %2811 = vmatprep.subr.mxu0 0.0
    %2812 = vmatpush1.msra.mxu0 %v2753
    %2813 = vmatprep.subr.mxu0 0.0
    %2814 = vmatpush1.msra.mxu0 %v2754
    %2815 = vmatprep.subr.mxu0 0.0
    %2816 = vmatpush1.msra.mxu0 %v2755
    %2817 = vmatprep.subr.mxu0 0.0
    %2818 = vmatpush1.msra.mxu0 %v2756
    %2819 = vmatprep.subr.mxu0 0.0
    %2820 = vmatpush1.msra.mxu0 %v2757
    %2821 = vmatprep.subr.mxu0 0.0
    %2822 = vmatpush1.msra.mxu0 %v2758
    %2823 = vmatprep.mubr.f32.mxu0 %v2665
    %2824 = vmatmul.mubr.f32.gmra.mrb[0].mxu0 %v2664
    %v2825 = vpop.f32.mrb[0].mxu0
    %v2826 = vadd.f32 0.0, %v2825
    %v2827 = vpop.f32.mrb[0].mxu0
    %2828 = vmatprep.mubr.f32.mxu0 %v2667
    %2829 = vmatmul.mubr.f32.gmra.mrb[0].mxu0 %v2666
    %v2830 = vpop.f32.mrb[0].mxu0
    %v2831 = vadd.f32 0.0, %v2830
    %v2832 = vpop.f32.mrb[0].mxu0
    %2833 = vmatprep.mubr.f32.mxu0 %v2669
    %2834 = vmatmul.mubr.f32.gmra.mrb[0].mxu0 %v2668
    %v2835 = vpop.f32.mrb[0].mxu0
    %v2836 = vadd.f32 0.0, %v2835
    %v2837 = vpop.f32.mrb[0].mxu0
    %2838 = vmatprep.mubr.f32.mxu0 %v2671
    %2839 = vmatmul.mubr.f32.gmra.mrb[0].mxu0 %v2670
    %v2840 = vpop.f32.mrb[0].mxu0
    %v2841 = vadd.f32 0.0, %v2840
    %v2842 = vpop.f32.mrb[0].mxu0
    %2843 = vmatprep.mubr.f32.mxu0 %v2673
    %2844 = vmatmul.mubr.f32.gmra.mrb[0].mxu0 %v2672
    %v2845 = vpop.f32.mrb[0].mxu0
    %v2846 = vadd.f32 0.0, %v2845
    %v2847 = vpop.f32.mrb[0].mxu0
    %2848 = vmatprep.mubr.f32.mxu0 %v2675
    %2849 = vmatmul.mubr.f32.gmra.mrb[0].mxu0 %v2674
    %v2850 = vpop.f32.mrb[0].mxu0
    %v2851 = vadd.f32 0.0, %v2850
    %v2852 = vpop.f32.mrb[0].mxu0
    %2853 = vmatprep.mubr.f32.mxu0 %v2677
    %2854 = vmatmul.mubr.f32.gmra.mrb[0].mxu0 %v2676
    %v2855 = vpop.f32.mrb[0].mxu0
    %v2856 = vadd.f32 0.0, %v2855
    %v2857 = vpop.f32.mrb[0].mxu0
    %2858 = vmatprep.mubr.f32.mxu0 %v2679
    %2859 = vmatmul.mubr.f32.gmra.mrb[0].mxu0 %v2678
    %v2860 = vpop.f32.mrb[0].mxu0
    %v2861 = vadd.f32 0.0, %v2860
    %v2862 = vpop.f32.mrb[0].mxu0
    %2863 = vmatprep.mubr.f32.mxu0 %v2681
    %2864 = vmatmul.mubr.f32.gmra.mrb[0].mxu0 %v2680
    %v2865 = vpop.f32.mrb[0].mxu0
    %v2866 = vadd.f32 0.0, %v2865
    %v2867 = vpop.f32.mrb[0].mxu0
    %2868 = vmatprep.mubr.f32.mxu0 %v2683
    %2869 = vmatmul.mubr.f32.gmra.mrb[0].mxu0 %v2682
    %v2870 = vpop.f32.mrb[0].mxu0
    %v2871 = vadd.f32 0.0, %v2870
    %v2872 = vpop.f32.mrb[0].mxu0
    %2873 = vmatprep.mubr.f32.mxu0 %v2685
    %2874 = vmatmul.mubr.f32.gmra.mrb[0].mxu0 %v2684
    %v2875 = vpop.f32.mrb[0].mxu0
    %v2876 = vadd.f32 0.0, %v2875
    %v2877 = vpop.f32.mrb[0].mxu0
    %2878 = vmatprep.mubr.f32.mxu0 %v2687
    %2879 = vmatmul.mubr.f32.gmra.mrb[0].mxu0 %v2686
    %v2880 = vpop.f32.mrb[0].mxu0
    %v2881 = vadd.f32 0.0, %v2880
    %v2882 = vpop.f32.mrb[0].mxu0
    %2883 = vmatprep.mubr.f32.mxu0 %v2689
    %2884 = vmatmul.mubr.f32.gmra.mrb[0].mxu0 %v2688
    %v2885 = vpop.f32.mrb[0].mxu0
    %v2886 = vadd.f32 0.0, %v2885
    %v2887 = vpop.f32.mrb[0].mxu0
    %2888 = vmatprep.mubr.f32.mxu0 %v2691
    %2889 = vmatmul.mubr.f32.gmra.mrb[0].mxu0 %v2690
    %v2890 = vpop.f32.mrb[0].mxu0
    %v2891 = vadd.f32 0.0, %v2890
    %v2892 = vpop.f32.mrb[0].mxu0
    %2893 = vmatprep.mubr.f32.mxu0 %v2725
    %2894 = vmatmul.mubr.f32.gmra.mrb[0].mxu0 %v2724
    %v2895 = vpop.f32.mrb[0].mxu0
    %v2896 = vadd.f32 0.0, %v2895
    %v2897 = vpop.f32.mrb[0].mxu0
    %2898 = vdwg.mxu0
    %2899 = vmatprep.subr.mxu0 0.0
    %2900 = vmatpush1.msra.mxu0 %v2692
    %2901 = vmatprep.subr.mxu0 0.0
    %2902 = vmatpush1.msra.mxu0 %v2693
    %2903 = vmatprep.subr.mxu0 0.0
    %2904 = vmatpush1.msra.mxu0 %v2694
    %2905 = vmatprep.subr.mxu0 0.0
    %2906 = vmatpush1.msra.mxu0 %v2695
    %2907 = vmatprep.subr.mxu0 0.0
    %2908 = vmatpush1.msra.mxu0 %v2696
    %2909 = vmatprep.subr.mxu0 0.0
    %2910 = vmatpush1.msra.mxu0 %v2697
    %2911 = vmatprep.subr.mxu0 0.0
    %2912 = vmatpush1.msra.mxu0 %v2698
    %2913 = vmatprep.subr.mxu0 0.0
    %2914 = vmatpush1.msra.mxu0 %v2699
    %2915 = vmatprep.subr.mxu0 0.0
    %2916 = vmatpush1.msra.mxu0 %v2700
    %2917 = vmatprep.subr.mxu0 0.0
    %2918 = vmatpush1.msra.mxu0 %v2701
    %2919 = vmatprep.subr.mxu0 0.0
    %2920 = vmatpush1.msra.mxu0 %v2702
    %2921 = vmatprep.subr.mxu0 0.0
    %2922 = vmatpush1.msra.mxu0 %v2703
    %2923 = vmatprep.subr.mxu0 0.0
    %2924 = vmatpush1.msra.mxu0 %v2704
    %2925 = vmatprep.subr.mxu0 0.0
    %2926 = vmatpush1.msra.mxu0 %v2705
    %2927 = vmatprep.subr.mxu0 0.0
    %2928 = vmatpush1.msra.mxu0 %v2706
    %2929 = vmatprep.subr.mxu0 0.0
    %2930 = vmatpush1.msra.mxu0 %v2707
    %2931 = vmatprep.subr.mxu0 0.0
    %2932 = vmatpush1.msra.mxu0 %v2708
    %2933 = vmatprep.subr.mxu0 0.0
    %2934 = vmatpush1.msra.mxu0 %v2709
    %2935 = vmatprep.subr.mxu0 0.0
    %2936 = vmatpush1.msra.mxu0 %v2710
    %2937 = vmatprep.subr.mxu0 0.0
    %2938 = vmatpush1.msra.mxu0 %v2711
    %2939 = vmatprep.subr.mxu0 0.0
    %2940 = vmatpush1.msra.mxu0 %v2712
    %2941 = vmatprep.subr.mxu0 0.0
    %2942 = vmatpush1.msra.mxu0 %v2713
    %2943 = vmatprep.subr.mxu0 0.0
    %2944 = vmatpush1.msra.mxu0 %v2714
    %2945 = vmatprep.subr.mxu0 0.0
    %2946 = vmatpush1.msra.mxu0 %v2715
    %2947 = vmatprep.subr.mxu0 0.0
    %2948 = vmatpush1.msra.mxu0 %v2716
    %2949 = vmatprep.subr.mxu0 0.0
    %2950 = vmatpush1.msra.mxu0 %v2717
    %2951 = vmatprep.subr.mxu0 0.0
    %2952 = vmatpush1.msra.mxu0 %v2718
    %2953 = vmatprep.subr.mxu0 0.0
    %2954 = vmatpush1.msra.mxu0 %v2719
    %2955 = vmatprep.subr.mxu0 0.0
    %2956 = vmatpush1.msra.mxu0 %v2720
    %2957 = vmatprep.subr.mxu0 0.0
    %2958 = vmatpush1.msra.mxu0 %v2721
    %2959 = vmatprep.subr.mxu0 0.0
    %2960 = vmatpush1.msra.mxu0 %v2722
    %2961 = vmatprep.subr.mxu0 0.0
    %2962 = vmatpush1.msra.mxu0 %v2723
    %2963 = vmatprep.mubr.f32.mxu0 %v2663
    %2964 = vmatmul.mubr.f32.gmra.mrb[0].mxu0 %v2662
    %v2965 = vpop.f32.mrb[0].mxu0
    %v2966 = vadd.f32 %v2826, %v2965
    %v2967 = vpop.f32.mrb[0].mxu0
    %2968 = vmatprep.mubr.f32.mxu0 %v2665
    %2969 = vmatmul.mubr.f32.gmra.mrb[0].mxu0 %v2664
    %v2970 = vpop.f32.mrb[0].mxu0
    %v2971 = vadd.f32 %v2831, %v2970
    %v2972 = vpop.f32.mrb[0].mxu0
    %2973 = vmatprep.mubr.f32.mxu0 %v2667
    %2974 = vmatmul.mubr.f32.gmra.mrb[0].mxu0 %v2666
    %v2975 = vpop.f32.mrb[0].mxu0
    %v2976 = vadd.f32 %v2836, %v2975
    %v2977 = vpop.f32.mrb[0].mxu0
    %2978 = vmatprep.mubr.f32.mxu0 %v2669
    %2979 = vmatmul.mubr.f32.gmra.mrb[0].mxu0 %v2668
    %v2980 = vpop.f32.mrb[0].mxu0
    %v2981 = vadd.f32 %v2841, %v2980
    %v2982 = vpop.f32.mrb[0].mxu0
    %2983 = vmatprep.mubr.f32.mxu0 %v2671
    %2984 = vmatmul.mubr.f32.gmra.mrb[0].mxu0 %v2670
    %v2985 = vpop.f32.mrb[0].mxu0
    %v2986 = vadd.f32 %v2846, %v2985
    %v2987 = vpop.f32.mrb[0].mxu0
    %2988 = vmatprep.mubr.f32.mxu0 %v2673
    %2989 = vmatmul.mubr.f32.gmra.mrb[0].mxu0 %v2672
    %v2990 = vpop.f32.mrb[0].mxu0
    %v2991 = vadd.f32 %v2851, %v2990
    %v2992 = vpop.f32.mrb[0].mxu0
    %2993 = vmatprep.mubr.f32.mxu0 %v2675
    %2994 = vmatmul.mubr.f32.gmra.mrb[0].mxu0 %v2674
    %v2995 = vpop.f32.mrb[0].mxu0
    %v2996 = vadd.f32 %v2856, %v2995
    %v2997 = vpop.f32.mrb[0].mxu0
    %2998 = vmatprep.mubr.f32.mxu0 %v2677
    %2999 = vmatmul.mubr.f32.gmra.mrb[0].mxu0 %v2676
    %v3000 = vpop.f32.mrb[0].mxu0
    %v3001 = vadd.f32 %v2861, %v3000
    %v3002 = vpop.f32.mrb[0].mxu0
    %3003 = vmatprep.mubr.f32.mxu0 %v2679
    %3004 = vmatmul.mubr.f32.gmra.mrb[0].mxu0 %v2678
    %v3005 = vpop.f32.mrb[0].mxu0
    %v3006 = vadd.f32 %v2866, %v3005
    %v3007 = vpop.f32.mrb[0].mxu0
    %3008 = vmatprep.mubr.f32.mxu0 %v2681
    %3009 = vmatmul.mubr.f32.gmra.mrb[0].mxu0 %v2680
    %v3010 = vpop.f32.mrb[0].mxu0
    %v3011 = vadd.f32 %v2871, %v3010
    %v3012 = vpop.f32.mrb[0].mxu0
    %3013 = vmatprep.mubr.f32.mxu0 %v2683
    %3014 = vmatmul.mubr.f32.gmra.mrb[0].mxu0 %v2682
    %v3015 = vpop.f32.mrb[0].mxu0
    %v3016 = vadd.f32 %v2876, %v3015
    %v3017 = vpop.f32.mrb[0].mxu0
    %3018 = vmatprep.mubr.f32.mxu0 %v2685
    %3019 = vmatmul.mubr.f32.gmra.mrb[0].mxu0 %v2684
    %v3020 = vpop.f32.mrb[0].mxu0
    %v3021 = vadd.f32 %v2881, %v3020
    %v3022 = vpop.f32.mrb[0].mxu0
    %3023 = vmatprep.mubr.f32.mxu0 %v2687
    %3024 = vmatmul.mubr.f32.gmra.mrb[0].mxu0 %v2686
    %v3025 = vpop.f32.mrb[0].mxu0
    %v3026 = vadd.f32 %v2886, %v3025
    %v3027 = vpop.f32.mrb[0].mxu0
    %3028 = vmatprep.mubr.f32.mxu0 %v2689
    %3029 = vmatmul.mubr.f32.gmra.mrb[0].mxu0 %v2688
    %v3030 = vpop.f32.mrb[0].mxu0
    %v3031 = vadd.f32 %v2891, %v3030
    %v3032 = vpop.f32.mrb[0].mxu0
    %3033 = vmatprep.mubr.f32.mxu0 %v2691
    %3034 = vmatmul.mubr.f32.gmra.mrb[0].mxu0 %v2690
    %v3035 = vpop.f32.mrb[0].mxu0
    %v3036 = vadd.f32 %v2896, %v3035
    %v3037 = vpop.f32.mrb[0].mxu0
    %3038 = vdwg.mxu0
    %v3039 = vld [vmem:[#allocation4 + $0x20] sm:$0xff]
    %v3040 = vld [vmem:[#allocation4 + $0x28] sm:$0xff]
    %v3041 = vld [vmem:[#allocation4 + $0x30] sm:$0xff]
    %v3042 = vld [vmem:[#allocation4 + $0x38] sm:$0xff]
    %v3043 = vld [vmem:[#allocation4 + $0x40] sm:$0xff]
    %v3044 = vld [vmem:[#allocation4 + $0x48] sm:$0xff]
    %v3045 = vld [vmem:[#allocation4 + $0x50] sm:$0xff]
    %v3046 = vld [vmem:[#allocation4 + $0x58] sm:$0xff]
    %v3047 = vld [vmem:[#allocation4 + $0x60] sm:$0xff]
    %v3048 = vld [vmem:[#allocation4 + $0x68] sm:$0xff]
    %v3049 = vld [vmem:[#allocation4 + $0x70] sm:$0xff]
    %v3050 = vld [vmem:[#allocation4 + $0x78] sm:$0xff]
    %v3051 = vld [vmem:[#allocation4 + $0x80] sm:$0xff]
    %v3052 = vld [vmem:[#allocation4 + $0x88] sm:$0xff]
    %v3053 = vld [vmem:[#allocation4 + $0x90] sm:$0xff]
    %v3054 = vld [vmem:[#allocation4 + $0x98] sm:$0xff]
    %v3055 = vld [vmem:[#allocation4 + $0xa0] sm:$0xff]
    %v3056 = vld [vmem:[#allocation4 + $0xa8] sm:$0xff]
    %v3057 = vld [vmem:[#allocation4 + $0xb0] sm:$0xff]
    %v3058 = vld [vmem:[#allocation4 + $0xb8] sm:$0xff]
    %v3059 = vld [vmem:[#allocation4 + $0xc0] sm:$0xff]
    %v3060 = vld [vmem:[#allocation4 + $0xc8] sm:$0xff]
    %v3061 = vld [vmem:[#allocation4 + $0xd0] sm:$0xff]
    %v3062 = vld [vmem:[#allocation4 + $0xd8] sm:$0xff]
    %v3063 = vld [vmem:[#allocation4 + $0xe0] sm:$0xff]
    %v3064 = vld [vmem:[#allocation4 + $0xe8] sm:$0xff]
    %v3065 = vld [vmem:[#allocation4 + $0xf0] sm:$0xff]
    %v3066 = vld [vmem:[#allocation4 + $0xf8] sm:$0xff]
    %v3067 = vld [vmem:[#allocation4 + $0x100] sm:$0xff]
    %v3068 = vld [vmem:[#allocation4 + $0x108] sm:$0xff]
    %s3069 = scalar_lea.vmem [#allocation16], 512
    %v3070 = vld [vmem:[%s3069] sm:$0xff]
    %v3071 = vld [vmem:[%s3069 + $0x8] sm:$0xff]
    %v3072 = vld [vmem:[%s3069 + $0x10] sm:$0xff]
    %v3073 = vld [vmem:[%s3069 + $0x18] sm:$0xff]
    %v3074 = vld [vmem:[%s3069 + $0x20] sm:$0xff]
    %v3075 = vld [vmem:[%s3069 + $0x28] sm:$0xff]
    %v3076 = vld [vmem:[%s3069 + $0x30] sm:$0xff]
    %v3077 = vld [vmem:[%s3069 + $0x38] sm:$0xff]
    %v3078 = vld [vmem:[%s3069 + $0x40] sm:$0xff]
    %v3079 = vld [vmem:[%s3069 + $0x48] sm:$0xff]
    %v3080 = vld [vmem:[%s3069 + $0x50] sm:$0xff]
    %v3081 = vld [vmem:[%s3069 + $0x58] sm:$0xff]
    %v3082 = vld [vmem:[%s3069 + $0x60] sm:$0xff]
    %v3083 = vld [vmem:[%s3069 + $0x68] sm:$0xff]
    %v3084 = vld [vmem:[%s3069 + $0x70] sm:$0xff]
    %v3085 = vld [vmem:[%s3069 + $0x78] sm:$0xff]
    %v3086 = vld [vmem:[%s3069 + $0x80] sm:$0xff]
    %v3087 = vld [vmem:[%s3069 + $0x88] sm:$0xff]
    %v3088 = vld [vmem:[%s3069 + $0x90] sm:$0xff]
    %v3089 = vld [vmem:[%s3069 + $0x98] sm:$0xff]
    %v3090 = vld [vmem:[%s3069 + $0xa0] sm:$0xff]
    %v3091 = vld [vmem:[%s3069 + $0xa8] sm:$0xff]
    %v3092 = vld [vmem:[%s3069 + $0xb0] sm:$0xff]
    %v3093 = vld [vmem:[%s3069 + $0xb8] sm:$0xff]
    %v3094 = vld [vmem:[%s3069 + $0xc0] sm:$0xff]
    %v3095 = vld [vmem:[%s3069 + $0xc8] sm:$0xff]
    %v3096 = vld [vmem:[%s3069 + $0xd0] sm:$0xff]
    %v3097 = vld [vmem:[%s3069 + $0xd8] sm:$0xff]
    %v3098 = vld [vmem:[%s3069 + $0xe0] sm:$0xff]
    %v3099 = vld [vmem:[%s3069 + $0xe8] sm:$0xff]
    %v3100 = vld [vmem:[%s3069 + $0xf0] sm:$0xff]
    %v3101 = vld [vmem:[%s3069 + $0xf8] sm:$0xff]
    %3102 = vmatprep.subr.mxu0 0.0
    %3103 = vmatpush1.msra.mxu0 %v3070
    %3104 = vmatprep.subr.mxu0 0.0
    %3105 = vmatpush1.msra.mxu0 %v3071
    %3106 = vmatprep.subr.mxu0 0.0
    %3107 = vmatpush1.msra.mxu0 %v3072
    %3108 = vmatprep.subr.mxu0 0.0
    %3109 = vmatpush1.msra.mxu0 %v3073
    %3110 = vmatprep.subr.mxu0 0.0
    %3111 = vmatpush1.msra.mxu0 %v3074
    %3112 = vmatprep.subr.mxu0 0.0
    %3113 = vmatpush1.msra.mxu0 %v3075
    %3114 = vmatprep.subr.mxu0 0.0
    %3115 = vmatpush1.msra.mxu0 %v3076
    %3116 = vmatprep.subr.mxu0 0.0
    %3117 = vmatpush1.msra.mxu0 %v3077
    %3118 = vmatprep.subr.mxu0 0.0
    %3119 = vmatpush1.msra.mxu0 %v3078
    %3120 = vmatprep.subr.mxu0 0.0
    %3121 = vmatpush1.msra.mxu0 %v3079
    %3122 = vmatprep.subr.mxu0 0.0
    %3123 = vmatpush1.msra.mxu0 %v3080
    %3124 = vmatprep.subr.mxu0 0.0
    %3125 = vmatpush1.msra.mxu0 %v3081
    %3126 = vmatprep.subr.mxu0 0.0
    %3127 = vmatpush1.msra.mxu0 %v3082
    %3128 = vmatprep.subr.mxu0 0.0
    %3129 = vmatpush1.msra.mxu0 %v3083
    %3130 = vmatprep.subr.mxu0 0.0
    %3131 = vmatpush1.msra.mxu0 %v3084
    %3132 = vmatprep.subr.mxu0 0.0
    %3133 = vmatpush1.msra.mxu0 %v3085
    %3134 = vmatprep.subr.mxu0 0.0
    %3135 = vmatpush1.msra.mxu0 %v3086
    %3136 = vmatprep.subr.mxu0 0.0
    %3137 = vmatpush1.msra.mxu0 %v3087
    %3138 = vmatprep.subr.mxu0 0.0
    %3139 = vmatpush1.msra.mxu0 %v3088
    %3140 = vmatprep.subr.mxu0 0.0
    %3141 = vmatpush1.msra.mxu0 %v3089
    %3142 = vmatprep.subr.mxu0 0.0
    %3143 = vmatpush1.msra.mxu0 %v3090
    %3144 = vmatprep.subr.mxu0 0.0
    %3145 = vmatpush1.msra.mxu0 %v3091
    %3146 = vmatprep.subr.mxu0 0.0
    %3147 = vmatpush1.msra.mxu0 %v3092
    %3148 = vmatprep.subr.mxu0 0.0
    %3149 = vmatpush1.msra.mxu0 %v3093
    %3150 = vmatprep.subr.mxu0 0.0
    %3151 = vmatpush1.msra.mxu0 %v3094
    %3152 = vmatprep.subr.mxu0 0.0
    %3153 = vmatpush1.msra.mxu0 %v3095
    %3154 = vmatprep.subr.mxu0 0.0
    %3155 = vmatpush1.msra.mxu0 %v3096
    %3156 = vmatprep.subr.mxu0 0.0
    %3157 = vmatpush1.msra.mxu0 %v3097
    %3158 = vmatprep.subr.mxu0 0.0
    %3159 = vmatpush1.msra.mxu0 %v3098
    %3160 = vmatprep.subr.mxu0 0.0
    %3161 = vmatpush1.msra.mxu0 %v3099
    %3162 = vmatprep.subr.mxu0 0.0
    %3163 = vmatpush1.msra.mxu0 %v3100
    %3164 = vmatprep.subr.mxu0 0.0
    %3165 = vmatpush1.msra.mxu0 %v3101
    %3166 = vmatprep.mubr.f32.mxu0 %v3040
    %3167 = vmatmul.mubr.f32.gmra.mrb[0].mxu0 %v3039
    %v3168 = vpop.f32.mrb[0].mxu0
    %v3169 = vadd.f32 0.0, %v3168
    %v3170 = vpop.f32.mrb[0].mxu0
    %3171 = vmatprep.mubr.f32.mxu0 %v3042
    %3172 = vmatmul.mubr.f32.gmra.mrb[0].mxu0 %v3041
    %v3173 = vpop.f32.mrb[0].mxu0
    %v3174 = vadd.f32 0.0, %v3173
    %v3175 = vpop.f32.mrb[0].mxu0
    %3176 = vmatprep.mubr.f32.mxu0 %v3044
    %3177 = vmatmul.mubr.f32.gmra.mrb[0].mxu0 %v3043
    %v3178 = vpop.f32.mrb[0].mxu0
    %v3179 = vadd.f32 0.0, %v3178
    %v3180 = vpop.f32.mrb[0].mxu0
    %3181 = vmatprep.mubr.f32.mxu0 %v3046
    %3182 = vmatmul.mubr.f32.gmra.mrb[0].mxu0 %v3045
    %v3183 = vpop.f32.mrb[0].mxu0
    %v3184 = vadd.f32 0.0, %v3183
    %v3185 = vpop.f32.mrb[0].mxu0
    %3186 = vmatprep.mubr.f32.mxu0 %v3048
    %3187 = vmatmul.mubr.f32.gmra.mrb[0].mxu0 %v3047
    %v3188 = vpop.f32.mrb[0].mxu0
    %v3189 = vadd.f32 0.0, %v3188
    %v3190 = vpop.f32.mrb[0].mxu0
    %3191 = vmatprep.mubr.f32.mxu0 %v3050
    %3192 = vmatmul.mubr.f32.gmra.mrb[0].mxu0 %v3049
    %v3193 = vpop.f32.mrb[0].mxu0
    %v3194 = vadd.f32 0.0, %v3193
    %v3195 = vpop.f32.mrb[0].mxu0
    %3196 = vmatprep.mubr.f32.mxu0 %v3052
    %3197 = vmatmul.mubr.f32.gmra.mrb[0].mxu0 %v3051
    %v3198 = vpop.f32.mrb[0].mxu0
    %v3199 = vadd.f32 0.0, %v3198
    %v3200 = vpop.f32.mrb[0].mxu0
    %3201 = vmatprep.mubr.f32.mxu0 %v3054
    %3202 = vmatmul.mubr.f32.gmra.mrb[0].mxu0 %v3053
    %v3203 = vpop.f32.mrb[0].mxu0
    %v3204 = vadd.f32 0.0, %v3203
    %v3205 = vpop.f32.mrb[0].mxu0
    %3206 = vmatprep.mubr.f32.mxu0 %v3056
    %3207 = vmatmul.mubr.f32.gmra.mrb[0].mxu0 %v3055
    %v3208 = vpop.f32.mrb[0].mxu0
    %v3209 = vadd.f32 0.0, %v3208
    %v3210 = vpop.f32.mrb[0].mxu0
    %3211 = vmatprep.mubr.f32.mxu0 %v3058
    %3212 = vmatmul.mubr.f32.gmra.mrb[0].mxu0 %v3057
    %v3213 = vpop.f32.mrb[0].mxu0
    %v3214 = vadd.f32 0.0, %v3213
    %v3215 = vpop.f32.mrb[0].mxu0
    %3216 = vmatprep.mubr.f32.mxu0 %v3060
    %3217 = vmatmul.mubr.f32.gmra.mrb[0].mxu0 %v3059
    %v3218 = vpop.f32.mrb[0].mxu0
    %v3219 = vadd.f32 0.0, %v3218
    %v3220 = vpop.f32.mrb[0].mxu0
    %3221 = vmatprep.mubr.f32.mxu0 %v3062
    %3222 = vmatmul.mubr.f32.gmra.mrb[0].mxu0 %v3061
    %v3223 = vpop.f32.mrb[0].mxu0
    %v3224 = vadd.f32 0.0, %v3223
    %v3225 = vpop.f32.mrb[0].mxu0
    %3226 = vmatprep.mubr.f32.mxu0 %v3064
    %3227 = vmatmul.mubr.f32.gmra.mrb[0].mxu0 %v3063
    %v3228 = vpop.f32.mrb[0].mxu0
    %v3229 = vadd.f32 0.0, %v3228
    %v3230 = vpop.f32.mrb[0].mxu0
    %3231 = vmatprep.mubr.f32.mxu0 %v3066
    %3232 = vmatmul.mubr.f32.gmra.mrb[0].mxu0 %v3065
    %v3233 = vpop.f32.mrb[0].mxu0
    %v3234 = vadd.f32 0.0, %v3233
    %v3235 = vpop.f32.mrb[0].mxu0
    %3236 = vmatprep.mubr.f32.mxu0 %v3068
    %3237 = vmatmul.mubr.f32.gmra.mrb[0].mxu0 %v3067
    %v3238 = vpop.f32.mrb[0].mxu0
    %v3239 = vadd.f32 0.0, %v3238
    %v3240 = vpop.f32.mrb[0].mxu0
    %3241 = vdwg.mxu0
    %v3242 = vadd.f32 %v2966, %v3169
    %v3243 = vadd.f32 %v2971, %v3174
    %v3244 = vadd.f32 %v2976, %v3179
    %v3245 = vadd.f32 %v2981, %v3184
    %v3246 = vadd.f32 %v2986, %v3189
    %v3247 = vadd.f32 %v2991, %v3194
    %v3248 = vadd.f32 %v2996, %v3199
    %v3249 = vadd.f32 %v3001, %v3204
    %v3250 = vadd.f32 %v3006, %v3209
    %v3251 = vadd.f32 %v3011, %v3214
    %v3252 = vadd.f32 %v3016, %v3219
    %v3253 = vadd.f32 %v3021, %v3224
    %v3254 = vadd.f32 %v3026, %v3229
    %v3255 = vadd.f32 %v3031, %v3234
    %v3256 = vadd.f32 %v3036, %v3239
    %v3257 = vld [vmem:[#allocation4 + $0x30] sm:$0xff]
    %v3258 = vld [vmem:[#allocation4 + $0x38] sm:$0xff]
    %v3259 = vld [vmem:[#allocation4 + $0x40] sm:$0xff]
    %v3260 = vld [vmem:[#allocation4 + $0x48] sm:$0xff]
    %v3261 = vld [vmem:[#allocation4 + $0x50] sm:$0xff]
    %v3262 = vld [vmem:[#allocation4 + $0x58] sm:$0xff]
    %v3263 = vld [vmem:[#allocation4 + $0x60] sm:$0xff]
    %v3264 = vld [vmem:[#allocation4 + $0x68] sm:$0xff]
    %v3265 = vld [vmem:[#allocation4 + $0x70] sm:$0xff]
    %v3266 = vld [vmem:[#allocation4 + $0x78] sm:$0xff]
    %v3267 = vld [vmem:[#allocation4 + $0x80] sm:$0xff]
    %v3268 = vld [vmem:[#allocation4 + $0x88] sm:$0xff]
    %v3269 = vld [vmem:[#allocation4 + $0x90] sm:$0xff]
    %v3270 = vld [vmem:[#allocation4 + $0x98] sm:$0xff]
    %v3271 = vld [vmem:[#allocation4 + $0xa0] sm:$0xff]
    %v3272 = vld [vmem:[#allocation4 + $0xa8] sm:$0xff]
    %v3273 = vld [vmem:[#allocation4 + $0xb0] sm:$0xff]
    %v3274 = vld [vmem:[#allocation4 + $0xb8] sm:$0xff]
    %v3275 = vld [vmem:[#allocation4 + $0xc0] sm:$0xff]
    %v3276 = vld [vmem:[#allocation4 + $0xc8] sm:$0xff]
    %v3277 = vld [vmem:[#allocation4 + $0xd0] sm:$0xff]
    %v3278 = vld [vmem:[#allocation4 + $0xd8] sm:$0xff]
    %v3279 = vld [vmem:[#allocation4 + $0xe0] sm:$0xff]
    %v3280 = vld [vmem:[#allocation4 + $0xe8] sm:$0xff]
    %v3281 = vld [vmem:[#allocation4 + $0xf0] sm:$0xff]
    %v3282 = vld [vmem:[#allocation4 + $0xf8] sm:$0xff]
    %v3283 = vld [vmem:[#allocation4 + $0x100] sm:$0xff]
    %v3284 = vld [vmem:[#allocation4 + $0x108] sm:$0xff]
    %v3285 = vld [vmem:[#allocation4 + $0x110] sm:$0xff]
    %v3286 = vld [vmem:[#allocation4 + $0x118] sm:$0xff]
    %s3287 = scalar_lea.vmem [#allocation16], 768
    %v3288 = vld [vmem:[%s3287] sm:$0xff]
    %v3289 = vld [vmem:[%s3287 + $0x8] sm:$0xff]
    %v3290 = vld [vmem:[%s3287 + $0x10] sm:$0xff]
    %v3291 = vld [vmem:[%s3287 + $0x18] sm:$0xff]
    %v3292 = vld [vmem:[%s3287 + $0x20] sm:$0xff]
    %v3293 = vld [vmem:[%s3287 + $0x28] sm:$0xff]
    %v3294 = vld [vmem:[%s3287 + $0x30] sm:$0xff]
    %v3295 = vld [vmem:[%s3287 + $0x38] sm:$0xff]
    %v3296 = vld [vmem:[%s3287 + $0x40] sm:$0xff]
    %v3297 = vld [vmem:[%s3287 + $0x48] sm:$0xff]
    %v3298 = vld [vmem:[%s3287 + $0x50] sm:$0xff]
    %v3299 = vld [vmem:[%s3287 + $0x58] sm:$0xff]
    %v3300 = vld [vmem:[%s3287 + $0x60] sm:$0xff]
    %v3301 = vld [vmem:[%s3287 + $0x68] sm:$0xff]
    %v3302 = vld [vmem:[%s3287 + $0x70] sm:$0xff]
    %v3303 = vld [vmem:[%s3287 + $0x78] sm:$0xff]
    %v3304 = vld [vmem:[%s3287 + $0x80] sm:$0xff]
    %v3305 = vld [vmem:[%s3287 + $0x88] sm:$0xff]
    %v3306 = vld [vmem:[%s3287 + $0x90] sm:$0xff]
    %v3307 = vld [vmem:[%s3287 + $0x98] sm:$0xff]
    %v3308 = vld [vmem:[%s3287 + $0xa0] sm:$0xff]
    %v3309 = vld [vmem:[%s3287 + $0xa8] sm:$0xff]
    %v3310 = vld [vmem:[%s3287 + $0xb0] sm:$0xff]
    %v3311 = vld [vmem:[%s3287 + $0xb8] sm:$0xff]
    %v3312 = vld [vmem:[%s3287 + $0xc0] sm:$0xff]
    %v3313 = vld [vmem:[%s3287 + $0xc8] sm:$0xff]
    %v3314 = vld [vmem:[%s3287 + $0xd0] sm:$0xff]
    %v3315 = vld [vmem:[%s3287 + $0xd8] sm:$0xff]
    %v3316 = vld [vmem:[%s3287 + $0xe0] sm:$0xff]
    %v3317 = vld [vmem:[%s3287 + $0xe8] sm:$0xff]
    %v3318 = vld [vmem:[%s3287 + $0xf0] sm:$0xff]
    %v3319 = vld [vmem:[%s3287 + $0xf8] sm:$0xff]
    %3320 = vmatprep.subr.mxu0 0.0
    %3321 = vmatpush1.msra.mxu0 %v3288
    %3322 = vmatprep.subr.mxu0 0.0
    %3323 = vmatpush1.msra.mxu0 %v3289
    %3324 = vmatprep.subr.mxu0 0.0
    %3325 = vmatpush1.msra.mxu0 %v3290
    %3326 = vmatprep.subr.mxu0 0.0
    %3327 = vmatpush1.msra.mxu0 %v3291
    %3328 = vmatprep.subr.mxu0 0.0
    %3329 = vmatpush1.msra.mxu0 %v3292
    %3330 = vmatprep.subr.mxu0 0.0
    %3331 = vmatpush1.msra.mxu0 %v3293
    %3332 = vmatprep.subr.mxu0 0.0
    %3333 = vmatpush1.msra.mxu0 %v3294
    %3334 = vmatprep.subr.mxu0 0.0
    %3335 = vmatpush1.msra.mxu0 %v3295
    %3336 = vmatprep.subr.mxu0 0.0
    %3337 = vmatpush1.msra.mxu0 %v3296
    %3338 = vmatprep.subr.mxu0 0.0
    %3339 = vmatpush1.msra.mxu0 %v3297
    %3340 = vmatprep.subr.mxu0 0.0
    %3341 = vmatpush1.msra.mxu0 %v3298
    %3342 = vmatprep.subr.mxu0 0.0
    %3343 = vmatpush1.msra.mxu0 %v3299
    %3344 = vmatprep.subr.mxu0 0.0
    %3345 = vmatpush1.msra.mxu0 %v3300
    %3346 = vmatprep.subr.mxu0 0.0
    %3347 = vmatpush1.msra.mxu0 %v3301
    %3348 = vmatprep.subr.mxu0 0.0
    %3349 = vmatpush1.msra.mxu0 %v3302
    %3350 = vmatprep.subr.mxu0 0.0
    %3351 = vmatpush1.msra.mxu0 %v3303
    %3352 = vmatprep.subr.mxu0 0.0
    %3353 = vmatpush1.msra.mxu0 %v3304
    %3354 = vmatprep.subr.mxu0 0.0
    %3355 = vmatpush1.msra.mxu0 %v3305
    %3356 = vmatprep.subr.mxu0 0.0
    %3357 = vmatpush1.msra.mxu0 %v3306
    %3358 = vmatprep.subr.mxu0 0.0
    %3359 = vmatpush1.msra.mxu0 %v3307
    %3360 = vmatprep.subr.mxu0 0.0
    %3361 = vmatpush1.msra.mxu0 %v3308
    %3362 = vmatprep.subr.mxu0 0.0
    %3363 = vmatpush1.msra.mxu0 %v3309
    %3364 = vmatprep.subr.mxu0 0.0
    %3365 = vmatpush1.msra.mxu0 %v3310
    %3366 = vmatprep.subr.mxu0 0.0
    %3367 = vmatpush1.msra.mxu0 %v3311
    %3368 = vmatprep.subr.mxu0 0.0
    %3369 = vmatpush1.msra.mxu0 %v3312
    %3370 = vmatprep.subr.mxu0 0.0
    %3371 = vmatpush1.msra.mxu0 %v3313
    %3372 = vmatprep.subr.mxu0 0.0
    %3373 = vmatpush1.msra.mxu0 %v3314
    %3374 = vmatprep.subr.mxu0 0.0
    %3375 = vmatpush1.msra.mxu0 %v3315
    %3376 = vmatprep.subr.mxu0 0.0
    %3377 = vmatpush1.msra.mxu0 %v3316
    %3378 = vmatprep.subr.mxu0 0.0
    %3379 = vmatpush1.msra.mxu0 %v3317
    %3380 = vmatprep.subr.mxu0 0.0
    %3381 = vmatpush1.msra.mxu0 %v3318
    %3382 = vmatprep.subr.mxu0 0.0
    %3383 = vmatpush1.msra.mxu0 %v3319
    %3384 = vmatprep.mubr.f32.mxu0 %v3258
    %3385 = vmatmul.mubr.f32.gmra.mrb[0].mxu0 %v3257
    %v3386 = vpop.f32.mrb[0].mxu0
    %v3387 = vadd.f32 0.0, %v3386
    %v3388 = vpop.f32.mrb[0].mxu0
    %3389 = vmatprep.mubr.f32.mxu0 %v3260
    %3390 = vmatmul.mubr.f32.gmra.mrb[0].mxu0 %v3259
    %v3391 = vpop.f32.mrb[0].mxu0
    %v3392 = vadd.f32 0.0, %v3391
    %v3393 = vpop.f32.mrb[0].mxu0
    %3394 = vmatprep.mubr.f32.mxu0 %v3262
    %3395 = vmatmul.mubr.f32.gmra.mrb[0].mxu0 %v3261
    %v3396 = vpop.f32.mrb[0].mxu0
    %v3397 = vadd.f32 0.0, %v3396
    %v3398 = vpop.f32.mrb[0].mxu0
    %3399 = vmatprep.mubr.f32.mxu0 %v3264
    %3400 = vmatmul.mubr.f32.gmra.mrb[0].mxu0 %v3263
    %v3401 = vpop.f32.mrb[0].mxu0
    %v3402 = vadd.f32 0.0, %v3401
    %v3403 = vpop.f32.mrb[0].mxu0
    %3404 = vmatprep.mubr.f32.mxu0 %v3266
    %3405 = vmatmul.mubr.f32.gmra.mrb[0].mxu0 %v3265
    %v3406 = vpop.f32.mrb[0].mxu0
    %v3407 = vadd.f32 0.0, %v3406
    %v3408 = vpop.f32.mrb[0].mxu0
    %3409 = vmatprep.mubr.f32.mxu0 %v3268
    %3410 = vmatmul.mubr.f32.gmra.mrb[0].mxu0 %v3267
    %v3411 = vpop.f32.mrb[0].mxu0
    %v3412 = vadd.f32 0.0, %v3411
    %v3413 = vpop.f32.mrb[0].mxu0
    %3414 = vmatprep.mubr.f32.mxu0 %v3270
    %3415 = vmatmul.mubr.f32.gmra.mrb[0].mxu0 %v3269
    %v3416 = vpop.f32.mrb[0].mxu0
    %v3417 = vadd.f32 0.0, %v3416
    %v3418 = vpop.f32.mrb[0].mxu0
    %3419 = vmatprep.mubr.f32.mxu0 %v3272
    %3420 = vmatmul.mubr.f32.gmra.mrb[0].mxu0 %v3271
    %v3421 = vpop.f32.mrb[0].mxu0
    %v3422 = vadd.f32 0.0, %v3421
    %v3423 = vpop.f32.mrb[0].mxu0
    %3424 = vmatprep.mubr.f32.mxu0 %v3274
    %3425 = vmatmul.mubr.f32.gmra.mrb[0].mxu0 %v3273
    %v3426 = vpop.f32.mrb[0].mxu0
    %v3427 = vadd.f32 0.0, %v3426
    %v3428 = vpop.f32.mrb[0].mxu0
    %3429 = vmatprep.mubr.f32.mxu0 %v3276
    %3430 = vmatmul.mubr.f32.gmra.mrb[0].mxu0 %v3275
    %v3431 = vpop.f32.mrb[0].mxu0
    %v3432 = vadd.f32 0.0, %v3431
    %v3433 = vpop.f32.mrb[0].mxu0
    %3434 = vmatprep.mubr.f32.mxu0 %v3278
    %3435 = vmatmul.mubr.f32.gmra.mrb[0].mxu0 %v3277
    %v3436 = vpop.f32.mrb[0].mxu0
    %v3437 = vadd.f32 0.0, %v3436
    %v3438 = vpop.f32.mrb[0].mxu0
    %3439 = vmatprep.mubr.f32.mxu0 %v3280
    %3440 = vmatmul.mubr.f32.gmra.mrb[0].mxu0 %v3279
    %v3441 = vpop.f32.mrb[0].mxu0
    %v3442 = vadd.f32 0.0, %v3441
    %v3443 = vpop.f32.mrb[0].mxu0
    %3444 = vmatprep.mubr.f32.mxu0 %v3282
    %3445 = vmatmul.mubr.f32.gmra.mrb[0].mxu0 %v3281
    %v3446 = vpop.f32.mrb[0].mxu0
    %v3447 = vadd.f32 0.0, %v3446
    %v3448 = vpop.f32.mrb[0].mxu0
    %3449 = vmatprep.mubr.f32.mxu0 %v3284
    %3450 = vmatmul.mubr.f32.gmra.mrb[0].mxu0 %v3283
    %v3451 = vpop.f32.mrb[0].mxu0
    %v3452 = vadd.f32 0.0, %v3451
    %v3453 = vpop.f32.mrb[0].mxu0
    %3454 = vmatprep.mubr.f32.mxu0 %v3286
    %3455 = vmatmul.mubr.f32.gmra.mrb[0].mxu0 %v3285
    %v3456 = vpop.f32.mrb[0].mxu0
    %v3457 = vadd.f32 0.0, %v3456
    %v3458 = vpop.f32.mrb[0].mxu0
    %3459 = vdwg.mxu0
    %v3460 = vadd.f32 %v3242, %v3387
    %v3461 = vadd.f32 %v3243, %v3392
    %v3462 = vadd.f32 %v3244, %v3397
    %v3463 = vadd.f32 %v3245, %v3402
    %v3464 = vadd.f32 %v3246, %v3407
    %v3465 = vadd.f32 %v3247, %v3412
    %v3466 = vadd.f32 %v3248, %v3417
    %v3467 = vadd.f32 %v3249, %v3422
    %v3468 = vadd.f32 %v3250, %v3427
    %v3469 = vadd.f32 %v3251, %v3432
    %v3470 = vadd.f32 %v3252, %v3437
    %v3471 = vadd.f32 %v3253, %v3442
    %v3472 = vadd.f32 %v3254, %v3447
    %v3473 = vadd.f32 %v3255, %v3452
    %v3474 = vadd.f32 %v3256, %v3457
    %v3475 = vld [vmem:[#allocation4 + $0x40] sm:$0xff]
    %v3476 = vld [vmem:[#allocation4 + $0x48] sm:$0xff]
    %v3477 = vld [vmem:[#allocation4 + $0x50] sm:$0xff]
    %v3478 = vld [vmem:[#allocation4 + $0x58] sm:$0xff]
    %v3479 = vld [vmem:[#allocation4 + $0x60] sm:$0xff]
    %v3480 = vld [vmem:[#allocation4 + $0x68] sm:$0xff]
    %v3481 = vld [vmem:[#allocation4 + $0x70] sm:$0xff]
    %v3482 = vld [vmem:[#allocation4 + $0x78] sm:$0xff]
    %v3483 = vld [vmem:[#allocation4 + $0x80] sm:$0xff]
    %v3484 = vld [vmem:[#allocation4 + $0x88] sm:$0xff]
    %v3485 = vld [vmem:[#allocation4 + $0x90] sm:$0xff]
    %v3486 = vld [vmem:[#allocation4 + $0x98] sm:$0xff]
    %v3487 = vld [vmem:[#allocation4 + $0xa0] sm:$0xff]
    %v3488 = vld [vmem:[#allocation4 + $0xa8] sm:$0xff]
    %v3489 = vld [vmem:[#allocation4 + $0xb0] sm:$0xff]
    %v3490 = vld [vmem:[#allocation4 + $0xb8] sm:$0xff]
    %v3491 = vld [vmem:[#allocation4 + $0xc0] sm:$0xff]
    %v3492 = vld [vmem:[#allocation4 + $0xc8] sm:$0xff]
    %v3493 = vld [vmem:[#allocation4 + $0xd0] sm:$0xff]
    %v3494 = vld [vmem:[#allocation4 + $0xd8] sm:$0xff]
    %v3495 = vld [vmem:[#allocation4 + $0xe0] sm:$0xff]
    %v3496 = vld [vmem:[#allocation4 + $0xe8] sm:$0xff]
    %v3497 = vld [vmem:[#allocation4 + $0xf0] sm:$0xff]
    %v3498 = vld [vmem:[#allocation4 + $0xf8] sm:$0xff]
    %v3499 = vld [vmem:[#allocation4 + $0x100] sm:$0xff]
    %v3500 = vld [vmem:[#allocation4 + $0x108] sm:$0xff]
    %v3501 = vld [vmem:[#allocation4 + $0x110] sm:$0xff]
    %v3502 = vld [vmem:[#allocation4 + $0x118] sm:$0xff]
    %v3503 = vld [vmem:[#allocation4 + $0x120] sm:$0xff]
    %v3504 = vld [vmem:[#allocation4 + $0x128] sm:$0xff]
    %s3505 = scalar_lea.vmem [#allocation16], 1024
    %v3506 = vld [vmem:[%s3505] sm:$0xff]
    %v3507 = vld [vmem:[%s3505 + $0x8] sm:$0xff]
    %v3508 = vld [vmem:[%s3505 + $0x10] sm:$0xff]
    %v3509 = vld [vmem:[%s3505 + $0x18] sm:$0xff]
    %v3510 = vld [vmem:[%s3505 + $0x20] sm:$0xff]
    %v3511 = vld [vmem:[%s3505 + $0x28] sm:$0xff]
    %v3512 = vld [vmem:[%s3505 + $0x30] sm:$0xff]
    %v3513 = vld [vmem:[%s3505 + $0x38] sm:$0xff]
    %v3514 = vld [vmem:[%s3505 + $0x40] sm:$0xff]
    %v3515 = vld [vmem:[%s3505 + $0x48] sm:$0xff]
    %v3516 = vld [vmem:[%s3505 + $0x50] sm:$0xff]
    %v3517 = vld [vmem:[%s3505 + $0x58] sm:$0xff]
    %v3518 = vld [vmem:[%s3505 + $0x60] sm:$0xff]
    %v3519 = vld [vmem:[%s3505 + $0x68] sm:$0xff]
    %v3520 = vld [vmem:[%s3505 + $0x70] sm:$0xff]
    %v3521 = vld [vmem:[%s3505 + $0x78] sm:$0xff]
    %v3522 = vld [vmem:[%s3505 + $0x80] sm:$0xff]
    %v3523 = vld [vmem:[%s3505 + $0x88] sm:$0xff]
    %v3524 = vld [vmem:[%s3505 + $0x90] sm:$0xff]
    %v3525 = vld [vmem:[%s3505 + $0x98] sm:$0xff]
    %v3526 = vld [vmem:[%s3505 + $0xa0] sm:$0xff]
    %v3527 = vld [vmem:[%s3505 + $0xa8] sm:$0xff]
    %v3528 = vld [vmem:[%s3505 + $0xb0] sm:$0xff]
    %v3529 = vld [vmem:[%s3505 + $0xb8] sm:$0xff]
    %v3530 = vld [vmem:[%s3505 + $0xc0] sm:$0xff]
    %v3531 = vld [vmem:[%s3505 + $0xc8] sm:$0xff]
    %v3532 = vld [vmem:[%s3505 + $0xd0] sm:$0xff]
    %v3533 = vld [vmem:[%s3505 + $0xd8] sm:$0xff]
    %v3534 = vld [vmem:[%s3505 + $0xe0] sm:$0xff]
    %v3535 = vld [vmem:[%s3505 + $0xe8] sm:$0xff]
    %v3536 = vld [vmem:[%s3505 + $0xf0] sm:$0xff]
    %v3537 = vld [vmem:[%s3505 + $0xf8] sm:$0xff]
    %3538 = vmatprep.subr.mxu0 0.0
    %3539 = vmatpush1.msra.mxu0 %v3506
    %3540 = vmatprep.subr.mxu0 0.0
    %3541 = vmatpush1.msra.mxu0 %v3507
    %3542 = vmatprep.subr.mxu0 0.0
    %3543 = vmatpush1.msra.mxu0 %v3508
    %3544 = vmatprep.subr.mxu0 0.0
    %3545 = vmatpush1.msra.mxu0 %v3509
    %3546 = vmatprep.subr.mxu0 0.0
    %3547 = vmatpush1.msra.mxu0 %v3510
    %3548 = vmatprep.subr.mxu0 0.0
    %3549 = vmatpush1.msra.mxu0 %v3511
    %3550 = vmatprep.subr.mxu0 0.0
    %3551 = vmatpush1.msra.mxu0 %v3512
    %3552 = vmatprep.subr.mxu0 0.0
    %3553 = vmatpush1.msra.mxu0 %v3513
    %3554 = vmatprep.subr.mxu0 0.0
    %3555 = vmatpush1.msra.mxu0 %v3514
    %3556 = vmatprep.subr.mxu0 0.0
    %3557 = vmatpush1.msra.mxu0 %v3515
    %3558 = vmatprep.subr.mxu0 0.0
    %3559 = vmatpush1.msra.mxu0 %v3516
    %3560 = vmatprep.subr.mxu0 0.0
    %3561 = vmatpush1.msra.mxu0 %v3517
    %3562 = vmatprep.subr.mxu0 0.0
    %3563 = vmatpush1.msra.mxu0 %v3518
    %3564 = vmatprep.subr.mxu0 0.0
    %3565 = vmatpush1.msra.mxu0 %v3519
    %3566 = vmatprep.subr.mxu0 0.0
    %3567 = vmatpush1.msra.mxu0 %v3520
    %3568 = vmatprep.subr.mxu0 0.0
    %3569 = vmatpush1.msra.mxu0 %v3521
    %3570 = vmatprep.subr.mxu0 0.0
    %3571 = vmatpush1.msra.mxu0 %v3522
    %3572 = vmatprep.subr.mxu0 0.0
    %3573 = vmatpush1.msra.mxu0 %v3523
    %3574 = vmatprep.subr.mxu0 0.0
    %3575 = vmatpush1.msra.mxu0 %v3524
    %3576 = vmatprep.subr.mxu0 0.0
    %3577 = vmatpush1.msra.mxu0 %v3525
    %3578 = vmatprep.subr.mxu0 0.0
    %3579 = vmatpush1.msra.mxu0 %v3526
    %3580 = vmatprep.subr.mxu0 0.0
    %3581 = vmatpush1.msra.mxu0 %v3527
    %3582 = vmatprep.subr.mxu0 0.0
    %3583 = vmatpush1.msra.mxu0 %v3528
    %3584 = vmatprep.subr.mxu0 0.0
    %3585 = vmatpush1.msra.mxu0 %v3529
    %3586 = vmatprep.subr.mxu0 0.0
    %3587 = vmatpush1.msra.mxu0 %v3530
    %3588 = vmatprep.subr.mxu0 0.0
    %3589 = vmatpush1.msra.mxu0 %v3531
    %3590 = vmatprep.subr.mxu0 0.0
    %3591 = vmatpush1.msra.mxu0 %v3532
    %3592 = vmatprep.subr.mxu0 0.0
    %3593 = vmatpush1.msra.mxu0 %v3533
    %3594 = vmatprep.subr.mxu0 0.0
    %3595 = vmatpush1.msra.mxu0 %v3534
    %3596 = vmatprep.subr.mxu0 0.0
    %3597 = vmatpush1.msra.mxu0 %v3535
    %3598 = vmatprep.subr.mxu0 0.0
    %3599 = vmatpush1.msra.mxu0 %v3536
    %3600 = vmatprep.subr.mxu0 0.0
    %3601 = vmatpush1.msra.mxu0 %v3537
    %3602 = vmatprep.mubr.f32.mxu0 %v3476
    %3603 = vmatmul.mubr.f32.gmra.mrb[0].mxu0 %v3475
    %v3604 = vpop.f32.mrb[0].mxu0
    %v3605 = vadd.f32 0.0, %v3604
    %v3606 = vpop.f32.mrb[0].mxu0
    %3607 = vmatprep.mubr.f32.mxu0 %v3478
    %3608 = vmatmul.mubr.f32.gmra.mrb[0].mxu0 %v3477
    %v3609 = vpop.f32.mrb[0].mxu0
    %v3610 = vadd.f32 0.0, %v3609
    %v3611 = vpop.f32.mrb[0].mxu0
    %3612 = vmatprep.mubr.f32.mxu0 %v3480
    %3613 = vmatmul.mubr.f32.gmra.mrb[0].mxu0 %v3479
    %v3614 = vpop.f32.mrb[0].mxu0
    %v3615 = vadd.f32 0.0, %v3614
    %v3616 = vpop.f32.mrb[0].mxu0
    %3617 = vmatprep.mubr.f32.mxu0 %v3482
    %3618 = vmatmul.mubr.f32.gmra.mrb[0].mxu0 %v3481
    %v3619 = vpop.f32.mrb[0].mxu0
    %v3620 = vadd.f32 0.0, %v3619
    %v3621 = vpop.f32.mrb[0].mxu0
    %3622 = vmatprep.mubr.f32.mxu0 %v3484
    %3623 = vmatmul.mubr.f32.gmra.mrb[0].mxu0 %v3483
    %v3624 = vpop.f32.mrb[0].mxu0
    %v3625 = vadd.f32 0.0, %v3624
    %v3626 = vpop.f32.mrb[0].mxu0
    %3627 = vmatprep.mubr.f32.mxu0 %v3486
    %3628 = vmatmul.mubr.f32.gmra.mrb[0].mxu0 %v3485
    %v3629 = vpop.f32.mrb[0].mxu0
    %v3630 = vadd.f32 0.0, %v3629
    %v3631 = vpop.f32.mrb[0].mxu0
    %3632 = vmatprep.mubr.f32.mxu0 %v3488
    %3633 = vmatmul.mubr.f32.gmra.mrb[0].mxu0 %v3487
    %v3634 = vpop.f32.mrb[0].mxu0
    %v3635 = vadd.f32 0.0, %v3634
    %v3636 = vpop.f32.mrb[0].mxu0
    %3637 = vmatprep.mubr.f32.mxu0 %v3490
    %3638 = vmatmul.mubr.f32.gmra.mrb[0].mxu0 %v3489
    %v3639 = vpop.f32.mrb[0].mxu0
    %v3640 = vadd.f32 0.0, %v3639
    %v3641 = vpop.f32.mrb[0].mxu0
    %3642 = vmatprep.mubr.f32.mxu0 %v3492
    %3643 = vmatmul.mubr.f32.gmra.mrb[0].mxu0 %v3491
    %v3644 = vpop.f32.mrb[0].mxu0
    %v3645 = vadd.f32 0.0, %v3644
    %v3646 = vpop.f32.mrb[0].mxu0
    %3647 = vmatprep.mubr.f32.mxu0 %v3494
    %3648 = vmatmul.mubr.f32.gmra.mrb[0].mxu0 %v3493
    %v3649 = vpop.f32.mrb[0].mxu0
    %v3650 = vadd.f32 0.0, %v3649
    %v3651 = vpop.f32.mrb[0].mxu0
    %3652 = vmatprep.mubr.f32.mxu0 %v3496
    %3653 = vmatmul.mubr.f32.gmra.mrb[0].mxu0 %v3495
    %v3654 = vpop.f32.mrb[0].mxu0
    %v3655 = vadd.f32 0.0, %v3654
    %v3656 = vpop.f32.mrb[0].mxu0
    %3657 = vmatprep.mubr.f32.mxu0 %v3498
    %3658 = vmatmul.mubr.f32.gmra.mrb[0].mxu0 %v3497
    %v3659 = vpop.f32.mrb[0].mxu0
    %v3660 = vadd.f32 0.0, %v3659
    %v3661 = vpop.f32.mrb[0].mxu0
    %3662 = vmatprep.mubr.f32.mxu0 %v3500
    %3663 = vmatmul.mubr.f32.gmra.mrb[0].mxu0 %v3499
    %v3664 = vpop.f32.mrb[0].mxu0
    %v3665 = vadd.f32 0.0, %v3664
    %v3666 = vpop.f32.mrb[0].mxu0
    %3667 = vmatprep.mubr.f32.mxu0 %v3502
    %3668 = vmatmul.mubr.f32.gmra.mrb[0].mxu0 %v3501
    %v3669 = vpop.f32.mrb[0].mxu0
    %v3670 = vadd.f32 0.0, %v3669
    %v3671 = vpop.f32.mrb[0].mxu0
    %3672 = vmatprep.mubr.f32.mxu0 %v3504
    %3673 = vmatmul.mubr.f32.gmra.mrb[0].mxu0 %v3503
    %v3674 = vpop.f32.mrb[0].mxu0
    %v3675 = vadd.f32 0.0, %v3674
    %v3676 = vpop.f32.mrb[0].mxu0
    %3677 = vdwg.mxu0
    %v3678 = vadd.f32 %v3460, %v3605
    %v3679 = vadd.f32 %v3461, %v3610
    %v3680 = vadd.f32 %v3462, %v3615
    %v3681 = vadd.f32 %v3463, %v3620
    %v3682 = vadd.f32 %v3464, %v3625
    %v3683 = vadd.f32 %v3465, %v3630
    %v3684 = vadd.f32 %v3466, %v3635
    %v3685 = vadd.f32 %v3467, %v3640
    %v3686 = vadd.f32 %v3468, %v3645
    %v3687 = vadd.f32 %v3469, %v3650
    %v3688 = vadd.f32 %v3470, %v3655
    %v3689 = vadd.f32 %v3471, %v3660
    %v3690 = vadd.f32 %v3472, %v3665
    %v3691 = vadd.f32 %v3473, %v3670
    %v3692 = vadd.f32 %v3474, %v3675
    %v3693 = vld [vmem:[#allocation17] sm:$0x1]
    %v3695 = vlaneseq
    %v3696 = vshrl.u32 %v3695, 7
    %v3697 = vsub.s32 0, %v3696
    %v3698 = vrot.slane %v3693, %v3697
    %v3700 = vadd.f32 %v3678, %v3698
    %v3701 = vadd.f32 %v3679, %v3698
    %v3702 = vadd.f32 %v3680, %v3698
    %v3703 = vadd.f32 %v3681, %v3698
    %v3704 = vadd.f32 %v3682, %v3698
    %v3705 = vadd.f32 %v3683, %v3698
    %v3706 = vadd.f32 %v3684, %v3698
    %v3707 = vadd.f32 %v3685, %v3698
    %v3708 = vadd.f32 %v3686, %v3698
    %v3709 = vadd.f32 %v3687, %v3698
    %v3710 = vadd.f32 %v3688, %v3698
    %v3711 = vadd.f32 %v3689, %v3698
    %v3712 = vadd.f32 %v3690, %v3698
    %v3713 = vadd.f32 %v3691, %v3698
    %v3714 = vadd.f32 %v3692, %v3698
    %v3715 = vmax.f32 %v3700, 0.0
    %v3716 = vmax.f32 %v3701, 0.0
    %v3717 = vmax.f32 %v3702, 0.0
    %v3718 = vmax.f32 %v3703, 0.0
    %v3719 = vmax.f32 %v3704, 0.0
    %v3720 = vmax.f32 %v3705, 0.0
    %v3721 = vmax.f32 %v3706, 0.0
    %v3722 = vmax.f32 %v3707, 0.0
    %v3723 = vmax.f32 %v3708, 0.0
    %v3724 = vmax.f32 %v3709, 0.0
    %v3725 = vmax.f32 %v3710, 0.0
    %v3726 = vmax.f32 %v3711, 0.0
    %v3727 = vmax.f32 %v3712, 0.0
    %v3728 = vmax.f32 %v3713, 0.0
    %v3729 = vmax.f32 %v3714, 0.0
    %3730 = vst [vmem:[#allocation5] sm:$0xff] 0.0
    %3731 = vst [vmem:[#allocation5 + $0x8] sm:$0xff] 0.0
    %3732 = vst [vmem:[#allocation5 + $0x10] sm:$0xff] 0.0
    %3733 = vst [vmem:[#allocation5 + $0x18] sm:$0xff] 0.0
    %3734 = vst [vmem:[#allocation5 + $0x20] sm:$0xff] 0.0
    %3735 = vst [vmem:[#allocation5 + $0x28] sm:$0xff] 0.0
    %3736 = vst [vmem:[#allocation5 + $0x30] sm:$0xff] 0.0
    %3737 = vst [vmem:[#allocation5 + $0x38] sm:$0xff] 0.0
    %3738 = vst [vmem:[#allocation5 + $0x40] sm:$0xff] 0.0
    %3739 = vst [vmem:[#allocation5 + $0x48] sm:$0xff] 0.0
    %3740 = vst [vmem:[#allocation5 + $0x50] sm:$0xff] 0.0
    %3741 = vst [vmem:[#allocation5 + $0x58] sm:$0xff] 0.0
    %3742 = vst [vmem:[#allocation5 + $0x60] sm:$0xff] 0.0
    %3743 = vst [vmem:[#allocation5 + $0x68] sm:$0xff] 0.0
    %3744 = vst [vmem:[#allocation5 + $0x70] sm:$0xff] 0.0
    %3745 = vst [vmem:[#allocation5 + $0x78] sm:$0xff] 0.0
    %3746 = vst [vmem:[#allocation5 + $0x80] sm:$0xff] 0.0
    %3747 = vst [vmem:[#allocation5 + $0x88] sm:$0xff] 0.0
    %3748 = vst [vmem:[#allocation5 + $0x90] sm:$0xff] 0.0
    %3749 = vst [vmem:[#allocation5 + $0x98] sm:$0xff] 0.0
    %3750 = vst [vmem:[#allocation5 + $0xa0] sm:$0xff] 0.0
    %3751 = vst [vmem:[#allocation5 + $0xa8] sm:$0xff] 0.0
    %3752 = vst [vmem:[#allocation5 + $0xb0] sm:$0xff] 0.0
    %3753 = vst [vmem:[#allocation5 + $0xb8] sm:$0xff] 0.0
    %3754 = vst [vmem:[#allocation5 + $0xc0] sm:$0xff] 0.0
    %3755 = vst [vmem:[#allocation5 + $0xc8] sm:$0xff] 0.0
    %3756 = vst [vmem:[#allocation5 + $0xd0] sm:$0xff] 0.0
    %3757 = vst [vmem:[#allocation5 + $0xd8] sm:$0xff] 0.0
    %3758 = vst [vmem:[#allocation5 + $0xe0] sm:$0xff] 0.0
    %3759 = vst [vmem:[#allocation5 + $0xe8] sm:$0xff] 0.0
    %3760 = vst [vmem:[#allocation5 + $0xf0] sm:$0xff] 0.0
    %3761 = vst [vmem:[#allocation5 + $0xf8] sm:$0xff] 0.0
    %3762 = vst [vmem:[#allocation5 + $0x100] sm:$0xff] 0.0
    %3763 = vst [vmem:[#allocation5 + $0x108] sm:$0xff] 0.0
    %3764 = vst [vmem:[#allocation5 + $0x110] sm:$0xff] 0.0
    %3765 = vst [vmem:[#allocation5 + $0x118] sm:$0xff] 0.0
    %3766 = vst [vmem:[#allocation5 + $0x18] sm:$0xff] %v3715
    %3767 = vst [vmem:[#allocation5 + $0x28] sm:$0xff] %v3716
    %3768 = vst [vmem:[#allocation5 + $0x38] sm:$0xff] %v3717
    %3769 = vst [vmem:[#allocation5 + $0x48] sm:$0xff] %v3718
    %3770 = vst [vmem:[#allocation5 + $0x58] sm:$0xff] %v3719
    %3771 = vst [vmem:[#allocation5 + $0x68] sm:$0xff] %v3720
    %3772 = vst [vmem:[#allocation5 + $0x78] sm:$0xff] %v3721
    %3773 = vst [vmem:[#allocation5 + $0x88] sm:$0xff] %v3722
    %3774 = vst [vmem:[#allocation5 + $0x98] sm:$0xff] %v3723
    %3775 = vst [vmem:[#allocation5 + $0xa8] sm:$0xff] %v3724
    %3776 = vst [vmem:[#allocation5 + $0xb8] sm:$0xff] %v3725
    %3777 = vst [vmem:[#allocation5 + $0xc8] sm:$0xff] %v3726
    %3778 = vst [vmem:[#allocation5 + $0xd8] sm:$0xff] %v3727
    %3779 = vst [vmem:[#allocation5 + $0xe8] sm:$0xff] %v3728
    %3780 = vst [vmem:[#allocation5 + $0xf8] sm:$0xff] %v3729
    %v3781 = vld [vmem:[#allocation5] sm:$0xff]
    %v3782 = vld [vmem:[#allocation5 + $0x8] sm:$0xff]
    %v3783 = vld [vmem:[#allocation5 + $0x10] sm:$0xff]
    %v3784 = vld [vmem:[#allocation5 + $0x18] sm:$0xff]
    %v3785 = vld [vmem:[#allocation5 + $0x20] sm:$0xff]
    %v3786 = vld [vmem:[#allocation5 + $0x28] sm:$0xff]
    %v3787 = vld [vmem:[#allocation5 + $0x30] sm:$0xff]
    %v3788 = vld [vmem:[#allocation5 + $0x38] sm:$0xff]
    %v3789 = vld [vmem:[#allocation5 + $0x40] sm:$0xff]
    %v3790 = vld [vmem:[#allocation5 + $0x48] sm:$0xff]
    %v3791 = vld [vmem:[#allocation5 + $0x50] sm:$0xff]
    %v3792 = vld [vmem:[#allocation5 + $0x58] sm:$0xff]
    %v3793 = vld [vmem:[#allocation5 + $0x60] sm:$0xff]
    %v3794 = vld [vmem:[#allocation5 + $0x68] sm:$0xff]
    %v3795 = vld [vmem:[#allocation5 + $0x70] sm:$0xff]
    %v3796 = vld [vmem:[#allocation5 + $0x78] sm:$0xff]
    %v3797 = vld [vmem:[#allocation5 + $0x80] sm:$0xff]
    %v3798 = vld [vmem:[#allocation5 + $0x88] sm:$0xff]
    %v3799 = vld [vmem:[#allocation5 + $0x90] sm:$0xff]
    %v3800 = vld [vmem:[#allocation5 + $0x98] sm:$0xff]
    %v3801 = vld [vmem:[#allocation5 + $0xa0] sm:$0xff]
    %v3802 = vld [vmem:[#allocation5 + $0xa8] sm:$0xff]
    %v3803 = vld [vmem:[#allocation5 + $0xb0] sm:$0xff]
    %v3804 = vld [vmem:[#allocation5 + $0xb8] sm:$0xff]
    %v3805 = vld [vmem:[#allocation5 + $0xc0] sm:$0xff]
    %v3806 = vld [vmem:[#allocation5 + $0xc8] sm:$0xff]
    %v3807 = vld [vmem:[#allocation5 + $0xd0] sm:$0xff]
    %v3808 = vld [vmem:[#allocation5 + $0xd8] sm:$0xff]
    %v3809 = vld [vmem:[#allocation5 + $0xe0] sm:$0xff]
    %v3810 = vld [vmem:[#allocation5 + $0xe8] sm:$0xff]
    %v3811 = vld [vmem:[#allocation5 + $0xf0] sm:$0xff]
    %v3812 = vld [vmem:[#allocation5 + $0xf8] sm:$0xff]
    %v3813 = vld [vmem:[#allocation19] sm:$0xff]
    %v3814 = vld [vmem:[#allocation19 + $0x8] sm:$0xff]
    %v3815 = vld [vmem:[#allocation19 + $0x10] sm:$0xff]
    %v3816 = vld [vmem:[#allocation19 + $0x18] sm:$0xff]
    %v3817 = vld [vmem:[#allocation19 + $0x20] sm:$0xff]
    %v3818 = vld [vmem:[#allocation19 + $0x28] sm:$0xff]
    %v3819 = vld [vmem:[#allocation19 + $0x30] sm:$0xff]
    %v3820 = vld [vmem:[#allocation19 + $0x38] sm:$0xff]
    %v3821 = vld [vmem:[#allocation19 + $0x40] sm:$0xff]
    %v3822 = vld [vmem:[#allocation19 + $0x48] sm:$0xff]
    %v3823 = vld [vmem:[#allocation19 + $0x50] sm:$0xff]
    %v3824 = vld [vmem:[#allocation19 + $0x58] sm:$0xff]
    %v3825 = vld [vmem:[#allocation19 + $0x60] sm:$0xff]
    %v3826 = vld [vmem:[#allocation19 + $0x68] sm:$0xff]
    %v3827 = vld [vmem:[#allocation19 + $0x70] sm:$0xff]
    %v3828 = vld [vmem:[#allocation19 + $0x78] sm:$0xff]
    %v3829 = vld [vmem:[#allocation5 + $0x100] sm:$0xff]
    %s3830 = scalar_lea.vmem [#allocation19], 128
    %v3831 = vld [vmem:[%s3830] sm:$0xff]
    %v3832 = vld [vmem:[%s3830 + $0x8] sm:$0xff]
    %v3833 = vld [vmem:[%s3830 + $0x10] sm:$0xff]
    %v3834 = vld [vmem:[%s3830 + $0x18] sm:$0xff]
    %v3835 = vld [vmem:[%s3830 + $0x20] sm:$0xff]
    %v3836 = vld [vmem:[%s3830 + $0x28] sm:$0xff]
    %v3837 = vld [vmem:[%s3830 + $0x30] sm:$0xff]
    %v3838 = vld [vmem:[%s3830 + $0x38] sm:$0xff]
    %v3839 = vld [vmem:[%s3830 + $0x40] sm:$0xff]
    %v3840 = vld [vmem:[%s3830 + $0x48] sm:$0xff]
    %v3841 = vld [vmem:[%s3830 + $0x50] sm:$0xff]
    %v3842 = vld [vmem:[%s3830 + $0x58] sm:$0xff]
    %v3843 = vld [vmem:[%s3830 + $0x60] sm:$0xff]
    %v3844 = vld [vmem:[%s3830 + $0x68] sm:$0xff]
    %v3845 = vld [vmem:[%s3830 + $0x70] sm:$0xff]
    %v3846 = vld [vmem:[%s3830 + $0x78] sm:$0xff]
    %3847 = vmatprep.subr.mxu0 0.0
    %3848 = vmatpush1.msra.mxu0 %v3831
    %3849 = vmatprep.subr.mxu0 0.0
    %3850 = vmatpush1.msra.mxu0 %v3832
    %3851 = vmatprep.subr.mxu0 0.0
    %3852 = vmatpush1.msra.mxu0 %v3833
    %3853 = vmatprep.subr.mxu0 0.0
    %3854 = vmatpush1.msra.mxu0 %v3834
    %3855 = vmatprep.subr.mxu0 0.0
    %3856 = vmatpush1.msra.mxu0 %v3835
    %3857 = vmatprep.subr.mxu0 0.0
    %3858 = vmatpush1.msra.mxu0 %v3836
    %3859 = vmatprep.subr.mxu0 0.0
    %3860 = vmatpush1.msra.mxu0 %v3837
    %3861 = vmatprep.subr.mxu0 0.0
    %3862 = vmatpush1.msra.mxu0 %v3838
    %3863 = vmatprep.subr.mxu0 0.0
    %3864 = vmatpush1.msra.mxu0 %v3839
    %3865 = vmatprep.subr.mxu0 0.0
    %3866 = vmatpush1.msra.mxu0 %v3840
    %3867 = vmatprep.subr.mxu0 0.0
    %3868 = vmatpush1.msra.mxu0 %v3841
    %3869 = vmatprep.subr.mxu0 0.0
    %3870 = vmatpush1.msra.mxu0 %v3842
    %3871 = vmatprep.subr.mxu0 0.0
    %3872 = vmatpush1.msra.mxu0 %v3843
    %3873 = vmatprep.subr.mxu0 0.0
    %3874 = vmatpush1.msra.mxu0 %v3844
    %3875 = vmatprep.subr.mxu0 0.0
    %3876 = vmatpush1.msra.mxu0 %v3845
    %3877 = vmatprep.subr.mxu0 0.0
    %3878 = vmatpush1.msra.mxu0 %v3846
    %3879 = vmatprep.subr.mxu0 0.0
    %3880 = vmatpush1.msra.mxu0 0.0
    %3881 = vmatprep.subr.mxu0 0.0
    %3882 = vmatpush1.msra.mxu0 0.0
    %3883 = vmatprep.subr.mxu0 0.0
    %3884 = vmatpush1.msra.mxu0 0.0
    %3885 = vmatprep.subr.mxu0 0.0
    %3886 = vmatpush1.msra.mxu0 0.0
    %3887 = vmatprep.subr.mxu0 0.0
    %3888 = vmatpush1.msra.mxu0 0.0
    %3889 = vmatprep.subr.mxu0 0.0
    %3890 = vmatpush1.msra.mxu0 0.0
    %3891 = vmatprep.subr.mxu0 0.0
    %3892 = vmatpush1.msra.mxu0 0.0
    %3893 = vmatprep.subr.mxu0 0.0
    %3894 = vmatpush1.msra.mxu0 0.0
    %3895 = vmatprep.subr.mxu0 0.0
    %3896 = vmatpush1.msra.mxu0 0.0
    %3897 = vmatprep.subr.mxu0 0.0
    %3898 = vmatpush1.msra.mxu0 0.0
    %3899 = vmatprep.subr.mxu0 0.0
    %3900 = vmatpush1.msra.mxu0 0.0
    %3901 = vmatprep.subr.mxu0 0.0
    %3902 = vmatpush1.msra.mxu0 0.0
    %3903 = vmatprep.subr.mxu0 0.0
    %3904 = vmatpush1.msra.mxu0 0.0
    %3905 = vmatprep.subr.mxu0 0.0
    %3906 = vmatpush1.msra.mxu0 0.0
    %3907 = vmatprep.subr.mxu0 0.0
    %3908 = vmatpush1.msra.mxu0 0.0
    %3909 = vmatprep.subr.mxu0 0.0
    %3910 = vmatpush1.msra.mxu0 0.0
    %3911 = vmatprep.mubr.f32.mxu0 0.0
    %3912 = vmatmul.mubr.f32.gmra.mrb[0].mxu0 %v3782
    %v3913 = vpop.f32.mrb[0].mxu0
    %v3914 = vadd.f32 0.0, %v3913
    %v3915 = vpop.f32.mrb[0].mxu0
    %3916 = vmatprep.mubr.f32.mxu0 0.0
    %3917 = vmatmul.mubr.f32.gmra.mrb[0].mxu0 %v3783
    %v3918 = vpop.f32.mrb[0].mxu0
    %v3919 = vadd.f32 0.0, %v3918
    %v3920 = vpop.f32.mrb[0].mxu0
    %3921 = vmatprep.mubr.f32.mxu0 0.0
    %3922 = vmatmul.mubr.f32.gmra.mrb[0].mxu0 %v3784
    %v3923 = vpop.f32.mrb[0].mxu0
    %v3924 = vadd.f32 0.0, %v3923
    %v3925 = vpop.f32.mrb[0].mxu0
    %3926 = vmatprep.mubr.f32.mxu0 0.0
    %3927 = vmatmul.mubr.f32.gmra.mrb[0].mxu0 %v3785
    %v3928 = vpop.f32.mrb[0].mxu0
    %v3929 = vadd.f32 0.0, %v3928
    %v3930 = vpop.f32.mrb[0].mxu0
    %3931 = vmatprep.mubr.f32.mxu0 0.0
    %3932 = vmatmul.mubr.f32.gmra.mrb[0].mxu0 %v3786
    %v3933 = vpop.f32.mrb[0].mxu0
    %v3934 = vadd.f32 0.0, %v3933
    %v3935 = vpop.f32.mrb[0].mxu0
    %3936 = vmatprep.mubr.f32.mxu0 0.0
    %3937 = vmatmul.mubr.f32.gmra.mrb[0].mxu0 %v3787
    %v3938 = vpop.f32.mrb[0].mxu0
    %v3939 = vadd.f32 0.0, %v3938
    %v3940 = vpop.f32.mrb[0].mxu0
    %3941 = vmatprep.mubr.f32.mxu0 0.0
    %3942 = vmatmul.mubr.f32.gmra.mrb[0].mxu0 %v3788
    %v3943 = vpop.f32.mrb[0].mxu0
    %v3944 = vadd.f32 0.0, %v3943
    %v3945 = vpop.f32.mrb[0].mxu0
    %3946 = vmatprep.mubr.f32.mxu0 0.0
    %3947 = vmatmul.mubr.f32.gmra.mrb[0].mxu0 %v3789
    %v3948 = vpop.f32.mrb[0].mxu0
    %v3949 = vadd.f32 0.0, %v3948
    %v3950 = vpop.f32.mrb[0].mxu0
    %3951 = vmatprep.mubr.f32.mxu0 0.0
    %3952 = vmatmul.mubr.f32.gmra.mrb[0].mxu0 %v3790
    %v3953 = vpop.f32.mrb[0].mxu0
    %v3954 = vadd.f32 0.0, %v3953
    %v3955 = vpop.f32.mrb[0].mxu0
    %3956 = vmatprep.mubr.f32.mxu0 0.0
    %3957 = vmatmul.mubr.f32.gmra.mrb[0].mxu0 %v3791
    %v3958 = vpop.f32.mrb[0].mxu0
    %v3959 = vadd.f32 0.0, %v3958
    %v3960 = vpop.f32.mrb[0].mxu0
    %3961 = vmatprep.mubr.f32.mxu0 0.0
    %3962 = vmatmul.mubr.f32.gmra.mrb[0].mxu0 %v3792
    %v3963 = vpop.f32.mrb[0].mxu0
    %v3964 = vadd.f32 0.0, %v3963
    %v3965 = vpop.f32.mrb[0].mxu0
    %3966 = vmatprep.mubr.f32.mxu0 0.0
    %3967 = vmatmul.mubr.f32.gmra.mrb[0].mxu0 %v3793
    %v3968 = vpop.f32.mrb[0].mxu0
    %v3969 = vadd.f32 0.0, %v3968
    %v3970 = vpop.f32.mrb[0].mxu0
    %3971 = vmatprep.mubr.f32.mxu0 0.0
    %3972 = vmatmul.mubr.f32.gmra.mrb[0].mxu0 %v3794
    %v3973 = vpop.f32.mrb[0].mxu0
    %v3974 = vadd.f32 0.0, %v3973
    %v3975 = vpop.f32.mrb[0].mxu0
    %3976 = vmatprep.mubr.f32.mxu0 0.0
    %3977 = vmatmul.mubr.f32.gmra.mrb[0].mxu0 %v3795
    %v3978 = vpop.f32.mrb[0].mxu0
    %v3979 = vadd.f32 0.0, %v3978
    %v3980 = vpop.f32.mrb[0].mxu0
    %3981 = vmatprep.mubr.f32.mxu0 0.0
    %3982 = vmatmul.mubr.f32.gmra.mrb[0].mxu0 %v3796
    %v3983 = vpop.f32.mrb[0].mxu0
    %v3984 = vadd.f32 0.0, %v3983
    %v3985 = vpop.f32.mrb[0].mxu0
    %3986 = vmatprep.mubr.f32.mxu0 0.0
    %3987 = vmatmul.mubr.f32.gmra.mrb[0].mxu0 %v3797
    %v3988 = vpop.f32.mrb[0].mxu0
    %v3989 = vadd.f32 0.0, %v3988
    %v3990 = vpop.f32.mrb[0].mxu0
    %3991 = vmatprep.mubr.f32.mxu0 0.0
    %3992 = vmatmul.mubr.f32.gmra.mrb[0].mxu0 %v3798
    %v3993 = vpop.f32.mrb[0].mxu0
    %v3994 = vadd.f32 0.0, %v3993
    %v3995 = vpop.f32.mrb[0].mxu0
    %3996 = vmatprep.mubr.f32.mxu0 0.0
    %3997 = vmatmul.mubr.f32.gmra.mrb[0].mxu0 %v3799
    %v3998 = vpop.f32.mrb[0].mxu0
    %v3999 = vadd.f32 0.0, %v3998
    %v4000 = vpop.f32.mrb[0].mxu0
    %4001 = vmatprep.mubr.f32.mxu0 0.0
    %4002 = vmatmul.mubr.f32.gmra.mrb[0].mxu0 %v3800
    %v4003 = vpop.f32.mrb[0].mxu0
    %v4004 = vadd.f32 0.0, %v4003
    %v4005 = vpop.f32.mrb[0].mxu0
    %4006 = vmatprep.mubr.f32.mxu0 0.0
    %4007 = vmatmul.mubr.f32.gmra.mrb[0].mxu0 %v3801
    %v4008 = vpop.f32.mrb[0].mxu0
    %v4009 = vadd.f32 0.0, %v4008
    %v4010 = vpop.f32.mrb[0].mxu0
    %4011 = vmatprep.mubr.f32.mxu0 0.0
    %4012 = vmatmul.mubr.f32.gmra.mrb[0].mxu0 %v3802
    %v4013 = vpop.f32.mrb[0].mxu0
    %v4014 = vadd.f32 0.0, %v4013
    %v4015 = vpop.f32.mrb[0].mxu0
    %4016 = vmatprep.mubr.f32.mxu0 0.0
    %4017 = vmatmul.mubr.f32.gmra.mrb[0].mxu0 %v3803
    %v4018 = vpop.f32.mrb[0].mxu0
    %v4019 = vadd.f32 0.0, %v4018
    %v4020 = vpop.f32.mrb[0].mxu0
    %4021 = vmatprep.mubr.f32.mxu0 0.0
    %4022 = vmatmul.mubr.f32.gmra.mrb[0].mxu0 %v3804
    %v4023 = vpop.f32.mrb[0].mxu0
    %v4024 = vadd.f32 0.0, %v4023
    %v4025 = vpop.f32.mrb[0].mxu0
    %4026 = vmatprep.mubr.f32.mxu0 0.0
    %4027 = vmatmul.mubr.f32.gmra.mrb[0].mxu0 %v3805
    %v4028 = vpop.f32.mrb[0].mxu0
    %v4029 = vadd.f32 0.0, %v4028
    %v4030 = vpop.f32.mrb[0].mxu0
    %4031 = vmatprep.mubr.f32.mxu0 0.0
    %4032 = vmatmul.mubr.f32.gmra.mrb[0].mxu0 %v3806
    %v4033 = vpop.f32.mrb[0].mxu0
    %v4034 = vadd.f32 0.0, %v4033
    %v4035 = vpop.f32.mrb[0].mxu0
    %4036 = vmatprep.mubr.f32.mxu0 0.0
    %4037 = vmatmul.mubr.f32.gmra.mrb[0].mxu0 %v3807
    %v4038 = vpop.f32.mrb[0].mxu0
    %v4039 = vadd.f32 0.0, %v4038
    %v4040 = vpop.f32.mrb[0].mxu0
    %4041 = vmatprep.mubr.f32.mxu0 0.0
    %4042 = vmatmul.mubr.f32.gmra.mrb[0].mxu0 %v3808
    %v4043 = vpop.f32.mrb[0].mxu0
    %v4044 = vadd.f32 0.0, %v4043
    %v4045 = vpop.f32.mrb[0].mxu0
    %4046 = vmatprep.mubr.f32.mxu0 0.0
    %4047 = vmatmul.mubr.f32.gmra.mrb[0].mxu0 %v3809
    %v4048 = vpop.f32.mrb[0].mxu0
    %v4049 = vadd.f32 0.0, %v4048
    %v4050 = vpop.f32.mrb[0].mxu0
    %4051 = vmatprep.mubr.f32.mxu0 0.0
    %4052 = vmatmul.mubr.f32.gmra.mrb[0].mxu0 %v3810
    %v4053 = vpop.f32.mrb[0].mxu0
    %v4054 = vadd.f32 0.0, %v4053
    %v4055 = vpop.f32.mrb[0].mxu0
    %4056 = vmatprep.mubr.f32.mxu0 0.0
    %4057 = vmatmul.mubr.f32.gmra.mrb[0].mxu0 %v3811
    %v4058 = vpop.f32.mrb[0].mxu0
    %v4059 = vadd.f32 0.0, %v4058
    %v4060 = vpop.f32.mrb[0].mxu0
    %4061 = vmatprep.mubr.f32.mxu0 0.0
    %4062 = vmatmul.mubr.f32.gmra.mrb[0].mxu0 %v3812
    %v4063 = vpop.f32.mrb[0].mxu0
    %v4064 = vadd.f32 0.0, %v4063
    %v4065 = vpop.f32.mrb[0].mxu0
    %4066 = vmatprep.mubr.f32.mxu0 0.0
    %4067 = vmatmul.mubr.f32.gmra.mrb[0].mxu0 %v3829
    %v4068 = vpop.f32.mrb[0].mxu0
    %v4069 = vadd.f32 0.0, %v4068
    %v4070 = vpop.f32.mrb[0].mxu0
    %4071 = vdwg.mxu0
    %4072 = vmatprep.subr.mxu0 0.0
    %4073 = vmatpush1.msra.mxu0 %v3813
    %4074 = vmatprep.subr.mxu0 0.0
    %4075 = vmatpush1.msra.mxu0 %v3814
    %4076 = vmatprep.subr.mxu0 0.0
    %4077 = vmatpush1.msra.mxu0 %v3815
    %4078 = vmatprep.subr.mxu0 0.0
    %4079 = vmatpush1.msra.mxu0 %v3816
    %4080 = vmatprep.subr.mxu0 0.0
    %4081 = vmatpush1.msra.mxu0 %v3817
    %4082 = vmatprep.subr.mxu0 0.0
    %4083 = vmatpush1.msra.mxu0 %v3818
    %4084 = vmatprep.subr.mxu0 0.0
    %4085 = vmatpush1.msra.mxu0 %v3819
    %4086 = vmatprep.subr.mxu0 0.0
    %4087 = vmatpush1.msra.mxu0 %v3820
    %4088 = vmatprep.subr.mxu0 0.0
    %4089 = vmatpush1.msra.mxu0 %v3821
    %4090 = vmatprep.subr.mxu0 0.0
    %4091 = vmatpush1.msra.mxu0 %v3822
    %4092 = vmatprep.subr.mxu0 0.0
    %4093 = vmatpush1.msra.mxu0 %v3823
    %4094 = vmatprep.subr.mxu0 0.0
    %4095 = vmatpush1.msra.mxu0 %v3824
    %4096 = vmatprep.subr.mxu0 0.0
    %4097 = vmatpush1.msra.mxu0 %v3825
    %4098 = vmatprep.subr.mxu0 0.0
    %4099 = vmatpush1.msra.mxu0 %v3826
    %4100 = vmatprep.subr.mxu0 0.0
    %4101 = vmatpush1.msra.mxu0 %v3827
    %4102 = vmatprep.subr.mxu0 0.0
    %4103 = vmatpush1.msra.mxu0 %v3828
    %4104 = vmatprep.subr.mxu0 0.0
    %4105 = vmatpush1.msra.mxu0 0.0
    %4106 = vmatprep.subr.mxu0 0.0
    %4107 = vmatpush1.msra.mxu0 0.0
    %4108 = vmatprep.subr.mxu0 0.0
    %4109 = vmatpush1.msra.mxu0 0.0
    %4110 = vmatprep.subr.mxu0 0.0
    %4111 = vmatpush1.msra.mxu0 0.0
    %4112 = vmatprep.subr.mxu0 0.0
    %4113 = vmatpush1.msra.mxu0 0.0
    %4114 = vmatprep.subr.mxu0 0.0
    %4115 = vmatpush1.msra.mxu0 0.0
    %4116 = vmatprep.subr.mxu0 0.0
    %4117 = vmatpush1.msra.mxu0 0.0
    %4118 = vmatprep.subr.mxu0 0.0
    %4119 = vmatpush1.msra.mxu0 0.0
    %4120 = vmatprep.subr.mxu0 0.0
    %4121 = vmatpush1.msra.mxu0 0.0
    %4122 = vmatprep.subr.mxu0 0.0
    %4123 = vmatpush1.msra.mxu0 0.0
    %4124 = vmatprep.subr.mxu0 0.0
    %4125 = vmatpush1.msra.mxu0 0.0
    %4126 = vmatprep.subr.mxu0 0.0
    %4127 = vmatpush1.msra.mxu0 0.0
    %4128 = vmatprep.subr.mxu0 0.0
    %4129 = vmatpush1.msra.mxu0 0.0
    %4130 = vmatprep.subr.mxu0 0.0
    %4131 = vmatpush1.msra.mxu0 0.0
    %4132 = vmatprep.subr.mxu0 0.0
    %4133 = vmatpush1.msra.mxu0 0.0
    %4134 = vmatprep.subr.mxu0 0.0
    %4135 = vmatpush1.msra.mxu0 0.0
    %4136 = vmatprep.mubr.f32.mxu0 0.0
    %4137 = vmatmul.mubr.f32.gmra.mrb[0].mxu0 %v3781
    %v4138 = vpop.f32.mrb[0].mxu0
    %v4139 = vadd.f32 %v3914, %v4138
    %v4140 = vpop.f32.mrb[0].mxu0
    %4141 = vmatprep.mubr.f32.mxu0 0.0
    %4142 = vmatmul.mubr.f32.gmra.mrb[0].mxu0 %v3782
    %v4143 = vpop.f32.mrb[0].mxu0
    %v4144 = vadd.f32 %v3919, %v4143
    %v4145 = vpop.f32.mrb[0].mxu0
    %4146 = vmatprep.mubr.f32.mxu0 0.0
    %4147 = vmatmul.mubr.f32.gmra.mrb[0].mxu0 %v3783
    %v4148 = vpop.f32.mrb[0].mxu0
    %v4149 = vadd.f32 %v3924, %v4148
    %v4150 = vpop.f32.mrb[0].mxu0
    %4151 = vmatprep.mubr.f32.mxu0 0.0
    %4152 = vmatmul.mubr.f32.gmra.mrb[0].mxu0 %v3784
    %v4153 = vpop.f32.mrb[0].mxu0
    %v4154 = vadd.f32 %v3929, %v4153
    %v4155 = vpop.f32.mrb[0].mxu0
    %4156 = vmatprep.mubr.f32.mxu0 0.0
    %4157 = vmatmul.mubr.f32.gmra.mrb[0].mxu0 %v3785
    %v4158 = vpop.f32.mrb[0].mxu0
    %v4159 = vadd.f32 %v3934, %v4158
    %v4160 = vpop.f32.mrb[0].mxu0
    %4161 = vmatprep.mubr.f32.mxu0 0.0
    %4162 = vmatmul.mubr.f32.gmra.mrb[0].mxu0 %v3786
    %v4163 = vpop.f32.mrb[0].mxu0
    %v4164 = vadd.f32 %v3939, %v4163
    %v4165 = vpop.f32.mrb[0].mxu0
    %4166 = vmatprep.mubr.f32.mxu0 0.0
    %4167 = vmatmul.mubr.f32.gmra.mrb[0].mxu0 %v3787
    %v4168 = vpop.f32.mrb[0].mxu0
    %v4169 = vadd.f32 %v3944, %v4168
    %v4170 = vpop.f32.mrb[0].mxu0
    %4171 = vmatprep.mubr.f32.mxu0 0.0
    %4172 = vmatmul.mubr.f32.gmra.mrb[0].mxu0 %v3788
    %v4173 = vpop.f32.mrb[0].mxu0
    %v4174 = vadd.f32 %v3949, %v4173
    %v4175 = vpop.f32.mrb[0].mxu0
    %4176 = vmatprep.mubr.f32.mxu0 0.0
    %4177 = vmatmul.mubr.f32.gmra.mrb[0].mxu0 %v3789
    %v4178 = vpop.f32.mrb[0].mxu0
    %v4179 = vadd.f32 %v3954, %v4178
    %v4180 = vpop.f32.mrb[0].mxu0
    %4181 = vmatprep.mubr.f32.mxu0 0.0
    %4182 = vmatmul.mubr.f32.gmra.mrb[0].mxu0 %v3790
    %v4183 = vpop.f32.mrb[0].mxu0
    %v4184 = vadd.f32 %v3959, %v4183
    %v4185 = vpop.f32.mrb[0].mxu0
    %4186 = vmatprep.mubr.f32.mxu0 0.0
    %4187 = vmatmul.mubr.f32.gmra.mrb[0].mxu0 %v3791
    %v4188 = vpop.f32.mrb[0].mxu0
    %v4189 = vadd.f32 %v3964, %v4188
    %v4190 = vpop.f32.mrb[0].mxu0
    %4191 = vmatprep.mubr.f32.mxu0 0.0
    %4192 = vmatmul.mubr.f32.gmra.mrb[0].mxu0 %v3792
    %v4193 = vpop.f32.mrb[0].mxu0
    %v4194 = vadd.f32 %v3969, %v4193
    %v4195 = vpop.f32.mrb[0].mxu0
    %4196 = vmatprep.mubr.f32.mxu0 0.0
    %4197 = vmatmul.mubr.f32.gmra.mrb[0].mxu0 %v3793
    %v4198 = vpop.f32.mrb[0].mxu0
    %v4199 = vadd.f32 %v3974, %v4198
    %v4200 = vpop.f32.mrb[0].mxu0
    %4201 = vmatprep.mubr.f32.mxu0 0.0
    %4202 = vmatmul.mubr.f32.gmra.mrb[0].mxu0 %v3794
    %v4203 = vpop.f32.mrb[0].mxu0
    %v4204 = vadd.f32 %v3979, %v4203
    %v4205 = vpop.f32.mrb[0].mxu0
    %4206 = vmatprep.mubr.f32.mxu0 0.0
    %4207 = vmatmul.mubr.f32.gmra.mrb[0].mxu0 %v3795
    %v4208 = vpop.f32.mrb[0].mxu0
    %v4209 = vadd.f32 %v3984, %v4208
    %v4210 = vpop.f32.mrb[0].mxu0
    %4211 = vmatprep.mubr.f32.mxu0 0.0
    %4212 = vmatmul.mubr.f32.gmra.mrb[0].mxu0 %v3796
    %v4213 = vpop.f32.mrb[0].mxu0
    %v4214 = vadd.f32 %v3989, %v4213
    %v4215 = vpop.f32.mrb[0].mxu0
    %4216 = vmatprep.mubr.f32.mxu0 0.0
    %4217 = vmatmul.mubr.f32.gmra.mrb[0].mxu0 %v3797
    %v4218 = vpop.f32.mrb[0].mxu0
    %v4219 = vadd.f32 %v3994, %v4218
    %v4220 = vpop.f32.mrb[0].mxu0
    %4221 = vmatprep.mubr.f32.mxu0 0.0
    %4222 = vmatmul.mubr.f32.gmra.mrb[0].mxu0 %v3798
    %v4223 = vpop.f32.mrb[0].mxu0
    %v4224 = vadd.f32 %v3999, %v4223
    %v4225 = vpop.f32.mrb[0].mxu0
    %4226 = vmatprep.mubr.f32.mxu0 0.0
    %4227 = vmatmul.mubr.f32.gmra.mrb[0].mxu0 %v3799
    %v4228 = vpop.f32.mrb[0].mxu0
    %v4229 = vadd.f32 %v4004, %v4228
    %v4230 = vpop.f32.mrb[0].mxu0
    %4231 = vmatprep.mubr.f32.mxu0 0.0
    %4232 = vmatmul.mubr.f32.gmra.mrb[0].mxu0 %v3800
    %v4233 = vpop.f32.mrb[0].mxu0
    %v4234 = vadd.f32 %v4009, %v4233
    %v4235 = vpop.f32.mrb[0].mxu0
    %4236 = vmatprep.mubr.f32.mxu0 0.0
    %4237 = vmatmul.mubr.f32.gmra.mrb[0].mxu0 %v3801
    %v4238 = vpop.f32.mrb[0].mxu0
    %v4239 = vadd.f32 %v4014, %v4238
    %v4240 = vpop.f32.mrb[0].mxu0
    %4241 = vmatprep.mubr.f32.mxu0 0.0
    %4242 = vmatmul.mubr.f32.gmra.mrb[0].mxu0 %v3802
    %v4243 = vpop.f32.mrb[0].mxu0
    %v4244 = vadd.f32 %v4019, %v4243
    %v4245 = vpop.f32.mrb[0].mxu0
    %4246 = vmatprep.mubr.f32.mxu0 0.0
    %4247 = vmatmul.mubr.f32.gmra.mrb[0].mxu0 %v3803
    %v4248 = vpop.f32.mrb[0].mxu0
    %v4249 = vadd.f32 %v4024, %v4248
    %v4250 = vpop.f32.mrb[0].mxu0
    %4251 = vmatprep.mubr.f32.mxu0 0.0
    %4252 = vmatmul.mubr.f32.gmra.mrb[0].mxu0 %v3804
    %v4253 = vpop.f32.mrb[0].mxu0
    %v4254 = vadd.f32 %v4029, %v4253
    %v4255 = vpop.f32.mrb[0].mxu0
    %4256 = vmatprep.mubr.f32.mxu0 0.0
    %4257 = vmatmul.mubr.f32.gmra.mrb[0].mxu0 %v3805
    %v4258 = vpop.f32.mrb[0].mxu0
    %v4259 = vadd.f32 %v4034, %v4258
    %v4260 = vpop.f32.mrb[0].mxu0
    %4261 = vmatprep.mubr.f32.mxu0 0.0
    %4262 = vmatmul.mubr.f32.gmra.mrb[0].mxu0 %v3806
    %v4263 = vpop.f32.mrb[0].mxu0
    %v4264 = vadd.f32 %v4039, %v4263
    %v4265 = vpop.f32.mrb[0].mxu0
    %4266 = vmatprep.mubr.f32.mxu0 0.0
    %4267 = vmatmul.mubr.f32.gmra.mrb[0].mxu0 %v3807
    %v4268 = vpop.f32.mrb[0].mxu0
    %v4269 = vadd.f32 %v4044, %v4268
    %v4270 = vpop.f32.mrb[0].mxu0
    %4271 = vmatprep.mubr.f32.mxu0 0.0
    %4272 = vmatmul.mubr.f32.gmra.mrb[0].mxu0 %v3808
    %v4273 = vpop.f32.mrb[0].mxu0
    %v4274 = vadd.f32 %v4049, %v4273
    %v4275 = vpop.f32.mrb[0].mxu0
    %4276 = vmatprep.mubr.f32.mxu0 0.0
    %4277 = vmatmul.mubr.f32.gmra.mrb[0].mxu0 %v3809
    %v4278 = vpop.f32.mrb[0].mxu0
    %v4279 = vadd.f32 %v4054, %v4278
    %v4280 = vpop.f32.mrb[0].mxu0
    %4281 = vmatprep.mubr.f32.mxu0 0.0
    %4282 = vmatmul.mubr.f32.gmra.mrb[0].mxu0 %v3810
    %v4283 = vpop.f32.mrb[0].mxu0
    %v4284 = vadd.f32 %v4059, %v4283
    %v4285 = vpop.f32.mrb[0].mxu0
    %4286 = vmatprep.mubr.f32.mxu0 0.0
    %4287 = vmatmul.mubr.f32.gmra.mrb[0].mxu0 %v3811
    %v4288 = vpop.f32.mrb[0].mxu0
    %v4289 = vadd.f32 %v4064, %v4288
    %v4290 = vpop.f32.mrb[0].mxu0
    %4291 = vmatprep.mubr.f32.mxu0 0.0
    %4292 = vmatmul.mubr.f32.gmra.mrb[0].mxu0 %v3812
    %v4293 = vpop.f32.mrb[0].mxu0
    %v4294 = vadd.f32 %v4069, %v4293
    %v4295 = vpop.f32.mrb[0].mxu0
    %4296 = vdwg.mxu0
    %v4297 = vld [vmem:[#allocation5 + $0x10] sm:$0xff]
    %v4298 = vld [vmem:[#allocation5 + $0x18] sm:$0xff]
    %v4299 = vld [vmem:[#allocation5 + $0x20] sm:$0xff]
    %v4300 = vld [vmem:[#allocation5 + $0x28] sm:$0xff]
    %v4301 = vld [vmem:[#allocation5 + $0x30] sm:$0xff]
    %v4302 = vld [vmem:[#allocation5 + $0x38] sm:$0xff]
    %v4303 = vld [vmem:[#allocation5 + $0x40] sm:$0xff]
    %v4304 = vld [vmem:[#allocation5 + $0x48] sm:$0xff]
    %v4305 = vld [vmem:[#allocation5 + $0x50] sm:$0xff]
    %v4306 = vld [vmem:[#allocation5 + $0x58] sm:$0xff]
    %v4307 = vld [vmem:[#allocation5 + $0x60] sm:$0xff]
    %v4308 = vld [vmem:[#allocation5 + $0x68] sm:$0xff]
    %v4309 = vld [vmem:[#allocation5 + $0x70] sm:$0xff]
    %v4310 = vld [vmem:[#allocation5 + $0x78] sm:$0xff]
    %v4311 = vld [vmem:[#allocation5 + $0x80] sm:$0xff]
    %v4312 = vld [vmem:[#allocation5 + $0x88] sm:$0xff]
    %v4313 = vld [vmem:[#allocation5 + $0x90] sm:$0xff]
    %v4314 = vld [vmem:[#allocation5 + $0x98] sm:$0xff]
    %v4315 = vld [vmem:[#allocation5 + $0xa0] sm:$0xff]
    %v4316 = vld [vmem:[#allocation5 + $0xa8] sm:$0xff]
    %v4317 = vld [vmem:[#allocation5 + $0xb0] sm:$0xff]
    %v4318 = vld [vmem:[#allocation5 + $0xb8] sm:$0xff]
    %v4319 = vld [vmem:[#allocation5 + $0xc0] sm:$0xff]
    %v4320 = vld [vmem:[#allocation5 + $0xc8] sm:$0xff]
    %v4321 = vld [vmem:[#allocation5 + $0xd0] sm:$0xff]
    %v4322 = vld [vmem:[#allocation5 + $0xd8] sm:$0xff]
    %v4323 = vld [vmem:[#allocation5 + $0xe0] sm:$0xff]
    %v4324 = vld [vmem:[#allocation5 + $0xe8] sm:$0xff]
    %v4325 = vld [vmem:[#allocation5 + $0xf0] sm:$0xff]
    %v4326 = vld [vmem:[#allocation5 + $0xf8] sm:$0xff]
    %v4327 = vld [vmem:[#allocation5 + $0x100] sm:$0xff]
    %v4328 = vld [vmem:[#allocation5 + $0x108] sm:$0xff]
    %s4329 = scalar_lea.vmem [#allocation19], 256
    %v4330 = vld [vmem:[%s4329] sm:$0xff]
    %v4331 = vld [vmem:[%s4329 + $0x8] sm:$0xff]
    %v4332 = vld [vmem:[%s4329 + $0x10] sm:$0xff]
    %v4333 = vld [vmem:[%s4329 + $0x18] sm:$0xff]
    %v4334 = vld [vmem:[%s4329 + $0x20] sm:$0xff]
    %v4335 = vld [vmem:[%s4329 + $0x28] sm:$0xff]
    %v4336 = vld [vmem:[%s4329 + $0x30] sm:$0xff]
    %v4337 = vld [vmem:[%s4329 + $0x38] sm:$0xff]
    %v4338 = vld [vmem:[%s4329 + $0x40] sm:$0xff]
    %v4339 = vld [vmem:[%s4329 + $0x48] sm:$0xff]
    %v4340 = vld [vmem:[%s4329 + $0x50] sm:$0xff]
    %v4341 = vld [vmem:[%s4329 + $0x58] sm:$0xff]
    %v4342 = vld [vmem:[%s4329 + $0x60] sm:$0xff]
    %v4343 = vld [vmem:[%s4329 + $0x68] sm:$0xff]
    %v4344 = vld [vmem:[%s4329 + $0x70] sm:$0xff]
    %v4345 = vld [vmem:[%s4329 + $0x78] sm:$0xff]
    %4346 = vmatprep.subr.mxu0 0.0
    %4347 = vmatpush1.msra.mxu0 %v4330
    %4348 = vmatprep.subr.mxu0 0.0
    %4349 = vmatpush1.msra.mxu0 %v4331
    %4350 = vmatprep.subr.mxu0 0.0
    %4351 = vmatpush1.msra.mxu0 %v4332
    %4352 = vmatprep.subr.mxu0 0.0
    %4353 = vmatpush1.msra.mxu0 %v4333
    %4354 = vmatprep.subr.mxu0 0.0
    %4355 = vmatpush1.msra.mxu0 %v4334
    %4356 = vmatprep.subr.mxu0 0.0
    %4357 = vmatpush1.msra.mxu0 %v4335
    %4358 = vmatprep.subr.mxu0 0.0
    %4359 = vmatpush1.msra.mxu0 %v4336
    %4360 = vmatprep.subr.mxu0 0.0
    %4361 = vmatpush1.msra.mxu0 %v4337
    %4362 = vmatprep.subr.mxu0 0.0
    %4363 = vmatpush1.msra.mxu0 %v4338
    %4364 = vmatprep.subr.mxu0 0.0
    %4365 = vmatpush1.msra.mxu0 %v4339
    %4366 = vmatprep.subr.mxu0 0.0
    %4367 = vmatpush1.msra.mxu0 %v4340
    %4368 = vmatprep.subr.mxu0 0.0
    %4369 = vmatpush1.msra.mxu0 %v4341
    %4370 = vmatprep.subr.mxu0 0.0
    %4371 = vmatpush1.msra.mxu0 %v4342
    %4372 = vmatprep.subr.mxu0 0.0
    %4373 = vmatpush1.msra.mxu0 %v4343
    %4374 = vmatprep.subr.mxu0 0.0
    %4375 = vmatpush1.msra.mxu0 %v4344
    %4376 = vmatprep.subr.mxu0 0.0
    %4377 = vmatpush1.msra.mxu0 %v4345
    %4378 = vmatprep.subr.mxu0 0.0
    %4379 = vmatpush1.msra.mxu0 0.0
    %4380 = vmatprep.subr.mxu0 0.0
    %4381 = vmatpush1.msra.mxu0 0.0
    %4382 = vmatprep.subr.mxu0 0.0
    %4383 = vmatpush1.msra.mxu0 0.0
    %4384 = vmatprep.subr.mxu0 0.0
    %4385 = vmatpush1.msra.mxu0 0.0
    %4386 = vmatprep.subr.mxu0 0.0
    %4387 = vmatpush1.msra.mxu0 0.0
    %4388 = vmatprep.subr.mxu0 0.0
    %4389 = vmatpush1.msra.mxu0 0.0
    %4390 = vmatprep.subr.mxu0 0.0
    %4391 = vmatpush1.msra.mxu0 0.0
    %4392 = vmatprep.subr.mxu0 0.0
    %4393 = vmatpush1.msra.mxu0 0.0
    %4394 = vmatprep.subr.mxu0 0.0
    %4395 = vmatpush1.msra.mxu0 0.0
    %4396 = vmatprep.subr.mxu0 0.0
    %4397 = vmatpush1.msra.mxu0 0.0
    %4398 = vmatprep.subr.mxu0 0.0
    %4399 = vmatpush1.msra.mxu0 0.0
    %4400 = vmatprep.subr.mxu0 0.0
    %4401 = vmatpush1.msra.mxu0 0.0
    %4402 = vmatprep.subr.mxu0 0.0
    %4403 = vmatpush1.msra.mxu0 0.0
    %4404 = vmatprep.subr.mxu0 0.0
    %4405 = vmatpush1.msra.mxu0 0.0
    %4406 = vmatprep.subr.mxu0 0.0
    %4407 = vmatpush1.msra.mxu0 0.0
    %4408 = vmatprep.subr.mxu0 0.0
    %4409 = vmatpush1.msra.mxu0 0.0
    %4410 = vmatprep.mubr.f32.mxu0 0.0
    %4411 = vmatmul.mubr.f32.gmra.mrb[0].mxu0 %v4297
    %v4412 = vpop.f32.mrb[0].mxu0
    %v4413 = vadd.f32 0.0, %v4412
    %v4414 = vpop.f32.mrb[0].mxu0
    %4415 = vmatprep.mubr.f32.mxu0 0.0
    %4416 = vmatmul.mubr.f32.gmra.mrb[0].mxu0 %v4298
    %v4417 = vpop.f32.mrb[0].mxu0
    %v4418 = vadd.f32 0.0, %v4417
    %v4419 = vpop.f32.mrb[0].mxu0
    %4420 = vmatprep.mubr.f32.mxu0 0.0
    %4421 = vmatmul.mubr.f32.gmra.mrb[0].mxu0 %v4299
    %v4422 = vpop.f32.mrb[0].mxu0
    %v4423 = vadd.f32 0.0, %v4422
    %v4424 = vpop.f32.mrb[0].mxu0
    %4425 = vmatprep.mubr.f32.mxu0 0.0
    %4426 = vmatmul.mubr.f32.gmra.mrb[0].mxu0 %v4300
    %v4427 = vpop.f32.mrb[0].mxu0
    %v4428 = vadd.f32 0.0, %v4427
    %v4429 = vpop.f32.mrb[0].mxu0
    %4430 = vmatprep.mubr.f32.mxu0 0.0
    %4431 = vmatmul.mubr.f32.gmra.mrb[0].mxu0 %v4301
    %v4432 = vpop.f32.mrb[0].mxu0
    %v4433 = vadd.f32 0.0, %v4432
    %v4434 = vpop.f32.mrb[0].mxu0
    %4435 = vmatprep.mubr.f32.mxu0 0.0
    %4436 = vmatmul.mubr.f32.gmra.mrb[0].mxu0 %v4302
    %v4437 = vpop.f32.mrb[0].mxu0
    %v4438 = vadd.f32 0.0, %v4437
    %v4439 = vpop.f32.mrb[0].mxu0
    %4440 = vmatprep.mubr.f32.mxu0 0.0
    %4441 = vmatmul.mubr.f32.gmra.mrb[0].mxu0 %v4303
    %v4442 = vpop.f32.mrb[0].mxu0
    %v4443 = vadd.f32 0.0, %v4442
    %v4444 = vpop.f32.mrb[0].mxu0
    %4445 = vmatprep.mubr.f32.mxu0 0.0
    %4446 = vmatmul.mubr.f32.gmra.mrb[0].mxu0 %v4304
    %v4447 = vpop.f32.mrb[0].mxu0
    %v4448 = vadd.f32 0.0, %v4447
    %v4449 = vpop.f32.mrb[0].mxu0
    %4450 = vmatprep.mubr.f32.mxu0 0.0
    %4451 = vmatmul.mubr.f32.gmra.mrb[0].mxu0 %v4305
    %v4452 = vpop.f32.mrb[0].mxu0
    %v4453 = vadd.f32 0.0, %v4452
    %v4454 = vpop.f32.mrb[0].mxu0
    %4455 = vmatprep.mubr.f32.mxu0 0.0
    %4456 = vmatmul.mubr.f32.gmra.mrb[0].mxu0 %v4306
    %v4457 = vpop.f32.mrb[0].mxu0
    %v4458 = vadd.f32 0.0, %v4457
    %v4459 = vpop.f32.mrb[0].mxu0
    %4460 = vmatprep.mubr.f32.mxu0 0.0
    %4461 = vmatmul.mubr.f32.gmra.mrb[0].mxu0 %v4307
    %v4462 = vpop.f32.mrb[0].mxu0
    %v4463 = vadd.f32 0.0, %v4462
    %v4464 = vpop.f32.mrb[0].mxu0
    %4465 = vmatprep.mubr.f32.mxu0 0.0
    %4466 = vmatmul.mubr.f32.gmra.mrb[0].mxu0 %v4308
    %v4467 = vpop.f32.mrb[0].mxu0
    %v4468 = vadd.f32 0.0, %v4467
    %v4469 = vpop.f32.mrb[0].mxu0
    %4470 = vmatprep.mubr.f32.mxu0 0.0
    %4471 = vmatmul.mubr.f32.gmra.mrb[0].mxu0 %v4309
    %v4472 = vpop.f32.mrb[0].mxu0
    %v4473 = vadd.f32 0.0, %v4472
    %v4474 = vpop.f32.mrb[0].mxu0
    %4475 = vmatprep.mubr.f32.mxu0 0.0
    %4476 = vmatmul.mubr.f32.gmra.mrb[0].mxu0 %v4310
    %v4477 = vpop.f32.mrb[0].mxu0
    %v4478 = vadd.f32 0.0, %v4477
    %v4479 = vpop.f32.mrb[0].mxu0
    %4480 = vmatprep.mubr.f32.mxu0 0.0
    %4481 = vmatmul.mubr.f32.gmra.mrb[0].mxu0 %v4311
    %v4482 = vpop.f32.mrb[0].mxu0
    %v4483 = vadd.f32 0.0, %v4482
    %v4484 = vpop.f32.mrb[0].mxu0
    %4485 = vmatprep.mubr.f32.mxu0 0.0
    %4486 = vmatmul.mubr.f32.gmra.mrb[0].mxu0 %v4312
    %v4487 = vpop.f32.mrb[0].mxu0
    %v4488 = vadd.f32 0.0, %v4487
    %v4489 = vpop.f32.mrb[0].mxu0
    %4490 = vmatprep.mubr.f32.mxu0 0.0
    %4491 = vmatmul.mubr.f32.gmra.mrb[0].mxu0 %v4313
    %v4492 = vpop.f32.mrb[0].mxu0
    %v4493 = vadd.f32 0.0, %v4492
    %v4494 = vpop.f32.mrb[0].mxu0
    %4495 = vmatprep.mubr.f32.mxu0 0.0
    %4496 = vmatmul.mubr.f32.gmra.mrb[0].mxu0 %v4314
    %v4497 = vpop.f32.mrb[0].mxu0
    %v4498 = vadd.f32 0.0, %v4497
    %v4499 = vpop.f32.mrb[0].mxu0
    %4500 = vmatprep.mubr.f32.mxu0 0.0
    %4501 = vmatmul.mubr.f32.gmra.mrb[0].mxu0 %v4315
    %v4502 = vpop.f32.mrb[0].mxu0
    %v4503 = vadd.f32 0.0, %v4502
    %v4504 = vpop.f32.mrb[0].mxu0
    %4505 = vmatprep.mubr.f32.mxu0 0.0
    %4506 = vmatmul.mubr.f32.gmra.mrb[0].mxu0 %v4316
    %v4507 = vpop.f32.mrb[0].mxu0
    %v4508 = vadd.f32 0.0, %v4507
    %v4509 = vpop.f32.mrb[0].mxu0
    %4510 = vmatprep.mubr.f32.mxu0 0.0
    %4511 = vmatmul.mubr.f32.gmra.mrb[0].mxu0 %v4317
    %v4512 = vpop.f32.mrb[0].mxu0
    %v4513 = vadd.f32 0.0, %v4512
    %v4514 = vpop.f32.mrb[0].mxu0
    %4515 = vmatprep.mubr.f32.mxu0 0.0
    %4516 = vmatmul.mubr.f32.gmra.mrb[0].mxu0 %v4318
    %v4517 = vpop.f32.mrb[0].mxu0
    %v4518 = vadd.f32 0.0, %v4517
    %v4519 = vpop.f32.mrb[0].mxu0
    %4520 = vmatprep.mubr.f32.mxu0 0.0
    %4521 = vmatmul.mubr.f32.gmra.mrb[0].mxu0 %v4319
    %v4522 = vpop.f32.mrb[0].mxu0
    %v4523 = vadd.f32 0.0, %v4522
    %v4524 = vpop.f32.mrb[0].mxu0
    %4525 = vmatprep.mubr.f32.mxu0 0.0
    %4526 = vmatmul.mubr.f32.gmra.mrb[0].mxu0 %v4320
    %v4527 = vpop.f32.mrb[0].mxu0
    %v4528 = vadd.f32 0.0, %v4527
    %v4529 = vpop.f32.mrb[0].mxu0
    %4530 = vmatprep.mubr.f32.mxu0 0.0
    %4531 = vmatmul.mubr.f32.gmra.mrb[0].mxu0 %v4321
    %v4532 = vpop.f32.mrb[0].mxu0
    %v4533 = vadd.f32 0.0, %v4532
    %v4534 = vpop.f32.mrb[0].mxu0
    %4535 = vmatprep.mubr.f32.mxu0 0.0
    %4536 = vmatmul.mubr.f32.gmra.mrb[0].mxu0 %v4322
    %v4537 = vpop.f32.mrb[0].mxu0
    %v4538 = vadd.f32 0.0, %v4537
    %v4539 = vpop.f32.mrb[0].mxu0
    %4540 = vmatprep.mubr.f32.mxu0 0.0
    %4541 = vmatmul.mubr.f32.gmra.mrb[0].mxu0 %v4323
    %v4542 = vpop.f32.mrb[0].mxu0
    %v4543 = vadd.f32 0.0, %v4542
    %v4544 = vpop.f32.mrb[0].mxu0
    %4545 = vmatprep.mubr.f32.mxu0 0.0
    %4546 = vmatmul.mubr.f32.gmra.mrb[0].mxu0 %v4324
    %v4547 = vpop.f32.mrb[0].mxu0
    %v4548 = vadd.f32 0.0, %v4547
    %v4549 = vpop.f32.mrb[0].mxu0
    %4550 = vmatprep.mubr.f32.mxu0 0.0
    %4551 = vmatmul.mubr.f32.gmra.mrb[0].mxu0 %v4325
    %v4552 = vpop.f32.mrb[0].mxu0
    %v4553 = vadd.f32 0.0, %v4552
    %v4554 = vpop.f32.mrb[0].mxu0
    %4555 = vmatprep.mubr.f32.mxu0 0.0
    %4556 = vmatmul.mubr.f32.gmra.mrb[0].mxu0 %v4326
    %v4557 = vpop.f32.mrb[0].mxu0
    %v4558 = vadd.f32 0.0, %v4557
    %v4559 = vpop.f32.mrb[0].mxu0
    %4560 = vmatprep.mubr.f32.mxu0 0.0
    %4561 = vmatmul.mubr.f32.gmra.mrb[0].mxu0 %v4327
    %v4562 = vpop.f32.mrb[0].mxu0
    %v4563 = vadd.f32 0.0, %v4562
    %v4564 = vpop.f32.mrb[0].mxu0
    %4565 = vmatprep.mubr.f32.mxu0 0.0
    %4566 = vmatmul.mubr.f32.gmra.mrb[0].mxu0 %v4328
    %v4567 = vpop.f32.mrb[0].mxu0
    %v4568 = vadd.f32 0.0, %v4567
    %v4569 = vpop.f32.mrb[0].mxu0
    %4570 = vdwg.mxu0
    %v4571 = vadd.f32 %v4139, %v4413
    %v4572 = vadd.f32 %v4144, %v4418
    %v4573 = vadd.f32 %v4149, %v4423
    %v4574 = vadd.f32 %v4154, %v4428
    %v4575 = vadd.f32 %v4159, %v4433
    %v4576 = vadd.f32 %v4164, %v4438
    %v4577 = vadd.f32 %v4169, %v4443
    %v4578 = vadd.f32 %v4174, %v4448
    %v4579 = vadd.f32 %v4179, %v4453
    %v4580 = vadd.f32 %v4184, %v4458
    %v4581 = vadd.f32 %v4189, %v4463
    %v4582 = vadd.f32 %v4194, %v4468
    %v4583 = vadd.f32 %v4199, %v4473
    %v4584 = vadd.f32 %v4204, %v4478
    %v4585 = vadd.f32 %v4209, %v4483
    %v4586 = vadd.f32 %v4214, %v4488
    %v4587 = vadd.f32 %v4219, %v4493
    %v4588 = vadd.f32 %v4224, %v4498
    %v4589 = vadd.f32 %v4229, %v4503
    %v4590 = vadd.f32 %v4234, %v4508
    %v4591 = vadd.f32 %v4239, %v4513
    %v4592 = vadd.f32 %v4244, %v4518
    %v4593 = vadd.f32 %v4249, %v4523
    %v4594 = vadd.f32 %v4254, %v4528
    %v4595 = vadd.f32 %v4259, %v4533
    %v4596 = vadd.f32 %v4264, %v4538
    %v4597 = vadd.f32 %v4269, %v4543
    %v4598 = vadd.f32 %v4274, %v4548
    %v4599 = vadd.f32 %v4279, %v4553
    %v4600 = vadd.f32 %v4284, %v4558
    %v4601 = vadd.f32 %v4289, %v4563
    %v4602 = vadd.f32 %v4294, %v4568
    %v4603 = vld [vmem:[#allocation5 + $0x18] sm:$0xff]
    %v4604 = vld [vmem:[#allocation5 + $0x20] sm:$0xff]
    %v4605 = vld [vmem:[#allocation5 + $0x28] sm:$0xff]
    %v4606 = vld [vmem:[#allocation5 + $0x30] sm:$0xff]
    %v4607 = vld [vmem:[#allocation5 + $0x38] sm:$0xff]
    %v4608 = vld [vmem:[#allocation5 + $0x40] sm:$0xff]
    %v4609 = vld [vmem:[#allocation5 + $0x48] sm:$0xff]
    %v4610 = vld [vmem:[#allocation5 + $0x50] sm:$0xff]
    %v4611 = vld [vmem:[#allocation5 + $0x58] sm:$0xff]
    %v4612 = vld [vmem:[#allocation5 + $0x60] sm:$0xff]
    %v4613 = vld [vmem:[#allocation5 + $0x68] sm:$0xff]
    %v4614 = vld [vmem:[#allocation5 + $0x70] sm:$0xff]
    %v4615 = vld [vmem:[#allocation5 + $0x78] sm:$0xff]
    %v4616 = vld [vmem:[#allocation5 + $0x80] sm:$0xff]
    %v4617 = vld [vmem:[#allocation5 + $0x88] sm:$0xff]
    %v4618 = vld [vmem:[#allocation5 + $0x90] sm:$0xff]
    %v4619 = vld [vmem:[#allocation5 + $0x98] sm:$0xff]
    %v4620 = vld [vmem:[#allocation5 + $0xa0] sm:$0xff]
    %v4621 = vld [vmem:[#allocation5 + $0xa8] sm:$0xff]
    %v4622 = vld [vmem:[#allocation5 + $0xb0] sm:$0xff]
    %v4623 = vld [vmem:[#allocation5 + $0xb8] sm:$0xff]
    %v4624 = vld [vmem:[#allocation5 + $0xc0] sm:$0xff]
    %v4625 = vld [vmem:[#allocation5 + $0xc8] sm:$0xff]
    %v4626 = vld [vmem:[#allocation5 + $0xd0] sm:$0xff]
    %v4627 = vld [vmem:[#allocation5 + $0xd8] sm:$0xff]
    %v4628 = vld [vmem:[#allocation5 + $0xe0] sm:$0xff]
    %v4629 = vld [vmem:[#allocation5 + $0xe8] sm:$0xff]
    %v4630 = vld [vmem:[#allocation5 + $0xf0] sm:$0xff]
    %v4631 = vld [vmem:[#allocation5 + $0xf8] sm:$0xff]
    %v4632 = vld [vmem:[#allocation5 + $0x100] sm:$0xff]
    %v4633 = vld [vmem:[#allocation5 + $0x108] sm:$0xff]
    %v4634 = vld [vmem:[#allocation5 + $0x110] sm:$0xff]
    %s4635 = scalar_lea.vmem [#allocation19], 384
    %v4636 = vld [vmem:[%s4635] sm:$0xff]
    %v4637 = vld [vmem:[%s4635 + $0x8] sm:$0xff]
    %v4638 = vld [vmem:[%s4635 + $0x10] sm:$0xff]
    %v4639 = vld [vmem:[%s4635 + $0x18] sm:$0xff]
    %v4640 = vld [vmem:[%s4635 + $0x20] sm:$0xff]
    %v4641 = vld [vmem:[%s4635 + $0x28] sm:$0xff]
    %v4642 = vld [vmem:[%s4635 + $0x30] sm:$0xff]
    %v4643 = vld [vmem:[%s4635 + $0x38] sm:$0xff]
    %v4644 = vld [vmem:[%s4635 + $0x40] sm:$0xff]
    %v4645 = vld [vmem:[%s4635 + $0x48] sm:$0xff]
    %v4646 = vld [vmem:[%s4635 + $0x50] sm:$0xff]
    %v4647 = vld [vmem:[%s4635 + $0x58] sm:$0xff]
    %v4648 = vld [vmem:[%s4635 + $0x60] sm:$0xff]
    %v4649 = vld [vmem:[%s4635 + $0x68] sm:$0xff]
    %v4650 = vld [vmem:[%s4635 + $0x70] sm:$0xff]
    %v4651 = vld [vmem:[%s4635 + $0x78] sm:$0xff]
    %4652 = vmatprep.subr.mxu0 0.0
    %4653 = vmatpush1.msra.mxu0 %v4636
    %4654 = vmatprep.subr.mxu0 0.0
    %4655 = vmatpush1.msra.mxu0 %v4637
    %4656 = vmatprep.subr.mxu0 0.0
    %4657 = vmatpush1.msra.mxu0 %v4638
    %4658 = vmatprep.subr.mxu0 0.0
    %4659 = vmatpush1.msra.mxu0 %v4639
    %4660 = vmatprep.subr.mxu0 0.0
    %4661 = vmatpush1.msra.mxu0 %v4640
    %4662 = vmatprep.subr.mxu0 0.0
    %4663 = vmatpush1.msra.mxu0 %v4641
    %4664 = vmatprep.subr.mxu0 0.0
    %4665 = vmatpush1.msra.mxu0 %v4642
    %4666 = vmatprep.subr.mxu0 0.0
    %4667 = vmatpush1.msra.mxu0 %v4643
    %4668 = vmatprep.subr.mxu0 0.0
    %4669 = vmatpush1.msra.mxu0 %v4644
    %4670 = vmatprep.subr.mxu0 0.0
    %4671 = vmatpush1.msra.mxu0 %v4645
    %4672 = vmatprep.subr.mxu0 0.0
    %4673 = vmatpush1.msra.mxu0 %v4646
    %4674 = vmatprep.subr.mxu0 0.0
    %4675 = vmatpush1.msra.mxu0 %v4647
    %4676 = vmatprep.subr.mxu0 0.0
    %4677 = vmatpush1.msra.mxu0 %v4648
    %4678 = vmatprep.subr.mxu0 0.0
    %4679 = vmatpush1.msra.mxu0 %v4649
    %4680 = vmatprep.subr.mxu0 0.0
    %4681 = vmatpush1.msra.mxu0 %v4650
    %4682 = vmatprep.subr.mxu0 0.0
    %4683 = vmatpush1.msra.mxu0 %v4651
    %4684 = vmatprep.subr.mxu0 0.0
    %4685 = vmatpush1.msra.mxu0 0.0
    %4686 = vmatprep.subr.mxu0 0.0
    %4687 = vmatpush1.msra.mxu0 0.0
    %4688 = vmatprep.subr.mxu0 0.0
    %4689 = vmatpush1.msra.mxu0 0.0
    %4690 = vmatprep.subr.mxu0 0.0
    %4691 = vmatpush1.msra.mxu0 0.0
    %4692 = vmatprep.subr.mxu0 0.0
    %4693 = vmatpush1.msra.mxu0 0.0
    %4694 = vmatprep.subr.mxu0 0.0
    %4695 = vmatpush1.msra.mxu0 0.0
    %4696 = vmatprep.subr.mxu0 0.0
    %4697 = vmatpush1.msra.mxu0 0.0
    %4698 = vmatprep.subr.mxu0 0.0
    %4699 = vmatpush1.msra.mxu0 0.0
    %4700 = vmatprep.subr.mxu0 0.0
    %4701 = vmatpush1.msra.mxu0 0.0
    %4702 = vmatprep.subr.mxu0 0.0
    %4703 = vmatpush1.msra.mxu0 0.0
    %4704 = vmatprep.subr.mxu0 0.0
    %4705 = vmatpush1.msra.mxu0 0.0
    %4706 = vmatprep.subr.mxu0 0.0
    %4707 = vmatpush1.msra.mxu0 0.0
    %4708 = vmatprep.subr.mxu0 0.0
    %4709 = vmatpush1.msra.mxu0 0.0
    %4710 = vmatprep.subr.mxu0 0.0
    %4711 = vmatpush1.msra.mxu0 0.0
    %4712 = vmatprep.subr.mxu0 0.0
    %4713 = vmatpush1.msra.mxu0 0.0
    %4714 = vmatprep.subr.mxu0 0.0
    %4715 = vmatpush1.msra.mxu0 0.0
    %4716 = vmatprep.mubr.f32.mxu0 0.0
    %4717 = vmatmul.mubr.f32.gmra.mrb[0].mxu0 %v4603
    %v4718 = vpop.f32.mrb[0].mxu0
    %v4719 = vadd.f32 0.0, %v4718
    %v4720 = vpop.f32.mrb[0].mxu0
    %4721 = vmatprep.mubr.f32.mxu0 0.0
    %4722 = vmatmul.mubr.f32.gmra.mrb[0].mxu0 %v4604
    %v4723 = vpop.f32.mrb[0].mxu0
    %v4724 = vadd.f32 0.0, %v4723
    %v4725 = vpop.f32.mrb[0].mxu0
    %4726 = vmatprep.mubr.f32.mxu0 0.0
    %4727 = vmatmul.mubr.f32.gmra.mrb[0].mxu0 %v4605
    %v4728 = vpop.f32.mrb[0].mxu0
    %v4729 = vadd.f32 0.0, %v4728
    %v4730 = vpop.f32.mrb[0].mxu0
    %4731 = vmatprep.mubr.f32.mxu0 0.0
    %4732 = vmatmul.mubr.f32.gmra.mrb[0].mxu0 %v4606
    %v4733 = vpop.f32.mrb[0].mxu0
    %v4734 = vadd.f32 0.0, %v4733
    %v4735 = vpop.f32.mrb[0].mxu0
    %4736 = vmatprep.mubr.f32.mxu0 0.0
    %4737 = vmatmul.mubr.f32.gmra.mrb[0].mxu0 %v4607
    %v4738 = vpop.f32.mrb[0].mxu0
    %v4739 = vadd.f32 0.0, %v4738
    %v4740 = vpop.f32.mrb[0].mxu0
    %4741 = vmatprep.mubr.f32.mxu0 0.0
    %4742 = vmatmul.mubr.f32.gmra.mrb[0].mxu0 %v4608
    %v4743 = vpop.f32.mrb[0].mxu0
    %v4744 = vadd.f32 0.0, %v4743
    %v4745 = vpop.f32.mrb[0].mxu0
    %4746 = vmatprep.mubr.f32.mxu0 0.0
    %4747 = vmatmul.mubr.f32.gmra.mrb[0].mxu0 %v4609
    %v4748 = vpop.f32.mrb[0].mxu0
    %v4749 = vadd.f32 0.0, %v4748
    %v4750 = vpop.f32.mrb[0].mxu0
    %4751 = vmatprep.mubr.f32.mxu0 0.0
    %4752 = vmatmul.mubr.f32.gmra.mrb[0].mxu0 %v4610
    %v4753 = vpop.f32.mrb[0].mxu0
    %v4754 = vadd.f32 0.0, %v4753
    %v4755 = vpop.f32.mrb[0].mxu0
    %4756 = vmatprep.mubr.f32.mxu0 0.0
    %4757 = vmatmul.mubr.f32.gmra.mrb[0].mxu0 %v4611
    %v4758 = vpop.f32.mrb[0].mxu0
    %v4759 = vadd.f32 0.0, %v4758
    %v4760 = vpop.f32.mrb[0].mxu0
    %4761 = vmatprep.mubr.f32.mxu0 0.0
    %4762 = vmatmul.mubr.f32.gmra.mrb[0].mxu0 %v4612
    %v4763 = vpop.f32.mrb[0].mxu0
    %v4764 = vadd.f32 0.0, %v4763
    %v4765 = vpop.f32.mrb[0].mxu0
    %4766 = vmatprep.mubr.f32.mxu0 0.0
    %4767 = vmatmul.mubr.f32.gmra.mrb[0].mxu0 %v4613
    %v4768 = vpop.f32.mrb[0].mxu0
    %v4769 = vadd.f32 0.0, %v4768
    %v4770 = vpop.f32.mrb[0].mxu0
    %4771 = vmatprep.mubr.f32.mxu0 0.0
    %4772 = vmatmul.mubr.f32.gmra.mrb[0].mxu0 %v4614
    %v4773 = vpop.f32.mrb[0].mxu0
    %v4774 = vadd.f32 0.0, %v4773
    %v4775 = vpop.f32.mrb[0].mxu0
    %4776 = vmatprep.mubr.f32.mxu0 0.0
    %4777 = vmatmul.mubr.f32.gmra.mrb[0].mxu0 %v4615
    %v4778 = vpop.f32.mrb[0].mxu0
    %v4779 = vadd.f32 0.0, %v4778
    %v4780 = vpop.f32.mrb[0].mxu0
    %4781 = vmatprep.mubr.f32.mxu0 0.0
    %4782 = vmatmul.mubr.f32.gmra.mrb[0].mxu0 %v4616
    %v4783 = vpop.f32.mrb[0].mxu0
    %v4784 = vadd.f32 0.0, %v4783
    %v4785 = vpop.f32.mrb[0].mxu0
    %4786 = vmatprep.mubr.f32.mxu0 0.0
    %4787 = vmatmul.mubr.f32.gmra.mrb[0].mxu0 %v4617
    %v4788 = vpop.f32.mrb[0].mxu0
    %v4789 = vadd.f32 0.0, %v4788
    %v4790 = vpop.f32.mrb[0].mxu0
    %4791 = vmatprep.mubr.f32.mxu0 0.0
    %4792 = vmatmul.mubr.f32.gmra.mrb[0].mxu0 %v4618
    %v4793 = vpop.f32.mrb[0].mxu0
    %v4794 = vadd.f32 0.0, %v4793
    %v4795 = vpop.f32.mrb[0].mxu0
    %4796 = vmatprep.mubr.f32.mxu0 0.0
    %4797 = vmatmul.mubr.f32.gmra.mrb[0].mxu0 %v4619
    %v4798 = vpop.f32.mrb[0].mxu0
    %v4799 = vadd.f32 0.0, %v4798
    %v4800 = vpop.f32.mrb[0].mxu0
    %4801 = vmatprep.mubr.f32.mxu0 0.0
    %4802 = vmatmul.mubr.f32.gmra.mrb[0].mxu0 %v4620
    %v4803 = vpop.f32.mrb[0].mxu0
    %v4804 = vadd.f32 0.0, %v4803
    %v4805 = vpop.f32.mrb[0].mxu0
    %4806 = vmatprep.mubr.f32.mxu0 0.0
    %4807 = vmatmul.mubr.f32.gmra.mrb[0].mxu0 %v4621
    %v4808 = vpop.f32.mrb[0].mxu0
    %v4809 = vadd.f32 0.0, %v4808
    %v4810 = vpop.f32.mrb[0].mxu0
    %4811 = vmatprep.mubr.f32.mxu0 0.0
    %4812 = vmatmul.mubr.f32.gmra.mrb[0].mxu0 %v4622
    %v4813 = vpop.f32.mrb[0].mxu0
    %v4814 = vadd.f32 0.0, %v4813
    %v4815 = vpop.f32.mrb[0].mxu0
    %4816 = vmatprep.mubr.f32.mxu0 0.0
    %4817 = vmatmul.mubr.f32.gmra.mrb[0].mxu0 %v4623
    %v4818 = vpop.f32.mrb[0].mxu0
    %v4819 = vadd.f32 0.0, %v4818
    %v4820 = vpop.f32.mrb[0].mxu0
    %4821 = vmatprep.mubr.f32.mxu0 0.0
    %4822 = vmatmul.mubr.f32.gmra.mrb[0].mxu0 %v4624
    %v4823 = vpop.f32.mrb[0].mxu0
    %v4824 = vadd.f32 0.0, %v4823
    %v4825 = vpop.f32.mrb[0].mxu0
    %4826 = vmatprep.mubr.f32.mxu0 0.0
    %4827 = vmatmul.mubr.f32.gmra.mrb[0].mxu0 %v4625
    %v4828 = vpop.f32.mrb[0].mxu0
    %v4829 = vadd.f32 0.0, %v4828
    %v4830 = vpop.f32.mrb[0].mxu0
    %4831 = vmatprep.mubr.f32.mxu0 0.0
    %4832 = vmatmul.mubr.f32.gmra.mrb[0].mxu0 %v4626
    %v4833 = vpop.f32.mrb[0].mxu0
    %v4834 = vadd.f32 0.0, %v4833
    %v4835 = vpop.f32.mrb[0].mxu0
    %4836 = vmatprep.mubr.f32.mxu0 0.0
    %4837 = vmatmul.mubr.f32.gmra.mrb[0].mxu0 %v4627
    %v4838 = vpop.f32.mrb[0].mxu0
    %v4839 = vadd.f32 0.0, %v4838
    %v4840 = vpop.f32.mrb[0].mxu0
    %4841 = vmatprep.mubr.f32.mxu0 0.0
    %4842 = vmatmul.mubr.f32.gmra.mrb[0].mxu0 %v4628
    %v4843 = vpop.f32.mrb[0].mxu0
    %v4844 = vadd.f32 0.0, %v4843
    %v4845 = vpop.f32.mrb[0].mxu0
    %4846 = vmatprep.mubr.f32.mxu0 0.0
    %4847 = vmatmul.mubr.f32.gmra.mrb[0].mxu0 %v4629
    %v4848 = vpop.f32.mrb[0].mxu0
    %v4849 = vadd.f32 0.0, %v4848
    %v4850 = vpop.f32.mrb[0].mxu0
    %4851 = vmatprep.mubr.f32.mxu0 0.0
    %4852 = vmatmul.mubr.f32.gmra.mrb[0].mxu0 %v4630
    %v4853 = vpop.f32.mrb[0].mxu0
    %v4854 = vadd.f32 0.0, %v4853
    %v4855 = vpop.f32.mrb[0].mxu0
    %4856 = vmatprep.mubr.f32.mxu0 0.0
    %4857 = vmatmul.mubr.f32.gmra.mrb[0].mxu0 %v4631
    %v4858 = vpop.f32.mrb[0].mxu0
    %v4859 = vadd.f32 0.0, %v4858
    %v4860 = vpop.f32.mrb[0].mxu0
    %4861 = vmatprep.mubr.f32.mxu0 0.0
    %4862 = vmatmul.mubr.f32.gmra.mrb[0].mxu0 %v4632
    %v4863 = vpop.f32.mrb[0].mxu0
    %v4864 = vadd.f32 0.0, %v4863
    %v4865 = vpop.f32.mrb[0].mxu0
    %4866 = vmatprep.mubr.f32.mxu0 0.0
    %4867 = vmatmul.mubr.f32.gmra.mrb[0].mxu0 %v4633
    %v4868 = vpop.f32.mrb[0].mxu0
    %v4869 = vadd.f32 0.0, %v4868
    %v4870 = vpop.f32.mrb[0].mxu0
    %4871 = vmatprep.mubr.f32.mxu0 0.0
    %4872 = vmatmul.mubr.f32.gmra.mrb[0].mxu0 %v4634
    %v4873 = vpop.f32.mrb[0].mxu0
    %v4874 = vadd.f32 0.0, %v4873
    %v4875 = vpop.f32.mrb[0].mxu0
    %4876 = vdwg.mxu0
    %v4877 = vadd.f32 %v4571, %v4719
    %v4878 = vadd.f32 %v4572, %v4724
    %v4879 = vadd.f32 %v4573, %v4729
    %v4880 = vadd.f32 %v4574, %v4734
    %v4881 = vadd.f32 %v4575, %v4739
    %v4882 = vadd.f32 %v4576, %v4744
    %v4883 = vadd.f32 %v4577, %v4749
    %v4884 = vadd.f32 %v4578, %v4754
    %v4885 = vadd.f32 %v4579, %v4759
    %v4886 = vadd.f32 %v4580, %v4764
    %v4887 = vadd.f32 %v4581, %v4769
    %v4888 = vadd.f32 %v4582, %v4774
    %v4889 = vadd.f32 %v4583, %v4779
    %v4890 = vadd.f32 %v4584, %v4784
    %v4891 = vadd.f32 %v4585, %v4789
    %v4892 = vadd.f32 %v4586, %v4794
    %v4893 = vadd.f32 %v4587, %v4799
    %v4894 = vadd.f32 %v4588, %v4804
    %v4895 = vadd.f32 %v4589, %v4809
    %v4896 = vadd.f32 %v4590, %v4814
    %v4897 = vadd.f32 %v4591, %v4819
    %v4898 = vadd.f32 %v4592, %v4824
    %v4899 = vadd.f32 %v4593, %v4829
    %v4900 = vadd.f32 %v4594, %v4834
    %v4901 = vadd.f32 %v4595, %v4839
    %v4902 = vadd.f32 %v4596, %v4844
    %v4903 = vadd.f32 %v4597, %v4849
    %v4904 = vadd.f32 %v4598, %v4854
    %v4905 = vadd.f32 %v4599, %v4859
    %v4906 = vadd.f32 %v4600, %v4864
    %v4907 = vadd.f32 %v4601, %v4869
    %v4908 = vadd.f32 %v4602, %v4874
    %v4909 = vld [vmem:[#allocation5 + $0x20] sm:$0xff]
    %v4910 = vld [vmem:[#allocation5 + $0x28] sm:$0xff]
    %v4911 = vld [vmem:[#allocation5 + $0x30] sm:$0xff]
    %v4912 = vld [vmem:[#allocation5 + $0x38] sm:$0xff]
    %v4913 = vld [vmem:[#allocation5 + $0x40] sm:$0xff]
    %v4914 = vld [vmem:[#allocation5 + $0x48] sm:$0xff]
    %v4915 = vld [vmem:[#allocation5 + $0x50] sm:$0xff]
    %v4916 = vld [vmem:[#allocation5 + $0x58] sm:$0xff]
    %v4917 = vld [vmem:[#allocation5 + $0x60] sm:$0xff]
    %v4918 = vld [vmem:[#allocation5 + $0x68] sm:$0xff]
    %v4919 = vld [vmem:[#allocation5 + $0x70] sm:$0xff]
    %v4920 = vld [vmem:[#allocation5 + $0x78] sm:$0xff]
    %v4921 = vld [vmem:[#allocation5 + $0x80] sm:$0xff]
    %v4922 = vld [vmem:[#allocation5 + $0x88] sm:$0xff]
    %v4923 = vld [vmem:[#allocation5 + $0x90] sm:$0xff]
    %v4924 = vld [vmem:[#allocation5 + $0x98] sm:$0xff]
    %v4925 = vld [vmem:[#allocation5 + $0xa0] sm:$0xff]
    %v4926 = vld [vmem:[#allocation5 + $0xa8] sm:$0xff]
    %v4927 = vld [vmem:[#allocation5 + $0xb0] sm:$0xff]
    %v4928 = vld [vmem:[#allocation5 + $0xb8] sm:$0xff]
    %v4929 = vld [vmem:[#allocation5 + $0xc0] sm:$0xff]
    %v4930 = vld [vmem:[#allocation5 + $0xc8] sm:$0xff]
    %v4931 = vld [vmem:[#allocation5 + $0xd0] sm:$0xff]
    %v4932 = vld [vmem:[#allocation5 + $0xd8] sm:$0xff]
    %v4933 = vld [vmem:[#allocation5 + $0xe0] sm:$0xff]
    %v4934 = vld [vmem:[#allocation5 + $0xe8] sm:$0xff]
    %v4935 = vld [vmem:[#allocation5 + $0xf0] sm:$0xff]
    %v4936 = vld [vmem:[#allocation5 + $0xf8] sm:$0xff]
    %v4937 = vld [vmem:[#allocation5 + $0x100] sm:$0xff]
    %v4938 = vld [vmem:[#allocation5 + $0x108] sm:$0xff]
    %v4939 = vld [vmem:[#allocation5 + $0x110] sm:$0xff]
    %v4940 = vld [vmem:[#allocation5 + $0x118] sm:$0xff]
    %s4941 = scalar_lea.vmem [#allocation19], 512
    %v4942 = vld [vmem:[%s4941] sm:$0xff]
    %v4943 = vld [vmem:[%s4941 + $0x8] sm:$0xff]
    %v4944 = vld [vmem:[%s4941 + $0x10] sm:$0xff]
    %v4945 = vld [vmem:[%s4941 + $0x18] sm:$0xff]
    %v4946 = vld [vmem:[%s4941 + $0x20] sm:$0xff]
    %v4947 = vld [vmem:[%s4941 + $0x28] sm:$0xff]
    %v4948 = vld [vmem:[%s4941 + $0x30] sm:$0xff]
    %v4949 = vld [vmem:[%s4941 + $0x38] sm:$0xff]
    %v4950 = vld [vmem:[%s4941 + $0x40] sm:$0xff]
    %v4951 = vld [vmem:[%s4941 + $0x48] sm:$0xff]
    %v4952 = vld [vmem:[%s4941 + $0x50] sm:$0xff]
    %v4953 = vld [vmem:[%s4941 + $0x58] sm:$0xff]
    %v4954 = vld [vmem:[%s4941 + $0x60] sm:$0xff]
    %v4955 = vld [vmem:[%s4941 + $0x68] sm:$0xff]
    %v4956 = vld [vmem:[%s4941 + $0x70] sm:$0xff]
    %v4957 = vld [vmem:[%s4941 + $0x78] sm:$0xff]
    %4958 = vmatprep.subr.mxu0 0.0
    %4959 = vmatpush1.msra.mxu0 %v4942
    %4960 = vmatprep.subr.mxu0 0.0
    %4961 = vmatpush1.msra.mxu0 %v4943
    %4962 = vmatprep.subr.mxu0 0.0
    %4963 = vmatpush1.msra.mxu0 %v4944
    %4964 = vmatprep.subr.mxu0 0.0
    %4965 = vmatpush1.msra.mxu0 %v4945
    %4966 = vmatprep.subr.mxu0 0.0
    %4967 = vmatpush1.msra.mxu0 %v4946
    %4968 = vmatprep.subr.mxu0 0.0
    %4969 = vmatpush1.msra.mxu0 %v4947
    %4970 = vmatprep.subr.mxu0 0.0
    %4971 = vmatpush1.msra.mxu0 %v4948
    %4972 = vmatprep.subr.mxu0 0.0
    %4973 = vmatpush1.msra.mxu0 %v4949
    %4974 = vmatprep.subr.mxu0 0.0
    %4975 = vmatpush1.msra.mxu0 %v4950
    %4976 = vmatprep.subr.mxu0 0.0
    %4977 = vmatpush1.msra.mxu0 %v4951
    %4978 = vmatprep.subr.mxu0 0.0
    %4979 = vmatpush1.msra.mxu0 %v4952
    %4980 = vmatprep.subr.mxu0 0.0
    %4981 = vmatpush1.msra.mxu0 %v4953
    %4982 = vmatprep.subr.mxu0 0.0
    %4983 = vmatpush1.msra.mxu0 %v4954
    %4984 = vmatprep.subr.mxu0 0.0
    %4985 = vmatpush1.msra.mxu0 %v4955
    %4986 = vmatprep.subr.mxu0 0.0
    %4987 = vmatpush1.msra.mxu0 %v4956
    %4988 = vmatprep.subr.mxu0 0.0
    %4989 = vmatpush1.msra.mxu0 %v4957
    %4990 = vmatprep.subr.mxu0 0.0
    %4991 = vmatpush1.msra.mxu0 0.0
    %4992 = vmatprep.subr.mxu0 0.0
    %4993 = vmatpush1.msra.mxu0 0.0
    %4994 = vmatprep.subr.mxu0 0.0
    %4995 = vmatpush1.msra.mxu0 0.0
    %4996 = vmatprep.subr.mxu0 0.0
    %4997 = vmatpush1.msra.mxu0 0.0
    %4998 = vmatprep.subr.mxu0 0.0
    %4999 = vmatpush1.msra.mxu0 0.0
    %5000 = vmatprep.subr.mxu0 0.0
    %5001 = vmatpush1.msra.mxu0 0.0
    %5002 = vmatprep.subr.mxu0 0.0
    %5003 = vmatpush1.msra.mxu0 0.0
    %5004 = vmatprep.subr.mxu0 0.0
    %5005 = vmatpush1.msra.mxu0 0.0
    %5006 = vmatprep.subr.mxu0 0.0
    %5007 = vmatpush1.msra.mxu0 0.0
    %5008 = vmatprep.subr.mxu0 0.0
    %5009 = vmatpush1.msra.mxu0 0.0
    %5010 = vmatprep.subr.mxu0 0.0
    %5011 = vmatpush1.msra.mxu0 0.0
    %5012 = vmatprep.subr.mxu0 0.0
    %5013 = vmatpush1.msra.mxu0 0.0
    %5014 = vmatprep.subr.mxu0 0.0
    %5015 = vmatpush1.msra.mxu0 0.0
    %5016 = vmatprep.subr.mxu0 0.0
    %5017 = vmatpush1.msra.mxu0 0.0
    %5018 = vmatprep.subr.mxu0 0.0
    %5019 = vmatpush1.msra.mxu0 0.0
    %5020 = vmatprep.subr.mxu0 0.0
    %5021 = vmatpush1.msra.mxu0 0.0
    %5022 = vmatprep.mubr.f32.mxu0 0.0
    %5023 = vmatmul.mubr.f32.gmra.mrb[0].mxu0 %v4909
    %v5024 = vpop.f32.mrb[0].mxu0
    %v5025 = vadd.f32 0.0, %v5024
    %v5026 = vpop.f32.mrb[0].mxu0
    %5027 = vmatprep.mubr.f32.mxu0 0.0
    %5028 = vmatmul.mubr.f32.gmra.mrb[0].mxu0 %v4910
    %v5029 = vpop.f32.mrb[0].mxu0
    %v5030 = vadd.f32 0.0, %v5029
    %v5031 = vpop.f32.mrb[0].mxu0
    %5032 = vmatprep.mubr.f32.mxu0 0.0
    %5033 = vmatmul.mubr.f32.gmra.mrb[0].mxu0 %v4911
    %v5034 = vpop.f32.mrb[0].mxu0
    %v5035 = vadd.f32 0.0, %v5034
    %v5036 = vpop.f32.mrb[0].mxu0
    %5037 = vmatprep.mubr.f32.mxu0 0.0
    %5038 = vmatmul.mubr.f32.gmra.mrb[0].mxu0 %v4912
    %v5039 = vpop.f32.mrb[0].mxu0
    %v5040 = vadd.f32 0.0, %v5039
    %v5041 = vpop.f32.mrb[0].mxu0
    %5042 = vmatprep.mubr.f32.mxu0 0.0
    %5043 = vmatmul.mubr.f32.gmra.mrb[0].mxu0 %v4913
    %v5044 = vpop.f32.mrb[0].mxu0
    %v5045 = vadd.f32 0.0, %v5044
    %v5046 = vpop.f32.mrb[0].mxu0
    %5047 = vmatprep.mubr.f32.mxu0 0.0
    %5048 = vmatmul.mubr.f32.gmra.mrb[0].mxu0 %v4914
    %v5049 = vpop.f32.mrb[0].mxu0
    %v5050 = vadd.f32 0.0, %v5049
    %v5051 = vpop.f32.mrb[0].mxu0
    %5052 = vmatprep.mubr.f32.mxu0 0.0
    %5053 = vmatmul.mubr.f32.gmra.mrb[0].mxu0 %v4915
    %v5054 = vpop.f32.mrb[0].mxu0
    %v5055 = vadd.f32 0.0, %v5054
    %v5056 = vpop.f32.mrb[0].mxu0
    %5057 = vmatprep.mubr.f32.mxu0 0.0
    %5058 = vmatmul.mubr.f32.gmra.mrb[0].mxu0 %v4916
    %v5059 = vpop.f32.mrb[0].mxu0
    %v5060 = vadd.f32 0.0, %v5059
    %v5061 = vpop.f32.mrb[0].mxu0
    %5062 = vmatprep.mubr.f32.mxu0 0.0
    %5063 = vmatmul.mubr.f32.gmra.mrb[0].mxu0 %v4917
    %v5064 = vpop.f32.mrb[0].mxu0
    %v5065 = vadd.f32 0.0, %v5064
    %v5066 = vpop.f32.mrb[0].mxu0
    %5067 = vmatprep.mubr.f32.mxu0 0.0
    %5068 = vmatmul.mubr.f32.gmra.mrb[0].mxu0 %v4918
    %v5069 = vpop.f32.mrb[0].mxu0
    %v5070 = vadd.f32 0.0, %v5069
    %v5071 = vpop.f32.mrb[0].mxu0
    %5072 = vmatprep.mubr.f32.mxu0 0.0
    %5073 = vmatmul.mubr.f32.gmra.mrb[0].mxu0 %v4919
    %v5074 = vpop.f32.mrb[0].mxu0
    %v5075 = vadd.f32 0.0, %v5074
    %v5076 = vpop.f32.mrb[0].mxu0
    %5077 = vmatprep.mubr.f32.mxu0 0.0
    %5078 = vmatmul.mubr.f32.gmra.mrb[0].mxu0 %v4920
    %v5079 = vpop.f32.mrb[0].mxu0
    %v5080 = vadd.f32 0.0, %v5079
    %v5081 = vpop.f32.mrb[0].mxu0
    %5082 = vmatprep.mubr.f32.mxu0 0.0
    %5083 = vmatmul.mubr.f32.gmra.mrb[0].mxu0 %v4921
    %v5084 = vpop.f32.mrb[0].mxu0
    %v5085 = vadd.f32 0.0, %v5084
    %v5086 = vpop.f32.mrb[0].mxu0
    %5087 = vmatprep.mubr.f32.mxu0 0.0
    %5088 = vmatmul.mubr.f32.gmra.mrb[0].mxu0 %v4922
    %v5089 = vpop.f32.mrb[0].mxu0
    %v5090 = vadd.f32 0.0, %v5089
    %v5091 = vpop.f32.mrb[0].mxu0
    %5092 = vmatprep.mubr.f32.mxu0 0.0
    %5093 = vmatmul.mubr.f32.gmra.mrb[0].mxu0 %v4923
    %v5094 = vpop.f32.mrb[0].mxu0
    %v5095 = vadd.f32 0.0, %v5094
    %v5096 = vpop.f32.mrb[0].mxu0
    %5097 = vmatprep.mubr.f32.mxu0 0.0
    %5098 = vmatmul.mubr.f32.gmra.mrb[0].mxu0 %v4924
    %v5099 = vpop.f32.mrb[0].mxu0
    %v5100 = vadd.f32 0.0, %v5099
    %v5101 = vpop.f32.mrb[0].mxu0
    %5102 = vmatprep.mubr.f32.mxu0 0.0
    %5103 = vmatmul.mubr.f32.gmra.mrb[0].mxu0 %v4925
    %v5104 = vpop.f32.mrb[0].mxu0
    %v5105 = vadd.f32 0.0, %v5104
    %v5106 = vpop.f32.mrb[0].mxu0
    %5107 = vmatprep.mubr.f32.mxu0 0.0
    %5108 = vmatmul.mubr.f32.gmra.mrb[0].mxu0 %v4926
    %v5109 = vpop.f32.mrb[0].mxu0
    %v5110 = vadd.f32 0.0, %v5109
    %v5111 = vpop.f32.mrb[0].mxu0
    %5112 = vmatprep.mubr.f32.mxu0 0.0
    %5113 = vmatmul.mubr.f32.gmra.mrb[0].mxu0 %v4927
    %v5114 = vpop.f32.mrb[0].mxu0
    %v5115 = vadd.f32 0.0, %v5114
    %v5116 = vpop.f32.mrb[0].mxu0
    %5117 = vmatprep.mubr.f32.mxu0 0.0
    %5118 = vmatmul.mubr.f32.gmra.mrb[0].mxu0 %v4928
    %v5119 = vpop.f32.mrb[0].mxu0
    %v5120 = vadd.f32 0.0, %v5119
    %v5121 = vpop.f32.mrb[0].mxu0
    %5122 = vmatprep.mubr.f32.mxu0 0.0
    %5123 = vmatmul.mubr.f32.gmra.mrb[0].mxu0 %v4929
    %v5124 = vpop.f32.mrb[0].mxu0
    %v5125 = vadd.f32 0.0, %v5124
    %v5126 = vpop.f32.mrb[0].mxu0
    %5127 = vmatprep.mubr.f32.mxu0 0.0
    %5128 = vmatmul.mubr.f32.gmra.mrb[0].mxu0 %v4930
    %v5129 = vpop.f32.mrb[0].mxu0
    %v5130 = vadd.f32 0.0, %v5129
    %v5131 = vpop.f32.mrb[0].mxu0
    %5132 = vmatprep.mubr.f32.mxu0 0.0
    %5133 = vmatmul.mubr.f32.gmra.mrb[0].mxu0 %v4931
    %v5134 = vpop.f32.mrb[0].mxu0
    %v5135 = vadd.f32 0.0, %v5134
    %v5136 = vpop.f32.mrb[0].mxu0
    %5137 = vmatprep.mubr.f32.mxu0 0.0
    %5138 = vmatmul.mubr.f32.gmra.mrb[0].mxu0 %v4932
    %v5139 = vpop.f32.mrb[0].mxu0
    %v5140 = vadd.f32 0.0, %v5139
    %v5141 = vpop.f32.mrb[0].mxu0
    %5142 = vmatprep.mubr.f32.mxu0 0.0
    %5143 = vmatmul.mubr.f32.gmra.mrb[0].mxu0 %v4933
    %v5144 = vpop.f32.mrb[0].mxu0
    %v5145 = vadd.f32 0.0, %v5144
    %v5146 = vpop.f32.mrb[0].mxu0
    %5147 = vmatprep.mubr.f32.mxu0 0.0
    %5148 = vmatmul.mubr.f32.gmra.mrb[0].mxu0 %v4934
    %v5149 = vpop.f32.mrb[0].mxu0
    %v5150 = vadd.f32 0.0, %v5149
    %v5151 = vpop.f32.mrb[0].mxu0
    %5152 = vmatprep.mubr.f32.mxu0 0.0
    %5153 = vmatmul.mubr.f32.gmra.mrb[0].mxu0 %v4935
    %v5154 = vpop.f32.mrb[0].mxu0
    %v5155 = vadd.f32 0.0, %v5154
    %v5156 = vpop.f32.mrb[0].mxu0
    %5157 = vmatprep.mubr.f32.mxu0 0.0
    %5158 = vmatmul.mubr.f32.gmra.mrb[0].mxu0 %v4936
    %v5159 = vpop.f32.mrb[0].mxu0
    %v5160 = vadd.f32 0.0, %v5159
    %v5161 = vpop.f32.mrb[0].mxu0
    %5162 = vmatprep.mubr.f32.mxu0 0.0
    %5163 = vmatmul.mubr.f32.gmra.mrb[0].mxu0 %v4937
    %v5164 = vpop.f32.mrb[0].mxu0
    %v5165 = vadd.f32 0.0, %v5164
    %v5166 = vpop.f32.mrb[0].mxu0
    %5167 = vmatprep.mubr.f32.mxu0 0.0
    %5168 = vmatmul.mubr.f32.gmra.mrb[0].mxu0 %v4938
    %v5169 = vpop.f32.mrb[0].mxu0
    %v5170 = vadd.f32 0.0, %v5169
    %v5171 = vpop.f32.mrb[0].mxu0
    %5172 = vmatprep.mubr.f32.mxu0 0.0
    %5173 = vmatmul.mubr.f32.gmra.mrb[0].mxu0 %v4939
    %v5174 = vpop.f32.mrb[0].mxu0
    %v5175 = vadd.f32 0.0, %v5174
    %v5176 = vpop.f32.mrb[0].mxu0
    %5177 = vmatprep.mubr.f32.mxu0 0.0
    %5178 = vmatmul.mubr.f32.gmra.mrb[0].mxu0 %v4940
    %v5179 = vpop.f32.mrb[0].mxu0
    %v5180 = vadd.f32 0.0, %v5179
    %v5181 = vpop.f32.mrb[0].mxu0
    %5182 = vdwg.mxu0
    %v5183 = vadd.f32 %v4877, %v5025
    %v5184 = vadd.f32 %v4878, %v5030
    %v5185 = vadd.f32 %v4879, %v5035
    %v5186 = vadd.f32 %v4880, %v5040
    %v5187 = vadd.f32 %v4881, %v5045
    %v5188 = vadd.f32 %v4882, %v5050
    %v5189 = vadd.f32 %v4883, %v5055
    %v5190 = vadd.f32 %v4884, %v5060
    %v5191 = vadd.f32 %v4885, %v5065
    %v5192 = vadd.f32 %v4886, %v5070
    %v5193 = vadd.f32 %v4887, %v5075
    %v5194 = vadd.f32 %v4888, %v5080
    %v5195 = vadd.f32 %v4889, %v5085
    %v5196 = vadd.f32 %v4890, %v5090
    %v5197 = vadd.f32 %v4891, %v5095
    %v5198 = vadd.f32 %v4892, %v5100
    %v5199 = vadd.f32 %v4893, %v5105
    %v5200 = vadd.f32 %v4894, %v5110
    %v5201 = vadd.f32 %v4895, %v5115
    %v5202 = vadd.f32 %v4896, %v5120
    %v5203 = vadd.f32 %v4897, %v5125
    %v5204 = vadd.f32 %v4898, %v5130
    %v5205 = vadd.f32 %v4899, %v5135
    %v5206 = vadd.f32 %v4900, %v5140
    %v5207 = vadd.f32 %v4901, %v5145
    %v5208 = vadd.f32 %v4902, %v5150
    %v5209 = vadd.f32 %v4903, %v5155
    %v5210 = vadd.f32 %v4904, %v5160
    %v5211 = vadd.f32 %v4905, %v5165
    %v5212 = vadd.f32 %v4906, %v5170
    %v5213 = vadd.f32 %v4907, %v5175
    %v5214 = vadd.f32 %v4908, %v5180
    %v5215 = vld [vmem:[#allocation20] sm:$0x1]
    %v5217 = vlaneseq
    %v5218 = vshrl.u32 %v5217, 7
    %v5219 = vsub.s32 0, %v5218
    %v5220 = vrot.slane %v5215, %v5219
    %v5222 = vadd.f32 %v5183, %v5220
    %v5223 = vadd.f32 %v5184, %v5220
    %v5224 = vadd.f32 %v5185, %v5220
    %v5225 = vadd.f32 %v5186, %v5220
    %v5226 = vadd.f32 %v5187, %v5220
    %v5227 = vadd.f32 %v5188, %v5220
    %v5228 = vadd.f32 %v5189, %v5220
    %v5229 = vadd.f32 %v5190, %v5220
    %v5230 = vadd.f32 %v5191, %v5220
    %v5231 = vadd.f32 %v5192, %v5220
    %v5232 = vadd.f32 %v5193, %v5220
    %v5233 = vadd.f32 %v5194, %v5220
    %v5234 = vadd.f32 %v5195, %v5220
    %v5235 = vadd.f32 %v5196, %v5220
    %v5236 = vadd.f32 %v5197, %v5220
    %v5237 = vadd.f32 %v5198, %v5220
    %v5238 = vadd.f32 %v5199, %v5220
    %v5239 = vadd.f32 %v5200, %v5220
    %v5240 = vadd.f32 %v5201, %v5220
    %v5241 = vadd.f32 %v5202, %v5220
    %v5242 = vadd.f32 %v5203, %v5220
    %v5243 = vadd.f32 %v5204, %v5220
    %v5244 = vadd.f32 %v5205, %v5220
    %v5245 = vadd.f32 %v5206, %v5220
    %v5246 = vadd.f32 %v5207, %v5220
    %v5247 = vadd.f32 %v5208, %v5220
    %v5248 = vadd.f32 %v5209, %v5220
    %v5249 = vadd.f32 %v5210, %v5220
    %v5250 = vadd.f32 %v5211, %v5220
    %v5251 = vadd.f32 %v5212, %v5220
    %v5252 = vadd.f32 %v5213, %v5220
    %v5253 = vadd.f32 %v5214, %v5220
    %5254 = vst [vmem:[%s11] sm:$0xff] %v5222
    %5255 = vst [vmem:[%s11 + $0x8] sm:$0xff] %v5223
    %5256 = vst [vmem:[%s11 + $0x10] sm:$0xff] %v5224
    %5257 = vst [vmem:[%s11 + $0x18] sm:$0xff] %v5225
    %5258 = vst [vmem:[%s11 + $0x20] sm:$0xff] %v5226
    %5259 = vst [vmem:[%s11 + $0x28] sm:$0xff] %v5227
    %5260 = vst [vmem:[%s11 + $0x30] sm:$0xff] %v5228
    %5261 = vst [vmem:[%s11 + $0x38] sm:$0xff] %v5229
    %5262 = vst [vmem:[%s11 + $0x40] sm:$0xff] %v5230
    %5263 = vst [vmem:[%s11 + $0x48] sm:$0xff] %v5231
    %5264 = vst [vmem:[%s11 + $0x50] sm:$0xff] %v5232
    %5265 = vst [vmem:[%s11 + $0x58] sm:$0xff] %v5233
    %5266 = vst [vmem:[%s11 + $0x60] sm:$0xff] %v5234
    %5267 = vst [vmem:[%s11 + $0x68] sm:$0xff] %v5235
    %5268 = vst [vmem:[%s11 + $0x70] sm:$0xff] %v5236
    %5269 = vst [vmem:[%s11 + $0x78] sm:$0xff] %v5237
    %5270 = vst [vmem:[%s11 + $0x80] sm:$0xff] %v5238
    %5271 = vst [vmem:[%s11 + $0x88] sm:$0xff] %v5239
    %5272 = vst [vmem:[%s11 + $0x90] sm:$0xff] %v5240
    %5273 = vst [vmem:[%s11 + $0x98] sm:$0xff] %v5241
    %5274 = vst [vmem:[%s11 + $0xa0] sm:$0xff] %v5242
    %5275 = vst [vmem:[%s11 + $0xa8] sm:$0xff] %v5243
    %5276 = vst [vmem:[%s11 + $0xb0] sm:$0xff] %v5244
    %5277 = vst [vmem:[%s11 + $0xb8] sm:$0xff] %v5245
    %5278 = vst [vmem:[%s11 + $0xc0] sm:$0xff] %v5246
    %5279 = vst [vmem:[%s11 + $0xc8] sm:$0xff] %v5247
    %5280 = vst [vmem:[%s11 + $0xd0] sm:$0xff] %v5248
    %5281 = vst [vmem:[%s11 + $0xd8] sm:$0xff] %v5249
    %5282 = vst [vmem:[%s11 + $0xe0] sm:$0xff] %v5250
    %5283 = vst [vmem:[%s11 + $0xe8] sm:$0xff] %v5251
    %5284 = vst [vmem:[%s11 + $0xf0] sm:$0xff] %v5252
    %5285 = vst [vmem:[%s11 + $0xf8] sm:$0xff] %v5253
    // Predicated region
    $region86: #{_lambda_.1} parent=1 // pred_check
      _
    $region87: #{_lambda_.1} parent=1 // pred_check_branch
      %5287 = sbr.rel (0) target = $region89
    $region88: #{_lambda_.1} parent=1 // pred_region
      _
    $region89: #{_lambda_.1} parent=1 // pred_fallthru
      _
    // Predicated region
    $region90: #{_lambda_.1} parent=1 // pred_check
      _
    $region91: #{_lambda_.1} parent=1 // pred_check_branch
      %5289 = sbr.rel (0) target = $region93
    $region92: #{_lambda_.1} parent=1 // pred_region
      _
    $region93: #{_lambda_.1} parent=1 // pred_fallthru
      _
    %5290 = vsyncpa [#allocation7], 1
    %5291 = vsyncpa [#allocation9], 1
    %5292 = vsyncpa [#allocation12], 1
    %5293 = vsyncpa [#allocation15], 1
    %5294 = vsyncpa [#allocation18], 1
    %5295 = vsyncpa [#allocation21], 1

</llo_original>
